<compile_context>
chip_gen: v6e
topology: v6e:2x2x1
jax: 0.10.0
libtpu: 0.0.40
codegen_flags: <defaults>
</compile_context>

<pallas_src>
import functools

import jax
import jax.numpy as jnp
from jax.experimental import pallas as pl
from jax.experimental.pallas import tpu as pltpu


# ----------------------------------------------------------------------------
# Kernel 1: fused grouped 3x3 + 5x5 conv (25 per-tap MXU matmuls from a halo
# tile) -> U = [U1 | U2] (bf16, lane-dense), plus streamed GAP partial sums.
# ----------------------------------------------------------------------------
def u_gap_kernel(x_ref, wtap_ref, bias_ref, u_ref, gap_ref, acc_ref,
                 *, tile_h, W, Cin, C2):
    t = pl.program_id(1)
    rows = tile_h * W
    row0 = t * tile_h

    acc_ref[...] = jnp.zeros_like(acc_ref)
    # 5x5 tap window; 3x3 weights sit in taps (1..3, 1..3) of the left Cout
    # block of wtap, 5x5 weights in the right block (zeros elsewhere).
    for ky in range(5):
        for kx in range(5):
            patch = x_ref[0, pl.ds(row0 + ky, tile_h), pl.ds(kx, W), :]
            patch = patch.reshape(rows, Cin)                       # bf16
            acc_ref[...] += jnp.dot(patch, wtap_ref[ky * 5 + kx],
                                    preferred_element_type=jnp.float32)

    u = acc_ref[...] + bias_ref[...]                               # (rows, 2C) f32
    u_ref[...] = u.astype(u_ref.dtype)                             # bf16 store

    # GAP partial sums, accumulated across row tiles of this batch element.
    @pl.when(t == 0)
    def _():
        gap_ref[...] = jnp.zeros_like(gap_ref)
    gsum = jnp.sum(u, axis=0, keepdims=True)                       # (1, 2C)
    gap_ref[...] += jnp.broadcast_to(gsum[None, :, :], gap_ref.shape)


# ----------------------------------------------------------------------------
# Kernel 2: per-batch FC -> ReLU -> FC -> softmax on the GAP, then apply the
# branch attention to each U tile: V = U1*z1 + U2*z2.
# ----------------------------------------------------------------------------
def apply_kernel(u_ref, gap_ref, fc1w_ref, fc1b_ref, fc2w_ref, fc2b_ref,
                 v_ref, *, C, inv_hw):
    g = gap_ref[0, 0:1, :]                                         # (1, 2C) sums
    s = (g[:, :C] + g[:, C:]) * inv_hw                             # GAP of U1+U2
    h = jnp.dot(s, fc1w_ref[...],
                preferred_element_type=jnp.float32) + fc1b_ref[...]
    h = jnp.maximum(h, 0.0)
    logits = jnp.dot(h, fc2w_ref[...],
                     preferred_element_type=jnp.float32) + fc2b_ref[...]
    m = jnp.max(logits, axis=1, keepdims=True)
    e = jnp.exp(logits - m)
    # Softmax over the full M*C axis (matches torch nn.Softmax(dim=1) pre-view).
    z = e * pl.reciprocal(jnp.sum(e, axis=1, keepdims=True), approx=True)

    u = u_ref[...].astype(jnp.float32)                             # (rows, 2C)
    v = u[:, :C] * z[:, :C] + u[:, C:] * z[:, C:]
    v_ref[...] = v.astype(v_ref.dtype)


# ----------------------------------------------------------------------------
# One-time weight re-layout (hoisted out of the per-call path).
# ----------------------------------------------------------------------------
def _grouped_to_dense_taps(w, G):
    """Torch grouped weight (Cout, Cin//G, K, K) -> dense block-diagonal
    per-tap matrices (K*K, Cin, Cout)."""
    Cout, cinpg, K, _ = w.shape
    coutpg = Cout // G
    Cin = cinpg * G
    wr = w.reshape(G, coutpg, cinpg, K, K)
    wt = jnp.transpose(wr, (3, 4, 0, 2, 1))            # (K, K, G, cinpg, coutpg)
    eye = jnp.eye(G, dtype=w.dtype)
    dense = jnp.einsum('xygio,gh->xygiho', wt, eye)    # block-diag over groups
    return dense.reshape(K * K, Cin, Cout)


def prepare_params(params, *, M=2, G=32, r=16):
    assert M == 2, "kernel is specialized for M=2 (3x3 + 5x5 branches)"
    Cout = params["b3"].shape[0]
    Cin = params["w3"].shape[1] * G

    taps5 = _grouped_to_dense_taps(params["w5"], G)    # (25, Cin, Cout)
    taps3 = _grouped_to_dense_taps(params["w3"], G)    # (9,  Cin, Cout)
    taps3_full = jnp.zeros((25, Cin, Cout), taps3.dtype)
    pos = jnp.array([(a + 1) * 5 + (b + 1) for a in range(3) for b in range(3)])
    taps3_full = taps3_full.at[pos].set(taps3)
    # Fused per-tap weight: left Cout block -> 3x3 branch, right -> 5x5 branch.
    wtap = jnp.concatenate([taps3_full, taps5], axis=-1).astype(jnp.bfloat16)

    return {
        "wtap": wtap,                                                # (25, Cin, 2C) bf16
        "bias": jnp.concatenate([params["b3"], params["b5"]]
                                ).reshape(1, 2 * Cout).astype(jnp.float32),
        "fc1w": params["fc1w"].T.astype(jnp.float32),                # (C, C//r)
        "fc1b": params["fc1b"].reshape(1, -1).astype(jnp.float32),
        "fc2w": params["fc2w"].T.astype(jnp.float32),                # (C//r, 2C)
        "fc2b": params["fc2b"].reshape(1, -1).astype(jnp.float32),
        "Cin": Cin,
        "Cout": Cout,
    }


def _pick_tile_h(H, W, target_rows):
    cands = [th for th in range(1, H + 1)
             if H % th == 0 and (th * W) % 8 == 0 and th * W <= target_rows]
    if cands:
        return max(cands)
    # TODO(synk): pad N to a multiple of 8 when no divisor of H gives 8-aligned
    # row tiles; typical conv feature maps never hit this.
    return H


# ----------------------------------------------------------------------------
# Forward wrapper.
# ----------------------------------------------------------------------------
def skconv_forward(x_nchw, prep, *, rows_per_tile=1024):
    B, Cin, H, W = x_nchw.shape
    assert Cin == prep["Cin"]
    Cout = prep["Cout"]
    C2 = 2 * Cout
    HW = H * W
    N = B * HW

    tile_h = _pick_tile_h(H, W, rows_per_tile)
    n_t = H // tile_h
    rows = tile_h * W

    # Channels-last + 2px zero halo (covers both padding=1 and padding=2);
    # bf16 for the streamed MXU operand.
    x_nhwc = jnp.transpose(x_nchw, (0, 2, 3, 1))
    xp = jnp.pad(x_nhwc, ((0, 0), (2, 2), (2, 2), (0, 0))).astype(jnp.bfloat16)
    Hp, Wp = H + 4, W + 4

    cparams1 = pltpu.CompilerParams(
        dimension_semantics=("parallel", "arbitrary"),
        vmem_limit_bytes=32 * 1024 * 1024,
    )
    u_flat, gap = pl.pallas_call(
        functools.partial(u_gap_kernel, tile_h=tile_h, W=W, Cin=Cin, C2=C2),
        grid=(B, n_t),
        in_specs=[
            pl.BlockSpec((1, Hp, Wp, Cin), lambda b, t: (b, 0, 0, 0)),
            pl.BlockSpec((25, Cin, C2), lambda b, t: (0, 0, 0)),
            pl.BlockSpec((1, C2), lambda b, t: (0, 0)),
        ],
        out_specs=[
            pl.BlockSpec((rows, C2), lambda b, t: (b * n_t + t, 0)),
            pl.BlockSpec((1, 8, C2), lambda b, t: (b, 0, 0)),
        ],
        out_shape=[
            jax.ShapeDtypeStruct((N, C2), jnp.bfloat16),
            jax.ShapeDtypeStruct((B, 8, C2), jnp.float32),
        ],
        scratch_shapes=[pltpu.VMEM((rows, C2), jnp.float32)],
        compiler_params=cparams1,
    )(xp, prep["wtap"], prep["bias"])

    cparams2 = pltpu.CompilerParams(
        dimension_semantics=("parallel", "parallel"),
        vmem_limit_bytes=32 * 1024 * 1024,
    )
    v_flat = pl.pallas_call(
        functools.partial(apply_kernel, C=Cout, inv_hw=1.0 / HW),
        grid=(B, n_t),
        in_specs=[
            pl.BlockSpec((rows, C2), lambda b, t: (b * n_t + t, 0)),
            pl.BlockSpec((1, 8, C2), lambda b, t: (b, 0, 0)),
            pl.BlockSpec(prep["fc1w"].shape, lambda b, t: (0, 0)),
            pl.BlockSpec(prep["fc1b"].shape, lambda b, t: (0, 0)),
            pl.BlockSpec(prep["fc2w"].shape, lambda b, t: (0, 0)),
            pl.BlockSpec(prep["fc2b"].shape, lambda b, t: (0, 0)),
        ],
        out_specs=pl.BlockSpec((rows, Cout), lambda b, t: (b * n_t + t, 0)),
        out_shape=jax.ShapeDtypeStruct((N, Cout), jnp.float32),
        compiler_params=cparams2,
    )(u_flat, gap, prep["fc1w"], prep["fc1b"], prep["fc2w"], prep["fc2b"])

    v_nhwc = v_flat.reshape(B, H, W, Cout)
    return jnp.transpose(v_nhwc, (0, 3, 1, 2))          # back to NCHW


# ----------------------------------------------------------------------------
# Pure-JAX reference (mirrors the PyTorch forward) for a sanity check.
# ----------------------------------------------------------------------------
def skconv_reference(x, params, *, M=2, G=32, r=16):
    dn = ("NCHW", "OIHW", "NCHW")
    u1 = jax.lax.conv_general_dilated(x, params["w3"], (1, 1), "SAME",
                                      dimension_numbers=dn,
                                      feature_group_count=G)
    u1 = u1 + params["b3"][None, :, None, None]
    u2 = jax.lax.conv_general_dilated(x, params["w5"], (1, 1), "SAME",
                                      dimension_numbers=dn,
                                      feature_group_count=G)
    u2 = u2 + params["b5"][None, :, None, None]
    s = jnp.mean(u1 + u2, axis=(2, 3))
    h = jnp.maximum(s @ params["fc1w"].T + params["fc1b"], 0.0)
    logits = h @ params["fc2w"].T + params["fc2b"]
    z = jax.nn.softmax(logits, axis=1)
    B = x.shape[0]
    Cout = params["b3"].shape[0]
    zr = z.reshape(B, M, Cout)
    return u1 * zr[:, 0][:, :, None, None] + u2 * zr[:, 1][:, :, None, None]


def make_params(key, in_channels, out_channels, M=2, G=32, r=16):
    ks = jax.random.split(key, 8)
    cinpg = in_channels // G
    hid = out_channels // r
    scale = 0.1
    return {
        "w3": scale * jax.random.normal(ks[0], (out_channels, cinpg, 3, 3), jnp.float32),
        "b3": scale * jax.random.normal(ks[1], (out_channels,), jnp.float32),
        "w5": scale * jax.random.normal(ks[2], (out_channels, cinpg, 5, 5), jnp.float32),
        "b5": scale * jax.random.normal(ks[3], (out_channels,), jnp.float32),
        "fc1w": scale * jax.random.normal(ks[4], (hid, out_channels), jnp.float32),
        "fc1b": scale * jax.random.normal(ks[5], (hid,), jnp.float32),
        "fc2w": scale * jax.random.normal(ks[6], (out_channels * M, hid), jnp.float32),
        "fc2b": scale * jax.random.normal(ks[7], (out_channels * M,), jnp.float32),
    }


if __name__ == "__main__":
    # Channels divisible by G=32 and r=16 -> C=64; spatial 16x16 so the demo
    # exercises multi-tile row grids and the GAP accumulator.
    B, Cin, Cout, H, W = 2, 64, 64, 16, 16
    M, G, r = 2, 32, 16

    key = jax.random.PRNGKey(0)
    kx, kp = jax.random.split(key)
    x = jax.random.normal(kx, (B, Cin, H, W), jnp.float32)
    params = make_params(kp, Cin, Cout, M=M, G=G, r=r)

    prep = prepare_params(params, M=M, G=G, r=r)       # one-time weight relayout
    # Small rows_per_tile so the toy shapes still run a (B, 2)-tile grid;
    # production shapes use the default (~1024 rows per tile).
    out = skconv_forward(x, prep, rows_per_tile=128)
    out = jax.block_until_ready(out)

    ref = jax.block_until_ready(skconv_reference(x, params, M=M, G=G, r=r))
    assert out.shape == (B, Cout, H, W)
    assert jnp.allclose(out, ref, rtol=5e-2, atol=5e-2), float(
        jnp.max(jnp.abs(out - ref)))

    print("KERNEL_OK")
</pallas_src>

<mosaic_0001>
module attributes {stable_mosaic.version = 11 : i64} {
  func.func @u_gap_kernel(%arg0: i32, %arg1: i32, %arg2: memref<1x20x20x64xbf16, #tpu.memory_space<vmem>>, %arg3: memref<25x64x128xbf16, #tpu.memory_space<vmem>>, %arg4: memref<1x128xf32, #tpu.memory_space<vmem>>, %arg5: memref<128x128xbf16, #tpu.memory_space<vmem>>, %arg6: memref<1x8x128xf32, #tpu.memory_space<vmem>>, %arg7: memref<128x128xf32, #tpu.memory_space<vmem>>) attributes {dimension_semantics = [#tpu.dimension_semantics<parallel>, #tpu.dimension_semantics<arbitrary>], iteration_bounds = array<i64: 2, 2>, scalar_prefetch = 0 : i64, scratch_operands = 1 : i64, tpu.core_type = #tpu.core_type<tc>, window_params = [{transform_indices = @transform_0, window_bounds = array<i64: 1, 20, 20, 64>}, {pipeline_mode = #tpu.pipeline_mode<synchronous>, transform_indices = @transform_1, window_bounds = array<i64: 25, 64, 128>}, {pipeline_mode = #tpu.pipeline_mode<synchronous>, transform_indices = @transform_2, window_bounds = array<i64: 1, 128>}, {transform_indices = @transform_3, window_bounds = array<i64: 128, 128>}, {transform_indices = @transform_4, window_bounds = array<i64: 1, 8, 128>}]} {
    %c8_i32 = arith.constant 8 : i32
    %0 = arith.muli %arg1, %c8_i32 : i32
    %cst = arith.constant 0.000000e+00 : f32
    %1 = vector.broadcast %cst : f32 to vector<128x128xf32>
    %c0 = arith.constant 0 : index
    %c0_0 = arith.constant 0 : index
    %2 = vector.load %arg7[%c0, %c0_0] : memref<128x128xf32, #tpu.memory_space<vmem>>, vector<128x128xf32>
    tpu.vector_store %arg7[%c0, %c0_0], %1 {strides = array<i32>} : memref<128x128xf32, #tpu.memory_space<vmem>>, vector<128x128xf32>,
    %c0_i32 = arith.constant 0 : i32
    %3 = arith.addi %0, %c0_i32 : i32
    %c0_1 = arith.constant 0 : index
    %4 = arith.index_cast %3 : i32 to index
    %c0_2 = arith.constant 0 : index
    %c0_3 = arith.constant 0 : index
    %5 = vector.load %arg2[%c0_1, %4, %c0_2, %c0_3] : memref<1x20x20x64xbf16, #tpu.memory_space<vmem>>, vector<1x8x16x64xbf16>
    %6 = vector.shape_cast %5 : vector<1x8x16x64xbf16> to vector<8x16x64xbf16>
    %7 = vector.shape_cast %6 : vector<8x16x64xbf16> to vector<128x64xbf16>
    %c0_4 = arith.constant 0 : index
    %c0_5 = arith.constant 0 : index
    %8 = vector.load %arg7[%c0_4, %c0_5] : memref<128x128xf32, #tpu.memory_space<vmem>>, vector<128x128xf32>
    %c0_6 = arith.constant 0 : index
    %c0_7 = arith.constant 0 : index
    %c0_8 = arith.constant 0 : index
    %9 = vector.load %arg3[%c0_6, %c0_7, %c0_8] : memref<25x64x128xbf16, #tpu.memory_space<vmem>>, vector<1x64x128xbf16>
    %10 = vector.shape_cast %9 : vector<1x64x128xbf16> to vector<64x128xbf16>
    %cst_9 = arith.constant dense<0.000000e+00> : vector<128x128xf32>
    %11 = tpu.matmul %7, %10, %cst_9 {dimension_numbers = #tpu.dot_dimension_numbers<[1], [0], [0], [1], [0, 0, 1, 1], [], []>} : vector<128x64xbf16>, vector<64x128xbf16>, vector<128x128xf32> -> vector<128x128xf32>
    %12 = arith.addf %8, %11 : vector<128x128xf32>
    %c0_10 = arith.constant 0 : index
    %c0_11 = arith.constant 0 : index
    %13 = vector.load %arg7[%c0_10, %c0_11] : memref<128x128xf32, #tpu.memory_space<vmem>>, vector<128x128xf32>
    tpu.vector_store %arg7[%c0_10, %c0_11], %12 {strides = array<i32>} : memref<128x128xf32, #tpu.memory_space<vmem>>, vector<128x128xf32>,
    %c0_i32_12 = arith.constant 0 : i32
    %14 = arith.addi %0, %c0_i32_12 : i32
    %c0_13 = arith.constant 0 : index
    %15 = arith.index_cast %14 : i32 to index
    %c1 = arith.constant 1 : index
    %c0_14 = arith.constant 0 : index
    %16 = vector.load %arg2[%c0_13, %15, %c1, %c0_14] : memref<1x20x20x64xbf16, #tpu.memory_space<vmem>>, vector<1x8x16x64xbf16>
    %17 = vector.shape_cast %16 : vector<1x8x16x64xbf16> to vector<8x16x64xbf16>
    %18 = vector.shape_cast %17 : vector<8x16x64xbf16> to vector<128x64xbf16>
    %c0_15 = arith.constant 0 : index
    %c0_16 = arith.constant 0 : index
    %19 = vector.load %arg7[%c0_15, %c0_16] : memref<128x128xf32, #tpu.memory_space<vmem>>, vector<128x128xf32>
    %c1_17 = arith.constant 1 : index
    %c0_18 = arith.constant 0 : index
    %c0_19 = arith.constant 0 : index
    %20 = vector.load %arg3[%c1_17, %c0_18, %c0_19] : memref<25x64x128xbf16, #tpu.memory_space<vmem>>, vector<1x64x128xbf16>
    %21 = vector.shape_cast %20 : vector<1x64x128xbf16> to vector<64x128xbf16>
    %cst_20 = arith.constant dense<0.000000e+00> : vector<128x128xf32>
    %22 = tpu.matmul %18, %21, %cst_20 {dimension_numbers = #tpu.dot_dimension_numbers<[1], [0], [0], [1], [0, 0, 1, 1], [], []>} : vector<128x64xbf16>, vector<64x128xbf16>, vector<128x128xf32> -> vector<128x128xf32>
    %23 = arith.addf %19, %22 : vector<128x128xf32>
    %c0_21 = arith.constant 0 : index
    %c0_22 = arith.constant 0 : index
    %24 = vector.load %arg7[%c0_21, %c0_22] : memref<128x128xf32, #tpu.memory_space<vmem>>, vector<128x128xf32>
    tpu.vector_store %arg7[%c0_21, %c0_22], %23 {strides = array<i32>} : memref<128x128xf32, #tpu.memory_space<vmem>>, vector<128x128xf32>,
    %c0_i32_23 = arith.constant 0 : i32
    %25 = arith.addi %0, %c0_i32_23 : i32
    %c0_24 = arith.constant 0 : index
    %26 = arith.index_cast %25 : i32 to index
    %c2 = arith.constant 2 : index
    %c0_25 = arith.constant 0 : index
    %27 = vector.load %arg2[%c0_24, %26, %c2, %c0_25] : memref<1x20x20x64xbf16, #tpu.memory_space<vmem>>, vector<1x8x16x64xbf16>
    %28 = vector.shape_cast %27 : vector<1x8x16x64xbf16> to vector<8x16x64xbf16>
    %29 = vector.shape_cast %28 : vector<8x16x64xbf16> to vector<128x64xbf16>
    %c0_26 = arith.constant 0 : index
    %c0_27 = arith.constant 0 : index
    %30 = vector.load %arg7[%c0_26, %c0_27] : memref<128x128xf32, #tpu.memory_space<vmem>>, vector<128x128xf32>
    %c2_28 = arith.constant 2 : index
    %c0_29 = arith.constant 0 : index
    %c0_30 = arith.constant 0 : index
    %31 = vector.load %arg3[%c2_28, %c0_29, %c0_30] : memref<25x64x128xbf16, #tpu.memory_space<vmem>>, vector<1x64x128xbf16>
    %32 = vector.shape_cast %31 : vector<1x64x128xbf16> to vector<64x128xbf16>
    %cst_31 = arith.constant dense<0.000000e+00> : vector<128x128xf32>
    %33 = tpu.matmul %29, %32, %cst_31 {dimension_numbers = #tpu.dot_dimension_numbers<[1], [0], [0], [1], [0, 0, 1, 1], [], []>} : vector<128x64xbf16>, vector<64x128xbf16>, vector<128x128xf32> -> vector<128x128xf32>
    %34 = arith.addf %30, %33 : vector<128x128xf32>
    %c0_32 = arith.constant 0 : index
    %c0_33 = arith.constant 0 : index
    %35 = vector.load %arg7[%c0_32, %c0_33] : memref<128x128xf32, #tpu.memory_space<vmem>>, vector<128x128xf32>
    tpu.vector_store %arg7[%c0_32, %c0_33], %34 {strides = array<i32>} : memref<128x128xf32, #tpu.memory_space<vmem>>, vector<128x128xf32>,
    %c0_i32_34 = arith.constant 0 : i32
    %36 = arith.addi %0, %c0_i32_34 : i32
    %c0_35 = arith.constant 0 : index
    %37 = arith.index_cast %36 : i32 to index
    %c3 = arith.constant 3 : index
    %c0_36 = arith.constant 0 : index
    %38 = vector.load %arg2[%c0_35, %37, %c3, %c0_36] : memref<1x20x20x64xbf16, #tpu.memory_space<vmem>>, vector<1x8x16x64xbf16>
    %39 = vector.shape_cast %38 : vector<1x8x16x64xbf16> to vector<8x16x64xbf16>
    %40 = vector.shape_cast %39 : vector<8x16x64xbf16> to vector<128x64xbf16>
    %c0_37 = arith.constant 0 : index
    %c0_38 = arith.constant 0 : index
    %41 = vector.load %arg7[%c0_37, %c0_38] : memref<128x128xf32, #tpu.memory_space<vmem>>, vector<128x128xf32>
    %c3_39 = arith.constant 3 : index
    %c0_40 = arith.constant 0 : index
    %c0_41 = arith.constant 0 : index
    %42 = vector.load %arg3[%c3_39, %c0_40, %c0_41] : memref<25x64x128xbf16, #tpu.memory_space<vmem>>, vector<1x64x128xbf16>
    %43 = vector.shape_cast %42 : vector<1x64x128xbf16> to vector<64x128xbf16>
    %cst_42 = arith.constant dense<0.000000e+00> : vector<128x128xf32>
    %44 = tpu.matmul %40, %43, %cst_42 {dimension_numbers = #tpu.dot_dimension_numbers<[1], [0], [0], [1], [0, 0, 1, 1], [], []>} : vector<128x64xbf16>, vector<64x128xbf16>, vector<128x128xf32> -> vector<128x128xf32>
    %45 = arith.addf %41, %44 : vector<128x128xf32>
    %c0_43 = arith.constant 0 : index
    %c0_44 = arith.constant 0 : index
    %46 = vector.load %arg7[%c0_43, %c0_44] : memref<128x128xf32, #tpu.memory_space<vmem>>, vector<128x128xf32>
    tpu.vector_store %arg7[%c0_43, %c0_44], %45 {strides = array<i32>} : memref<128x128xf32, #tpu.memory_space<vmem>>, vector<128x128xf32>,
    %c0_i32_45 = arith.constant 0 : i32
    %47 = arith.addi %0, %c0_i32_45 : i32
    %c0_46 = arith.constant 0 : index
    %48 = arith.index_cast %47 : i32 to index
    %c4 = arith.constant 4 : index
    %c0_47 = arith.constant 0 : index
    %49 = vector.load %arg2[%c0_46, %48, %c4, %c0_47] : memref<1x20x20x64xbf16, #tpu.memory_space<vmem>>, vector<1x8x16x64xbf16>
    %50 = vector.shape_cast %49 : vector<1x8x16x64xbf16> to vector<8x16x64xbf16>
    %51 = vector.shape_cast %50 : vector<8x16x64xbf16> to vector<128x64xbf16>
    %c0_48 = arith.constant 0 : index
    %c0_49 = arith.constant 0 : index
    %52 = vector.load %arg7[%c0_48, %c0_49] : memref<128x128xf32, #tpu.memory_space<vmem>>, vector<128x128xf32>
    %c4_50 = arith.constant 4 : index
    %c0_51 = arith.constant 0 : index
    %c0_52 = arith.constant 0 : index
    %53 = vector.load %arg3[%c4_50, %c0_51, %c0_52] : memref<25x64x128xbf16, #tpu.memory_space<vmem>>, vector<1x64x128xbf16>
    %54 = vector.shape_cast %53 : vector<1x64x128xbf16> to vector<64x128xbf16>
    %cst_53 = arith.constant dense<0.000000e+00> : vector<128x128xf32>
    %55 = tpu.matmul %51, %54, %cst_53 {dimension_numbers = #tpu.dot_dimension_numbers<[1], [0], [0], [1], [0, 0, 1, 1], [], []>} : vector<128x64xbf16>, vector<64x128xbf16>, vector<128x128xf32> -> vector<128x128xf32>
    %56 = arith.addf %52, %55 : vector<128x128xf32>
    %c0_54 = arith.constant 0 : index
    %c0_55 = arith.constant 0 : index
    %57 = vector.load %arg7[%c0_54, %c0_55] : memref<128x128xf32, #tpu.memory_space<vmem>>, vector<128x128xf32>
    tpu.vector_store %arg7[%c0_54, %c0_55], %56 {strides = array<i32>} : memref<128x128xf32, #tpu.memory_space<vmem>>, vector<128x128xf32>,
    %c1_i32 = arith.constant 1 : i32
    %58 = arith.addi %0, %c1_i32 : i32
    %c0_56 = arith.constant 0 : index
    %59 = arith.index_cast %58 : i32 to index
    %c0_57 = arith.constant 0 : index
    %c0_58 = arith.constant 0 : index
    %60 = vector.load %arg2[%c0_56, %59, %c0_57, %c0_58] : memref<1x20x20x64xbf16, #tpu.memory_space<vmem>>, vector<1x8x16x64xbf16>
    %61 = vector.shape_cast %60 : vector<1x8x16x64xbf16> to vector<8x16x64xbf16>
    %62 = vector.shape_cast %61 : vector<8x16x64xbf16> to vector<128x64xbf16>
    %c0_59 = arith.constant 0 : index
    %c0_60 = arith.constant 0 : index
    %63 = vector.load %arg7[%c0_59, %c0_60] : memref<128x128xf32, #tpu.memory_space<vmem>>, vector<128x128xf32>
    %c5 = arith.constant 5 : index
    %c0_61 = arith.constant 0 : index
    %c0_62 = arith.constant 0 : index
    %64 = vector.load %arg3[%c5, %c0_61, %c0_62] : memref<25x64x128xbf16, #tpu.memory_space<vmem>>, vector<1x64x128xbf16>
    %65 = vector.shape_cast %64 : vector<1x64x128xbf16> to vector<64x128xbf16>
    %cst_63 = arith.constant dense<0.000000e+00> : vector<128x128xf32>
    %66 = tpu.matmul %62, %65, %cst_63 {dimension_numbers = #tpu.dot_dimension_numbers<[1], [0], [0], [1], [0, 0, 1, 1], [], []>} : vector<128x64xbf16>, vector<64x128xbf16>, vector<128x128xf32> -> vector<128x128xf32>
    %67 = arith.addf %63, %66 : vector<128x128xf32>
    %c0_64 = arith.constant 0 : index
    %c0_65 = arith.constant 0 : index
    %68 = vector.load %arg7[%c0_64, %c0_65] : memref<128x128xf32, #tpu.memory_space<vmem>>, vector<128x128xf32>
    tpu.vector_store %arg7[%c0_64, %c0_65], %67 {strides = array<i32>} : memref<128x128xf32, #tpu.memory_space<vmem>>, vector<128x128xf32>,
    %c1_i32_66 = arith.constant 1 : i32
    %69 = arith.addi %0, %c1_i32_66 : i32
    %c0_67 = arith.constant 0 : index
    %70 = arith.index_cast %69 : i32 to index
    %c1_68 = arith.constant 1 : index
    %c0_69 = arith.constant 0 : index
    %71 = vector.load %arg2[%c0_67, %70, %c1_68, %c0_69] : memref<1x20x20x64xbf16, #tpu.memory_space<vmem>>, vector<1x8x16x64xbf16>
    %72 = vector.shape_cast %71 : vector<1x8x16x64xbf16> to vector<8x16x64xbf16>
    %73 = vector.shape_cast %72 : vector<8x16x64xbf16> to vector<128x64xbf16>
    %c0_70 = arith.constant 0 : index
    %c0_71 = arith.constant 0 : index
    %74 = vector.load %arg7[%c0_70, %c0_71] : memref<128x128xf32, #tpu.memory_space<vmem>>, vector<128x128xf32>
    %c6 = arith.constant 6 : index
    %c0_72 = arith.constant 0 : index
    %c0_73 = arith.constant 0 : index
    %75 = vector.load %arg3[%c6, %c0_72, %c0_73] : memref<25x64x128xbf16, #tpu.memory_space<vmem>>, vector<1x64x128xbf16>
    %76 = vector.shape_cast %75 : vector<1x64x128xbf16> to vector<64x128xbf16>
    %cst_74 = arith.constant dense<0.000000e+00> : vector<128x128xf32>
    %77 = tpu.matmul %73, %76, %cst_74 {dimension_numbers = #tpu.dot_dimension_numbers<[1], [0], [0], [1], [0, 0, 1, 1], [], []>} : vector<128x64xbf16>, vector<64x128xbf16>, vector<128x128xf32> -> vector<128x128xf32>
    %78 = arith.addf %74, %77 : vector<128x128xf32>
    %c0_75 = arith.constant 0 : index
    %c0_76 = arith.constant 0 : index
    %79 = vector.load %arg7[%c0_75, %c0_76] : memref<128x128xf32, #tpu.memory_space<vmem>>, vector<128x128xf32>
    tpu.vector_store %arg7[%c0_75, %c0_76], %78 {strides = array<i32>} : memref<128x128xf32, #tpu.memory_space<vmem>>, vector<128x128xf32>,
    %c1_i32_77 = arith.constant 1 : i32
    %80 = arith.addi %0, %c1_i32_77 : i32
    %c0_78 = arith.constant 0 : index
    %81 = arith.index_cast %80 : i32 to index
    %c2_79 = arith.constant 2 : index
    %c0_80 = arith.constant 0 : index
    %82 = vector.load %arg2[%c0_78, %81, %c2_79, %c0_80] : memref<1x20x20x64xbf16, #tpu.memory_space<vmem>>, vector<1x8x16x64xbf16>
    %83 = vector.shape_cast %82 : vector<1x8x16x64xbf16> to vector<8x16x64xbf16>
    %84 = vector.shape_cast %83 : vector<8x16x64xbf16> to vector<128x64xbf16>
    %c0_81 = arith.constant 0 : index
    %c0_82 = arith.constant 0 : index
    %85 = vector.load %arg7[%c0_81, %c0_82] : memref<128x128xf32, #tpu.memory_space<vmem>>, vector<128x128xf32>
    %c7 = arith.constant 7 : index
    %c0_83 = arith.constant 0 : index
    %c0_84 = arith.constant 0 : index
    %86 = vector.load %arg3[%c7, %c0_83, %c0_84] : memref<25x64x128xbf16, #tpu.memory_space<vmem>>, vector<1x64x128xbf16>
    %87 = vector.shape_cast %86 : vector<1x64x128xbf16> to vector<64x128xbf16>
    %cst_85 = arith.constant dense<0.000000e+00> : vector<128x128xf32>
    %88 = tpu.matmul %84, %87, %cst_85 {dimension_numbers = #tpu.dot_dimension_numbers<[1], [0], [0], [1], [0, 0, 1, 1], [], []>} : vector<128x64xbf16>, vector<64x128xbf16>, vector<128x128xf32> -> vector<128x128xf32>
    %89 = arith.addf %85, %88 : vector<128x128xf32>
    %c0_86 = arith.constant 0 : index
    %c0_87 = arith.constant 0 : index
    %90 = vector.load %arg7[%c0_86, %c0_87] : memref<128x128xf32, #tpu.memory_space<vmem>>, vector<128x128xf32>
    tpu.vector_store %arg7[%c0_86, %c0_87], %89 {strides = array<i32>} : memref<128x128xf32, #tpu.memory_space<vmem>>, vector<128x128xf32>,
    %c1_i32_88 = arith.constant 1 : i32
    %91 = arith.addi %0, %c1_i32_88 : i32
    %c0_89 = arith.constant 0 : index
    %92 = arith.index_cast %91 : i32 to index
    %c3_90 = arith.constant 3 : index
    %c0_91 = arith.constant 0 : index
    %93 = vector.load %arg2[%c0_89, %92, %c3_90, %c0_91] : memref<1x20x20x64xbf16, #tpu.memory_space<vmem>>, vector<1x8x16x64xbf16>
    %94 = vector.shape_cast %93 : vector<1x8x16x64xbf16> to vector<8x16x64xbf16>
    %95 = vector.shape_cast %94 : vector<8x16x64xbf16> to vector<128x64xbf16>
    %c0_92 = arith.constant 0 : index
    %c0_93 = arith.constant 0 : index
    %96 = vector.load %arg7[%c0_92, %c0_93] : memref<128x128xf32, #tpu.memory_space<vmem>>, vector<128x128xf32>
    %c8 = arith.constant 8 : index
    %c0_94 = arith.constant 0 : index
    %c0_95 = arith.constant 0 : index
    %97 = vector.load %arg3[%c8, %c0_94, %c0_95] : memref<25x64x128xbf16, #tpu.memory_space<vmem>>, vector<1x64x128xbf16>
    %98 = vector.shape_cast %97 : vector<1x64x128xbf16> to vector<64x128xbf16>
    %cst_96 = arith.constant dense<0.000000e+00> : vector<128x128xf32>
    %99 = tpu.matmul %95, %98, %cst_96 {dimension_numbers = #tpu.dot_dimension_numbers<[1], [0], [0], [1], [0, 0, 1, 1], [], []>} : vector<128x64xbf16>, vector<64x128xbf16>, vector<128x128xf32> -> vector<128x128xf32>
    %100 = arith.addf %96, %99 : vector<128x128xf32>
    %c0_97 = arith.constant 0 : index
    %c0_98 = arith.constant 0 : index
    %101 = vector.load %arg7[%c0_97, %c0_98] : memref<128x128xf32, #tpu.memory_space<vmem>>, vector<128x128xf32>
    tpu.vector_store %arg7[%c0_97, %c0_98], %100 {strides = array<i32>} : memref<128x128xf32, #tpu.memory_space<vmem>>, vector<128x128xf32>,
    %c1_i32_99 = arith.constant 1 : i32
    %102 = arith.addi %0, %c1_i32_99 : i32
    %c0_100 = arith.constant 0 : index
    %103 = arith.index_cast %102 : i32 to index
    %c4_101 = arith.constant 4 : index
    %c0_102 = arith.constant 0 : index
    %104 = vector.load %arg2[%c0_100, %103, %c4_101, %c0_102] : memref<1x20x20x64xbf16, #tpu.memory_space<vmem>>, vector<1x8x16x64xbf16>
    %105 = vector.shape_cast %104 : vector<1x8x16x64xbf16> to vector<8x16x64xbf16>
    %106 = vector.shape_cast %105 : vector<8x16x64xbf16> to vector<128x64xbf16>
    %c0_103 = arith.constant 0 : index
    %c0_104 = arith.constant 0 : index
    %107 = vector.load %arg7[%c0_103, %c0_104] : memref<128x128xf32, #tpu.memory_space<vmem>>, vector<128x128xf32>
    %c9 = arith.constant 9 : index
    %c0_105 = arith.constant 0 : index
    %c0_106 = arith.constant 0 : index
    %108 = vector.load %arg3[%c9, %c0_105, %c0_106] : memref<25x64x128xbf16, #tpu.memory_space<vmem>>, vector<1x64x128xbf16>
    %109 = vector.shape_cast %108 : vector<1x64x128xbf16> to vector<64x128xbf16>
    %cst_107 = arith.constant dense<0.000000e+00> : vector<128x128xf32>
    %110 = tpu.matmul %106, %109, %cst_107 {dimension_numbers = #tpu.dot_dimension_numbers<[1], [0], [0], [1], [0, 0, 1, 1], [], []>} : vector<128x64xbf16>, vector<64x128xbf16>, vector<128x128xf32> -> vector<128x128xf32>
    %111 = arith.addf %107, %110 : vector<128x128xf32>
    %c0_108 = arith.constant 0 : index
    %c0_109 = arith.constant 0 : index
    %112 = vector.load %arg7[%c0_108, %c0_109] : memref<128x128xf32, #tpu.memory_space<vmem>>, vector<128x128xf32>
    tpu.vector_store %arg7[%c0_108, %c0_109], %111 {strides = array<i32>} : memref<128x128xf32, #tpu.memory_space<vmem>>, vector<128x128xf32>,
    %c2_i32 = arith.constant 2 : i32
    %113 = arith.addi %0, %c2_i32 : i32
    %c0_110 = arith.constant 0 : index
    %114 = arith.index_cast %113 : i32 to index
    %c0_111 = arith.constant 0 : index
    %c0_112 = arith.constant 0 : index
    %115 = vector.load %arg2[%c0_110, %114, %c0_111, %c0_112] : memref<1x20x20x64xbf16, #tpu.memory_space<vmem>>, vector<1x8x16x64xbf16>
    %116 = vector.shape_cast %115 : vector<1x8x16x64xbf16> to vector<8x16x64xbf16>
    %117 = vector.shape_cast %116 : vector<8x16x64xbf16> to vector<128x64xbf16>
    %c0_113 = arith.constant 0 : index
    %c0_114 = arith.constant 0 : index
    %118 = vector.load %arg7[%c0_113, %c0_114] : memref<128x128xf32, #tpu.memory_space<vmem>>, vector<128x128xf32>
    %c10 = arith.constant 10 : index
    %c0_115 = arith.constant 0 : index
    %c0_116 = arith.constant 0 : index
    %119 = vector.load %arg3[%c10, %c0_115, %c0_116] : memref<25x64x128xbf16, #tpu.memory_space<vmem>>, vector<1x64x128xbf16>
    %120 = vector.shape_cast %119 : vector<1x64x128xbf16> to vector<64x128xbf16>
    %cst_117 = arith.constant dense<0.000000e+00> : vector<128x128xf32>
    %121 = tpu.matmul %117, %120, %cst_117 {dimension_numbers = #tpu.dot_dimension_numbers<[1], [0], [0], [1], [0, 0, 1, 1], [], []>} : vector<128x64xbf16>, vector<64x128xbf16>, vector<128x128xf32> -> vector<128x128xf32>
    %122 = arith.addf %118, %121 : vector<128x128xf32>
    %c0_118 = arith.constant 0 : index
    %c0_119 = arith.constant 0 : index
    %123 = vector.load %arg7[%c0_118, %c0_119] : memref<128x128xf32, #tpu.memory_space<vmem>>, vector<128x128xf32>
    tpu.vector_store %arg7[%c0_118, %c0_119], %122 {strides = array<i32>} : memref<128x128xf32, #tpu.memory_space<vmem>>, vector<128x128xf32>,
    %c2_i32_120 = arith.constant 2 : i32
    %124 = arith.addi %0, %c2_i32_120 : i32
    %c0_121 = arith.constant 0 : index
    %125 = arith.index_cast %124 : i32 to index
    %c1_122 = arith.constant 1 : index
    %c0_123 = arith.constant 0 : index
    %126 = vector.load %arg2[%c0_121, %125, %c1_122, %c0_123] : memref<1x20x20x64xbf16, #tpu.memory_space<vmem>>, vector<1x8x16x64xbf16>
    %127 = vector.shape_cast %126 : vector<1x8x16x64xbf16> to vector<8x16x64xbf16>
    %128 = vector.shape_cast %127 : vector<8x16x64xbf16> to vector<128x64xbf16>
    %c0_124 = arith.constant 0 : index
    %c0_125 = arith.constant 0 : index
    %129 = vector.load %arg7[%c0_124, %c0_125] : memref<128x128xf32, #tpu.memory_space<vmem>>, vector<128x128xf32>
    %c11 = arith.constant 11 : index
    %c0_126 = arith.constant 0 : index
    %c0_127 = arith.constant 0 : index
    %130 = vector.load %arg3[%c11, %c0_126, %c0_127] : memref<25x64x128xbf16, #tpu.memory_space<vmem>>, vector<1x64x128xbf16>
    %131 = vector.shape_cast %130 : vector<1x64x128xbf16> to vector<64x128xbf16>
    %cst_128 = arith.constant dense<0.000000e+00> : vector<128x128xf32>
    %132 = tpu.matmul %128, %131, %cst_128 {dimension_numbers = #tpu.dot_dimension_numbers<[1], [0], [0], [1], [0, 0, 1, 1], [], []>} : vector<128x64xbf16>, vector<64x128xbf16>, vector<128x128xf32> -> vector<128x128xf32>
    %133 = arith.addf %129, %132 : vector<128x128xf32>
    %c0_129 = arith.constant 0 : index
    %c0_130 = arith.constant 0 : index
    %134 = vector.load %arg7[%c0_129, %c0_130] : memref<128x128xf32, #tpu.memory_space<vmem>>, vector<128x128xf32>
    tpu.vector_store %arg7[%c0_129, %c0_130], %133 {strides = array<i32>} : memref<128x128xf32, #tpu.memory_space<vmem>>, vector<128x128xf32>,
    %c2_i32_131 = arith.constant 2 : i32
    %135 = arith.addi %0, %c2_i32_131 : i32
    %c0_132 = arith.constant 0 : index
    %136 = arith.index_cast %135 : i32 to index
    %c2_133 = arith.constant 2 : index
    %c0_134 = arith.constant 0 : index
    %137 = vector.load %arg2[%c0_132, %136, %c2_133, %c0_134] : memref<1x20x20x64xbf16, #tpu.memory_space<vmem>>, vector<1x8x16x64xbf16>
    %138 = vector.shape_cast %137 : vector<1x8x16x64xbf16> to vector<8x16x64xbf16>
    %139 = vector.shape_cast %138 : vector<8x16x64xbf16> to vector<128x64xbf16>
    %c0_135 = arith.constant 0 : index
    %c0_136 = arith.constant 0 : index
    %140 = vector.load %arg7[%c0_135, %c0_136] : memref<128x128xf32, #tpu.memory_space<vmem>>, vector<128x128xf32>
    %c12 = arith.constant 12 : index
    %c0_137 = arith.constant 0 : index
    %c0_138 = arith.constant 0 : index
    %141 = vector.load %arg3[%c12, %c0_137, %c0_138] : memref<25x64x128xbf16, #tpu.memory_space<vmem>>, vector<1x64x128xbf16>
    %142 = vector.shape_cast %141 : vector<1x64x128xbf16> to vector<64x128xbf16>
    %cst_139 = arith.constant dense<0.000000e+00> : vector<128x128xf32>
    %143 = tpu.matmul %139, %142, %cst_139 {dimension_numbers = #tpu.dot_dimension_numbers<[1], [0], [0], [1], [0, 0, 1, 1], [], []>} : vector<128x64xbf16>, vector<64x128xbf16>, vector<128x128xf32> -> vector<128x128xf32>
    %144 = arith.addf %140, %143 : vector<128x128xf32>
    %c0_140 = arith.constant 0 : index
    %c0_141 = arith.constant 0 : index
    %145 = vector.load %arg7[%c0_140, %c0_141] : memref<128x128xf32, #tpu.memory_space<vmem>>, vector<128x128xf32>
    tpu.vector_store %arg7[%c0_140, %c0_141], %144 {strides = array<i32>} : memref<128x128xf32, #tpu.memory_space<vmem>>, vector<128x128xf32>,
    %c2_i32_142 = arith.constant 2 : i32
    %146 = arith.addi %0, %c2_i32_142 : i32
    %c0_143 = arith.constant 0 : index
    %147 = arith.index_cast %146 : i32 to index
    %c3_144 = arith.constant 3 : index
    %c0_145 = arith.constant 0 : index
    %148 = vector.load %arg2[%c0_143, %147, %c3_144, %c0_145] : memref<1x20x20x64xbf16, #tpu.memory_space<vmem>>, vector<1x8x16x64xbf16>
    %149 = vector.shape_cast %148 : vector<1x8x16x64xbf16> to vector<8x16x64xbf16>
    %150 = vector.shape_cast %149 : vector<8x16x64xbf16> to vector<128x64xbf16>
    %c0_146 = arith.constant 0 : index
    %c0_147 = arith.constant 0 : index
    %151 = vector.load %arg7[%c0_146, %c0_147] : memref<128x128xf32, #tpu.memory_space<vmem>>, vector<128x128xf32>
    %c13 = arith.constant 13 : index
    %c0_148 = arith.constant 0 : index
    %c0_149 = arith.constant 0 : index
    %152 = vector.load %arg3[%c13, %c0_148, %c0_149] : memref<25x64x128xbf16, #tpu.memory_space<vmem>>, vector<1x64x128xbf16>
    %153 = vector.shape_cast %152 : vector<1x64x128xbf16> to vector<64x128xbf16>
    %cst_150 = arith.constant dense<0.000000e+00> : vector<128x128xf32>
    %154 = tpu.matmul %150, %153, %cst_150 {dimension_numbers = #tpu.dot_dimension_numbers<[1], [0], [0], [1], [0, 0, 1, 1], [], []>} : vector<128x64xbf16>, vector<64x128xbf16>, vector<128x128xf32> -> vector<128x128xf32>
    %155 = arith.addf %151, %154 : vector<128x128xf32>
    %c0_151 = arith.constant 0 : index
    %c0_152 = arith.constant 0 : index
    %156 = vector.load %arg7[%c0_151, %c0_152] : memref<128x128xf32, #tpu.memory_space<vmem>>, vector<128x128xf32>
    tpu.vector_store %arg7[%c0_151, %c0_152], %155 {strides = array<i32>} : memref<128x128xf32, #tpu.memory_space<vmem>>, vector<128x128xf32>,
    %c2_i32_153 = arith.constant 2 : i32
    %157 = arith.addi %0, %c2_i32_153 : i32
    %c0_154 = arith.constant 0 : index
    %158 = arith.index_cast %157 : i32 to index
    %c4_155 = arith.constant 4 : index
    %c0_156 = arith.constant 0 : index
    %159 = vector.load %arg2[%c0_154, %158, %c4_155, %c0_156] : memref<1x20x20x64xbf16, #tpu.memory_space<vmem>>, vector<1x8x16x64xbf16>
    %160 = vector.shape_cast %159 : vector<1x8x16x64xbf16> to vector<8x16x64xbf16>
    %161 = vector.shape_cast %160 : vector<8x16x64xbf16> to vector<128x64xbf16>
    %c0_157 = arith.constant 0 : index
    %c0_158 = arith.constant 0 : index
    %162 = vector.load %arg7[%c0_157, %c0_158] : memref<128x128xf32, #tpu.memory_space<vmem>>, vector<128x128xf32>
    %c14 = arith.constant 14 : index
    %c0_159 = arith.constant 0 : index
    %c0_160 = arith.constant 0 : index
    %163 = vector.load %arg3[%c14, %c0_159, %c0_160] : memref<25x64x128xbf16, #tpu.memory_space<vmem>>, vector<1x64x128xbf16>
    %164 = vector.shape_cast %163 : vector<1x64x128xbf16> to vector<64x128xbf16>
    %cst_161 = arith.constant dense<0.000000e+00> : vector<128x128xf32>
    %165 = tpu.matmul %161, %164, %cst_161 {dimension_numbers = #tpu.dot_dimension_numbers<[1], [0], [0], [1], [0, 0, 1, 1], [], []>} : vector<128x64xbf16>, vector<64x128xbf16>, vector<128x128xf32> -> vector<128x128xf32>
    %166 = arith.addf %162, %165 : vector<128x128xf32>
    %c0_162 = arith.constant 0 : index
    %c0_163 = arith.constant 0 : index
    %167 = vector.load %arg7[%c0_162, %c0_163] : memref<128x128xf32, #tpu.memory_space<vmem>>, vector<128x128xf32>
    tpu.vector_store %arg7[%c0_162, %c0_163], %166 {strides = array<i32>} : memref<128x128xf32, #tpu.memory_space<vmem>>, vector<128x128xf32>,
    %c3_i32 = arith.constant 3 : i32
    %168 = arith.addi %0, %c3_i32 : i32
    %c0_164 = arith.constant 0 : index
    %169 = arith.index_cast %168 : i32 to index
    %c0_165 = arith.constant 0 : index
    %c0_166 = arith.constant 0 : index
    %170 = vector.load %arg2[%c0_164, %169, %c0_165, %c0_166] : memref<1x20x20x64xbf16, #tpu.memory_space<vmem>>, vector<1x8x16x64xbf16>
    %171 = vector.shape_cast %170 : vector<1x8x16x64xbf16> to vector<8x16x64xbf16>
    %172 = vector.shape_cast %171 : vector<8x16x64xbf16> to vector<128x64xbf16>
    %c0_167 = arith.constant 0 : index
    %c0_168 = arith.constant 0 : index
    %173 = vector.load %arg7[%c0_167, %c0_168] : memref<128x128xf32, #tpu.memory_space<vmem>>, vector<128x128xf32>
    %c15 = arith.constant 15 : index
    %c0_169 = arith.constant 0 : index
    %c0_170 = arith.constant 0 : index
    %174 = vector.load %arg3[%c15, %c0_169, %c0_170] : memref<25x64x128xbf16, #tpu.memory_space<vmem>>, vector<1x64x128xbf16>
    %175 = vector.shape_cast %174 : vector<1x64x128xbf16> to vector<64x128xbf16>
    %cst_171 = arith.constant dense<0.000000e+00> : vector<128x128xf32>
    %176 = tpu.matmul %172, %175, %cst_171 {dimension_numbers = #tpu.dot_dimension_numbers<[1], [0], [0], [1], [0, 0, 1, 1], [], []>} : vector<128x64xbf16>, vector<64x128xbf16>, vector<128x128xf32> -> vector<128x128xf32>
    %177 = arith.addf %173, %176 : vector<128x128xf32>
    %c0_172 = arith.constant 0 : index
    %c0_173 = arith.constant 0 : index
    %178 = vector.load %arg7[%c0_172, %c0_173] : memref<128x128xf32, #tpu.memory_space<vmem>>, vector<128x128xf32>
    tpu.vector_store %arg7[%c0_172, %c0_173], %177 {strides = array<i32>} : memref<128x128xf32, #tpu.memory_space<vmem>>, vector<128x128xf32>,
    %c3_i32_174 = arith.constant 3 : i32
    %179 = arith.addi %0, %c3_i32_174 : i32
    %c0_175 = arith.constant 0 : index
    %180 = arith.index_cast %179 : i32 to index
    %c1_176 = arith.constant 1 : index
    %c0_177 = arith.constant 0 : index
    %181 = vector.load %arg2[%c0_175, %180, %c1_176, %c0_177] : memref<1x20x20x64xbf16, #tpu.memory_space<vmem>>, vector<1x8x16x64xbf16>
    %182 = vector.shape_cast %181 : vector<1x8x16x64xbf16> to vector<8x16x64xbf16>
    %183 = vector.shape_cast %182 : vector<8x16x64xbf16> to vector<128x64xbf16>
    %c0_178 = arith.constant 0 : index
    %c0_179 = arith.constant 0 : index
    %184 = vector.load %arg7[%c0_178, %c0_179] : memref<128x128xf32, #tpu.memory_space<vmem>>, vector<128x128xf32>
    %c16 = arith.constant 16 : index
    %c0_180 = arith.constant 0 : index
    %c0_181 = arith.constant 0 : index
    %185 = vector.load %arg3[%c16, %c0_180, %c0_181] : memref<25x64x128xbf16, #tpu.memory_space<vmem>>, vector<1x64x128xbf16>
    %186 = vector.shape_cast %185 : vector<1x64x128xbf16> to vector<64x128xbf16>
    %cst_182 = arith.constant dense<0.000000e+00> : vector<128x128xf32>
    %187 = tpu.matmul %183, %186, %cst_182 {dimension_numbers = #tpu.dot_dimension_numbers<[1], [0], [0], [1], [0, 0, 1, 1], [], []>} : vector<128x64xbf16>, vector<64x128xbf16>, vector<128x128xf32> -> vector<128x128xf32>
    %188 = arith.addf %184, %187 : vector<128x128xf32>
    %c0_183 = arith.constant 0 : index
    %c0_184 = arith.constant 0 : index
    %189 = vector.load %arg7[%c0_183, %c0_184] : memref<128x128xf32, #tpu.memory_space<vmem>>, vector<128x128xf32>
    tpu.vector_store %arg7[%c0_183, %c0_184], %188 {strides = array<i32>} : memref<128x128xf32, #tpu.memory_space<vmem>>, vector<128x128xf32>,
    %c3_i32_185 = arith.constant 3 : i32
    %190 = arith.addi %0, %c3_i32_185 : i32
    %c0_186 = arith.constant 0 : index
    %191 = arith.index_cast %190 : i32 to index
    %c2_187 = arith.constant 2 : index
    %c0_188 = arith.constant 0 : index
    %192 = vector.load %arg2[%c0_186, %191, %c2_187, %c0_188] : memref<1x20x20x64xbf16, #tpu.memory_space<vmem>>, vector<1x8x16x64xbf16>
    %193 = vector.shape_cast %192 : vector<1x8x16x64xbf16> to vector<8x16x64xbf16>
    %194 = vector.shape_cast %193 : vector<8x16x64xbf16> to vector<128x64xbf16>
    %c0_189 = arith.constant 0 : index
    %c0_190 = arith.constant 0 : index
    %195 = vector.load %arg7[%c0_189, %c0_190] : memref<128x128xf32, #tpu.memory_space<vmem>>, vector<128x128xf32>
    %c17 = arith.constant 17 : index
    %c0_191 = arith.constant 0 : index
    %c0_192 = arith.constant 0 : index
    %196 = vector.load %arg3[%c17, %c0_191, %c0_192] : memref<25x64x128xbf16, #tpu.memory_space<vmem>>, vector<1x64x128xbf16>
    %197 = vector.shape_cast %196 : vector<1x64x128xbf16> to vector<64x128xbf16>
    %cst_193 = arith.constant dense<0.000000e+00> : vector<128x128xf32>
    %198 = tpu.matmul %194, %197, %cst_193 {dimension_numbers = #tpu.dot_dimension_numbers<[1], [0], [0], [1], [0, 0, 1, 1], [], []>} : vector<128x64xbf16>, vector<64x128xbf16>, vector<128x128xf32> -> vector<128x128xf32>
    %199 = arith.addf %195, %198 : vector<128x128xf32>
    %c0_194 = arith.constant 0 : index
    %c0_195 = arith.constant 0 : index
    %200 = vector.load %arg7[%c0_194, %c0_195] : memref<128x128xf32, #tpu.memory_space<vmem>>, vector<128x128xf32>
    tpu.vector_store %arg7[%c0_194, %c0_195], %199 {strides = array<i32>} : memref<128x128xf32, #tpu.memory_space<vmem>>, vector<128x128xf32>,
    %c3_i32_196 = arith.constant 3 : i32
    %201 = arith.addi %0, %c3_i32_196 : i32
    %c0_197 = arith.constant 0 : index
    %202 = arith.index_cast %201 : i32 to index
    %c3_198 = arith.constant 3 : index
    %c0_199 = arith.constant 0 : index
    %203 = vector.load %arg2[%c0_197, %202, %c3_198, %c0_199] : memref<1x20x20x64xbf16, #tpu.memory_space<vmem>>, vector<1x8x16x64xbf16>
    %204 = vector.shape_cast %203 : vector<1x8x16x64xbf16> to vector<8x16x64xbf16>
    %205 = vector.shape_cast %204 : vector<8x16x64xbf16> to vector<128x64xbf16>
    %c0_200 = arith.constant 0 : index
    %c0_201 = arith.constant 0 : index
    %206 = vector.load %arg7[%c0_200, %c0_201] : memref<128x128xf32, #tpu.memory_space<vmem>>, vector<128x128xf32>
    %c18 = arith.constant 18 : index
    %c0_202 = arith.constant 0 : index
    %c0_203 = arith.constant 0 : index
    %207 = vector.load %arg3[%c18, %c0_202, %c0_203] : memref<25x64x128xbf16, #tpu.memory_space<vmem>>, vector<1x64x128xbf16>
    %208 = vector.shape_cast %207 : vector<1x64x128xbf16> to vector<64x128xbf16>
    %cst_204 = arith.constant dense<0.000000e+00> : vector<128x128xf32>
    %209 = tpu.matmul %205, %208, %cst_204 {dimension_numbers = #tpu.dot_dimension_numbers<[1], [0], [0], [1], [0, 0, 1, 1], [], []>} : vector<128x64xbf16>, vector<64x128xbf16>, vector<128x128xf32> -> vector<128x128xf32>
    %210 = arith.addf %206, %209 : vector<128x128xf32>
    %c0_205 = arith.constant 0 : index
    %c0_206 = arith.constant 0 : index
    %211 = vector.load %arg7[%c0_205, %c0_206] : memref<128x128xf32, #tpu.memory_space<vmem>>, vector<128x128xf32>
    tpu.vector_store %arg7[%c0_205, %c0_206], %210 {strides = array<i32>} : memref<128x128xf32, #tpu.memory_space<vmem>>, vector<128x128xf32>,
    %c3_i32_207 = arith.constant 3 : i32
    %212 = arith.addi %0, %c3_i32_207 : i32
    %c0_208 = arith.constant 0 : index
    %213 = arith.index_cast %212 : i32 to index
    %c4_209 = arith.constant 4 : index
    %c0_210 = arith.constant 0 : index
    %214 = vector.load %arg2[%c0_208, %213, %c4_209, %c0_210] : memref<1x20x20x64xbf16, #tpu.memory_space<vmem>>, vector<1x8x16x64xbf16>
    %215 = vector.shape_cast %214 : vector<1x8x16x64xbf16> to vector<8x16x64xbf16>
    %216 = vector.shape_cast %215 : vector<8x16x64xbf16> to vector<128x64xbf16>
    %c0_211 = arith.constant 0 : index
    %c0_212 = arith.constant 0 : index
    %217 = vector.load %arg7[%c0_211, %c0_212] : memref<128x128xf32, #tpu.memory_space<vmem>>, vector<128x128xf32>
    %c19 = arith.constant 19 : index
    %c0_213 = arith.constant 0 : index
    %c0_214 = arith.constant 0 : index
    %218 = vector.load %arg3[%c19, %c0_213, %c0_214] : memref<25x64x128xbf16, #tpu.memory_space<vmem>>, vector<1x64x128xbf16>
    %219 = vector.shape_cast %218 : vector<1x64x128xbf16> to vector<64x128xbf16>
    %cst_215 = arith.constant dense<0.000000e+00> : vector<128x128xf32>
    %220 = tpu.matmul %216, %219, %cst_215 {dimension_numbers = #tpu.dot_dimension_numbers<[1], [0], [0], [1], [0, 0, 1, 1], [], []>} : vector<128x64xbf16>, vector<64x128xbf16>, vector<128x128xf32> -> vector<128x128xf32>
    %221 = arith.addf %217, %220 : vector<128x128xf32>
    %c0_216 = arith.constant 0 : index
    %c0_217 = arith.constant 0 : index
    %222 = vector.load %arg7[%c0_216, %c0_217] : memref<128x128xf32, #tpu.memory_space<vmem>>, vector<128x128xf32>
    tpu.vector_store %arg7[%c0_216, %c0_217], %221 {strides = array<i32>} : memref<128x128xf32, #tpu.memory_space<vmem>>, vector<128x128xf32>,
    %c4_i32 = arith.constant 4 : i32
    %223 = arith.addi %0, %c4_i32 : i32
    %c0_218 = arith.constant 0 : index
    %224 = arith.index_cast %223 : i32 to index
    %c0_219 = arith.constant 0 : index
    %c0_220 = arith.constant 0 : index
    %225 = vector.load %arg2[%c0_218, %224, %c0_219, %c0_220] : memref<1x20x20x64xbf16, #tpu.memory_space<vmem>>, vector<1x8x16x64xbf16>
    %226 = vector.shape_cast %225 : vector<1x8x16x64xbf16> to vector<8x16x64xbf16>
    %227 = vector.shape_cast %226 : vector<8x16x64xbf16> to vector<128x64xbf16>
    %c0_221 = arith.constant 0 : index
    %c0_222 = arith.constant 0 : index
    %228 = vector.load %arg7[%c0_221, %c0_222] : memref<128x128xf32, #tpu.memory_space<vmem>>, vector<128x128xf32>
    %c20 = arith.constant 20 : index
    %c0_223 = arith.constant 0 : index
    %c0_224 = arith.constant 0 : index
    %229 = vector.load %arg3[%c20, %c0_223, %c0_224] : memref<25x64x128xbf16, #tpu.memory_space<vmem>>, vector<1x64x128xbf16>
    %230 = vector.shape_cast %229 : vector<1x64x128xbf16> to vector<64x128xbf16>
    %cst_225 = arith.constant dense<0.000000e+00> : vector<128x128xf32>
    %231 = tpu.matmul %227, %230, %cst_225 {dimension_numbers = #tpu.dot_dimension_numbers<[1], [0], [0], [1], [0, 0, 1, 1], [], []>} : vector<128x64xbf16>, vector<64x128xbf16>, vector<128x128xf32> -> vector<128x128xf32>
    %232 = arith.addf %228, %231 : vector<128x128xf32>
    %c0_226 = arith.constant 0 : index
    %c0_227 = arith.constant 0 : index
    %233 = vector.load %arg7[%c0_226, %c0_227] : memref<128x128xf32, #tpu.memory_space<vmem>>, vector<128x128xf32>
    tpu.vector_store %arg7[%c0_226, %c0_227], %232 {strides = array<i32>} : memref<128x128xf32, #tpu.memory_space<vmem>>, vector<128x128xf32>,
    %c4_i32_228 = arith.constant 4 : i32
    %234 = arith.addi %0, %c4_i32_228 : i32
    %c0_229 = arith.constant 0 : index
    %235 = arith.index_cast %234 : i32 to index
    %c1_230 = arith.constant 1 : index
    %c0_231 = arith.constant 0 : index
    %236 = vector.load %arg2[%c0_229, %235, %c1_230, %c0_231] : memref<1x20x20x64xbf16, #tpu.memory_space<vmem>>, vector<1x8x16x64xbf16>
    %237 = vector.shape_cast %236 : vector<1x8x16x64xbf16> to vector<8x16x64xbf16>
    %238 = vector.shape_cast %237 : vector<8x16x64xbf16> to vector<128x64xbf16>
    %c0_232 = arith.constant 0 : index
    %c0_233 = arith.constant 0 : index
    %239 = vector.load %arg7[%c0_232, %c0_233] : memref<128x128xf32, #tpu.memory_space<vmem>>, vector<128x128xf32>
    %c21 = arith.constant 21 : index
    %c0_234 = arith.constant 0 : index
    %c0_235 = arith.constant 0 : index
    %240 = vector.load %arg3[%c21, %c0_234, %c0_235] : memref<25x64x128xbf16, #tpu.memory_space<vmem>>, vector<1x64x128xbf16>
    %241 = vector.shape_cast %240 : vector<1x64x128xbf16> to vector<64x128xbf16>
    %cst_236 = arith.constant dense<0.000000e+00> : vector<128x128xf32>
    %242 = tpu.matmul %238, %241, %cst_236 {dimension_numbers = #tpu.dot_dimension_numbers<[1], [0], [0], [1], [0, 0, 1, 1], [], []>} : vector<128x64xbf16>, vector<64x128xbf16>, vector<128x128xf32> -> vector<128x128xf32>
    %243 = arith.addf %239, %242 : vector<128x128xf32>
    %c0_237 = arith.constant 0 : index
    %c0_238 = arith.constant 0 : index
    %244 = vector.load %arg7[%c0_237, %c0_238] : memref<128x128xf32, #tpu.memory_space<vmem>>, vector<128x128xf32>
    tpu.vector_store %arg7[%c0_237, %c0_238], %243 {strides = array<i32>} : memref<128x128xf32, #tpu.memory_space<vmem>>, vector<128x128xf32>,
    %c4_i32_239 = arith.constant 4 : i32
    %245 = arith.addi %0, %c4_i32_239 : i32
    %c0_240 = arith.constant 0 : index
    %246 = arith.index_cast %245 : i32 to index
    %c2_241 = arith.constant 2 : index
    %c0_242 = arith.constant 0 : index
    %247 = vector.load %arg2[%c0_240, %246, %c2_241, %c0_242] : memref<1x20x20x64xbf16, #tpu.memory_space<vmem>>, vector<1x8x16x64xbf16>
    %248 = vector.shape_cast %247 : vector<1x8x16x64xbf16> to vector<8x16x64xbf16>
    %249 = vector.shape_cast %248 : vector<8x16x64xbf16> to vector<128x64xbf16>
    %c0_243 = arith.constant 0 : index
    %c0_244 = arith.constant 0 : index
    %250 = vector.load %arg7[%c0_243, %c0_244] : memref<128x128xf32, #tpu.memory_space<vmem>>, vector<128x128xf32>
    %c22 = arith.constant 22 : index
    %c0_245 = arith.constant 0 : index
    %c0_246 = arith.constant 0 : index
    %251 = vector.load %arg3[%c22, %c0_245, %c0_246] : memref<25x64x128xbf16, #tpu.memory_space<vmem>>, vector<1x64x128xbf16>
    %252 = vector.shape_cast %251 : vector<1x64x128xbf16> to vector<64x128xbf16>
    %cst_247 = arith.constant dense<0.000000e+00> : vector<128x128xf32>
    %253 = tpu.matmul %249, %252, %cst_247 {dimension_numbers = #tpu.dot_dimension_numbers<[1], [0], [0], [1], [0, 0, 1, 1], [], []>} : vector<128x64xbf16>, vector<64x128xbf16>, vector<128x128xf32> -> vector<128x128xf32>
    %254 = arith.addf %250, %253 : vector<128x128xf32>
    %c0_248 = arith.constant 0 : index
    %c0_249 = arith.constant 0 : index
    %255 = vector.load %arg7[%c0_248, %c0_249] : memref<128x128xf32, #tpu.memory_space<vmem>>, vector<128x128xf32>
    tpu.vector_store %arg7[%c0_248, %c0_249], %254 {strides = array<i32>} : memref<128x128xf32, #tpu.memory_space<vmem>>, vector<128x128xf32>,
    %c4_i32_250 = arith.constant 4 : i32
    %256 = arith.addi %0, %c4_i32_250 : i32
    %c0_251 = arith.constant 0 : index
    %257 = arith.index_cast %256 : i32 to index
    %c3_252 = arith.constant 3 : index
    %c0_253 = arith.constant 0 : index
    %258 = vector.load %arg2[%c0_251, %257, %c3_252, %c0_253] : memref<1x20x20x64xbf16, #tpu.memory_space<vmem>>, vector<1x8x16x64xbf16>
    %259 = vector.shape_cast %258 : vector<1x8x16x64xbf16> to vector<8x16x64xbf16>
    %260 = vector.shape_cast %259 : vector<8x16x64xbf16> to vector<128x64xbf16>
    %c0_254 = arith.constant 0 : index
    %c0_255 = arith.constant 0 : index
    %261 = vector.load %arg7[%c0_254, %c0_255] : memref<128x128xf32, #tpu.memory_space<vmem>>, vector<128x128xf32>
    %c23 = arith.constant 23 : index
    %c0_256 = arith.constant 0 : index
    %c0_257 = arith.constant 0 : index
    %262 = vector.load %arg3[%c23, %c0_256, %c0_257] : memref<25x64x128xbf16, #tpu.memory_space<vmem>>, vector<1x64x128xbf16>
    %263 = vector.shape_cast %262 : vector<1x64x128xbf16> to vector<64x128xbf16>
    %cst_258 = arith.constant dense<0.000000e+00> : vector<128x128xf32>
    %264 = tpu.matmul %260, %263, %cst_258 {dimension_numbers = #tpu.dot_dimension_numbers<[1], [0], [0], [1], [0, 0, 1, 1], [], []>} : vector<128x64xbf16>, vector<64x128xbf16>, vector<128x128xf32> -> vector<128x128xf32>
    %265 = arith.addf %261, %264 : vector<128x128xf32>
    %c0_259 = arith.constant 0 : index
    %c0_260 = arith.constant 0 : index
    %266 = vector.load %arg7[%c0_259, %c0_260] : memref<128x128xf32, #tpu.memory_space<vmem>>, vector<128x128xf32>
    tpu.vector_store %arg7[%c0_259, %c0_260], %265 {strides = array<i32>} : memref<128x128xf32, #tpu.memory_space<vmem>>, vector<128x128xf32>,
    %c4_i32_261 = arith.constant 4 : i32
    %267 = arith.addi %0, %c4_i32_261 : i32
    %c0_262 = arith.constant 0 : index
    %268 = arith.index_cast %267 : i32 to index
    %c4_263 = arith.constant 4 : index
    %c0_264 = arith.constant 0 : index
    %269 = vector.load %arg2[%c0_262, %268, %c4_263, %c0_264] : memref<1x20x20x64xbf16, #tpu.memory_space<vmem>>, vector<1x8x16x64xbf16>
    %270 = vector.shape_cast %269 : vector<1x8x16x64xbf16> to vector<8x16x64xbf16>
    %271 = vector.shape_cast %270 : vector<8x16x64xbf16> to vector<128x64xbf16>
    %c0_265 = arith.constant 0 : index
    %c0_266 = arith.constant 0 : index
    %272 = vector.load %arg7[%c0_265, %c0_266] : memref<128x128xf32, #tpu.memory_space<vmem>>, vector<128x128xf32>
    %c24 = arith.constant 24 : index
    %c0_267 = arith.constant 0 : index
    %c0_268 = arith.constant 0 : index
    %273 = vector.load %arg3[%c24, %c0_267, %c0_268] : memref<25x64x128xbf16, #tpu.memory_space<vmem>>, vector<1x64x128xbf16>
    %274 = vector.shape_cast %273 : vector<1x64x128xbf16> to vector<64x128xbf16>
    %cst_269 = arith.constant dense<0.000000e+00> : vector<128x128xf32>
    %275 = tpu.matmul %271, %274, %cst_269 {dimension_numbers = #tpu.dot_dimension_numbers<[1], [0], [0], [1], [0, 0, 1, 1], [], []>} : vector<128x64xbf16>, vector<64x128xbf16>, vector<128x128xf32> -> vector<128x128xf32>
    %276 = arith.addf %272, %275 : vector<128x128xf32>
    %c0_270 = arith.constant 0 : index
    %c0_271 = arith.constant 0 : index
    %277 = vector.load %arg7[%c0_270, %c0_271] : memref<128x128xf32, #tpu.memory_space<vmem>>, vector<128x128xf32>
    tpu.vector_store %arg7[%c0_270, %c0_271], %276 {strides = array<i32>} : memref<128x128xf32, #tpu.memory_space<vmem>>, vector<128x128xf32>,
    %c0_272 = arith.constant 0 : index
    %c0_273 = arith.constant 0 : index
    %278 = vector.load %arg7[%c0_272, %c0_273] : memref<128x128xf32, #tpu.memory_space<vmem>>, vector<128x128xf32>
    %c0_274 = arith.constant 0 : index
    %c0_275 = arith.constant 0 : index
    %279 = vector.load %arg4[%c0_274, %c0_275] : memref<1x128xf32, #tpu.memory_space<vmem>>, vector<1x128xf32>
    %280 = vector.broadcast %279 : vector<1x128xf32> to vector<128x128xf32>
    %281 = arith.addf %278, %280 : vector<128x128xf32>
    %282 = arith.truncf %281 : vector<128x128xf32> to vector<128x128xbf16>
    %c0_276 = arith.constant 0 : index
    %c0_277 = arith.constant 0 : index
    %283 = vector.load %arg5[%c0_276, %c0_277] : memref<128x128xbf16, #tpu.memory_space<vmem>>, vector<128x128xbf16>
    tpu.vector_store %arg5[%c0_276, %c0_277], %282 {strides = array<i32>} : memref<128x128xbf16, #tpu.memory_space<vmem>>, vector<128x128xbf16>,
    %c0_i32_278 = arith.constant 0 : i32
    %284 = arith.cmpi eq, %arg1, %c0_i32_278 : i32
    %285 = arith.extui %284 : i1 to i32
    %c0_i32_279 = arith.constant 0 : i32
    %286 = arith.cmpi ne, %285, %c0_i32_279 : i32
    scf.if %286 {
      %cst_287 = arith.constant 0.000000e+00 : f32
      %295 = vector.broadcast %cst_287 : f32 to vector<1x8x128xf32>
      %c0_288 = arith.constant 0 : index
      %c0_289 = arith.constant 0 : index
      %c0_290 = arith.constant 0 : index
      %296 = vector.load %arg6[%c0_288, %c0_289, %c0_290] : memref<1x8x128xf32, #tpu.memory_space<vmem>>, vector<1x8x128xf32>
      tpu.vector_store %arg6[%c0_288, %c0_289, %c0_290], %295 {strides = array<i32>} : memref<1x8x128xf32, #tpu.memory_space<vmem>>, vector<1x8x128xf32>,
    } else {
    }
    %cst_280 = arith.constant dense<0.000000e+00> : vector<128xf32>
    %287 = vector.multi_reduction <add>, %281, %cst_280 [0] : vector<128x128xf32> to vector<128xf32>
    %288 = vector.shape_cast %287 : vector<128xf32> to vector<1x128xf32>
    %c0_281 = arith.constant 0 : index
    %c0_282 = arith.constant 0 : index
    %c0_283 = arith.constant 0 : index
    %289 = vector.load %arg6[%c0_281, %c0_282, %c0_283] : memref<1x8x128xf32, #tpu.memory_space<vmem>>, vector<1x8x128xf32>
    %290 = vector.shape_cast %288 : vector<1x128xf32> to vector<1x1x128xf32>
    %291 = vector.shape_cast %290 : vector<1x1x128xf32> to vector<1x1x128xf32>
    %292 = vector.broadcast %291 : vector<1x1x128xf32> to vector<1x8x128xf32>
    %293 = arith.addf %289, %292 : vector<1x8x128xf32>
    %c0_284 = arith.constant 0 : index
    %c0_285 = arith.constant 0 : index
    %c0_286 = arith.constant 0 : index
    %294 = vector.load %arg6[%c0_284, %c0_285, %c0_286] : memref<1x8x128xf32, #tpu.memory_space<vmem>>, vector<1x8x128xf32>
    tpu.vector_store %arg6[%c0_284, %c0_285, %c0_286], %293 {strides = array<i32>} : memref<1x8x128xf32, #tpu.memory_space<vmem>>, vector<1x8x128xf32>,
    return
  }
  func.func @transform_0(%arg0: i32, %arg1: i32) -> (i32, i32, i32, i32) {
    %c0_i32 = arith.constant 0 : i32
    %c0_i32_0 = arith.constant 0 : i32
    %c0_i32_1 = arith.constant 0 : i32
    %c0_i32_2 = arith.constant 0 : i32
    return %arg0, %c0_i32, %c0_i32_0, %c0_i32_1 : i32, i32, i32, i32
  }
  func.func @transform_1(%arg0: i32, %arg1: i32) -> (i32, i32, i32) {
    %c0_i32 = arith.constant 0 : i32
    %c0_i32_0 = arith.constant 0 : i32
    %c0_i32_1 = arith.constant 0 : i32
    %c0_i32_2 = arith.constant 0 : i32
    return %c0_i32, %c0_i32_0, %c0_i32_1 : i32, i32, i32
  }
  func.func @transform_2(%arg0: i32, %arg1: i32) -> (i32, i32) {
    %c0_i32 = arith.constant 0 : i32
    %c0_i32_0 = arith.constant 0 : i32
    %c0_i32_1 = arith.constant 0 : i32
    return %c0_i32, %c0_i32_0 : i32, i32
  }
  func.func @transform_3(%arg0: i32, %arg1: i32) -> (i32, i32) {
    %c2_i32 = arith.constant 2 : i32
    %0 = arith.muli %arg0, %c2_i32 : i32
    %1 = arith.addi %0, %arg1 : i32
    %c0_i32 = arith.constant 0 : i32
    %c0_i32_0 = arith.constant 0 : i32
    return %1, %c0_i32 : i32, i32
  }
  func.func @transform_4(%arg0: i32, %arg1: i32) -> (i32, i32, i32) {
    %c0_i32 = arith.constant 0 : i32
    %c0_i32_0 = arith.constant 0 : i32
    %c0_i32_1 = arith.constant 0 : i32
    return %arg0, %c0_i32, %c0_i32_0 : i32, i32, i32
  }
}

</mosaic_0001>

<llo_original>
// kernel: tpu_custom_call.1
$region0: #{tpu_custom_call.1}
  #allocation0 [shape = 'u32[]', space=smem, size = 0x4, offset = 0x4, fixed_abs, tag = 'smem constant byte address 0x4 - core index']
  #allocation1 [shape = 'u32[144,128]{1,0:T(1,128)}', space=vmem, size = 0x12000, scoped, tag = 'internal scratch']
  #allocation2 [shape = 'f32[128,128]{1,0:T(8,128)}', space=vmem, size = 0x10000, scoped, tag = 'scratch operand']
  %s0 = inlined_call_operand.vmem [shape: bf16[2,20,20,64], index: 0, kind: input, shape index: {}]
  %s1 = inlined_call_operand.vmem [shape: bf16[25,64,128], index: 1, kind: input, shape index: {}]
  %s2 = inlined_call_operand.vmem [shape: f32[1,128], index: 2, kind: input, shape index: {}]
  %s3 = inlined_call_operand.hbm [shape: bf16[512,128], index: 3, kind: output, shape index: {0}]
  %s4 = inlined_call_operand.hbm [shape: f32[2,8,128], index: 4, kind: output, shape index: {1}]
  %5 = xla_tuple %s3, %s4
  %s6 = sld [smem:[#allocation0]]
  $region57: #{tpu_custom_call.1} parent=0
    _
  %s8 = ssub.s32 1, %s6
  %s9 = scalar_select 0, %s8, %s6
  $region1: #{tpu_custom_call.1} parent=0
    #allocation3 [shape = 'u8[65536]{0}', space=vmem, size = 0x10000, scoped, tag = 'output window, operand 0']
    #allocation4 [shape = 's32[2]{0}', space=sflag, size = 0x8, scoped, tag = 'scoped memory for tpu_custom_call.1']
    #allocation5 [shape = 'u8[8192]{0}', space=vmem, size = 0x2000, scoped, tag = 'output window, operand 1']
    #allocation6 [shape = 's32[2]{0}', space=sflag, size = 0x8, scoped, tag = 'scoped memory for tpu_custom_call.1']
    %10 = vsyncpa [#allocation4], 0
    %s11 = scalar_lea.sflag [#allocation4], 1
    %12 = vsyncpa %s11, 0
    %13 = vsyncpa [#allocation6], 0
    %s14 = scalar_lea.sflag [#allocation6], 1
    %15 = vsyncpa %s14, 0
    loop: start=0, step=1, limit=6
    $region2: #{tpu_custom_call.1} parent=1 // loop_pre_header
      _
    $region3: #{tpu_custom_call.1} parent=1 // loop_header
      %s17 = sphi 0, %s21
      %p18 = scmp.ge.s32.totalorder %s17, 6
      %s24 = sphi 0, %s36
      %s25 = sphi 0, %s32
      %s26 = sphi 0, %s24
      %s27 = sphi 0, %s25
      %s28 = sphi 0, %s26
      %s29 = sphi 0, %s27
      %s39 = sphi 0, %s41
      %s42 = sphi 0, %s39
      %s43 = sphi 0, %s42
      %s59 = sphi 0, %s43
      %s63 = sphi 0, %s63
      %s65 = sphi 0, %s63
      %s66 = sphi 0, %s65
      %s80 = sphi 0, %s66
      %s84 = sphi 0, %s84
      %s86 = sphi 0, %s84
      %s87 = sphi 0, %s86
      %s101 = sphi 0, %s87
      %s111 = sphi 0, %s113
      %s114 = sphi 0, %s111
      %s115 = sphi 0, %s114
      %s131 = sphi 0, %s115
      %s137 = sphi 0, %s139
      %s140 = sphi 0, %s137
      %s141 = sphi 0, %s140
      %s157 = sphi 0, %s141
    $region4: #{tpu_custom_call.1} parent=1 // loop_header_branch
      %20 = sbr.rel (%p18) target = $region8
    $region5: #{tpu_custom_call.1} parent=1 // loop_body
      %s22 = ssub.s32 %s17, 1
      %s23 = ssub.s32 %s17, 2
      %s30 = sadd.s32 1, %s25
      %p31 = scmp.ge.s32.totalorder %s30, 2
      %s32 = scalar_select %p31, 0, %s30
      %s33 = sadd.s32 1, %s24
      %s34 = scalar_select %p31, %s33, %s24
      %p35 = scmp.ge.s32.totalorder %s34, 2
      %s36 = scalar_select %p35, 0, %s34
      %s37 = ssub.s32 %s24, %s36
      %p38 = scmp.eq.s32.totalorder %s37, 0
      %s40 = sadd.s32 %s39, 1
      %s41 = scalar_select %p38, %s39, %s40
      %p44 = pneg %p38
      %p45 = scmp.eq.s32.totalorder %s17, 3
      %p46 = por %p44, %p45
      %p47 = scmp.ne.s32.totalorder %s39, %s42
      %p48 = scmp.eq.s32.totalorder %s17, 0
      %p49 = por %p47, %p48
      %p50 = scmp.ne.s32.totalorder %s39, %s42
      %p51 = scmp.eq.s32.totalorder %s22, 3
      %p52 = por %p50, %p51
      %p53 = scmp.ne.s32.totalorder %s42, %s43
      %p54 = scmp.eq.s32.totalorder %s22, 0
      %p55 = por %p53, %p54
      %p56 = scmp.ne.s32.totalorder %s42, %s43
      %p57 = scmp.eq.s32.totalorder %s23, 3
      %p58 = por %p56, %p57
      %p60 = scmp.ne.s32.totalorder %s43, %s59
      %p61 = scmp.eq.s32.totalorder %s23, 0
      %p62 = por %p60, %p61
      %s64 = sadd.s32 %s63, 1
      %p67 = scmp.eq.s32.totalorder %s17, 3
      %p68 = scmp.ne.s32.totalorder %s63, %s65
      %p69 = scmp.eq.s32.totalorder %s17, 0
      %p70 = por %p68, %p69
      %p71 = scmp.ne.s32.totalorder %s63, %s65
      %p72 = scmp.eq.s32.totalorder %s22, 3
      %p73 = por %p71, %p72
      %p74 = scmp.ne.s32.totalorder %s65, %s66
      %p75 = scmp.eq.s32.totalorder %s22, 0
      %p76 = por %p74, %p75
      %p77 = scmp.ne.s32.totalorder %s65, %s66
      %p78 = scmp.eq.s32.totalorder %s23, 3
      %p79 = por %p77, %p78
      %p81 = scmp.ne.s32.totalorder %s66, %s80
      %p82 = scmp.eq.s32.totalorder %s23, 0
      %p83 = por %p81, %p82
      %s85 = sadd.s32 %s84, 1
      %p88 = scmp.eq.s32.totalorder %s17, 3
      %p89 = scmp.ne.s32.totalorder %s84, %s86
      %p90 = scmp.eq.s32.totalorder %s17, 0
      %p91 = por %p89, %p90
      %p92 = scmp.ne.s32.totalorder %s84, %s86
      %p93 = scmp.eq.s32.totalorder %s22, 3
      %p94 = por %p92, %p93
      %p95 = scmp.ne.s32.totalorder %s86, %s87
      %p96 = scmp.eq.s32.totalorder %s22, 0
      %p97 = por %p95, %p96
      %p98 = scmp.ne.s32.totalorder %s86, %s87
      %p99 = scmp.eq.s32.totalorder %s23, 3
      %p100 = por %p98, %p99
      %p102 = scmp.ne.s32.totalorder %s87, %s101
      %p103 = scmp.eq.s32.totalorder %s23, 0
      %p104 = por %p102, %p103
      %s105 = smul.u32 %s24, 2
      %s106 = sadd.s32 %s105, %s25
      %s107 = smul.u32 %s36, 2
      %s108 = sadd.s32 %s107, %s32
      %s109 = ssub.s32 %s106, %s108
      %p110 = scmp.eq.s32.totalorder %s109, 0
      %s112 = sadd.s32 %s111, 1
      %s113 = scalar_select %p110, %s111, %s112
      %p116 = pneg %p110
      %p117 = scmp.eq.s32.totalorder %s17, 3
      %p118 = por %p116, %p117
      %p119 = scmp.ne.s32.totalorder %s111, %s114
      %p120 = scmp.eq.s32.totalorder %s17, 0
      %p121 = por %p119, %p120
      %p122 = scmp.ne.s32.totalorder %s111, %s114
      %p123 = scmp.eq.s32.totalorder %s22, 3
      %p124 = por %p122, %p123
      %p125 = scmp.ne.s32.totalorder %s114, %s115
      %p126 = scmp.eq.s32.totalorder %s22, 0
      %p127 = por %p125, %p126
      %p128 = scmp.ne.s32.totalorder %s114, %s115
      %p129 = scmp.eq.s32.totalorder %s23, 3
      %p130 = por %p128, %p129
      %p132 = scmp.ne.s32.totalorder %s115, %s131
      %p133 = scmp.eq.s32.totalorder %s23, 0
      %p134 = por %p132, %p133
      %s135 = ssub.s32 %s24, %s36
      %p136 = scmp.eq.s32.totalorder %s135, 0
      %s138 = sadd.s32 %s137, 1
      %s139 = scalar_select %p136, %s137, %s138
      %p142 = pneg %p136
      %p143 = scmp.eq.s32.totalorder %s17, 3
      %p144 = por %p142, %p143
      %p145 = scmp.ne.s32.totalorder %s137, %s140
      %p146 = scmp.eq.s32.totalorder %s17, 0
      %p147 = por %p145, %p146
      %p148 = scmp.ne.s32.totalorder %s137, %s140
      %p149 = scmp.eq.s32.totalorder %s22, 3
      %p150 = por %p148, %p149
      %p151 = scmp.ne.s32.totalorder %s140, %s141
      %p152 = scmp.eq.s32.totalorder %s22, 0
      %p153 = por %p151, %p152
      %p154 = scmp.ne.s32.totalorder %s140, %s141
      %p155 = scmp.eq.s32.totalorder %s23, 3
      %p156 = por %p154, %p155
      %p158 = scmp.ne.s32.totalorder %s141, %s157
      %p159 = scmp.eq.s32.totalorder %s23, 0
      %p160 = por %p158, %p159
      %p161 = scmp.le.s32.totalorder 1, %s17
      %p162 = scmp.lt.s32.totalorder %s17, 5
      %p163 = pnand %p161, %p162
      %p164 = pneg %p163
      // Predicated region
      $region9: #{tpu_custom_call.1} parent=5 // pred_check
        _
      $region10: #{tpu_custom_call.1} parent=5 // pred_check_branch
        %166 = sbr.rel (%p163) target = $region12
      $region11: #{tpu_custom_call.1} parent=5 // pred_region
        %s167 = ssub.s32 %s17, 1
        // Predicated region
        $region13: #{tpu_custom_call.1} parent=11 // pred_check
          %p168 = pneg %p76
        $region14: #{tpu_custom_call.1} parent=11 // pred_check_branch
          %170 = sbr.rel (%p168) target = $region16
        $region15: #{tpu_custom_call.1} parent=11 // pred_region
          _
        $region16: #{tpu_custom_call.1} parent=11 // pred_fallthru
          _
        // Predicated region
        $region17: #{tpu_custom_call.1} parent=11 // pred_check
          %p171 = pneg %p97
        $region18: #{tpu_custom_call.1} parent=11 // pred_check_branch
          %173 = sbr.rel (%p171) target = $region20
        $region19: #{tpu_custom_call.1} parent=11 // pred_region
          _
        $region20: #{tpu_custom_call.1} parent=11 // pred_fallthru
          _
      $region12: #{tpu_custom_call.1} parent=5 // pred_fallthru
        _
      %p174 = scmp.lt.s32.totalorder %s17, 4
      // Predicated region
      $region21: #{tpu_custom_call.1} parent=5 // pred_check
        %p175 = pneg %p174
      $region22: #{tpu_custom_call.1} parent=5 // pred_check_branch
        %177 = sbr.rel (%p175) target = $region24
      $region23: #{tpu_custom_call.1} parent=5 // pred_region
        // Predicated region
        $region25: #{tpu_custom_call.1} parent=23 // pred_check
          %p178 = pneg %p49
        $region26: #{tpu_custom_call.1} parent=23 // pred_check_branch
          %180 = sbr.rel (%p178) target = $region28
        $region27: #{tpu_custom_call.1} parent=23 // pred_region
          %p181 = scmp.lt.s32.totalorder %s24, 1
          %s182 = scalar_select %p181, %s24, 1
          %s183 = smul.addr %s182, 60
          %s184 = smul.addr %s183, 4
          %s185 = scalar_lea.vmem %s0, %s184
        $region28: #{tpu_custom_call.1} parent=23 // pred_fallthru
          _
      $region24: #{tpu_custom_call.1} parent=5 // pred_fallthru
        _
      %p186 = scmp.le.s32.totalorder 1, %s17
      %p187 = scmp.lt.s32.totalorder %s17, 5
      %p188 = pnand %p186, %p187
      %p189 = pneg %p188
      // Predicated region
      $region29: #{tpu_custom_call.1} parent=5 // pred_check
        _
      $region30: #{tpu_custom_call.1} parent=5 // pred_check_branch
        %191 = sbr.rel (%p188) target = $region32
      $region31: #{tpu_custom_call.1} parent=5 // pred_region
        %s192 = ssub.s32 %s17, 1
        %p193 = scmp.lt.s32.totalorder %s26, 1
        %s194 = scalar_select %p193, %s26, 1
        %s195 = smul.addr %s194, 60
        %s196 = smul.addr %s195, 4
        %s197 = scalar_lea.vmem %s0, %s196
        %p198 = pneg %p55
        %p199 = pneg %p52
        %p200 = pneg %p76
        %p201 = pneg %p73
        %p202 = pneg %p97
        %p203 = pneg %p94
        %p204 = pneg %p127
        %p205 = pneg %p124
        %s206 = sand.u32 %s114, 1
        %s207 = scalar_lea.sflag [#allocation4], %s206
        %s208 = sand.u32 %s114, 1
        %s209 = smul.addr %s208, 64
        %s210 = scalar_lea.vmem [#allocation3], %s209
        %p211 = pneg %p153
        %p212 = pneg %p150
        %s213 = sand.u32 %s140, 1
        %s214 = scalar_lea.sflag [#allocation6], %s213
        %s215 = sand.u32 %s140, 1
        %s216 = smul.addr %s215, 8
        %s217 = scalar_lea.vmem [#allocation5], %s216
        %p218 = scmp.lt.s32.totalorder %s26, 1
        %s219 = scalar_select %p218, %s26, 1
        %s220 = smul.addr %s219, 60
        %s221 = smul.addr %s220, 4
        %s222 = scalar_lea.vmem %s0, %s221
        %s223 = smul.u32 %s26, 2
        %s224 = sadd.s32 %s223, %s27
        %s225 = smul.u32 16, %s224
        %s227 = smul.u32 %s27, 8
        %228 = vst [vmem:[#allocation2] sm:$0xff] 0.0
        %229 = vst [vmem:[#allocation2 + $0x8] sm:$0xff] 0.0
        %230 = vst [vmem:[#allocation2 + $0x10] sm:$0xff] 0.0
        %231 = vst [vmem:[#allocation2 + $0x18] sm:$0xff] 0.0
        %232 = vst [vmem:[#allocation2 + $0x20] sm:$0xff] 0.0
        %233 = vst [vmem:[#allocation2 + $0x28] sm:$0xff] 0.0
        %234 = vst [vmem:[#allocation2 + $0x30] sm:$0xff] 0.0
        %235 = vst [vmem:[#allocation2 + $0x38] sm:$0xff] 0.0
        %236 = vst [vmem:[#allocation2 + $0x40] sm:$0xff] 0.0
        %237 = vst [vmem:[#allocation2 + $0x48] sm:$0xff] 0.0
        %238 = vst [vmem:[#allocation2 + $0x50] sm:$0xff] 0.0
        %239 = vst [vmem:[#allocation2 + $0x58] sm:$0xff] 0.0
        %240 = vst [vmem:[#allocation2 + $0x60] sm:$0xff] 0.0
        %241 = vst [vmem:[#allocation2 + $0x68] sm:$0xff] 0.0
        %242 = vst [vmem:[#allocation2 + $0x70] sm:$0xff] 0.0
        %243 = vst [vmem:[#allocation2 + $0x78] sm:$0xff] 0.0
        %s244 = smul.u32 %s227, 3
        %s245 = smul.addr %s244, 4
        %s246 = scalar_lea.vmem %s222, %s245
        %v247 = vld [vmem:[%s246] sm:$0xf]
        %v248 = vld [vmem:[%s246 + $0x4] sm:$0xf]
        %v249 = vld [vmem:[%s246 + $0xc] sm:$0xf]
        %v250 = vld [vmem:[%s246 + $0x10] sm:$0xf]
        %v251 = vld [vmem:[%s246 + $0x18] sm:$0xf]
        %v252 = vld [vmem:[%s246 + $0x1c] sm:$0xf]
        %v253 = vld [vmem:[%s246 + $0x24] sm:$0xf]
        %v254 = vld [vmem:[%s246 + $0x28] sm:$0xf]
        %v255 = vld [vmem:[%s246 + $0x30] sm:$0xf]
        %v256 = vld [vmem:[%s246 + $0x34] sm:$0xf]
        %v257 = vld [vmem:[%s246 + $0x3c] sm:$0xf]
        %v258 = vld [vmem:[%s246 + $0x40] sm:$0xf]
        %v259 = vld [vmem:[%s246 + $0x48] sm:$0xf]
        %v260 = vld [vmem:[%s246 + $0x4c] sm:$0xf]
        %v261 = vld [vmem:[%s246 + $0x54] sm:$0xf]
        %v262 = vld [vmem:[%s246 + $0x58] sm:$0xf]
        %v263 = vld [vmem:[#allocation2] sm:$0xff]
        %v264 = vld [vmem:[#allocation2 + $0x8] sm:$0xff]
        %v265 = vld [vmem:[#allocation2 + $0x10] sm:$0xff]
        %v266 = vld [vmem:[#allocation2 + $0x18] sm:$0xff]
        %v267 = vld [vmem:[#allocation2 + $0x20] sm:$0xff]
        %v268 = vld [vmem:[#allocation2 + $0x28] sm:$0xff]
        %v269 = vld [vmem:[#allocation2 + $0x30] sm:$0xff]
        %v270 = vld [vmem:[#allocation2 + $0x38] sm:$0xff]
        %v271 = vld [vmem:[#allocation2 + $0x40] sm:$0xff]
        %v272 = vld [vmem:[#allocation2 + $0x48] sm:$0xff]
        %v273 = vld [vmem:[#allocation2 + $0x50] sm:$0xff]
        %v274 = vld [vmem:[#allocation2 + $0x58] sm:$0xff]
        %v275 = vld [vmem:[#allocation2 + $0x60] sm:$0xff]
        %v276 = vld [vmem:[#allocation2 + $0x68] sm:$0xff]
        %v277 = vld [vmem:[#allocation2 + $0x70] sm:$0xff]
        %v278 = vld [vmem:[#allocation2 + $0x78] sm:$0xff]
        %v279 = vld [vmem:[%s1] sm:$0xf]
        %v280 = vld [vmem:[%s1 + $0x4] sm:$0xf]
        %v281 = vld [vmem:[%s1 + $0x8] sm:$0xf]
        %v282 = vld [vmem:[%s1 + $0xc] sm:$0xf]
        %v283 = vld [vmem:[%s1 + $0x10] sm:$0xf]
        %v284 = vld [vmem:[%s1 + $0x14] sm:$0xf]
        %v285 = vld [vmem:[%s1 + $0x18] sm:$0xf]
        %v286 = vld [vmem:[%s1 + $0x1c] sm:$0xf]
        %v303 = vunpack.c.l.b16 %v247
        %v304 = vunpack.c.l.b16 %v248
        %v305 = vunpack.c.l.b16 %v249
        %v306 = vunpack.c.l.b16 %v250
        %v307 = vunpack.c.l.b16 %v251
        %v308 = vunpack.c.l.b16 %v252
        %v309 = vunpack.c.l.b16 %v253
        %v310 = vunpack.c.l.b16 %v254
        %v311 = vunpack.c.l.b16 %v255
        %v312 = vunpack.c.l.b16 %v256
        %v313 = vunpack.c.l.b16 %v257
        %v314 = vunpack.c.l.b16 %v258
        %v315 = vunpack.c.l.b16 %v259
        %v316 = vunpack.c.l.b16 %v260
        %v317 = vunpack.c.l.b16 %v261
        %v318 = vunpack.c.l.b16 %v262
        %v319 = vpack.c.b16 %v304, %v303
        %v320 = vpack.c.b16 %v306, %v305
        %v321 = vpack.c.b16 %v308, %v307
        %v322 = vpack.c.b16 %v310, %v309
        %v323 = vpack.c.b16 %v312, %v311
        %v324 = vpack.c.b16 %v314, %v313
        %v325 = vpack.c.b16 %v316, %v315
        %v326 = vpack.c.b16 %v318, %v317
        %v335 = vunpack.c.l.b16 %v279
        %v336 = vunpack.c.l.b16 %v280
        %v337 = vunpack.c.l.b16 %v281
        %v338 = vunpack.c.l.b16 %v282
        %v339 = vunpack.c.l.b16 %v283
        %v340 = vunpack.c.l.b16 %v284
        %v341 = vunpack.c.l.b16 %v285
        %v342 = vunpack.c.l.b16 %v286
        %v343 = vpack.c.b16 %v336, %v335
        %v344 = vpack.c.b16 %v338, %v337
        %v345 = vpack.c.b16 %v340, %v339
        %v346 = vpack.c.b16 %v342, %v341
        %vm351 = vcmask 523264
        %v353 = vsel %vm351, %v319, 0
        %v356 = vsel %vm351, %v320, 0
        %v359 = vsel %vm351, %v321, 0
        %v362 = vsel %vm351, %v322, 0
        %v365 = vsel %vm351, %v323, 0
        %v368 = vsel %vm351, %v324, 0
        %v371 = vsel %vm351, %v325, 0
        %v374 = vsel %vm351, %v326, 0
        %376 = vmatprep.subr.bf16.mxu0 0
        %377 = vmatpush1.bf16.msra.mxu0 0
        %378 = vmatprep.subr.bf16.mxu0 0
        %379 = vmatpush1.bf16.msra.mxu0 0
        %380 = vmatprep.subr.bf16.mxu0 0
        %381 = vmatpush1.bf16.msra.mxu0 0
        %382 = vmatprep.subr.bf16.mxu0 0
        %383 = vmatpush1.bf16.msra.mxu0 0
        %384 = vmatprep.subr.bf16.mxu0 0
        %385 = vmatpush1.bf16.msra.mxu0 %v346
        %386 = vmatprep.subr.bf16.mxu0 0
        %387 = vmatpush1.bf16.msra.mxu0 %v345
        %388 = vmatprep.subr.bf16.mxu0 0
        %389 = vmatpush1.bf16.msra.mxu0 %v344
        %390 = vmatprep.subr.bf16.mxu0 0
        %391 = vmatpush1.bf16.msra.mxu0 %v343
        %392 = vmatprep.subr.bf16.mxu0 0
        %393 = vmatpush2.bf16.msra.mxu0 0
        %394 = vmatprep.subr.bf16.mxu0 0
        %395 = vmatpush2.bf16.msra.mxu0 0
        %396 = vmatprep.subr.bf16.mxu0 0
        %397 = vmatpush2.bf16.msra.mxu0 0
        %398 = vmatprep.subr.bf16.mxu0 0
        %399 = vmatpush2.bf16.msra.mxu0 0
        %400 = vmatprep.subr.bf16.mxu0 0
        %401 = vmatpush2.bf16.msra.mxu0 0
        %402 = vmatprep.subr.bf16.mxu0 0
        %403 = vmatpush2.bf16.msra.mxu0 0
        %404 = vmatprep.subr.bf16.mxu0 0
        %405 = vmatpush2.bf16.msra.mxu0 0
        %406 = vmatprep.subr.bf16.mxu0 0
        %407 = vmatpush2.bf16.msra.mxu0 0
        %408 = vmatprep.mubr.bf16.mxu0 0
        %409 = vmatmul.mubr.bf16.gmra.mxu0 %v353
        %v410 = vpop.f32.mrf.mxu0
        %v411 = vadd.f32 0.0, %v410
        %v412 = vpop.f32.mrf.mxu0
        %v413 = vpop.f32.mrf.mxu0
        %v414 = vadd.f32 0.0, %v413
        %v415 = vpop.f32.mrf.mxu0
        %416 = vmatprep.mubr.bf16.mxu0 0
        %417 = vmatmul.mubr.bf16.gmra.mxu0 %v356
        %v418 = vpop.f32.mrf.mxu0
        %v419 = vadd.f32 0.0, %v418
        %v420 = vpop.f32.mrf.mxu0
        %v421 = vpop.f32.mrf.mxu0
        %v422 = vadd.f32 0.0, %v421
        %v423 = vpop.f32.mrf.mxu0
        %424 = vmatprep.mubr.bf16.mxu0 0
        %425 = vmatmul.mubr.bf16.gmra.mxu0 %v359
        %v426 = vpop.f32.mrf.mxu0
        %v427 = vadd.f32 0.0, %v426
        %v428 = vpop.f32.mrf.mxu0
        %v429 = vpop.f32.mrf.mxu0
        %v430 = vadd.f32 0.0, %v429
        %v431 = vpop.f32.mrf.mxu0
        %432 = vmatprep.mubr.bf16.mxu0 0
        %433 = vmatmul.mubr.bf16.gmra.mxu0 %v362
        %v434 = vpop.f32.mrf.mxu0
        %v435 = vadd.f32 0.0, %v434
        %v436 = vpop.f32.mrf.mxu0
        %v437 = vpop.f32.mrf.mxu0
        %v438 = vadd.f32 0.0, %v437
        %v439 = vpop.f32.mrf.mxu0
        %440 = vmatprep.mubr.bf16.mxu0 0
        %441 = vmatmul.mubr.bf16.gmra.mxu0 %v365
        %v442 = vpop.f32.mrf.mxu0
        %v443 = vadd.f32 0.0, %v442
        %v444 = vpop.f32.mrf.mxu0
        %v445 = vpop.f32.mrf.mxu0
        %v446 = vadd.f32 0.0, %v445
        %v447 = vpop.f32.mrf.mxu0
        %448 = vmatprep.mubr.bf16.mxu0 0
        %449 = vmatmul.mubr.bf16.gmra.mxu0 %v368
        %v450 = vpop.f32.mrf.mxu0
        %v451 = vadd.f32 0.0, %v450
        %v452 = vpop.f32.mrf.mxu0
        %v453 = vpop.f32.mrf.mxu0
        %v454 = vadd.f32 0.0, %v453
        %v455 = vpop.f32.mrf.mxu0
        %456 = vmatprep.mubr.bf16.mxu0 0
        %457 = vmatmul.mubr.bf16.gmra.mxu0 %v371
        %v458 = vpop.f32.mrf.mxu0
        %v459 = vadd.f32 0.0, %v458
        %v460 = vpop.f32.mrf.mxu0
        %v461 = vpop.f32.mrf.mxu0
        %v462 = vadd.f32 0.0, %v461
        %v463 = vpop.f32.mrf.mxu0
        %464 = vmatprep.mubr.bf16.mxu0 0
        %465 = vmatmul.mubr.bf16.gmra.mxu0 %v374
        %v466 = vpop.f32.mrf.mxu0
        %v467 = vadd.f32 0.0, %v466
        %v468 = vpop.f32.mrf.mxu0
        %v469 = vpop.f32.mrf.mxu0
        %v470 = vadd.f32 0.0, %v469
        %v471 = vpop.f32.mrf.mxu0
        %472 = vdwg.mxu0
        %v473 = vadd.f32 %v263, %v411
        %v474 = vadd.f32 %v264, %v414
        %v475 = vadd.f32 %v265, %v419
        %v476 = vadd.f32 %v266, %v422
        %v477 = vadd.f32 %v267, %v427
        %v478 = vadd.f32 %v268, %v430
        %v479 = vadd.f32 %v269, %v435
        %v480 = vadd.f32 %v270, %v438
        %v481 = vadd.f32 %v271, %v443
        %v482 = vadd.f32 %v272, %v446
        %v483 = vadd.f32 %v273, %v451
        %v484 = vadd.f32 %v274, %v454
        %v485 = vadd.f32 %v275, %v459
        %v486 = vadd.f32 %v276, %v462
        %v487 = vadd.f32 %v277, %v467
        %v488 = vadd.f32 %v278, %v470
        %489 = vst [vmem:[#allocation2] sm:$0xff] %v473
        %490 = vst [vmem:[#allocation2 + $0x8] sm:$0xff] %v474
        %491 = vst [vmem:[#allocation2 + $0x10] sm:$0xff] %v475
        %492 = vst [vmem:[#allocation2 + $0x18] sm:$0xff] %v476
        %493 = vst [vmem:[#allocation2 + $0x20] sm:$0xff] %v477
        %494 = vst [vmem:[#allocation2 + $0x28] sm:$0xff] %v478
        %495 = vst [vmem:[#allocation2 + $0x30] sm:$0xff] %v479
        %496 = vst [vmem:[#allocation2 + $0x38] sm:$0xff] %v480
        %497 = vst [vmem:[#allocation2 + $0x40] sm:$0xff] %v481
        %498 = vst [vmem:[#allocation2 + $0x48] sm:$0xff] %v482
        %499 = vst [vmem:[#allocation2 + $0x50] sm:$0xff] %v483
        %500 = vst [vmem:[#allocation2 + $0x58] sm:$0xff] %v484
        %501 = vst [vmem:[#allocation2 + $0x60] sm:$0xff] %v485
        %502 = vst [vmem:[#allocation2 + $0x68] sm:$0xff] %v486
        %503 = vst [vmem:[#allocation2 + $0x70] sm:$0xff] %v487
        %504 = vst [vmem:[#allocation2 + $0x78] sm:$0xff] %v488
        %v505 = vld [vmem:[%s246] sm:$0xf]
        %v506 = vld [vmem:[%s246 + $0x4] sm:$0xf]
        %v507 = vld [vmem:[%s246 + $0x8] sm:$0x1]
        %v508 = vld [vmem:[%s246 + $0xc] sm:$0xf]
        %v509 = vld [vmem:[%s246 + $0x10] sm:$0xf]
        %v510 = vld [vmem:[%s246 + $0x14] sm:$0x1]
        %v511 = vld [vmem:[%s246 + $0x18] sm:$0xf]
        %v512 = vld [vmem:[%s246 + $0x1c] sm:$0xf]
        %v513 = vld [vmem:[%s246 + $0x20] sm:$0x1]
        %v514 = vld [vmem:[%s246 + $0x24] sm:$0xf]
        %v515 = vld [vmem:[%s246 + $0x28] sm:$0xf]
        %v516 = vld [vmem:[%s246 + $0x2c] sm:$0x1]
        %v517 = vld [vmem:[%s246 + $0x30] sm:$0xf]
        %v518 = vld [vmem:[%s246 + $0x34] sm:$0xf]
        %v519 = vld [vmem:[%s246 + $0x38] sm:$0x1]
        %v520 = vld [vmem:[%s246 + $0x3c] sm:$0xf]
        %v521 = vld [vmem:[%s246 + $0x40] sm:$0xf]
        %v522 = vld [vmem:[%s246 + $0x44] sm:$0x1]
        %v523 = vld [vmem:[%s246 + $0x48] sm:$0xf]
        %v524 = vld [vmem:[%s246 + $0x4c] sm:$0xf]
        %v525 = vld [vmem:[%s246 + $0x50] sm:$0x1]
        %v526 = vld [vmem:[%s246 + $0x54] sm:$0xf]
        %v527 = vld [vmem:[%s246 + $0x58] sm:$0xf]
        %v528 = vld [vmem:[%s246 + $0x5c] sm:$0x1]
        %vm529 = vsmask.f32 3328
        %vm530 = vsmask.f32 7440
        %vm531 = vmor %vm529, %vm530
        %v533 = vshrl.u32 %v505, 16
        %v535 = vrot.slane %v533, 4
        %v536 = vshll.u32 %v505, 16
        %v538 = vrot.slane %v536, 5
        %v539 = vor.u32 %v535, %v538
        %v540 = vrot.slane %v539, 4
        %v542 = vshll.u32 %v506, 16
        %v544 = vrot.slane %v542, 5
        %v545 = vsel %vm531, %v540, %v544
        %v546 = vshrl.u32 %v506, 16
        %v548 = vrot.slane %v546, 4
        %v549 = vor.u32 %v548, %v544
        %v550 = vrot.slane %v549, 4
        %v552 = vshll.u32 %v507, 16
        %v554 = vrot.slane %v552, 5
        %v555 = vsel %vm531, %v550, %v554
        %v557 = vshrl.u32 %v508, 16
        %v559 = vrot.slane %v557, 4
        %v560 = vshll.u32 %v508, 16
        %v562 = vrot.slane %v560, 5
        %v563 = vor.u32 %v559, %v562
        %v564 = vrot.slane %v563, 4
        %v566 = vshll.u32 %v509, 16
        %v568 = vrot.slane %v566, 5
        %v569 = vsel %vm531, %v564, %v568
        %v570 = vshrl.u32 %v509, 16
        %v572 = vrot.slane %v570, 4
        %v573 = vor.u32 %v572, %v568
        %v574 = vrot.slane %v573, 4
        %v576 = vshll.u32 %v510, 16
        %v578 = vrot.slane %v576, 5
        %v579 = vsel %vm531, %v574, %v578
        %v581 = vshrl.u32 %v511, 16
        %v583 = vrot.slane %v581, 4
        %v584 = vshll.u32 %v511, 16
        %v586 = vrot.slane %v584, 5
        %v587 = vor.u32 %v583, %v586
        %v588 = vrot.slane %v587, 4
        %v590 = vshll.u32 %v512, 16
        %v592 = vrot.slane %v590, 5
        %v593 = vsel %vm531, %v588, %v592
        %v594 = vshrl.u32 %v512, 16
        %v596 = vrot.slane %v594, 4
        %v597 = vor.u32 %v596, %v592
        %v598 = vrot.slane %v597, 4
        %v600 = vshll.u32 %v513, 16
        %v602 = vrot.slane %v600, 5
        %v603 = vsel %vm531, %v598, %v602
        %v605 = vshrl.u32 %v514, 16
        %v607 = vrot.slane %v605, 4
        %v608 = vshll.u32 %v514, 16
        %v610 = vrot.slane %v608, 5
        %v611 = vor.u32 %v607, %v610
        %v612 = vrot.slane %v611, 4
        %v614 = vshll.u32 %v515, 16
        %v616 = vrot.slane %v614, 5
        %v617 = vsel %vm531, %v612, %v616
        %v618 = vshrl.u32 %v515, 16
        %v620 = vrot.slane %v618, 4
        %v621 = vor.u32 %v620, %v616
        %v622 = vrot.slane %v621, 4
        %v624 = vshll.u32 %v516, 16
        %v626 = vrot.slane %v624, 5
        %v627 = vsel %vm531, %v622, %v626
        %v629 = vshrl.u32 %v517, 16
        %v631 = vrot.slane %v629, 4
        %v632 = vshll.u32 %v517, 16
        %v634 = vrot.slane %v632, 5
        %v635 = vor.u32 %v631, %v634
        %v636 = vrot.slane %v635, 4
        %v638 = vshll.u32 %v518, 16
        %v640 = vrot.slane %v638, 5
        %v641 = vsel %vm531, %v636, %v640
        %v642 = vshrl.u32 %v518, 16
        %v644 = vrot.slane %v642, 4
        %v645 = vor.u32 %v644, %v640
        %v646 = vrot.slane %v645, 4
        %v648 = vshll.u32 %v519, 16
        %v650 = vrot.slane %v648, 5
        %v651 = vsel %vm531, %v646, %v650
        %v653 = vshrl.u32 %v520, 16
        %v655 = vrot.slane %v653, 4
        %v656 = vshll.u32 %v520, 16
        %v658 = vrot.slane %v656, 5
        %v659 = vor.u32 %v655, %v658
        %v660 = vrot.slane %v659, 4
        %v662 = vshll.u32 %v521, 16
        %v664 = vrot.slane %v662, 5
        %v665 = vsel %vm531, %v660, %v664
        %v666 = vshrl.u32 %v521, 16
        %v668 = vrot.slane %v666, 4
        %v669 = vor.u32 %v668, %v664
        %v670 = vrot.slane %v669, 4
        %v672 = vshll.u32 %v522, 16
        %v674 = vrot.slane %v672, 5
        %v675 = vsel %vm531, %v670, %v674
        %v677 = vshrl.u32 %v523, 16
        %v679 = vrot.slane %v677, 4
        %v680 = vshll.u32 %v523, 16
        %v682 = vrot.slane %v680, 5
        %v683 = vor.u32 %v679, %v682
        %v684 = vrot.slane %v683, 4
        %v686 = vshll.u32 %v524, 16
        %v688 = vrot.slane %v686, 5
        %v689 = vsel %vm531, %v684, %v688
        %v690 = vshrl.u32 %v524, 16
        %v692 = vrot.slane %v690, 4
        %v693 = vor.u32 %v692, %v688
        %v694 = vrot.slane %v693, 4
        %v696 = vshll.u32 %v525, 16
        %v698 = vrot.slane %v696, 5
        %v699 = vsel %vm531, %v694, %v698
        %v701 = vshrl.u32 %v526, 16
        %v703 = vrot.slane %v701, 4
        %v704 = vshll.u32 %v526, 16
        %v706 = vrot.slane %v704, 5
        %v707 = vor.u32 %v703, %v706
        %v708 = vrot.slane %v707, 4
        %v710 = vshll.u32 %v527, 16
        %v712 = vrot.slane %v710, 5
        %v713 = vsel %vm531, %v708, %v712
        %v714 = vshrl.u32 %v527, 16
        %v716 = vrot.slane %v714, 4
        %v717 = vor.u32 %v716, %v712
        %v718 = vrot.slane %v717, 4
        %v720 = vshll.u32 %v528, 16
        %v722 = vrot.slane %v720, 5
        %v723 = vsel %vm531, %v718, %v722
        %v724 = vld [vmem:[#allocation2] sm:$0xff]
        %v725 = vld [vmem:[#allocation2 + $0x8] sm:$0xff]
        %v726 = vld [vmem:[#allocation2 + $0x10] sm:$0xff]
        %v727 = vld [vmem:[#allocation2 + $0x18] sm:$0xff]
        %v728 = vld [vmem:[#allocation2 + $0x20] sm:$0xff]
        %v729 = vld [vmem:[#allocation2 + $0x28] sm:$0xff]
        %v730 = vld [vmem:[#allocation2 + $0x30] sm:$0xff]
        %v731 = vld [vmem:[#allocation2 + $0x38] sm:$0xff]
        %v732 = vld [vmem:[#allocation2 + $0x40] sm:$0xff]
        %v733 = vld [vmem:[#allocation2 + $0x48] sm:$0xff]
        %v734 = vld [vmem:[#allocation2 + $0x50] sm:$0xff]
        %v735 = vld [vmem:[#allocation2 + $0x58] sm:$0xff]
        %v736 = vld [vmem:[#allocation2 + $0x60] sm:$0xff]
        %v737 = vld [vmem:[#allocation2 + $0x68] sm:$0xff]
        %v738 = vld [vmem:[#allocation2 + $0x70] sm:$0xff]
        %v739 = vld [vmem:[#allocation2 + $0x78] sm:$0xff]
        %s740 = scalar_lea.vmem %s1, 32
        %v741 = vld [vmem:[%s740] sm:$0xf]
        %v742 = vld [vmem:[%s740 + $0x4] sm:$0xf]
        %v743 = vld [vmem:[%s740 + $0x8] sm:$0xf]
        %v744 = vld [vmem:[%s740 + $0xc] sm:$0xf]
        %v745 = vld [vmem:[%s740 + $0x10] sm:$0xf]
        %v746 = vld [vmem:[%s740 + $0x14] sm:$0xf]
        %v747 = vld [vmem:[%s740 + $0x18] sm:$0xf]
        %v748 = vld [vmem:[%s740 + $0x1c] sm:$0xf]
        %v749 = vunpack.c.l.b16 %v545
        %v750 = vunpack.c.l.b16 %v555
        %v751 = vunpack.c.l.b16 %v569
        %v752 = vunpack.c.l.b16 %v579
        %v753 = vunpack.c.l.b16 %v593
        %v754 = vunpack.c.l.b16 %v603
        %v755 = vunpack.c.l.b16 %v617
        %v756 = vunpack.c.l.b16 %v627
        %v757 = vunpack.c.l.b16 %v641
        %v758 = vunpack.c.l.b16 %v651
        %v759 = vunpack.c.l.b16 %v665
        %v760 = vunpack.c.l.b16 %v675
        %v761 = vunpack.c.l.b16 %v689
        %v762 = vunpack.c.l.b16 %v699
        %v763 = vunpack.c.l.b16 %v713
        %v764 = vunpack.c.l.b16 %v723
        %v765 = vpack.c.b16 %v750, %v749
        %v766 = vpack.c.b16 %v752, %v751
        %v767 = vpack.c.b16 %v754, %v753
        %v768 = vpack.c.b16 %v756, %v755
        %v769 = vpack.c.b16 %v758, %v757
        %v770 = vpack.c.b16 %v760, %v759
        %v771 = vpack.c.b16 %v762, %v761
        %v772 = vpack.c.b16 %v764, %v763
        %v781 = vunpack.c.l.b16 %v741
        %v782 = vunpack.c.l.b16 %v742
        %v783 = vunpack.c.l.b16 %v743
        %v784 = vunpack.c.l.b16 %v744
        %v785 = vunpack.c.l.b16 %v745
        %v786 = vunpack.c.l.b16 %v746
        %v787 = vunpack.c.l.b16 %v747
        %v788 = vunpack.c.l.b16 %v748
        %v789 = vpack.c.b16 %v782, %v781
        %v790 = vpack.c.b16 %v784, %v783
        %v791 = vpack.c.b16 %v786, %v785
        %v792 = vpack.c.b16 %v788, %v787
        %v798 = vsel %vm351, %v765, 0
        %v801 = vsel %vm351, %v766, 0
        %v804 = vsel %vm351, %v767, 0
        %v807 = vsel %vm351, %v768, 0
        %v810 = vsel %vm351, %v769, 0
        %v813 = vsel %vm351, %v770, 0
        %v816 = vsel %vm351, %v771, 0
        %v819 = vsel %vm351, %v772, 0
        %821 = vmatprep.subr.bf16.mxu0 0
        %822 = vmatpush1.bf16.msra.mxu0 0
        %823 = vmatprep.subr.bf16.mxu0 0
        %824 = vmatpush1.bf16.msra.mxu0 0
        %825 = vmatprep.subr.bf16.mxu0 0
        %826 = vmatpush1.bf16.msra.mxu0 0
        %827 = vmatprep.subr.bf16.mxu0 0
        %828 = vmatpush1.bf16.msra.mxu0 0
        %829 = vmatprep.subr.bf16.mxu0 0
        %830 = vmatpush1.bf16.msra.mxu0 %v792
        %831 = vmatprep.subr.bf16.mxu0 0
        %832 = vmatpush1.bf16.msra.mxu0 %v791
        %833 = vmatprep.subr.bf16.mxu0 0
        %834 = vmatpush1.bf16.msra.mxu0 %v790
        %835 = vmatprep.subr.bf16.mxu0 0
        %836 = vmatpush1.bf16.msra.mxu0 %v789
        %837 = vmatprep.subr.bf16.mxu0 0
        %838 = vmatpush2.bf16.msra.mxu0 0
        %839 = vmatprep.subr.bf16.mxu0 0
        %840 = vmatpush2.bf16.msra.mxu0 0
        %841 = vmatprep.subr.bf16.mxu0 0
        %842 = vmatpush2.bf16.msra.mxu0 0
        %843 = vmatprep.subr.bf16.mxu0 0
        %844 = vmatpush2.bf16.msra.mxu0 0
        %845 = vmatprep.subr.bf16.mxu0 0
        %846 = vmatpush2.bf16.msra.mxu0 0
        %847 = vmatprep.subr.bf16.mxu0 0
        %848 = vmatpush2.bf16.msra.mxu0 0
        %849 = vmatprep.subr.bf16.mxu0 0
        %850 = vmatpush2.bf16.msra.mxu0 0
        %851 = vmatprep.subr.bf16.mxu0 0
        %852 = vmatpush2.bf16.msra.mxu0 0
        %853 = vmatprep.mubr.bf16.mxu0 0
        %854 = vmatmul.mubr.bf16.gmra.mxu0 %v798
        %v855 = vpop.f32.mrf.mxu0
        %v856 = vadd.f32 0.0, %v855
        %v857 = vpop.f32.mrf.mxu0
        %v858 = vpop.f32.mrf.mxu0
        %v859 = vadd.f32 0.0, %v858
        %v860 = vpop.f32.mrf.mxu0
        %861 = vmatprep.mubr.bf16.mxu0 0
        %862 = vmatmul.mubr.bf16.gmra.mxu0 %v801
        %v863 = vpop.f32.mrf.mxu0
        %v864 = vadd.f32 0.0, %v863
        %v865 = vpop.f32.mrf.mxu0
        %v866 = vpop.f32.mrf.mxu0
        %v867 = vadd.f32 0.0, %v866
        %v868 = vpop.f32.mrf.mxu0
        %869 = vmatprep.mubr.bf16.mxu0 0
        %870 = vmatmul.mubr.bf16.gmra.mxu0 %v804
        %v871 = vpop.f32.mrf.mxu0
        %v872 = vadd.f32 0.0, %v871
        %v873 = vpop.f32.mrf.mxu0
        %v874 = vpop.f32.mrf.mxu0
        %v875 = vadd.f32 0.0, %v874
        %v876 = vpop.f32.mrf.mxu0
        %877 = vmatprep.mubr.bf16.mxu0 0
        %878 = vmatmul.mubr.bf16.gmra.mxu0 %v807
        %v879 = vpop.f32.mrf.mxu0
        %v880 = vadd.f32 0.0, %v879
        %v881 = vpop.f32.mrf.mxu0
        %v882 = vpop.f32.mrf.mxu0
        %v883 = vadd.f32 0.0, %v882
        %v884 = vpop.f32.mrf.mxu0
        %885 = vmatprep.mubr.bf16.mxu0 0
        %886 = vmatmul.mubr.bf16.gmra.mxu0 %v810
        %v887 = vpop.f32.mrf.mxu0
        %v888 = vadd.f32 0.0, %v887
        %v889 = vpop.f32.mrf.mxu0
        %v890 = vpop.f32.mrf.mxu0
        %v891 = vadd.f32 0.0, %v890
        %v892 = vpop.f32.mrf.mxu0
        %893 = vmatprep.mubr.bf16.mxu0 0
        %894 = vmatmul.mubr.bf16.gmra.mxu0 %v813
        %v895 = vpop.f32.mrf.mxu0
        %v896 = vadd.f32 0.0, %v895
        %v897 = vpop.f32.mrf.mxu0
        %v898 = vpop.f32.mrf.mxu0
        %v899 = vadd.f32 0.0, %v898
        %v900 = vpop.f32.mrf.mxu0
        %901 = vmatprep.mubr.bf16.mxu0 0
        %902 = vmatmul.mubr.bf16.gmra.mxu0 %v816
        %v903 = vpop.f32.mrf.mxu0
        %v904 = vadd.f32 0.0, %v903
        %v905 = vpop.f32.mrf.mxu0
        %v906 = vpop.f32.mrf.mxu0
        %v907 = vadd.f32 0.0, %v906
        %v908 = vpop.f32.mrf.mxu0
        %909 = vmatprep.mubr.bf16.mxu0 0
        %910 = vmatmul.mubr.bf16.gmra.mxu0 %v819
        %v911 = vpop.f32.mrf.mxu0
        %v912 = vadd.f32 0.0, %v911
        %v913 = vpop.f32.mrf.mxu0
        %v914 = vpop.f32.mrf.mxu0
        %v915 = vadd.f32 0.0, %v914
        %v916 = vpop.f32.mrf.mxu0
        %917 = vdwg.mxu0
        %v918 = vadd.f32 %v724, %v856
        %v919 = vadd.f32 %v725, %v859
        %v920 = vadd.f32 %v726, %v864
        %v921 = vadd.f32 %v727, %v867
        %v922 = vadd.f32 %v728, %v872
        %v923 = vadd.f32 %v729, %v875
        %v924 = vadd.f32 %v730, %v880
        %v925 = vadd.f32 %v731, %v883
        %v926 = vadd.f32 %v732, %v888
        %v927 = vadd.f32 %v733, %v891
        %v928 = vadd.f32 %v734, %v896
        %v929 = vadd.f32 %v735, %v899
        %v930 = vadd.f32 %v736, %v904
        %v931 = vadd.f32 %v737, %v907
        %v932 = vadd.f32 %v738, %v912
        %v933 = vadd.f32 %v739, %v915
        %934 = vst [vmem:[#allocation2] sm:$0xff] %v918
        %935 = vst [vmem:[#allocation2 + $0x8] sm:$0xff] %v919
        %936 = vst [vmem:[#allocation2 + $0x10] sm:$0xff] %v920
        %937 = vst [vmem:[#allocation2 + $0x18] sm:$0xff] %v921
        %938 = vst [vmem:[#allocation2 + $0x20] sm:$0xff] %v922
        %939 = vst [vmem:[#allocation2 + $0x28] sm:$0xff] %v923
        %940 = vst [vmem:[#allocation2 + $0x30] sm:$0xff] %v924
        %941 = vst [vmem:[#allocation2 + $0x38] sm:$0xff] %v925
        %942 = vst [vmem:[#allocation2 + $0x40] sm:$0xff] %v926
        %943 = vst [vmem:[#allocation2 + $0x48] sm:$0xff] %v927
        %944 = vst [vmem:[#allocation2 + $0x50] sm:$0xff] %v928
        %945 = vst [vmem:[#allocation2 + $0x58] sm:$0xff] %v929
        %946 = vst [vmem:[#allocation2 + $0x60] sm:$0xff] %v930
        %947 = vst [vmem:[#allocation2 + $0x68] sm:$0xff] %v931
        %948 = vst [vmem:[#allocation2 + $0x70] sm:$0xff] %v932
        %949 = vst [vmem:[#allocation2 + $0x78] sm:$0xff] %v933
        %v950 = vld [vmem:[%s246] sm:$0xe]
        %v951 = vld [vmem:[%s246 + $0x4] sm:$0xf]
        %v952 = vld [vmem:[%s246 + $0x8] sm:$0x1]
        %v953 = vld [vmem:[%s246 + $0xc] sm:$0xe]
        %v954 = vld [vmem:[%s246 + $0x10] sm:$0xf]
        %v955 = vld [vmem:[%s246 + $0x14] sm:$0x1]
        %v956 = vld [vmem:[%s246 + $0x18] sm:$0xe]
        %v957 = vld [vmem:[%s246 + $0x1c] sm:$0xf]
        %v958 = vld [vmem:[%s246 + $0x20] sm:$0x1]
        %v959 = vld [vmem:[%s246 + $0x24] sm:$0xe]
        %v960 = vld [vmem:[%s246 + $0x28] sm:$0xf]
        %v961 = vld [vmem:[%s246 + $0x2c] sm:$0x1]
        %v962 = vld [vmem:[%s246 + $0x30] sm:$0xe]
        %v963 = vld [vmem:[%s246 + $0x34] sm:$0xf]
        %v964 = vld [vmem:[%s246 + $0x38] sm:$0x1]
        %v965 = vld [vmem:[%s246 + $0x3c] sm:$0xe]
        %v966 = vld [vmem:[%s246 + $0x40] sm:$0xf]
        %v967 = vld [vmem:[%s246 + $0x44] sm:$0x1]
        %v968 = vld [vmem:[%s246 + $0x48] sm:$0xe]
        %v969 = vld [vmem:[%s246 + $0x4c] sm:$0xf]
        %v970 = vld [vmem:[%s246 + $0x50] sm:$0x1]
        %v971 = vld [vmem:[%s246 + $0x54] sm:$0xe]
        %v972 = vld [vmem:[%s246 + $0x58] sm:$0xf]
        %v973 = vld [vmem:[%s246 + $0x5c] sm:$0x1]
        %vm998 = vcmask 1042432
        %vm999 = vcmask 1046532
        %vm1000 = vmor %vm998, %vm999
        %v1001 = vrot.slane %v950, 5
        %v1002 = vrot.slane %v1001, 4
        %v1003 = vrot.slane %v951, 5
        %v1004 = vsel %vm1000, %v1002, %v1003
        %v1005 = vrot.slane %v1003, 4
        %v1006 = vrot.slane %v952, 5
        %v1007 = vsel %vm1000, %v1005, %v1006
        %v1008 = vrot.slane %v953, 5
        %v1009 = vrot.slane %v1008, 4
        %v1010 = vrot.slane %v954, 5
        %v1011 = vsel %vm1000, %v1009, %v1010
        %v1012 = vrot.slane %v1010, 4
        %v1013 = vrot.slane %v955, 5
        %v1014 = vsel %vm1000, %v1012, %v1013
        %v1015 = vrot.slane %v956, 5
        %v1016 = vrot.slane %v1015, 4
        %v1017 = vrot.slane %v957, 5
        %v1018 = vsel %vm1000, %v1016, %v1017
        %v1019 = vrot.slane %v1017, 4
        %v1020 = vrot.slane %v958, 5
        %v1021 = vsel %vm1000, %v1019, %v1020
        %v1022 = vrot.slane %v959, 5
        %v1023 = vrot.slane %v1022, 4
        %v1024 = vrot.slane %v960, 5
        %v1025 = vsel %vm1000, %v1023, %v1024
        %v1026 = vrot.slane %v1024, 4
        %v1027 = vrot.slane %v961, 5
        %v1028 = vsel %vm1000, %v1026, %v1027
        %v1029 = vrot.slane %v962, 5
        %v1030 = vrot.slane %v1029, 4
        %v1031 = vrot.slane %v963, 5
        %v1032 = vsel %vm1000, %v1030, %v1031
        %v1033 = vrot.slane %v1031, 4
        %v1034 = vrot.slane %v964, 5
        %v1035 = vsel %vm1000, %v1033, %v1034
        %v1036 = vrot.slane %v965, 5
        %v1037 = vrot.slane %v1036, 4
        %v1038 = vrot.slane %v966, 5
        %v1039 = vsel %vm1000, %v1037, %v1038
        %v1040 = vrot.slane %v1038, 4
        %v1041 = vrot.slane %v967, 5
        %v1042 = vsel %vm1000, %v1040, %v1041
        %v1043 = vrot.slane %v968, 5
        %v1044 = vrot.slane %v1043, 4
        %v1045 = vrot.slane %v969, 5
        %v1046 = vsel %vm1000, %v1044, %v1045
        %v1047 = vrot.slane %v1045, 4
        %v1048 = vrot.slane %v970, 5
        %v1049 = vsel %vm1000, %v1047, %v1048
        %v1050 = vrot.slane %v971, 5
        %v1051 = vrot.slane %v1050, 4
        %v1052 = vrot.slane %v972, 5
        %v1053 = vsel %vm1000, %v1051, %v1052
        %v1054 = vrot.slane %v1052, 4
        %v1055 = vrot.slane %v973, 5
        %v1056 = vsel %vm1000, %v1054, %v1055
        %v1057 = vld [vmem:[#allocation2] sm:$0xff]
        %v1058 = vld [vmem:[#allocation2 + $0x8] sm:$0xff]
        %v1059 = vld [vmem:[#allocation2 + $0x10] sm:$0xff]
        %v1060 = vld [vmem:[#allocation2 + $0x18] sm:$0xff]
        %v1061 = vld [vmem:[#allocation2 + $0x20] sm:$0xff]
        %v1062 = vld [vmem:[#allocation2 + $0x28] sm:$0xff]
        %v1063 = vld [vmem:[#allocation2 + $0x30] sm:$0xff]
        %v1064 = vld [vmem:[#allocation2 + $0x38] sm:$0xff]
        %v1065 = vld [vmem:[#allocation2 + $0x40] sm:$0xff]
        %v1066 = vld [vmem:[#allocation2 + $0x48] sm:$0xff]
        %v1067 = vld [vmem:[#allocation2 + $0x50] sm:$0xff]
        %v1068 = vld [vmem:[#allocation2 + $0x58] sm:$0xff]
        %v1069 = vld [vmem:[#allocation2 + $0x60] sm:$0xff]
        %v1070 = vld [vmem:[#allocation2 + $0x68] sm:$0xff]
        %v1071 = vld [vmem:[#allocation2 + $0x70] sm:$0xff]
        %v1072 = vld [vmem:[#allocation2 + $0x78] sm:$0xff]
        %s1073 = scalar_lea.vmem %s1, 64
        %v1074 = vld [vmem:[%s1073] sm:$0xf]
        %v1075 = vld [vmem:[%s1073 + $0x4] sm:$0xf]
        %v1076 = vld [vmem:[%s1073 + $0x8] sm:$0xf]
        %v1077 = vld [vmem:[%s1073 + $0xc] sm:$0xf]
        %v1078 = vld [vmem:[%s1073 + $0x10] sm:$0xf]
        %v1079 = vld [vmem:[%s1073 + $0x14] sm:$0xf]
        %v1080 = vld [vmem:[%s1073 + $0x18] sm:$0xf]
        %v1081 = vld [vmem:[%s1073 + $0x1c] sm:$0xf]
        %v1082 = vunpack.c.l.b16 %v1004
        %v1083 = vunpack.c.l.b16 %v1007
        %v1084 = vunpack.c.l.b16 %v1011
        %v1085 = vunpack.c.l.b16 %v1014
        %v1086 = vunpack.c.l.b16 %v1018
        %v1087 = vunpack.c.l.b16 %v1021
        %v1088 = vunpack.c.l.b16 %v1025
        %v1089 = vunpack.c.l.b16 %v1028
        %v1090 = vunpack.c.l.b16 %v1032
        %v1091 = vunpack.c.l.b16 %v1035
        %v1092 = vunpack.c.l.b16 %v1039
        %v1093 = vunpack.c.l.b16 %v1042
        %v1094 = vunpack.c.l.b16 %v1046
        %v1095 = vunpack.c.l.b16 %v1049
        %v1096 = vunpack.c.l.b16 %v1053
        %v1097 = vunpack.c.l.b16 %v1056
        %v1098 = vpack.c.b16 %v1083, %v1082
        %v1099 = vpack.c.b16 %v1085, %v1084
        %v1100 = vpack.c.b16 %v1087, %v1086
        %v1101 = vpack.c.b16 %v1089, %v1088
        %v1102 = vpack.c.b16 %v1091, %v1090
        %v1103 = vpack.c.b16 %v1093, %v1092
        %v1104 = vpack.c.b16 %v1095, %v1094
        %v1105 = vpack.c.b16 %v1097, %v1096
        %v1114 = vunpack.c.l.b16 %v1074
        %v1115 = vunpack.c.l.b16 %v1075
        %v1116 = vunpack.c.l.b16 %v1076
        %v1117 = vunpack.c.l.b16 %v1077
        %v1118 = vunpack.c.l.b16 %v1078
        %v1119 = vunpack.c.l.b16 %v1079
        %v1120 = vunpack.c.l.b16 %v1080
        %v1121 = vunpack.c.l.b16 %v1081
        %v1122 = vpack.c.b16 %v1115, %v1114
        %v1123 = vpack.c.b16 %v1117, %v1116
        %v1124 = vpack.c.b16 %v1119, %v1118
        %v1125 = vpack.c.b16 %v1121, %v1120
        %v1131 = vsel %vm351, %v1098, 0
        %v1134 = vsel %vm351, %v1099, 0
        %v1137 = vsel %vm351, %v1100, 0
        %v1140 = vsel %vm351, %v1101, 0
        %v1143 = vsel %vm351, %v1102, 0
        %v1146 = vsel %vm351, %v1103, 0
        %v1149 = vsel %vm351, %v1104, 0
        %v1152 = vsel %vm351, %v1105, 0
        %1154 = vmatprep.subr.bf16.mxu0 0
        %1155 = vmatpush1.bf16.msra.mxu0 0
        %1156 = vmatprep.subr.bf16.mxu0 0
        %1157 = vmatpush1.bf16.msra.mxu0 0
        %1158 = vmatprep.subr.bf16.mxu0 0
        %1159 = vmatpush1.bf16.msra.mxu0 0
        %1160 = vmatprep.subr.bf16.mxu0 0
        %1161 = vmatpush1.bf16.msra.mxu0 0
        %1162 = vmatprep.subr.bf16.mxu0 0
        %1163 = vmatpush1.bf16.msra.mxu0 %v1125
        %1164 = vmatprep.subr.bf16.mxu0 0
        %1165 = vmatpush1.bf16.msra.mxu0 %v1124
        %1166 = vmatprep.subr.bf16.mxu0 0
        %1167 = vmatpush1.bf16.msra.mxu0 %v1123
        %1168 = vmatprep.subr.bf16.mxu0 0
        %1169 = vmatpush1.bf16.msra.mxu0 %v1122
        %1170 = vmatprep.subr.bf16.mxu0 0
        %1171 = vmatpush2.bf16.msra.mxu0 0
        %1172 = vmatprep.subr.bf16.mxu0 0
        %1173 = vmatpush2.bf16.msra.mxu0 0
        %1174 = vmatprep.subr.bf16.mxu0 0
        %1175 = vmatpush2.bf16.msra.mxu0 0
        %1176 = vmatprep.subr.bf16.mxu0 0
        %1177 = vmatpush2.bf16.msra.mxu0 0
        %1178 = vmatprep.subr.bf16.mxu0 0
        %1179 = vmatpush2.bf16.msra.mxu0 0
        %1180 = vmatprep.subr.bf16.mxu0 0
        %1181 = vmatpush2.bf16.msra.mxu0 0
        %1182 = vmatprep.subr.bf16.mxu0 0
        %1183 = vmatpush2.bf16.msra.mxu0 0
        %1184 = vmatprep.subr.bf16.mxu0 0
        %1185 = vmatpush2.bf16.msra.mxu0 0
        %1186 = vmatprep.mubr.bf16.mxu0 0
        %1187 = vmatmul.mubr.bf16.gmra.mxu0 %v1131
        %v1188 = vpop.f32.mrf.mxu0
        %v1189 = vadd.f32 0.0, %v1188
        %v1190 = vpop.f32.mrf.mxu0
        %v1191 = vpop.f32.mrf.mxu0
        %v1192 = vadd.f32 0.0, %v1191
        %v1193 = vpop.f32.mrf.mxu0
        %1194 = vmatprep.mubr.bf16.mxu0 0
        %1195 = vmatmul.mubr.bf16.gmra.mxu0 %v1134
        %v1196 = vpop.f32.mrf.mxu0
        %v1197 = vadd.f32 0.0, %v1196
        %v1198 = vpop.f32.mrf.mxu0
        %v1199 = vpop.f32.mrf.mxu0
        %v1200 = vadd.f32 0.0, %v1199
        %v1201 = vpop.f32.mrf.mxu0
        %1202 = vmatprep.mubr.bf16.mxu0 0
        %1203 = vmatmul.mubr.bf16.gmra.mxu0 %v1137
        %v1204 = vpop.f32.mrf.mxu0
        %v1205 = vadd.f32 0.0, %v1204
        %v1206 = vpop.f32.mrf.mxu0
        %v1207 = vpop.f32.mrf.mxu0
        %v1208 = vadd.f32 0.0, %v1207
        %v1209 = vpop.f32.mrf.mxu0
        %1210 = vmatprep.mubr.bf16.mxu0 0
        %1211 = vmatmul.mubr.bf16.gmra.mxu0 %v1140
        %v1212 = vpop.f32.mrf.mxu0
        %v1213 = vadd.f32 0.0, %v1212
        %v1214 = vpop.f32.mrf.mxu0
        %v1215 = vpop.f32.mrf.mxu0
        %v1216 = vadd.f32 0.0, %v1215
        %v1217 = vpop.f32.mrf.mxu0
        %1218 = vmatprep.mubr.bf16.mxu0 0
        %1219 = vmatmul.mubr.bf16.gmra.mxu0 %v1143
        %v1220 = vpop.f32.mrf.mxu0
        %v1221 = vadd.f32 0.0, %v1220
        %v1222 = vpop.f32.mrf.mxu0
        %v1223 = vpop.f32.mrf.mxu0
        %v1224 = vadd.f32 0.0, %v1223
        %v1225 = vpop.f32.mrf.mxu0
        %1226 = vmatprep.mubr.bf16.mxu0 0
        %1227 = vmatmul.mubr.bf16.gmra.mxu0 %v1146
        %v1228 = vpop.f32.mrf.mxu0
        %v1229 = vadd.f32 0.0, %v1228
        %v1230 = vpop.f32.mrf.mxu0
        %v1231 = vpop.f32.mrf.mxu0
        %v1232 = vadd.f32 0.0, %v1231
        %v1233 = vpop.f32.mrf.mxu0
        %1234 = vmatprep.mubr.bf16.mxu0 0
        %1235 = vmatmul.mubr.bf16.gmra.mxu0 %v1149
        %v1236 = vpop.f32.mrf.mxu0
        %v1237 = vadd.f32 0.0, %v1236
        %v1238 = vpop.f32.mrf.mxu0
        %v1239 = vpop.f32.mrf.mxu0
        %v1240 = vadd.f32 0.0, %v1239
        %v1241 = vpop.f32.mrf.mxu0
        %1242 = vmatprep.mubr.bf16.mxu0 0
        %1243 = vmatmul.mubr.bf16.gmra.mxu0 %v1152
        %v1244 = vpop.f32.mrf.mxu0
        %v1245 = vadd.f32 0.0, %v1244
        %v1246 = vpop.f32.mrf.mxu0
        %v1247 = vpop.f32.mrf.mxu0
        %v1248 = vadd.f32 0.0, %v1247
        %v1249 = vpop.f32.mrf.mxu0
        %1250 = vdwg.mxu0
        %v1251 = vadd.f32 %v1057, %v1189
        %v1252 = vadd.f32 %v1058, %v1192
        %v1253 = vadd.f32 %v1059, %v1197
        %v1254 = vadd.f32 %v1060, %v1200
        %v1255 = vadd.f32 %v1061, %v1205
        %v1256 = vadd.f32 %v1062, %v1208
        %v1257 = vadd.f32 %v1063, %v1213
        %v1258 = vadd.f32 %v1064, %v1216
        %v1259 = vadd.f32 %v1065, %v1221
        %v1260 = vadd.f32 %v1066, %v1224
        %v1261 = vadd.f32 %v1067, %v1229
        %v1262 = vadd.f32 %v1068, %v1232
        %v1263 = vadd.f32 %v1069, %v1237
        %v1264 = vadd.f32 %v1070, %v1240
        %v1265 = vadd.f32 %v1071, %v1245
        %v1266 = vadd.f32 %v1072, %v1248
        %1267 = vst [vmem:[#allocation2] sm:$0xff] %v1251
        %1268 = vst [vmem:[#allocation2 + $0x8] sm:$0xff] %v1252
        %1269 = vst [vmem:[#allocation2 + $0x10] sm:$0xff] %v1253
        %1270 = vst [vmem:[#allocation2 + $0x18] sm:$0xff] %v1254
        %1271 = vst [vmem:[#allocation2 + $0x20] sm:$0xff] %v1255
        %1272 = vst [vmem:[#allocation2 + $0x28] sm:$0xff] %v1256
        %1273 = vst [vmem:[#allocation2 + $0x30] sm:$0xff] %v1257
        %1274 = vst [vmem:[#allocation2 + $0x38] sm:$0xff] %v1258
        %1275 = vst [vmem:[#allocation2 + $0x40] sm:$0xff] %v1259
        %1276 = vst [vmem:[#allocation2 + $0x48] sm:$0xff] %v1260
        %1277 = vst [vmem:[#allocation2 + $0x50] sm:$0xff] %v1261
        %1278 = vst [vmem:[#allocation2 + $0x58] sm:$0xff] %v1262
        %1279 = vst [vmem:[#allocation2 + $0x60] sm:$0xff] %v1263
        %1280 = vst [vmem:[#allocation2 + $0x68] sm:$0xff] %v1264
        %1281 = vst [vmem:[#allocation2 + $0x70] sm:$0xff] %v1265
        %1282 = vst [vmem:[#allocation2 + $0x78] sm:$0xff] %v1266
        %v1283 = vld [vmem:[%s246] sm:$0xe]
        %v1284 = vld [vmem:[%s246 + $0x4] sm:$0xf]
        %v1285 = vld [vmem:[%s246 + $0x8] sm:$0x3]
        %v1286 = vld [vmem:[%s246 + $0xc] sm:$0xe]
        %v1287 = vld [vmem:[%s246 + $0x10] sm:$0xf]
        %v1288 = vld [vmem:[%s246 + $0x14] sm:$0x3]
        %v1289 = vld [vmem:[%s246 + $0x18] sm:$0xe]
        %v1290 = vld [vmem:[%s246 + $0x1c] sm:$0xf]
        %v1291 = vld [vmem:[%s246 + $0x20] sm:$0x3]
        %v1292 = vld [vmem:[%s246 + $0x24] sm:$0xe]
        %v1293 = vld [vmem:[%s246 + $0x28] sm:$0xf]
        %v1294 = vld [vmem:[%s246 + $0x2c] sm:$0x3]
        %v1295 = vld [vmem:[%s246 + $0x30] sm:$0xe]
        %v1296 = vld [vmem:[%s246 + $0x34] sm:$0xf]
        %v1297 = vld [vmem:[%s246 + $0x38] sm:$0x3]
        %v1298 = vld [vmem:[%s246 + $0x3c] sm:$0xe]
        %v1299 = vld [vmem:[%s246 + $0x40] sm:$0xf]
        %v1300 = vld [vmem:[%s246 + $0x44] sm:$0x3]
        %v1301 = vld [vmem:[%s246 + $0x48] sm:$0xe]
        %v1302 = vld [vmem:[%s246 + $0x4c] sm:$0xf]
        %v1303 = vld [vmem:[%s246 + $0x50] sm:$0x3]
        %v1304 = vld [vmem:[%s246 + $0x54] sm:$0xe]
        %v1305 = vld [vmem:[%s246 + $0x58] sm:$0xf]
        %v1306 = vld [vmem:[%s246 + $0x5c] sm:$0x3]
        %vm1307 = vsmask.f32 2304
        %vm1308 = vsmask.f32 6416
        %vm1309 = vmor %vm1307, %vm1308
        %v1311 = vshrl.u32 %v1283, 16
        %v1313 = vrot.slane %v1311, 5
        %v1314 = vshll.u32 %v1283, 16
        %v1316 = vrot.slane %v1314, 6
        %v1317 = vor.u32 %v1313, %v1316
        %v1318 = vrot.slane %v1317, 4
        %v1320 = vshrl.u32 %v1284, 16
        %v1322 = vrot.slane %v1320, 5
        %v1323 = vshll.u32 %v1284, 16
        %v1325 = vrot.slane %v1323, 6
        %v1326 = vor.u32 %v1322, %v1325
        %v1327 = vsel %vm1309, %v1318, %v1326
        %v1328 = vrot.slane %v1326, 4
        %v1330 = vshrl.u32 %v1285, 16
        %v1332 = vrot.slane %v1330, 5
        %v1333 = vshll.u32 %v1285, 16
        %v1335 = vrot.slane %v1333, 6
        %v1336 = vor.u32 %v1332, %v1335
        %v1337 = vsel %vm1309, %v1328, %v1336
        %v1339 = vshrl.u32 %v1286, 16
        %v1341 = vrot.slane %v1339, 5
        %v1342 = vshll.u32 %v1286, 16
        %v1344 = vrot.slane %v1342, 6
        %v1345 = vor.u32 %v1341, %v1344
        %v1346 = vrot.slane %v1345, 4
        %v1348 = vshrl.u32 %v1287, 16
        %v1350 = vrot.slane %v1348, 5
        %v1351 = vshll.u32 %v1287, 16
        %v1353 = vrot.slane %v1351, 6
        %v1354 = vor.u32 %v1350, %v1353
        %v1355 = vsel %vm1309, %v1346, %v1354
        %v1356 = vrot.slane %v1354, 4
        %v1358 = vshrl.u32 %v1288, 16
        %v1360 = vrot.slane %v1358, 5
        %v1361 = vshll.u32 %v1288, 16
        %v1363 = vrot.slane %v1361, 6
        %v1364 = vor.u32 %v1360, %v1363
        %v1365 = vsel %vm1309, %v1356, %v1364
        %v1367 = vshrl.u32 %v1289, 16
        %v1369 = vrot.slane %v1367, 5
        %v1370 = vshll.u32 %v1289, 16
        %v1372 = vrot.slane %v1370, 6
        %v1373 = vor.u32 %v1369, %v1372
        %v1374 = vrot.slane %v1373, 4
        %v1376 = vshrl.u32 %v1290, 16
        %v1378 = vrot.slane %v1376, 5
        %v1379 = vshll.u32 %v1290, 16
        %v1381 = vrot.slane %v1379, 6
        %v1382 = vor.u32 %v1378, %v1381
        %v1383 = vsel %vm1309, %v1374, %v1382
        %v1384 = vrot.slane %v1382, 4
        %v1386 = vshrl.u32 %v1291, 16
        %v1388 = vrot.slane %v1386, 5
        %v1389 = vshll.u32 %v1291, 16
        %v1391 = vrot.slane %v1389, 6
        %v1392 = vor.u32 %v1388, %v1391
        %v1393 = vsel %vm1309, %v1384, %v1392
        %v1395 = vshrl.u32 %v1292, 16
        %v1397 = vrot.slane %v1395, 5
        %v1398 = vshll.u32 %v1292, 16
        %v1400 = vrot.slane %v1398, 6
        %v1401 = vor.u32 %v1397, %v1400
        %v1402 = vrot.slane %v1401, 4
        %v1404 = vshrl.u32 %v1293, 16
        %v1406 = vrot.slane %v1404, 5
        %v1407 = vshll.u32 %v1293, 16
        %v1409 = vrot.slane %v1407, 6
        %v1410 = vor.u32 %v1406, %v1409
        %v1411 = vsel %vm1309, %v1402, %v1410
        %v1412 = vrot.slane %v1410, 4
        %v1414 = vshrl.u32 %v1294, 16
        %v1416 = vrot.slane %v1414, 5
        %v1417 = vshll.u32 %v1294, 16
        %v1419 = vrot.slane %v1417, 6
        %v1420 = vor.u32 %v1416, %v1419
        %v1421 = vsel %vm1309, %v1412, %v1420
        %v1423 = vshrl.u32 %v1295, 16
        %v1425 = vrot.slane %v1423, 5
        %v1426 = vshll.u32 %v1295, 16
        %v1428 = vrot.slane %v1426, 6
        %v1429 = vor.u32 %v1425, %v1428
        %v1430 = vrot.slane %v1429, 4
        %v1432 = vshrl.u32 %v1296, 16
        %v1434 = vrot.slane %v1432, 5
        %v1435 = vshll.u32 %v1296, 16
        %v1437 = vrot.slane %v1435, 6
        %v1438 = vor.u32 %v1434, %v1437
        %v1439 = vsel %vm1309, %v1430, %v1438
        %v1440 = vrot.slane %v1438, 4
        %v1442 = vshrl.u32 %v1297, 16
        %v1444 = vrot.slane %v1442, 5
        %v1445 = vshll.u32 %v1297, 16
        %v1447 = vrot.slane %v1445, 6
        %v1448 = vor.u32 %v1444, %v1447
        %v1449 = vsel %vm1309, %v1440, %v1448
        %v1451 = vshrl.u32 %v1298, 16
        %v1453 = vrot.slane %v1451, 5
        %v1454 = vshll.u32 %v1298, 16
        %v1456 = vrot.slane %v1454, 6
        %v1457 = vor.u32 %v1453, %v1456
        %v1458 = vrot.slane %v1457, 4
        %v1460 = vshrl.u32 %v1299, 16
        %v1462 = vrot.slane %v1460, 5
        %v1463 = vshll.u32 %v1299, 16
        %v1465 = vrot.slane %v1463, 6
        %v1466 = vor.u32 %v1462, %v1465
        %v1467 = vsel %vm1309, %v1458, %v1466
        %v1468 = vrot.slane %v1466, 4
        %v1470 = vshrl.u32 %v1300, 16
        %v1472 = vrot.slane %v1470, 5
        %v1473 = vshll.u32 %v1300, 16
        %v1475 = vrot.slane %v1473, 6
        %v1476 = vor.u32 %v1472, %v1475
        %v1477 = vsel %vm1309, %v1468, %v1476
        %v1479 = vshrl.u32 %v1301, 16
        %v1481 = vrot.slane %v1479, 5
        %v1482 = vshll.u32 %v1301, 16
        %v1484 = vrot.slane %v1482, 6
        %v1485 = vor.u32 %v1481, %v1484
        %v1486 = vrot.slane %v1485, 4
        %v1488 = vshrl.u32 %v1302, 16
        %v1490 = vrot.slane %v1488, 5
        %v1491 = vshll.u32 %v1302, 16
        %v1493 = vrot.slane %v1491, 6
        %v1494 = vor.u32 %v1490, %v1493
        %v1495 = vsel %vm1309, %v1486, %v1494
        %v1496 = vrot.slane %v1494, 4
        %v1498 = vshrl.u32 %v1303, 16
        %v1500 = vrot.slane %v1498, 5
        %v1501 = vshll.u32 %v1303, 16
        %v1503 = vrot.slane %v1501, 6
        %v1504 = vor.u32 %v1500, %v1503
        %v1505 = vsel %vm1309, %v1496, %v1504
        %v1507 = vshrl.u32 %v1304, 16
        %v1509 = vrot.slane %v1507, 5
        %v1510 = vshll.u32 %v1304, 16
        %v1512 = vrot.slane %v1510, 6
        %v1513 = vor.u32 %v1509, %v1512
        %v1514 = vrot.slane %v1513, 4
        %v1516 = vshrl.u32 %v1305, 16
        %v1518 = vrot.slane %v1516, 5
        %v1519 = vshll.u32 %v1305, 16
        %v1521 = vrot.slane %v1519, 6
        %v1522 = vor.u32 %v1518, %v1521
        %v1523 = vsel %vm1309, %v1514, %v1522
        %v1524 = vrot.slane %v1522, 4
        %v1526 = vshrl.u32 %v1306, 16
        %v1528 = vrot.slane %v1526, 5
        %v1529 = vshll.u32 %v1306, 16
        %v1531 = vrot.slane %v1529, 6
        %v1532 = vor.u32 %v1528, %v1531
        %v1533 = vsel %vm1309, %v1524, %v1532
        %v1534 = vld [vmem:[#allocation2] sm:$0xff]
        %v1535 = vld [vmem:[#allocation2 + $0x8] sm:$0xff]
        %v1536 = vld [vmem:[#allocation2 + $0x10] sm:$0xff]
        %v1537 = vld [vmem:[#allocation2 + $0x18] sm:$0xff]
        %v1538 = vld [vmem:[#allocation2 + $0x20] sm:$0xff]
        %v1539 = vld [vmem:[#allocation2 + $0x28] sm:$0xff]
        %v1540 = vld [vmem:[#allocation2 + $0x30] sm:$0xff]
        %v1541 = vld [vmem:[#allocation2 + $0x38] sm:$0xff]
        %v1542 = vld [vmem:[#allocation2 + $0x40] sm:$0xff]
        %v1543 = vld [vmem:[#allocation2 + $0x48] sm:$0xff]
        %v1544 = vld [vmem:[#allocation2 + $0x50] sm:$0xff]
        %v1545 = vld [vmem:[#allocation2 + $0x58] sm:$0xff]
        %v1546 = vld [vmem:[#allocation2 + $0x60] sm:$0xff]
        %v1547 = vld [vmem:[#allocation2 + $0x68] sm:$0xff]
        %v1548 = vld [vmem:[#allocation2 + $0x70] sm:$0xff]
        %v1549 = vld [vmem:[#allocation2 + $0x78] sm:$0xff]
        %s1550 = scalar_lea.vmem %s1, 96
        %v1551 = vld [vmem:[%s1550] sm:$0xf]
        %v1552 = vld [vmem:[%s1550 + $0x4] sm:$0xf]
        %v1553 = vld [vmem:[%s1550 + $0x8] sm:$0xf]
        %v1554 = vld [vmem:[%s1550 + $0xc] sm:$0xf]
        %v1555 = vld [vmem:[%s1550 + $0x10] sm:$0xf]
        %v1556 = vld [vmem:[%s1550 + $0x14] sm:$0xf]
        %v1557 = vld [vmem:[%s1550 + $0x18] sm:$0xf]
        %v1558 = vld [vmem:[%s1550 + $0x1c] sm:$0xf]
        %v1559 = vunpack.c.l.b16 %v1327
        %v1560 = vunpack.c.l.b16 %v1337
        %v1561 = vunpack.c.l.b16 %v1355
        %v1562 = vunpack.c.l.b16 %v1365
        %v1563 = vunpack.c.l.b16 %v1383
        %v1564 = vunpack.c.l.b16 %v1393
        %v1565 = vunpack.c.l.b16 %v1411
        %v1566 = vunpack.c.l.b16 %v1421
        %v1567 = vunpack.c.l.b16 %v1439
        %v1568 = vunpack.c.l.b16 %v1449
        %v1569 = vunpack.c.l.b16 %v1467
        %v1570 = vunpack.c.l.b16 %v1477
        %v1571 = vunpack.c.l.b16 %v1495
        %v1572 = vunpack.c.l.b16 %v1505
        %v1573 = vunpack.c.l.b16 %v1523
        %v1574 = vunpack.c.l.b16 %v1533
        %v1575 = vpack.c.b16 %v1560, %v1559
        %v1576 = vpack.c.b16 %v1562, %v1561
        %v1577 = vpack.c.b16 %v1564, %v1563
        %v1578 = vpack.c.b16 %v1566, %v1565
        %v1579 = vpack.c.b16 %v1568, %v1567
        %v1580 = vpack.c.b16 %v1570, %v1569
        %v1581 = vpack.c.b16 %v1572, %v1571
        %v1582 = vpack.c.b16 %v1574, %v1573
        %v1591 = vunpack.c.l.b16 %v1551
        %v1592 = vunpack.c.l.b16 %v1552
        %v1593 = vunpack.c.l.b16 %v1553
        %v1594 = vunpack.c.l.b16 %v1554
        %v1595 = vunpack.c.l.b16 %v1555
        %v1596 = vunpack.c.l.b16 %v1556
        %v1597 = vunpack.c.l.b16 %v1557
        %v1598 = vunpack.c.l.b16 %v1558
        %v1599 = vpack.c.b16 %v1592, %v1591
        %v1600 = vpack.c.b16 %v1594, %v1593
        %v1601 = vpack.c.b16 %v1596, %v1595
        %v1602 = vpack.c.b16 %v1598, %v1597
        %v1608 = vsel %vm351, %v1575, 0
        %v1611 = vsel %vm351, %v1576, 0
        %v1614 = vsel %vm351, %v1577, 0
        %v1617 = vsel %vm351, %v1578, 0
        %v1620 = vsel %vm351, %v1579, 0
        %v1623 = vsel %vm351, %v1580, 0
        %v1626 = vsel %vm351, %v1581, 0
        %v1629 = vsel %vm351, %v1582, 0
        %1631 = vmatprep.subr.bf16.mxu0 0
        %1632 = vmatpush1.bf16.msra.mxu0 0
        %1633 = vmatprep.subr.bf16.mxu0 0
        %1634 = vmatpush1.bf16.msra.mxu0 0
        %1635 = vmatprep.subr.bf16.mxu0 0
        %1636 = vmatpush1.bf16.msra.mxu0 0
        %1637 = vmatprep.subr.bf16.mxu0 0
        %1638 = vmatpush1.bf16.msra.mxu0 0
        %1639 = vmatprep.subr.bf16.mxu0 0
        %1640 = vmatpush1.bf16.msra.mxu0 %v1602
        %1641 = vmatprep.subr.bf16.mxu0 0
        %1642 = vmatpush1.bf16.msra.mxu0 %v1601
        %1643 = vmatprep.subr.bf16.mxu0 0
        %1644 = vmatpush1.bf16.msra.mxu0 %v1600
        %1645 = vmatprep.subr.bf16.mxu0 0
        %1646 = vmatpush1.bf16.msra.mxu0 %v1599
        %1647 = vmatprep.subr.bf16.mxu0 0
        %1648 = vmatpush2.bf16.msra.mxu0 0
        %1649 = vmatprep.subr.bf16.mxu0 0
        %1650 = vmatpush2.bf16.msra.mxu0 0
        %1651 = vmatprep.subr.bf16.mxu0 0
        %1652 = vmatpush2.bf16.msra.mxu0 0
        %1653 = vmatprep.subr.bf16.mxu0 0
        %1654 = vmatpush2.bf16.msra.mxu0 0
        %1655 = vmatprep.subr.bf16.mxu0 0
        %1656 = vmatpush2.bf16.msra.mxu0 0
        %1657 = vmatprep.subr.bf16.mxu0 0
        %1658 = vmatpush2.bf16.msra.mxu0 0
        %1659 = vmatprep.subr.bf16.mxu0 0
        %1660 = vmatpush2.bf16.msra.mxu0 0
        %1661 = vmatprep.subr.bf16.mxu0 0
        %1662 = vmatpush2.bf16.msra.mxu0 0
        %1663 = vmatprep.mubr.bf16.mxu0 0
        %1664 = vmatmul.mubr.bf16.gmra.mxu0 %v1608
        %v1665 = vpop.f32.mrf.mxu0
        %v1666 = vadd.f32 0.0, %v1665
        %v1667 = vpop.f32.mrf.mxu0
        %v1668 = vpop.f32.mrf.mxu0
        %v1669 = vadd.f32 0.0, %v1668
        %v1670 = vpop.f32.mrf.mxu0
        %1671 = vmatprep.mubr.bf16.mxu0 0
        %1672 = vmatmul.mubr.bf16.gmra.mxu0 %v1611
        %v1673 = vpop.f32.mrf.mxu0
        %v1674 = vadd.f32 0.0, %v1673
        %v1675 = vpop.f32.mrf.mxu0
        %v1676 = vpop.f32.mrf.mxu0
        %v1677 = vadd.f32 0.0, %v1676
        %v1678 = vpop.f32.mrf.mxu0
        %1679 = vmatprep.mubr.bf16.mxu0 0
        %1680 = vmatmul.mubr.bf16.gmra.mxu0 %v1614
        %v1681 = vpop.f32.mrf.mxu0
        %v1682 = vadd.f32 0.0, %v1681
        %v1683 = vpop.f32.mrf.mxu0
        %v1684 = vpop.f32.mrf.mxu0
        %v1685 = vadd.f32 0.0, %v1684
        %v1686 = vpop.f32.mrf.mxu0
        %1687 = vmatprep.mubr.bf16.mxu0 0
        %1688 = vmatmul.mubr.bf16.gmra.mxu0 %v1617
        %v1689 = vpop.f32.mrf.mxu0
        %v1690 = vadd.f32 0.0, %v1689
        %v1691 = vpop.f32.mrf.mxu0
        %v1692 = vpop.f32.mrf.mxu0
        %v1693 = vadd.f32 0.0, %v1692
        %v1694 = vpop.f32.mrf.mxu0
        %1695 = vmatprep.mubr.bf16.mxu0 0
        %1696 = vmatmul.mubr.bf16.gmra.mxu0 %v1620
        %v1697 = vpop.f32.mrf.mxu0
        %v1698 = vadd.f32 0.0, %v1697
        %v1699 = vpop.f32.mrf.mxu0
        %v1700 = vpop.f32.mrf.mxu0
        %v1701 = vadd.f32 0.0, %v1700
        %v1702 = vpop.f32.mrf.mxu0
        %1703 = vmatprep.mubr.bf16.mxu0 0
        %1704 = vmatmul.mubr.bf16.gmra.mxu0 %v1623
        %v1705 = vpop.f32.mrf.mxu0
        %v1706 = vadd.f32 0.0, %v1705
        %v1707 = vpop.f32.mrf.mxu0
        %v1708 = vpop.f32.mrf.mxu0
        %v1709 = vadd.f32 0.0, %v1708
        %v1710 = vpop.f32.mrf.mxu0
        %1711 = vmatprep.mubr.bf16.mxu0 0
        %1712 = vmatmul.mubr.bf16.gmra.mxu0 %v1626
        %v1713 = vpop.f32.mrf.mxu0
        %v1714 = vadd.f32 0.0, %v1713
        %v1715 = vpop.f32.mrf.mxu0
        %v1716 = vpop.f32.mrf.mxu0
        %v1717 = vadd.f32 0.0, %v1716
        %v1718 = vpop.f32.mrf.mxu0
        %1719 = vmatprep.mubr.bf16.mxu0 0
        %1720 = vmatmul.mubr.bf16.gmra.mxu0 %v1629
        %v1721 = vpop.f32.mrf.mxu0
        %v1722 = vadd.f32 0.0, %v1721
        %v1723 = vpop.f32.mrf.mxu0
        %v1724 = vpop.f32.mrf.mxu0
        %v1725 = vadd.f32 0.0, %v1724
        %v1726 = vpop.f32.mrf.mxu0
        %1727 = vdwg.mxu0
        %v1728 = vadd.f32 %v1534, %v1666
        %v1729 = vadd.f32 %v1535, %v1669
        %v1730 = vadd.f32 %v1536, %v1674
        %v1731 = vadd.f32 %v1537, %v1677
        %v1732 = vadd.f32 %v1538, %v1682
        %v1733 = vadd.f32 %v1539, %v1685
        %v1734 = vadd.f32 %v1540, %v1690
        %v1735 = vadd.f32 %v1541, %v1693
        %v1736 = vadd.f32 %v1542, %v1698
        %v1737 = vadd.f32 %v1543, %v1701
        %v1738 = vadd.f32 %v1544, %v1706
        %v1739 = vadd.f32 %v1545, %v1709
        %v1740 = vadd.f32 %v1546, %v1714
        %v1741 = vadd.f32 %v1547, %v1717
        %v1742 = vadd.f32 %v1548, %v1722
        %v1743 = vadd.f32 %v1549, %v1725
        %1744 = vst [vmem:[#allocation2] sm:$0xff] %v1728
        %1745 = vst [vmem:[#allocation2 + $0x8] sm:$0xff] %v1729
        %1746 = vst [vmem:[#allocation2 + $0x10] sm:$0xff] %v1730
        %1747 = vst [vmem:[#allocation2 + $0x18] sm:$0xff] %v1731
        %1748 = vst [vmem:[#allocation2 + $0x20] sm:$0xff] %v1732
        %1749 = vst [vmem:[#allocation2 + $0x28] sm:$0xff] %v1733
        %1750 = vst [vmem:[#allocation2 + $0x30] sm:$0xff] %v1734
        %1751 = vst [vmem:[#allocation2 + $0x38] sm:$0xff] %v1735
        %1752 = vst [vmem:[#allocation2 + $0x40] sm:$0xff] %v1736
        %1753 = vst [vmem:[#allocation2 + $0x48] sm:$0xff] %v1737
        %1754 = vst [vmem:[#allocation2 + $0x50] sm:$0xff] %v1738
        %1755 = vst [vmem:[#allocation2 + $0x58] sm:$0xff] %v1739
        %1756 = vst [vmem:[#allocation2 + $0x60] sm:$0xff] %v1740
        %1757 = vst [vmem:[#allocation2 + $0x68] sm:$0xff] %v1741
        %1758 = vst [vmem:[#allocation2 + $0x70] sm:$0xff] %v1742
        %1759 = vst [vmem:[#allocation2 + $0x78] sm:$0xff] %v1743
        %v1760 = vld [vmem:[%s246] sm:$0xc]
        %v1761 = vld [vmem:[%s246 + $0x4] sm:$0xf]
        %v1762 = vld [vmem:[%s246 + $0x8] sm:$0x3]
        %v1763 = vld [vmem:[%s246 + $0xc] sm:$0xc]
        %v1764 = vld [vmem:[%s246 + $0x10] sm:$0xf]
        %v1765 = vld [vmem:[%s246 + $0x14] sm:$0x3]
        %v1766 = vld [vmem:[%s246 + $0x18] sm:$0xc]
        %v1767 = vld [vmem:[%s246 + $0x1c] sm:$0xf]
        %v1768 = vld [vmem:[%s246 + $0x20] sm:$0x3]
        %v1769 = vld [vmem:[%s246 + $0x24] sm:$0xc]
        %v1770 = vld [vmem:[%s246 + $0x28] sm:$0xf]
        %v1771 = vld [vmem:[%s246 + $0x2c] sm:$0x3]
        %v1772 = vld [vmem:[%s246 + $0x30] sm:$0xc]
        %v1773 = vld [vmem:[%s246 + $0x34] sm:$0xf]
        %v1774 = vld [vmem:[%s246 + $0x38] sm:$0x3]
        %v1775 = vld [vmem:[%s246 + $0x3c] sm:$0xc]
        %v1776 = vld [vmem:[%s246 + $0x40] sm:$0xf]
        %v1777 = vld [vmem:[%s246 + $0x44] sm:$0x3]
        %v1778 = vld [vmem:[%s246 + $0x48] sm:$0xc]
        %v1779 = vld [vmem:[%s246 + $0x4c] sm:$0xf]
        %v1780 = vld [vmem:[%s246 + $0x50] sm:$0x3]
        %v1781 = vld [vmem:[%s246 + $0x54] sm:$0xc]
        %v1782 = vld [vmem:[%s246 + $0x58] sm:$0xf]
        %v1783 = vld [vmem:[%s246 + $0x5c] sm:$0x3]
        %vm1808 = vcmask 1041408
        %vm1809 = vcmask 1045508
        %vm1810 = vmor %vm1808, %vm1809
        %v1811 = vrot.slane %v1760, 6
        %v1812 = vrot.slane %v1811, 4
        %v1813 = vrot.slane %v1761, 6
        %v1814 = vsel %vm1810, %v1812, %v1813
        %v1815 = vrot.slane %v1813, 4
        %v1816 = vrot.slane %v1762, 6
        %v1817 = vsel %vm1810, %v1815, %v1816
        %v1818 = vrot.slane %v1763, 6
        %v1819 = vrot.slane %v1818, 4
        %v1820 = vrot.slane %v1764, 6
        %v1821 = vsel %vm1810, %v1819, %v1820
        %v1822 = vrot.slane %v1820, 4
        %v1823 = vrot.slane %v1765, 6
        %v1824 = vsel %vm1810, %v1822, %v1823
        %v1825 = vrot.slane %v1766, 6
        %v1826 = vrot.slane %v1825, 4
        %v1827 = vrot.slane %v1767, 6
        %v1828 = vsel %vm1810, %v1826, %v1827
        %v1829 = vrot.slane %v1827, 4
        %v1830 = vrot.slane %v1768, 6
        %v1831 = vsel %vm1810, %v1829, %v1830
        %v1832 = vrot.slane %v1769, 6
        %v1833 = vrot.slane %v1832, 4
        %v1834 = vrot.slane %v1770, 6
        %v1835 = vsel %vm1810, %v1833, %v1834
        %v1836 = vrot.slane %v1834, 4
        %v1837 = vrot.slane %v1771, 6
        %v1838 = vsel %vm1810, %v1836, %v1837
        %v1839 = vrot.slane %v1772, 6
        %v1840 = vrot.slane %v1839, 4
        %v1841 = vrot.slane %v1773, 6
        %v1842 = vsel %vm1810, %v1840, %v1841
        %v1843 = vrot.slane %v1841, 4
        %v1844 = vrot.slane %v1774, 6
        %v1845 = vsel %vm1810, %v1843, %v1844
        %v1846 = vrot.slane %v1775, 6
        %v1847 = vrot.slane %v1846, 4
        %v1848 = vrot.slane %v1776, 6
        %v1849 = vsel %vm1810, %v1847, %v1848
        %v1850 = vrot.slane %v1848, 4
        %v1851 = vrot.slane %v1777, 6
        %v1852 = vsel %vm1810, %v1850, %v1851
        %v1853 = vrot.slane %v1778, 6
        %v1854 = vrot.slane %v1853, 4
        %v1855 = vrot.slane %v1779, 6
        %v1856 = vsel %vm1810, %v1854, %v1855
        %v1857 = vrot.slane %v1855, 4
        %v1858 = vrot.slane %v1780, 6
        %v1859 = vsel %vm1810, %v1857, %v1858
        %v1860 = vrot.slane %v1781, 6
        %v1861 = vrot.slane %v1860, 4
        %v1862 = vrot.slane %v1782, 6
        %v1863 = vsel %vm1810, %v1861, %v1862
        %v1864 = vrot.slane %v1862, 4
        %v1865 = vrot.slane %v1783, 6
        %v1866 = vsel %vm1810, %v1864, %v1865
        %v1867 = vld [vmem:[#allocation2] sm:$0xff]
        %v1868 = vld [vmem:[#allocation2 + $0x8] sm:$0xff]
        %v1869 = vld [vmem:[#allocation2 + $0x10] sm:$0xff]
        %v1870 = vld [vmem:[#allocation2 + $0x18] sm:$0xff]
        %v1871 = vld [vmem:[#allocation2 + $0x20] sm:$0xff]
        %v1872 = vld [vmem:[#allocation2 + $0x28] sm:$0xff]
        %v1873 = vld [vmem:[#allocation2 + $0x30] sm:$0xff]
        %v1874 = vld [vmem:[#allocation2 + $0x38] sm:$0xff]
        %v1875 = vld [vmem:[#allocation2 + $0x40] sm:$0xff]
        %v1876 = vld [vmem:[#allocation2 + $0x48] sm:$0xff]
        %v1877 = vld [vmem:[#allocation2 + $0x50] sm:$0xff]
        %v1878 = vld [vmem:[#allocation2 + $0x58] sm:$0xff]
        %v1879 = vld [vmem:[#allocation2 + $0x60] sm:$0xff]
        %v1880 = vld [vmem:[#allocation2 + $0x68] sm:$0xff]
        %v1881 = vld [vmem:[#allocation2 + $0x70] sm:$0xff]
        %v1882 = vld [vmem:[#allocation2 + $0x78] sm:$0xff]
        %s1883 = scalar_lea.vmem %s1, 128
        %v1884 = vld [vmem:[%s1883] sm:$0xf]
        %v1885 = vld [vmem:[%s1883 + $0x4] sm:$0xf]
        %v1886 = vld [vmem:[%s1883 + $0x8] sm:$0xf]
        %v1887 = vld [vmem:[%s1883 + $0xc] sm:$0xf]
        %v1888 = vld [vmem:[%s1883 + $0x10] sm:$0xf]
        %v1889 = vld [vmem:[%s1883 + $0x14] sm:$0xf]
        %v1890 = vld [vmem:[%s1883 + $0x18] sm:$0xf]
        %v1891 = vld [vmem:[%s1883 + $0x1c] sm:$0xf]
        %v1892 = vunpack.c.l.b16 %v1814
        %v1893 = vunpack.c.l.b16 %v1817
        %v1894 = vunpack.c.l.b16 %v1821
        %v1895 = vunpack.c.l.b16 %v1824
        %v1896 = vunpack.c.l.b16 %v1828
        %v1897 = vunpack.c.l.b16 %v1831
        %v1898 = vunpack.c.l.b16 %v1835
        %v1899 = vunpack.c.l.b16 %v1838
        %v1900 = vunpack.c.l.b16 %v1842
        %v1901 = vunpack.c.l.b16 %v1845
        %v1902 = vunpack.c.l.b16 %v1849
        %v1903 = vunpack.c.l.b16 %v1852
        %v1904 = vunpack.c.l.b16 %v1856
        %v1905 = vunpack.c.l.b16 %v1859
        %v1906 = vunpack.c.l.b16 %v1863
        %v1907 = vunpack.c.l.b16 %v1866
        %v1908 = vpack.c.b16 %v1893, %v1892
        %v1909 = vpack.c.b16 %v1895, %v1894
        %v1910 = vpack.c.b16 %v1897, %v1896
        %v1911 = vpack.c.b16 %v1899, %v1898
        %v1912 = vpack.c.b16 %v1901, %v1900
        %v1913 = vpack.c.b16 %v1903, %v1902
        %v1914 = vpack.c.b16 %v1905, %v1904
        %v1915 = vpack.c.b16 %v1907, %v1906
        %v1924 = vunpack.c.l.b16 %v1884
        %v1925 = vunpack.c.l.b16 %v1885
        %v1926 = vunpack.c.l.b16 %v1886
        %v1927 = vunpack.c.l.b16 %v1887
        %v1928 = vunpack.c.l.b16 %v1888
        %v1929 = vunpack.c.l.b16 %v1889
        %v1930 = vunpack.c.l.b16 %v1890
        %v1931 = vunpack.c.l.b16 %v1891
        %v1932 = vpack.c.b16 %v1925, %v1924
        %v1933 = vpack.c.b16 %v1927, %v1926
        %v1934 = vpack.c.b16 %v1929, %v1928
        %v1935 = vpack.c.b16 %v1931, %v1930
        %v1941 = vsel %vm351, %v1908, 0
        %v1944 = vsel %vm351, %v1909, 0
        %v1947 = vsel %vm351, %v1910, 0
        %v1950 = vsel %vm351, %v1911, 0
        %v1953 = vsel %vm351, %v1912, 0
        %v1956 = vsel %vm351, %v1913, 0
        %v1959 = vsel %vm351, %v1914, 0
        %v1962 = vsel %vm351, %v1915, 0
        %1964 = vmatprep.subr.bf16.mxu0 0
        %1965 = vmatpush1.bf16.msra.mxu0 0
        %1966 = vmatprep.subr.bf16.mxu0 0
        %1967 = vmatpush1.bf16.msra.mxu0 0
        %1968 = vmatprep.subr.bf16.mxu0 0
        %1969 = vmatpush1.bf16.msra.mxu0 0
        %1970 = vmatprep.subr.bf16.mxu0 0
        %1971 = vmatpush1.bf16.msra.mxu0 0
        %1972 = vmatprep.subr.bf16.mxu0 0
        %1973 = vmatpush1.bf16.msra.mxu0 %v1935
        %1974 = vmatprep.subr.bf16.mxu0 0
        %1975 = vmatpush1.bf16.msra.mxu0 %v1934
        %1976 = vmatprep.subr.bf16.mxu0 0
        %1977 = vmatpush1.bf16.msra.mxu0 %v1933
        %1978 = vmatprep.subr.bf16.mxu0 0
        %1979 = vmatpush1.bf16.msra.mxu0 %v1932
        %1980 = vmatprep.subr.bf16.mxu0 0
        %1981 = vmatpush2.bf16.msra.mxu0 0
        %1982 = vmatprep.subr.bf16.mxu0 0
        %1983 = vmatpush2.bf16.msra.mxu0 0
        %1984 = vmatprep.subr.bf16.mxu0 0
        %1985 = vmatpush2.bf16.msra.mxu0 0
        %1986 = vmatprep.subr.bf16.mxu0 0
        %1987 = vmatpush2.bf16.msra.mxu0 0
        %1988 = vmatprep.subr.bf16.mxu0 0
        %1989 = vmatpush2.bf16.msra.mxu0 0
        %1990 = vmatprep.subr.bf16.mxu0 0
        %1991 = vmatpush2.bf16.msra.mxu0 0
        %1992 = vmatprep.subr.bf16.mxu0 0
        %1993 = vmatpush2.bf16.msra.mxu0 0
        %1994 = vmatprep.subr.bf16.mxu0 0
        %1995 = vmatpush2.bf16.msra.mxu0 0
        %1996 = vmatprep.mubr.bf16.mxu0 0
        %1997 = vmatmul.mubr.bf16.gmra.mxu0 %v1941
        %v1998 = vpop.f32.mrf.mxu0
        %v1999 = vadd.f32 0.0, %v1998
        %v2000 = vpop.f32.mrf.mxu0
        %v2001 = vpop.f32.mrf.mxu0
        %v2002 = vadd.f32 0.0, %v2001
        %v2003 = vpop.f32.mrf.mxu0
        %2004 = vmatprep.mubr.bf16.mxu0 0
        %2005 = vmatmul.mubr.bf16.gmra.mxu0 %v1944
        %v2006 = vpop.f32.mrf.mxu0
        %v2007 = vadd.f32 0.0, %v2006
        %v2008 = vpop.f32.mrf.mxu0
        %v2009 = vpop.f32.mrf.mxu0
        %v2010 = vadd.f32 0.0, %v2009
        %v2011 = vpop.f32.mrf.mxu0
        %2012 = vmatprep.mubr.bf16.mxu0 0
        %2013 = vmatmul.mubr.bf16.gmra.mxu0 %v1947
        %v2014 = vpop.f32.mrf.mxu0
        %v2015 = vadd.f32 0.0, %v2014
        %v2016 = vpop.f32.mrf.mxu0
        %v2017 = vpop.f32.mrf.mxu0
        %v2018 = vadd.f32 0.0, %v2017
        %v2019 = vpop.f32.mrf.mxu0
        %2020 = vmatprep.mubr.bf16.mxu0 0
        %2021 = vmatmul.mubr.bf16.gmra.mxu0 %v1950
        %v2022 = vpop.f32.mrf.mxu0
        %v2023 = vadd.f32 0.0, %v2022
        %v2024 = vpop.f32.mrf.mxu0
        %v2025 = vpop.f32.mrf.mxu0
        %v2026 = vadd.f32 0.0, %v2025
        %v2027 = vpop.f32.mrf.mxu0
        %2028 = vmatprep.mubr.bf16.mxu0 0
        %2029 = vmatmul.mubr.bf16.gmra.mxu0 %v1953
        %v2030 = vpop.f32.mrf.mxu0
        %v2031 = vadd.f32 0.0, %v2030
        %v2032 = vpop.f32.mrf.mxu0
        %v2033 = vpop.f32.mrf.mxu0
        %v2034 = vadd.f32 0.0, %v2033
        %v2035 = vpop.f32.mrf.mxu0
        %2036 = vmatprep.mubr.bf16.mxu0 0
        %2037 = vmatmul.mubr.bf16.gmra.mxu0 %v1956
        %v2038 = vpop.f32.mrf.mxu0
        %v2039 = vadd.f32 0.0, %v2038
        %v2040 = vpop.f32.mrf.mxu0
        %v2041 = vpop.f32.mrf.mxu0
        %v2042 = vadd.f32 0.0, %v2041
        %v2043 = vpop.f32.mrf.mxu0
        %2044 = vmatprep.mubr.bf16.mxu0 0
        %2045 = vmatmul.mubr.bf16.gmra.mxu0 %v1959
        %v2046 = vpop.f32.mrf.mxu0
        %v2047 = vadd.f32 0.0, %v2046
        %v2048 = vpop.f32.mrf.mxu0
        %v2049 = vpop.f32.mrf.mxu0
        %v2050 = vadd.f32 0.0, %v2049
        %v2051 = vpop.f32.mrf.mxu0
        %2052 = vmatprep.mubr.bf16.mxu0 0
        %2053 = vmatmul.mubr.bf16.gmra.mxu0 %v1962
        %v2054 = vpop.f32.mrf.mxu0
        %v2055 = vadd.f32 0.0, %v2054
        %v2056 = vpop.f32.mrf.mxu0
        %v2057 = vpop.f32.mrf.mxu0
        %v2058 = vadd.f32 0.0, %v2057
        %v2059 = vpop.f32.mrf.mxu0
        %2060 = vdwg.mxu0
        %v2061 = vadd.f32 %v1867, %v1999
        %v2062 = vadd.f32 %v1868, %v2002
        %v2063 = vadd.f32 %v1869, %v2007
        %v2064 = vadd.f32 %v1870, %v2010
        %v2065 = vadd.f32 %v1871, %v2015
        %v2066 = vadd.f32 %v1872, %v2018
        %v2067 = vadd.f32 %v1873, %v2023
        %v2068 = vadd.f32 %v1874, %v2026
        %v2069 = vadd.f32 %v1875, %v2031
        %v2070 = vadd.f32 %v1876, %v2034
        %v2071 = vadd.f32 %v1877, %v2039
        %v2072 = vadd.f32 %v1878, %v2042
        %v2073 = vadd.f32 %v1879, %v2047
        %v2074 = vadd.f32 %v1880, %v2050
        %v2075 = vadd.f32 %v1881, %v2055
        %v2076 = vadd.f32 %v1882, %v2058
        %2077 = vst [vmem:[#allocation2] sm:$0xff] %v2061
        %2078 = vst [vmem:[#allocation2 + $0x8] sm:$0xff] %v2062
        %2079 = vst [vmem:[#allocation2 + $0x10] sm:$0xff] %v2063
        %2080 = vst [vmem:[#allocation2 + $0x18] sm:$0xff] %v2064
        %2081 = vst [vmem:[#allocation2 + $0x20] sm:$0xff] %v2065
        %2082 = vst [vmem:[#allocation2 + $0x28] sm:$0xff] %v2066
        %2083 = vst [vmem:[#allocation2 + $0x30] sm:$0xff] %v2067
        %2084 = vst [vmem:[#allocation2 + $0x38] sm:$0xff] %v2068
        %2085 = vst [vmem:[#allocation2 + $0x40] sm:$0xff] %v2069
        %2086 = vst [vmem:[#allocation2 + $0x48] sm:$0xff] %v2070
        %2087 = vst [vmem:[#allocation2 + $0x50] sm:$0xff] %v2071
        %2088 = vst [vmem:[#allocation2 + $0x58] sm:$0xff] %v2072
        %2089 = vst [vmem:[#allocation2 + $0x60] sm:$0xff] %v2073
        %2090 = vst [vmem:[#allocation2 + $0x68] sm:$0xff] %v2074
        %2091 = vst [vmem:[#allocation2 + $0x70] sm:$0xff] %v2075
        %2092 = vst [vmem:[#allocation2 + $0x78] sm:$0xff] %v2076
        %s2093 = sadd.s32 %s227, 1
        %s2094 = smul.u32 %s2093, 3
        %s2095 = smul.addr %s2094, 4
        %s2096 = scalar_lea.vmem %s222, %s2095
        %v2097 = vld [vmem:[%s2096] sm:$0xf]
        %v2098 = vld [vmem:[%s2096 + $0x4] sm:$0xf]
        %v2099 = vld [vmem:[%s2096 + $0xc] sm:$0xf]
        %v2100 = vld [vmem:[%s2096 + $0x10] sm:$0xf]
        %v2101 = vld [vmem:[%s2096 + $0x18] sm:$0xf]
        %v2102 = vld [vmem:[%s2096 + $0x1c] sm:$0xf]
        %v2103 = vld [vmem:[%s2096 + $0x24] sm:$0xf]
        %v2104 = vld [vmem:[%s2096 + $0x28] sm:$0xf]
        %v2105 = vld [vmem:[%s2096 + $0x30] sm:$0xf]
        %v2106 = vld [vmem:[%s2096 + $0x34] sm:$0xf]
        %v2107 = vld [vmem:[%s2096 + $0x3c] sm:$0xf]
        %v2108 = vld [vmem:[%s2096 + $0x40] sm:$0xf]
        %v2109 = vld [vmem:[%s2096 + $0x48] sm:$0xf]
        %v2110 = vld [vmem:[%s2096 + $0x4c] sm:$0xf]
        %v2111 = vld [vmem:[%s2096 + $0x54] sm:$0xf]
        %v2112 = vld [vmem:[%s2096 + $0x58] sm:$0xf]
        %v2113 = vld [vmem:[#allocation2] sm:$0xff]
        %v2114 = vld [vmem:[#allocation2 + $0x8] sm:$0xff]
        %v2115 = vld [vmem:[#allocation2 + $0x10] sm:$0xff]
        %v2116 = vld [vmem:[#allocation2 + $0x18] sm:$0xff]
        %v2117 = vld [vmem:[#allocation2 + $0x20] sm:$0xff]
        %v2118 = vld [vmem:[#allocation2 + $0x28] sm:$0xff]
        %v2119 = vld [vmem:[#allocation2 + $0x30] sm:$0xff]
        %v2120 = vld [vmem:[#allocation2 + $0x38] sm:$0xff]
        %v2121 = vld [vmem:[#allocation2 + $0x40] sm:$0xff]
        %v2122 = vld [vmem:[#allocation2 + $0x48] sm:$0xff]
        %v2123 = vld [vmem:[#allocation2 + $0x50] sm:$0xff]
        %v2124 = vld [vmem:[#allocation2 + $0x58] sm:$0xff]
        %v2125 = vld [vmem:[#allocation2 + $0x60] sm:$0xff]
        %v2126 = vld [vmem:[#allocation2 + $0x68] sm:$0xff]
        %v2127 = vld [vmem:[#allocation2 + $0x70] sm:$0xff]
        %v2128 = vld [vmem:[#allocation2 + $0x78] sm:$0xff]
        %s2129 = scalar_lea.vmem %s1, 160
        %v2130 = vld [vmem:[%s2129] sm:$0xf]
        %v2131 = vld [vmem:[%s2129 + $0x4] sm:$0xf]
        %v2132 = vld [vmem:[%s2129 + $0x8] sm:$0xf]
        %v2133 = vld [vmem:[%s2129 + $0xc] sm:$0xf]
        %v2134 = vld [vmem:[%s2129 + $0x10] sm:$0xf]
        %v2135 = vld [vmem:[%s2129 + $0x14] sm:$0xf]
        %v2136 = vld [vmem:[%s2129 + $0x18] sm:$0xf]
        %v2137 = vld [vmem:[%s2129 + $0x1c] sm:$0xf]
        %v2154 = vunpack.c.l.b16 %v2097
        %v2155 = vunpack.c.l.b16 %v2098
        %v2156 = vunpack.c.l.b16 %v2099
        %v2157 = vunpack.c.l.b16 %v2100
        %v2158 = vunpack.c.l.b16 %v2101
        %v2159 = vunpack.c.l.b16 %v2102
        %v2160 = vunpack.c.l.b16 %v2103
        %v2161 = vunpack.c.l.b16 %v2104
        %v2162 = vunpack.c.l.b16 %v2105
        %v2163 = vunpack.c.l.b16 %v2106
        %v2164 = vunpack.c.l.b16 %v2107
        %v2165 = vunpack.c.l.b16 %v2108
        %v2166 = vunpack.c.l.b16 %v2109
        %v2167 = vunpack.c.l.b16 %v2110
        %v2168 = vunpack.c.l.b16 %v2111
        %v2169 = vunpack.c.l.b16 %v2112
        %v2170 = vpack.c.b16 %v2155, %v2154
        %v2171 = vpack.c.b16 %v2157, %v2156
        %v2172 = vpack.c.b16 %v2159, %v2158
        %v2173 = vpack.c.b16 %v2161, %v2160
        %v2174 = vpack.c.b16 %v2163, %v2162
        %v2175 = vpack.c.b16 %v2165, %v2164
        %v2176 = vpack.c.b16 %v2167, %v2166
        %v2177 = vpack.c.b16 %v2169, %v2168
        %v2186 = vunpack.c.l.b16 %v2130
        %v2187 = vunpack.c.l.b16 %v2131
        %v2188 = vunpack.c.l.b16 %v2132
        %v2189 = vunpack.c.l.b16 %v2133
        %v2190 = vunpack.c.l.b16 %v2134
        %v2191 = vunpack.c.l.b16 %v2135
        %v2192 = vunpack.c.l.b16 %v2136
        %v2193 = vunpack.c.l.b16 %v2137
        %v2194 = vpack.c.b16 %v2187, %v2186
        %v2195 = vpack.c.b16 %v2189, %v2188
        %v2196 = vpack.c.b16 %v2191, %v2190
        %v2197 = vpack.c.b16 %v2193, %v2192
        %v2203 = vsel %vm351, %v2170, 0
        %v2206 = vsel %vm351, %v2171, 0
        %v2209 = vsel %vm351, %v2172, 0
        %v2212 = vsel %vm351, %v2173, 0
        %v2215 = vsel %vm351, %v2174, 0
        %v2218 = vsel %vm351, %v2175, 0
        %v2221 = vsel %vm351, %v2176, 0
        %v2224 = vsel %vm351, %v2177, 0
        %2226 = vmatprep.subr.bf16.mxu0 0
        %2227 = vmatpush1.bf16.msra.mxu0 0
        %2228 = vmatprep.subr.bf16.mxu0 0
        %2229 = vmatpush1.bf16.msra.mxu0 0
        %2230 = vmatprep.subr.bf16.mxu0 0
        %2231 = vmatpush1.bf16.msra.mxu0 0
        %2232 = vmatprep.subr.bf16.mxu0 0
        %2233 = vmatpush1.bf16.msra.mxu0 0
        %2234 = vmatprep.subr.bf16.mxu0 0
        %2235 = vmatpush1.bf16.msra.mxu0 %v2197
        %2236 = vmatprep.subr.bf16.mxu0 0
        %2237 = vmatpush1.bf16.msra.mxu0 %v2196
        %2238 = vmatprep.subr.bf16.mxu0 0
        %2239 = vmatpush1.bf16.msra.mxu0 %v2195
        %2240 = vmatprep.subr.bf16.mxu0 0
        %2241 = vmatpush1.bf16.msra.mxu0 %v2194
        %2242 = vmatprep.subr.bf16.mxu0 0
        %2243 = vmatpush2.bf16.msra.mxu0 0
        %2244 = vmatprep.subr.bf16.mxu0 0
        %2245 = vmatpush2.bf16.msra.mxu0 0
        %2246 = vmatprep.subr.bf16.mxu0 0
        %2247 = vmatpush2.bf16.msra.mxu0 0
        %2248 = vmatprep.subr.bf16.mxu0 0
        %2249 = vmatpush2.bf16.msra.mxu0 0
        %2250 = vmatprep.subr.bf16.mxu0 0
        %2251 = vmatpush2.bf16.msra.mxu0 0
        %2252 = vmatprep.subr.bf16.mxu0 0
        %2253 = vmatpush2.bf16.msra.mxu0 0
        %2254 = vmatprep.subr.bf16.mxu0 0
        %2255 = vmatpush2.bf16.msra.mxu0 0
        %2256 = vmatprep.subr.bf16.mxu0 0
        %2257 = vmatpush2.bf16.msra.mxu0 0
        %2258 = vmatprep.mubr.bf16.mxu0 0
        %2259 = vmatmul.mubr.bf16.gmra.mxu0 %v2203
        %v2260 = vpop.f32.mrf.mxu0
        %v2261 = vadd.f32 0.0, %v2260
        %v2262 = vpop.f32.mrf.mxu0
        %v2263 = vpop.f32.mrf.mxu0
        %v2264 = vadd.f32 0.0, %v2263
        %v2265 = vpop.f32.mrf.mxu0
        %2266 = vmatprep.mubr.bf16.mxu0 0
        %2267 = vmatmul.mubr.bf16.gmra.mxu0 %v2206
        %v2268 = vpop.f32.mrf.mxu0
        %v2269 = vadd.f32 0.0, %v2268
        %v2270 = vpop.f32.mrf.mxu0
        %v2271 = vpop.f32.mrf.mxu0
        %v2272 = vadd.f32 0.0, %v2271
        %v2273 = vpop.f32.mrf.mxu0
        %2274 = vmatprep.mubr.bf16.mxu0 0
        %2275 = vmatmul.mubr.bf16.gmra.mxu0 %v2209
        %v2276 = vpop.f32.mrf.mxu0
        %v2277 = vadd.f32 0.0, %v2276
        %v2278 = vpop.f32.mrf.mxu0
        %v2279 = vpop.f32.mrf.mxu0
        %v2280 = vadd.f32 0.0, %v2279
        %v2281 = vpop.f32.mrf.mxu0
        %2282 = vmatprep.mubr.bf16.mxu0 0
        %2283 = vmatmul.mubr.bf16.gmra.mxu0 %v2212
        %v2284 = vpop.f32.mrf.mxu0
        %v2285 = vadd.f32 0.0, %v2284
        %v2286 = vpop.f32.mrf.mxu0
        %v2287 = vpop.f32.mrf.mxu0
        %v2288 = vadd.f32 0.0, %v2287
        %v2289 = vpop.f32.mrf.mxu0
        %2290 = vmatprep.mubr.bf16.mxu0 0
        %2291 = vmatmul.mubr.bf16.gmra.mxu0 %v2215
        %v2292 = vpop.f32.mrf.mxu0
        %v2293 = vadd.f32 0.0, %v2292
        %v2294 = vpop.f32.mrf.mxu0
        %v2295 = vpop.f32.mrf.mxu0
        %v2296 = vadd.f32 0.0, %v2295
        %v2297 = vpop.f32.mrf.mxu0
        %2298 = vmatprep.mubr.bf16.mxu0 0
        %2299 = vmatmul.mubr.bf16.gmra.mxu0 %v2218
        %v2300 = vpop.f32.mrf.mxu0
        %v2301 = vadd.f32 0.0, %v2300
        %v2302 = vpop.f32.mrf.mxu0
        %v2303 = vpop.f32.mrf.mxu0
        %v2304 = vadd.f32 0.0, %v2303
        %v2305 = vpop.f32.mrf.mxu0
        %2306 = vmatprep.mubr.bf16.mxu0 0
        %2307 = vmatmul.mubr.bf16.gmra.mxu0 %v2221
        %v2308 = vpop.f32.mrf.mxu0
        %v2309 = vadd.f32 0.0, %v2308
        %v2310 = vpop.f32.mrf.mxu0
        %v2311 = vpop.f32.mrf.mxu0
        %v2312 = vadd.f32 0.0, %v2311
        %v2313 = vpop.f32.mrf.mxu0
        %2314 = vmatprep.mubr.bf16.mxu0 0
        %2315 = vmatmul.mubr.bf16.gmra.mxu0 %v2224
        %v2316 = vpop.f32.mrf.mxu0
        %v2317 = vadd.f32 0.0, %v2316
        %v2318 = vpop.f32.mrf.mxu0
        %v2319 = vpop.f32.mrf.mxu0
        %v2320 = vadd.f32 0.0, %v2319
        %v2321 = vpop.f32.mrf.mxu0
        %2322 = vdwg.mxu0
        %v2323 = vadd.f32 %v2113, %v2261
        %v2324 = vadd.f32 %v2114, %v2264
        %v2325 = vadd.f32 %v2115, %v2269
        %v2326 = vadd.f32 %v2116, %v2272
        %v2327 = vadd.f32 %v2117, %v2277
        %v2328 = vadd.f32 %v2118, %v2280
        %v2329 = vadd.f32 %v2119, %v2285
        %v2330 = vadd.f32 %v2120, %v2288
        %v2331 = vadd.f32 %v2121, %v2293
        %v2332 = vadd.f32 %v2122, %v2296
        %v2333 = vadd.f32 %v2123, %v2301
        %v2334 = vadd.f32 %v2124, %v2304
        %v2335 = vadd.f32 %v2125, %v2309
        %v2336 = vadd.f32 %v2126, %v2312
        %v2337 = vadd.f32 %v2127, %v2317
        %v2338 = vadd.f32 %v2128, %v2320
        %2339 = vst [vmem:[#allocation2] sm:$0xff] %v2323
        %2340 = vst [vmem:[#allocation2 + $0x8] sm:$0xff] %v2324
        %2341 = vst [vmem:[#allocation2 + $0x10] sm:$0xff] %v2325
        %2342 = vst [vmem:[#allocation2 + $0x18] sm:$0xff] %v2326
        %2343 = vst [vmem:[#allocation2 + $0x20] sm:$0xff] %v2327
        %2344 = vst [vmem:[#allocation2 + $0x28] sm:$0xff] %v2328
        %2345 = vst [vmem:[#allocation2 + $0x30] sm:$0xff] %v2329
        %2346 = vst [vmem:[#allocation2 + $0x38] sm:$0xff] %v2330
        %2347 = vst [vmem:[#allocation2 + $0x40] sm:$0xff] %v2331
        %2348 = vst [vmem:[#allocation2 + $0x48] sm:$0xff] %v2332
        %2349 = vst [vmem:[#allocation2 + $0x50] sm:$0xff] %v2333
        %2350 = vst [vmem:[#allocation2 + $0x58] sm:$0xff] %v2334
        %2351 = vst [vmem:[#allocation2 + $0x60] sm:$0xff] %v2335
        %2352 = vst [vmem:[#allocation2 + $0x68] sm:$0xff] %v2336
        %2353 = vst [vmem:[#allocation2 + $0x70] sm:$0xff] %v2337
        %2354 = vst [vmem:[#allocation2 + $0x78] sm:$0xff] %v2338
        %v2355 = vld [vmem:[%s2096] sm:$0xf]
        %v2356 = vld [vmem:[%s2096 + $0x4] sm:$0xf]
        %v2357 = vld [vmem:[%s2096 + $0x8] sm:$0x1]
        %v2358 = vld [vmem:[%s2096 + $0xc] sm:$0xf]
        %v2359 = vld [vmem:[%s2096 + $0x10] sm:$0xf]
        %v2360 = vld [vmem:[%s2096 + $0x14] sm:$0x1]
        %v2361 = vld [vmem:[%s2096 + $0x18] sm:$0xf]
        %v2362 = vld [vmem:[%s2096 + $0x1c] sm:$0xf]
        %v2363 = vld [vmem:[%s2096 + $0x20] sm:$0x1]
        %v2364 = vld [vmem:[%s2096 + $0x24] sm:$0xf]
        %v2365 = vld [vmem:[%s2096 + $0x28] sm:$0xf]
        %v2366 = vld [vmem:[%s2096 + $0x2c] sm:$0x1]
        %v2367 = vld [vmem:[%s2096 + $0x30] sm:$0xf]
        %v2368 = vld [vmem:[%s2096 + $0x34] sm:$0xf]
        %v2369 = vld [vmem:[%s2096 + $0x38] sm:$0x1]
        %v2370 = vld [vmem:[%s2096 + $0x3c] sm:$0xf]
        %v2371 = vld [vmem:[%s2096 + $0x40] sm:$0xf]
        %v2372 = vld [vmem:[%s2096 + $0x44] sm:$0x1]
        %v2373 = vld [vmem:[%s2096 + $0x48] sm:$0xf]
        %v2374 = vld [vmem:[%s2096 + $0x4c] sm:$0xf]
        %v2375 = vld [vmem:[%s2096 + $0x50] sm:$0x1]
        %v2376 = vld [vmem:[%s2096 + $0x54] sm:$0xf]
        %v2377 = vld [vmem:[%s2096 + $0x58] sm:$0xf]
        %v2378 = vld [vmem:[%s2096 + $0x5c] sm:$0x1]
        %v2380 = vshrl.u32 %v2355, 16
        %v2382 = vrot.slane %v2380, 4
        %v2383 = vshll.u32 %v2355, 16
        %v2385 = vrot.slane %v2383, 5
        %v2386 = vor.u32 %v2382, %v2385
        %v2387 = vrot.slane %v2386, 4
        %v2389 = vshll.u32 %v2356, 16
        %v2391 = vrot.slane %v2389, 5
        %v2392 = vsel %vm531, %v2387, %v2391
        %v2393 = vshrl.u32 %v2356, 16
        %v2395 = vrot.slane %v2393, 4
        %v2396 = vor.u32 %v2395, %v2391
        %v2397 = vrot.slane %v2396, 4
        %v2399 = vshll.u32 %v2357, 16
        %v2401 = vrot.slane %v2399, 5
        %v2402 = vsel %vm531, %v2397, %v2401
        %v2404 = vshrl.u32 %v2358, 16
        %v2406 = vrot.slane %v2404, 4
        %v2407 = vshll.u32 %v2358, 16
        %v2409 = vrot.slane %v2407, 5
        %v2410 = vor.u32 %v2406, %v2409
        %v2411 = vrot.slane %v2410, 4
        %v2413 = vshll.u32 %v2359, 16
        %v2415 = vrot.slane %v2413, 5
        %v2416 = vsel %vm531, %v2411, %v2415
        %v2417 = vshrl.u32 %v2359, 16
        %v2419 = vrot.slane %v2417, 4
        %v2420 = vor.u32 %v2419, %v2415
        %v2421 = vrot.slane %v2420, 4
        %v2423 = vshll.u32 %v2360, 16
        %v2425 = vrot.slane %v2423, 5
        %v2426 = vsel %vm531, %v2421, %v2425
        %v2428 = vshrl.u32 %v2361, 16
        %v2430 = vrot.slane %v2428, 4
        %v2431 = vshll.u32 %v2361, 16
        %v2433 = vrot.slane %v2431, 5
        %v2434 = vor.u32 %v2430, %v2433
        %v2435 = vrot.slane %v2434, 4
        %v2437 = vshll.u32 %v2362, 16
        %v2439 = vrot.slane %v2437, 5
        %v2440 = vsel %vm531, %v2435, %v2439
        %v2441 = vshrl.u32 %v2362, 16
        %v2443 = vrot.slane %v2441, 4
        %v2444 = vor.u32 %v2443, %v2439
        %v2445 = vrot.slane %v2444, 4
        %v2447 = vshll.u32 %v2363, 16
        %v2449 = vrot.slane %v2447, 5
        %v2450 = vsel %vm531, %v2445, %v2449
        %v2452 = vshrl.u32 %v2364, 16
        %v2454 = vrot.slane %v2452, 4
        %v2455 = vshll.u32 %v2364, 16
        %v2457 = vrot.slane %v2455, 5
        %v2458 = vor.u32 %v2454, %v2457
        %v2459 = vrot.slane %v2458, 4
        %v2461 = vshll.u32 %v2365, 16
        %v2463 = vrot.slane %v2461, 5
        %v2464 = vsel %vm531, %v2459, %v2463
        %v2465 = vshrl.u32 %v2365, 16
        %v2467 = vrot.slane %v2465, 4
        %v2468 = vor.u32 %v2467, %v2463
        %v2469 = vrot.slane %v2468, 4
        %v2471 = vshll.u32 %v2366, 16
        %v2473 = vrot.slane %v2471, 5
        %v2474 = vsel %vm531, %v2469, %v2473
        %v2476 = vshrl.u32 %v2367, 16
        %v2478 = vrot.slane %v2476, 4
        %v2479 = vshll.u32 %v2367, 16
        %v2481 = vrot.slane %v2479, 5
        %v2482 = vor.u32 %v2478, %v2481
        %v2483 = vrot.slane %v2482, 4
        %v2485 = vshll.u32 %v2368, 16
        %v2487 = vrot.slane %v2485, 5
        %v2488 = vsel %vm531, %v2483, %v2487
        %v2489 = vshrl.u32 %v2368, 16
        %v2491 = vrot.slane %v2489, 4
        %v2492 = vor.u32 %v2491, %v2487
        %v2493 = vrot.slane %v2492, 4
        %v2495 = vshll.u32 %v2369, 16
        %v2497 = vrot.slane %v2495, 5
        %v2498 = vsel %vm531, %v2493, %v2497
        %v2500 = vshrl.u32 %v2370, 16
        %v2502 = vrot.slane %v2500, 4
        %v2503 = vshll.u32 %v2370, 16
        %v2505 = vrot.slane %v2503, 5
        %v2506 = vor.u32 %v2502, %v2505
        %v2507 = vrot.slane %v2506, 4
        %v2509 = vshll.u32 %v2371, 16
        %v2511 = vrot.slane %v2509, 5
        %v2512 = vsel %vm531, %v2507, %v2511
        %v2513 = vshrl.u32 %v2371, 16
        %v2515 = vrot.slane %v2513, 4
        %v2516 = vor.u32 %v2515, %v2511
        %v2517 = vrot.slane %v2516, 4
        %v2519 = vshll.u32 %v2372, 16
        %v2521 = vrot.slane %v2519, 5
        %v2522 = vsel %vm531, %v2517, %v2521
        %v2524 = vshrl.u32 %v2373, 16
        %v2526 = vrot.slane %v2524, 4
        %v2527 = vshll.u32 %v2373, 16
        %v2529 = vrot.slane %v2527, 5
        %v2530 = vor.u32 %v2526, %v2529
        %v2531 = vrot.slane %v2530, 4
        %v2533 = vshll.u32 %v2374, 16
        %v2535 = vrot.slane %v2533, 5
        %v2536 = vsel %vm531, %v2531, %v2535
        %v2537 = vshrl.u32 %v2374, 16
        %v2539 = vrot.slane %v2537, 4
        %v2540 = vor.u32 %v2539, %v2535
        %v2541 = vrot.slane %v2540, 4
        %v2543 = vshll.u32 %v2375, 16
        %v2545 = vrot.slane %v2543, 5
        %v2546 = vsel %vm531, %v2541, %v2545
        %v2548 = vshrl.u32 %v2376, 16
        %v2550 = vrot.slane %v2548, 4
        %v2551 = vshll.u32 %v2376, 16
        %v2553 = vrot.slane %v2551, 5
        %v2554 = vor.u32 %v2550, %v2553
        %v2555 = vrot.slane %v2554, 4
        %v2557 = vshll.u32 %v2377, 16
        %v2559 = vrot.slane %v2557, 5
        %v2560 = vsel %vm531, %v2555, %v2559
        %v2561 = vshrl.u32 %v2377, 16
        %v2563 = vrot.slane %v2561, 4
        %v2564 = vor.u32 %v2563, %v2559
        %v2565 = vrot.slane %v2564, 4
        %v2567 = vshll.u32 %v2378, 16
        %v2569 = vrot.slane %v2567, 5
        %v2570 = vsel %vm531, %v2565, %v2569
        %v2571 = vld [vmem:[#allocation2] sm:$0xff]
        %v2572 = vld [vmem:[#allocation2 + $0x8] sm:$0xff]
        %v2573 = vld [vmem:[#allocation2 + $0x10] sm:$0xff]
        %v2574 = vld [vmem:[#allocation2 + $0x18] sm:$0xff]
        %v2575 = vld [vmem:[#allocation2 + $0x20] sm:$0xff]
        %v2576 = vld [vmem:[#allocation2 + $0x28] sm:$0xff]
        %v2577 = vld [vmem:[#allocation2 + $0x30] sm:$0xff]
        %v2578 = vld [vmem:[#allocation2 + $0x38] sm:$0xff]
        %v2579 = vld [vmem:[#allocation2 + $0x40] sm:$0xff]
        %v2580 = vld [vmem:[#allocation2 + $0x48] sm:$0xff]
        %v2581 = vld [vmem:[#allocation2 + $0x50] sm:$0xff]
        %v2582 = vld [vmem:[#allocation2 + $0x58] sm:$0xff]
        %v2583 = vld [vmem:[#allocation2 + $0x60] sm:$0xff]
        %v2584 = vld [vmem:[#allocation2 + $0x68] sm:$0xff]
        %v2585 = vld [vmem:[#allocation2 + $0x70] sm:$0xff]
        %v2586 = vld [vmem:[#allocation2 + $0x78] sm:$0xff]
        %s2587 = scalar_lea.vmem %s1, 192
        %v2588 = vld [vmem:[%s2587] sm:$0xf]
        %v2589 = vld [vmem:[%s2587 + $0x4] sm:$0xf]
        %v2590 = vld [vmem:[%s2587 + $0x8] sm:$0xf]
        %v2591 = vld [vmem:[%s2587 + $0xc] sm:$0xf]
        %v2592 = vld [vmem:[%s2587 + $0x10] sm:$0xf]
        %v2593 = vld [vmem:[%s2587 + $0x14] sm:$0xf]
        %v2594 = vld [vmem:[%s2587 + $0x18] sm:$0xf]
        %v2595 = vld [vmem:[%s2587 + $0x1c] sm:$0xf]
        %v2596 = vunpack.c.l.b16 %v2392
        %v2597 = vunpack.c.l.b16 %v2402
        %v2598 = vunpack.c.l.b16 %v2416
        %v2599 = vunpack.c.l.b16 %v2426
        %v2600 = vunpack.c.l.b16 %v2440
        %v2601 = vunpack.c.l.b16 %v2450
        %v2602 = vunpack.c.l.b16 %v2464
        %v2603 = vunpack.c.l.b16 %v2474
        %v2604 = vunpack.c.l.b16 %v2488
        %v2605 = vunpack.c.l.b16 %v2498
        %v2606 = vunpack.c.l.b16 %v2512
        %v2607 = vunpack.c.l.b16 %v2522
        %v2608 = vunpack.c.l.b16 %v2536
        %v2609 = vunpack.c.l.b16 %v2546
        %v2610 = vunpack.c.l.b16 %v2560
        %v2611 = vunpack.c.l.b16 %v2570
        %v2612 = vpack.c.b16 %v2597, %v2596
        %v2613 = vpack.c.b16 %v2599, %v2598
        %v2614 = vpack.c.b16 %v2601, %v2600
        %v2615 = vpack.c.b16 %v2603, %v2602
        %v2616 = vpack.c.b16 %v2605, %v2604
        %v2617 = vpack.c.b16 %v2607, %v2606
        %v2618 = vpack.c.b16 %v2609, %v2608
        %v2619 = vpack.c.b16 %v2611, %v2610
        %v2628 = vunpack.c.l.b16 %v2588
        %v2629 = vunpack.c.l.b16 %v2589
        %v2630 = vunpack.c.l.b16 %v2590
        %v2631 = vunpack.c.l.b16 %v2591
        %v2632 = vunpack.c.l.b16 %v2592
        %v2633 = vunpack.c.l.b16 %v2593
        %v2634 = vunpack.c.l.b16 %v2594
        %v2635 = vunpack.c.l.b16 %v2595
        %v2636 = vpack.c.b16 %v2629, %v2628
        %v2637 = vpack.c.b16 %v2631, %v2630
        %v2638 = vpack.c.b16 %v2633, %v2632
        %v2639 = vpack.c.b16 %v2635, %v2634
        %v2645 = vsel %vm351, %v2612, 0
        %v2648 = vsel %vm351, %v2613, 0
        %v2651 = vsel %vm351, %v2614, 0
        %v2654 = vsel %vm351, %v2615, 0
        %v2657 = vsel %vm351, %v2616, 0
        %v2660 = vsel %vm351, %v2617, 0
        %v2663 = vsel %vm351, %v2618, 0
        %v2666 = vsel %vm351, %v2619, 0
        %2668 = vmatprep.subr.bf16.mxu0 0
        %2669 = vmatpush1.bf16.msra.mxu0 0
        %2670 = vmatprep.subr.bf16.mxu0 0
        %2671 = vmatpush1.bf16.msra.mxu0 0
        %2672 = vmatprep.subr.bf16.mxu0 0
        %2673 = vmatpush1.bf16.msra.mxu0 0
        %2674 = vmatprep.subr.bf16.mxu0 0
        %2675 = vmatpush1.bf16.msra.mxu0 0
        %2676 = vmatprep.subr.bf16.mxu0 0
        %2677 = vmatpush1.bf16.msra.mxu0 %v2639
        %2678 = vmatprep.subr.bf16.mxu0 0
        %2679 = vmatpush1.bf16.msra.mxu0 %v2638
        %2680 = vmatprep.subr.bf16.mxu0 0
        %2681 = vmatpush1.bf16.msra.mxu0 %v2637
        %2682 = vmatprep.subr.bf16.mxu0 0
        %2683 = vmatpush1.bf16.msra.mxu0 %v2636
        %2684 = vmatprep.subr.bf16.mxu0 0
        %2685 = vmatpush2.bf16.msra.mxu0 0
        %2686 = vmatprep.subr.bf16.mxu0 0
        %2687 = vmatpush2.bf16.msra.mxu0 0
        %2688 = vmatprep.subr.bf16.mxu0 0
        %2689 = vmatpush2.bf16.msra.mxu0 0
        %2690 = vmatprep.subr.bf16.mxu0 0
        %2691 = vmatpush2.bf16.msra.mxu0 0
        %2692 = vmatprep.subr.bf16.mxu0 0
        %2693 = vmatpush2.bf16.msra.mxu0 0
        %2694 = vmatprep.subr.bf16.mxu0 0
        %2695 = vmatpush2.bf16.msra.mxu0 0
        %2696 = vmatprep.subr.bf16.mxu0 0
        %2697 = vmatpush2.bf16.msra.mxu0 0
        %2698 = vmatprep.subr.bf16.mxu0 0
        %2699 = vmatpush2.bf16.msra.mxu0 0
        %2700 = vmatprep.mubr.bf16.mxu0 0
        %2701 = vmatmul.mubr.bf16.gmra.mxu0 %v2645
        %v2702 = vpop.f32.mrf.mxu0
        %v2703 = vadd.f32 0.0, %v2702
        %v2704 = vpop.f32.mrf.mxu0
        %v2705 = vpop.f32.mrf.mxu0
        %v2706 = vadd.f32 0.0, %v2705
        %v2707 = vpop.f32.mrf.mxu0
        %2708 = vmatprep.mubr.bf16.mxu0 0
        %2709 = vmatmul.mubr.bf16.gmra.mxu0 %v2648
        %v2710 = vpop.f32.mrf.mxu0
        %v2711 = vadd.f32 0.0, %v2710
        %v2712 = vpop.f32.mrf.mxu0
        %v2713 = vpop.f32.mrf.mxu0
        %v2714 = vadd.f32 0.0, %v2713
        %v2715 = vpop.f32.mrf.mxu0
        %2716 = vmatprep.mubr.bf16.mxu0 0
        %2717 = vmatmul.mubr.bf16.gmra.mxu0 %v2651
        %v2718 = vpop.f32.mrf.mxu0
        %v2719 = vadd.f32 0.0, %v2718
        %v2720 = vpop.f32.mrf.mxu0
        %v2721 = vpop.f32.mrf.mxu0
        %v2722 = vadd.f32 0.0, %v2721
        %v2723 = vpop.f32.mrf.mxu0
        %2724 = vmatprep.mubr.bf16.mxu0 0
        %2725 = vmatmul.mubr.bf16.gmra.mxu0 %v2654
        %v2726 = vpop.f32.mrf.mxu0
        %v2727 = vadd.f32 0.0, %v2726
        %v2728 = vpop.f32.mrf.mxu0
        %v2729 = vpop.f32.mrf.mxu0
        %v2730 = vadd.f32 0.0, %v2729
        %v2731 = vpop.f32.mrf.mxu0
        %2732 = vmatprep.mubr.bf16.mxu0 0
        %2733 = vmatmul.mubr.bf16.gmra.mxu0 %v2657
        %v2734 = vpop.f32.mrf.mxu0
        %v2735 = vadd.f32 0.0, %v2734
        %v2736 = vpop.f32.mrf.mxu0
        %v2737 = vpop.f32.mrf.mxu0
        %v2738 = vadd.f32 0.0, %v2737
        %v2739 = vpop.f32.mrf.mxu0
        %2740 = vmatprep.mubr.bf16.mxu0 0
        %2741 = vmatmul.mubr.bf16.gmra.mxu0 %v2660
        %v2742 = vpop.f32.mrf.mxu0
        %v2743 = vadd.f32 0.0, %v2742
        %v2744 = vpop.f32.mrf.mxu0
        %v2745 = vpop.f32.mrf.mxu0
        %v2746 = vadd.f32 0.0, %v2745
        %v2747 = vpop.f32.mrf.mxu0
        %2748 = vmatprep.mubr.bf16.mxu0 0
        %2749 = vmatmul.mubr.bf16.gmra.mxu0 %v2663
        %v2750 = vpop.f32.mrf.mxu0
        %v2751 = vadd.f32 0.0, %v2750
        %v2752 = vpop.f32.mrf.mxu0
        %v2753 = vpop.f32.mrf.mxu0
        %v2754 = vadd.f32 0.0, %v2753
        %v2755 = vpop.f32.mrf.mxu0
        %2756 = vmatprep.mubr.bf16.mxu0 0
        %2757 = vmatmul.mubr.bf16.gmra.mxu0 %v2666
        %v2758 = vpop.f32.mrf.mxu0
        %v2759 = vadd.f32 0.0, %v2758
        %v2760 = vpop.f32.mrf.mxu0
        %v2761 = vpop.f32.mrf.mxu0
        %v2762 = vadd.f32 0.0, %v2761
        %v2763 = vpop.f32.mrf.mxu0
        %2764 = vdwg.mxu0
        %v2765 = vadd.f32 %v2571, %v2703
        %v2766 = vadd.f32 %v2572, %v2706
        %v2767 = vadd.f32 %v2573, %v2711
        %v2768 = vadd.f32 %v2574, %v2714
        %v2769 = vadd.f32 %v2575, %v2719
        %v2770 = vadd.f32 %v2576, %v2722
        %v2771 = vadd.f32 %v2577, %v2727
        %v2772 = vadd.f32 %v2578, %v2730
        %v2773 = vadd.f32 %v2579, %v2735
        %v2774 = vadd.f32 %v2580, %v2738
        %v2775 = vadd.f32 %v2581, %v2743
        %v2776 = vadd.f32 %v2582, %v2746
        %v2777 = vadd.f32 %v2583, %v2751
        %v2778 = vadd.f32 %v2584, %v2754
        %v2779 = vadd.f32 %v2585, %v2759
        %v2780 = vadd.f32 %v2586, %v2762
        %2781 = vst [vmem:[#allocation2] sm:$0xff] %v2765
        %2782 = vst [vmem:[#allocation2 + $0x8] sm:$0xff] %v2766
        %2783 = vst [vmem:[#allocation2 + $0x10] sm:$0xff] %v2767
        %2784 = vst [vmem:[#allocation2 + $0x18] sm:$0xff] %v2768
        %2785 = vst [vmem:[#allocation2 + $0x20] sm:$0xff] %v2769
        %2786 = vst [vmem:[#allocation2 + $0x28] sm:$0xff] %v2770
        %2787 = vst [vmem:[#allocation2 + $0x30] sm:$0xff] %v2771
        %2788 = vst [vmem:[#allocation2 + $0x38] sm:$0xff] %v2772
        %2789 = vst [vmem:[#allocation2 + $0x40] sm:$0xff] %v2773
        %2790 = vst [vmem:[#allocation2 + $0x48] sm:$0xff] %v2774
        %2791 = vst [vmem:[#allocation2 + $0x50] sm:$0xff] %v2775
        %2792 = vst [vmem:[#allocation2 + $0x58] sm:$0xff] %v2776
        %2793 = vst [vmem:[#allocation2 + $0x60] sm:$0xff] %v2777
        %2794 = vst [vmem:[#allocation2 + $0x68] sm:$0xff] %v2778
        %2795 = vst [vmem:[#allocation2 + $0x70] sm:$0xff] %v2779
        %2796 = vst [vmem:[#allocation2 + $0x78] sm:$0xff] %v2780
        %v2797 = vld [vmem:[%s2096] sm:$0xe]
        %v2798 = vld [vmem:[%s2096 + $0x4] sm:$0xf]
        %v2799 = vld [vmem:[%s2096 + $0x8] sm:$0x1]
        %v2800 = vld [vmem:[%s2096 + $0xc] sm:$0xe]
        %v2801 = vld [vmem:[%s2096 + $0x10] sm:$0xf]
        %v2802 = vld [vmem:[%s2096 + $0x14] sm:$0x1]
        %v2803 = vld [vmem:[%s2096 + $0x18] sm:$0xe]
        %v2804 = vld [vmem:[%s2096 + $0x1c] sm:$0xf]
        %v2805 = vld [vmem:[%s2096 + $0x20] sm:$0x1]
        %v2806 = vld [vmem:[%s2096 + $0x24] sm:$0xe]
        %v2807 = vld [vmem:[%s2096 + $0x28] sm:$0xf]
        %v2808 = vld [vmem:[%s2096 + $0x2c] sm:$0x1]
        %v2809 = vld [vmem:[%s2096 + $0x30] sm:$0xe]
        %v2810 = vld [vmem:[%s2096 + $0x34] sm:$0xf]
        %v2811 = vld [vmem:[%s2096 + $0x38] sm:$0x1]
        %v2812 = vld [vmem:[%s2096 + $0x3c] sm:$0xe]
        %v2813 = vld [vmem:[%s2096 + $0x40] sm:$0xf]
        %v2814 = vld [vmem:[%s2096 + $0x44] sm:$0x1]
        %v2815 = vld [vmem:[%s2096 + $0x48] sm:$0xe]
        %v2816 = vld [vmem:[%s2096 + $0x4c] sm:$0xf]
        %v2817 = vld [vmem:[%s2096 + $0x50] sm:$0x1]
        %v2818 = vld [vmem:[%s2096 + $0x54] sm:$0xe]
        %v2819 = vld [vmem:[%s2096 + $0x58] sm:$0xf]
        %v2820 = vld [vmem:[%s2096 + $0x5c] sm:$0x1]
        %v2845 = vrot.slane %v2797, 5
        %v2846 = vrot.slane %v2845, 4
        %v2847 = vrot.slane %v2798, 5
        %v2848 = vsel %vm1000, %v2846, %v2847
        %v2849 = vrot.slane %v2847, 4
        %v2850 = vrot.slane %v2799, 5
        %v2851 = vsel %vm1000, %v2849, %v2850
        %v2852 = vrot.slane %v2800, 5
        %v2853 = vrot.slane %v2852, 4
        %v2854 = vrot.slane %v2801, 5
        %v2855 = vsel %vm1000, %v2853, %v2854
        %v2856 = vrot.slane %v2854, 4
        %v2857 = vrot.slane %v2802, 5
        %v2858 = vsel %vm1000, %v2856, %v2857
        %v2859 = vrot.slane %v2803, 5
        %v2860 = vrot.slane %v2859, 4
        %v2861 = vrot.slane %v2804, 5
        %v2862 = vsel %vm1000, %v2860, %v2861
        %v2863 = vrot.slane %v2861, 4
        %v2864 = vrot.slane %v2805, 5
        %v2865 = vsel %vm1000, %v2863, %v2864
        %v2866 = vrot.slane %v2806, 5
        %v2867 = vrot.slane %v2866, 4
        %v2868 = vrot.slane %v2807, 5
        %v2869 = vsel %vm1000, %v2867, %v2868
        %v2870 = vrot.slane %v2868, 4
        %v2871 = vrot.slane %v2808, 5
        %v2872 = vsel %vm1000, %v2870, %v2871
        %v2873 = vrot.slane %v2809, 5
        %v2874 = vrot.slane %v2873, 4
        %v2875 = vrot.slane %v2810, 5
        %v2876 = vsel %vm1000, %v2874, %v2875
        %v2877 = vrot.slane %v2875, 4
        %v2878 = vrot.slane %v2811, 5
        %v2879 = vsel %vm1000, %v2877, %v2878
        %v2880 = vrot.slane %v2812, 5
        %v2881 = vrot.slane %v2880, 4
        %v2882 = vrot.slane %v2813, 5
        %v2883 = vsel %vm1000, %v2881, %v2882
        %v2884 = vrot.slane %v2882, 4
        %v2885 = vrot.slane %v2814, 5
        %v2886 = vsel %vm1000, %v2884, %v2885
        %v2887 = vrot.slane %v2815, 5
        %v2888 = vrot.slane %v2887, 4
        %v2889 = vrot.slane %v2816, 5
        %v2890 = vsel %vm1000, %v2888, %v2889
        %v2891 = vrot.slane %v2889, 4
        %v2892 = vrot.slane %v2817, 5
        %v2893 = vsel %vm1000, %v2891, %v2892
        %v2894 = vrot.slane %v2818, 5
        %v2895 = vrot.slane %v2894, 4
        %v2896 = vrot.slane %v2819, 5
        %v2897 = vsel %vm1000, %v2895, %v2896
        %v2898 = vrot.slane %v2896, 4
        %v2899 = vrot.slane %v2820, 5
        %v2900 = vsel %vm1000, %v2898, %v2899
        %v2901 = vld [vmem:[#allocation2] sm:$0xff]
        %v2902 = vld [vmem:[#allocation2 + $0x8] sm:$0xff]
        %v2903 = vld [vmem:[#allocation2 + $0x10] sm:$0xff]
        %v2904 = vld [vmem:[#allocation2 + $0x18] sm:$0xff]
        %v2905 = vld [vmem:[#allocation2 + $0x20] sm:$0xff]
        %v2906 = vld [vmem:[#allocation2 + $0x28] sm:$0xff]
        %v2907 = vld [vmem:[#allocation2 + $0x30] sm:$0xff]
        %v2908 = vld [vmem:[#allocation2 + $0x38] sm:$0xff]
        %v2909 = vld [vmem:[#allocation2 + $0x40] sm:$0xff]
        %v2910 = vld [vmem:[#allocation2 + $0x48] sm:$0xff]
        %v2911 = vld [vmem:[#allocation2 + $0x50] sm:$0xff]
        %v2912 = vld [vmem:[#allocation2 + $0x58] sm:$0xff]
        %v2913 = vld [vmem:[#allocation2 + $0x60] sm:$0xff]
        %v2914 = vld [vmem:[#allocation2 + $0x68] sm:$0xff]
        %v2915 = vld [vmem:[#allocation2 + $0x70] sm:$0xff]
        %v2916 = vld [vmem:[#allocation2 + $0x78] sm:$0xff]
        %s2917 = scalar_lea.vmem %s1, 224
        %v2918 = vld [vmem:[%s2917] sm:$0xf]
        %v2919 = vld [vmem:[%s2917 + $0x4] sm:$0xf]
        %v2920 = vld [vmem:[%s2917 + $0x8] sm:$0xf]
        %v2921 = vld [vmem:[%s2917 + $0xc] sm:$0xf]
        %v2922 = vld [vmem:[%s2917 + $0x10] sm:$0xf]
        %v2923 = vld [vmem:[%s2917 + $0x14] sm:$0xf]
        %v2924 = vld [vmem:[%s2917 + $0x18] sm:$0xf]
        %v2925 = vld [vmem:[%s2917 + $0x1c] sm:$0xf]
        %v2926 = vunpack.c.l.b16 %v2848
        %v2927 = vunpack.c.l.b16 %v2851
        %v2928 = vunpack.c.l.b16 %v2855
        %v2929 = vunpack.c.l.b16 %v2858
        %v2930 = vunpack.c.l.b16 %v2862
        %v2931 = vunpack.c.l.b16 %v2865
        %v2932 = vunpack.c.l.b16 %v2869
        %v2933 = vunpack.c.l.b16 %v2872
        %v2934 = vunpack.c.l.b16 %v2876
        %v2935 = vunpack.c.l.b16 %v2879
        %v2936 = vunpack.c.l.b16 %v2883
        %v2937 = vunpack.c.l.b16 %v2886
        %v2938 = vunpack.c.l.b16 %v2890
        %v2939 = vunpack.c.l.b16 %v2893
        %v2940 = vunpack.c.l.b16 %v2897
        %v2941 = vunpack.c.l.b16 %v2900
        %v2942 = vpack.c.b16 %v2927, %v2926
        %v2943 = vpack.c.b16 %v2929, %v2928
        %v2944 = vpack.c.b16 %v2931, %v2930
        %v2945 = vpack.c.b16 %v2933, %v2932
        %v2946 = vpack.c.b16 %v2935, %v2934
        %v2947 = vpack.c.b16 %v2937, %v2936
        %v2948 = vpack.c.b16 %v2939, %v2938
        %v2949 = vpack.c.b16 %v2941, %v2940
        %v2958 = vunpack.c.l.b16 %v2918
        %v2959 = vunpack.c.l.b16 %v2919
        %v2960 = vunpack.c.l.b16 %v2920
        %v2961 = vunpack.c.l.b16 %v2921
        %v2962 = vunpack.c.l.b16 %v2922
        %v2963 = vunpack.c.l.b16 %v2923
        %v2964 = vunpack.c.l.b16 %v2924
        %v2965 = vunpack.c.l.b16 %v2925
        %v2966 = vpack.c.b16 %v2959, %v2958
        %v2967 = vpack.c.b16 %v2961, %v2960
        %v2968 = vpack.c.b16 %v2963, %v2962
        %v2969 = vpack.c.b16 %v2965, %v2964
        %v2975 = vsel %vm351, %v2942, 0
        %v2978 = vsel %vm351, %v2943, 0
        %v2981 = vsel %vm351, %v2944, 0
        %v2984 = vsel %vm351, %v2945, 0
        %v2987 = vsel %vm351, %v2946, 0
        %v2990 = vsel %vm351, %v2947, 0
        %v2993 = vsel %vm351, %v2948, 0
        %v2996 = vsel %vm351, %v2949, 0
        %2998 = vmatprep.subr.bf16.mxu0 0
        %2999 = vmatpush1.bf16.msra.mxu0 0
        %3000 = vmatprep.subr.bf16.mxu0 0
        %3001 = vmatpush1.bf16.msra.mxu0 0
        %3002 = vmatprep.subr.bf16.mxu0 0
        %3003 = vmatpush1.bf16.msra.mxu0 0
        %3004 = vmatprep.subr.bf16.mxu0 0
        %3005 = vmatpush1.bf16.msra.mxu0 0
        %3006 = vmatprep.subr.bf16.mxu0 0
        %3007 = vmatpush1.bf16.msra.mxu0 %v2969
        %3008 = vmatprep.subr.bf16.mxu0 0
        %3009 = vmatpush1.bf16.msra.mxu0 %v2968
        %3010 = vmatprep.subr.bf16.mxu0 0
        %3011 = vmatpush1.bf16.msra.mxu0 %v2967
        %3012 = vmatprep.subr.bf16.mxu0 0
        %3013 = vmatpush1.bf16.msra.mxu0 %v2966
        %3014 = vmatprep.subr.bf16.mxu0 0
        %3015 = vmatpush2.bf16.msra.mxu0 0
        %3016 = vmatprep.subr.bf16.mxu0 0
        %3017 = vmatpush2.bf16.msra.mxu0 0
        %3018 = vmatprep.subr.bf16.mxu0 0
        %3019 = vmatpush2.bf16.msra.mxu0 0
        %3020 = vmatprep.subr.bf16.mxu0 0
        %3021 = vmatpush2.bf16.msra.mxu0 0
        %3022 = vmatprep.subr.bf16.mxu0 0
        %3023 = vmatpush2.bf16.msra.mxu0 0
        %3024 = vmatprep.subr.bf16.mxu0 0
        %3025 = vmatpush2.bf16.msra.mxu0 0
        %3026 = vmatprep.subr.bf16.mxu0 0
        %3027 = vmatpush2.bf16.msra.mxu0 0
        %3028 = vmatprep.subr.bf16.mxu0 0
        %3029 = vmatpush2.bf16.msra.mxu0 0
        %3030 = vmatprep.mubr.bf16.mxu0 0
        %3031 = vmatmul.mubr.bf16.gmra.mxu0 %v2975
        %v3032 = vpop.f32.mrf.mxu0
        %v3033 = vadd.f32 0.0, %v3032
        %v3034 = vpop.f32.mrf.mxu0
        %v3035 = vpop.f32.mrf.mxu0
        %v3036 = vadd.f32 0.0, %v3035
        %v3037 = vpop.f32.mrf.mxu0
        %3038 = vmatprep.mubr.bf16.mxu0 0
        %3039 = vmatmul.mubr.bf16.gmra.mxu0 %v2978
        %v3040 = vpop.f32.mrf.mxu0
        %v3041 = vadd.f32 0.0, %v3040
        %v3042 = vpop.f32.mrf.mxu0
        %v3043 = vpop.f32.mrf.mxu0
        %v3044 = vadd.f32 0.0, %v3043
        %v3045 = vpop.f32.mrf.mxu0
        %3046 = vmatprep.mubr.bf16.mxu0 0
        %3047 = vmatmul.mubr.bf16.gmra.mxu0 %v2981
        %v3048 = vpop.f32.mrf.mxu0
        %v3049 = vadd.f32 0.0, %v3048
        %v3050 = vpop.f32.mrf.mxu0
        %v3051 = vpop.f32.mrf.mxu0
        %v3052 = vadd.f32 0.0, %v3051
        %v3053 = vpop.f32.mrf.mxu0
        %3054 = vmatprep.mubr.bf16.mxu0 0
        %3055 = vmatmul.mubr.bf16.gmra.mxu0 %v2984
        %v3056 = vpop.f32.mrf.mxu0
        %v3057 = vadd.f32 0.0, %v3056
        %v3058 = vpop.f32.mrf.mxu0
        %v3059 = vpop.f32.mrf.mxu0
        %v3060 = vadd.f32 0.0, %v3059
        %v3061 = vpop.f32.mrf.mxu0
        %3062 = vmatprep.mubr.bf16.mxu0 0
        %3063 = vmatmul.mubr.bf16.gmra.mxu0 %v2987
        %v3064 = vpop.f32.mrf.mxu0
        %v3065 = vadd.f32 0.0, %v3064
        %v3066 = vpop.f32.mrf.mxu0
        %v3067 = vpop.f32.mrf.mxu0
        %v3068 = vadd.f32 0.0, %v3067
        %v3069 = vpop.f32.mrf.mxu0
        %3070 = vmatprep.mubr.bf16.mxu0 0
        %3071 = vmatmul.mubr.bf16.gmra.mxu0 %v2990
        %v3072 = vpop.f32.mrf.mxu0
        %v3073 = vadd.f32 0.0, %v3072
        %v3074 = vpop.f32.mrf.mxu0
        %v3075 = vpop.f32.mrf.mxu0
        %v3076 = vadd.f32 0.0, %v3075
        %v3077 = vpop.f32.mrf.mxu0
        %3078 = vmatprep.mubr.bf16.mxu0 0
        %3079 = vmatmul.mubr.bf16.gmra.mxu0 %v2993
        %v3080 = vpop.f32.mrf.mxu0
        %v3081 = vadd.f32 0.0, %v3080
        %v3082 = vpop.f32.mrf.mxu0
        %v3083 = vpop.f32.mrf.mxu0
        %v3084 = vadd.f32 0.0, %v3083
        %v3085 = vpop.f32.mrf.mxu0
        %3086 = vmatprep.mubr.bf16.mxu0 0
        %3087 = vmatmul.mubr.bf16.gmra.mxu0 %v2996
        %v3088 = vpop.f32.mrf.mxu0
        %v3089 = vadd.f32 0.0, %v3088
        %v3090 = vpop.f32.mrf.mxu0
        %v3091 = vpop.f32.mrf.mxu0
        %v3092 = vadd.f32 0.0, %v3091
        %v3093 = vpop.f32.mrf.mxu0
        %3094 = vdwg.mxu0
        %v3095 = vadd.f32 %v2901, %v3033
        %v3096 = vadd.f32 %v2902, %v3036
        %v3097 = vadd.f32 %v2903, %v3041
        %v3098 = vadd.f32 %v2904, %v3044
        %v3099 = vadd.f32 %v2905, %v3049
        %v3100 = vadd.f32 %v2906, %v3052
        %v3101 = vadd.f32 %v2907, %v3057
        %v3102 = vadd.f32 %v2908, %v3060
        %v3103 = vadd.f32 %v2909, %v3065
        %v3104 = vadd.f32 %v2910, %v3068
        %v3105 = vadd.f32 %v2911, %v3073
        %v3106 = vadd.f32 %v2912, %v3076
        %v3107 = vadd.f32 %v2913, %v3081
        %v3108 = vadd.f32 %v2914, %v3084
        %v3109 = vadd.f32 %v2915, %v3089
        %v3110 = vadd.f32 %v2916, %v3092
        %3111 = vst [vmem:[#allocation2] sm:$0xff] %v3095
        %3112 = vst [vmem:[#allocation2 + $0x8] sm:$0xff] %v3096
        %3113 = vst [vmem:[#allocation2 + $0x10] sm:$0xff] %v3097
        %3114 = vst [vmem:[#allocation2 + $0x18] sm:$0xff] %v3098
        %3115 = vst [vmem:[#allocation2 + $0x20] sm:$0xff] %v3099
        %3116 = vst [vmem:[#allocation2 + $0x28] sm:$0xff] %v3100
        %3117 = vst [vmem:[#allocation2 + $0x30] sm:$0xff] %v3101
        %3118 = vst [vmem:[#allocation2 + $0x38] sm:$0xff] %v3102
        %3119 = vst [vmem:[#allocation2 + $0x40] sm:$0xff] %v3103
        %3120 = vst [vmem:[#allocation2 + $0x48] sm:$0xff] %v3104
        %3121 = vst [vmem:[#allocation2 + $0x50] sm:$0xff] %v3105
        %3122 = vst [vmem:[#allocation2 + $0x58] sm:$0xff] %v3106
        %3123 = vst [vmem:[#allocation2 + $0x60] sm:$0xff] %v3107
        %3124 = vst [vmem:[#allocation2 + $0x68] sm:$0xff] %v3108
        %3125 = vst [vmem:[#allocation2 + $0x70] sm:$0xff] %v3109
        %3126 = vst [vmem:[#allocation2 + $0x78] sm:$0xff] %v3110
        %v3127 = vld [vmem:[%s2096] sm:$0xe]
        %v3128 = vld [vmem:[%s2096 + $0x4] sm:$0xf]
        %v3129 = vld [vmem:[%s2096 + $0x8] sm:$0x3]
        %v3130 = vld [vmem:[%s2096 + $0xc] sm:$0xe]
        %v3131 = vld [vmem:[%s2096 + $0x10] sm:$0xf]
        %v3132 = vld [vmem:[%s2096 + $0x14] sm:$0x3]
        %v3133 = vld [vmem:[%s2096 + $0x18] sm:$0xe]
        %v3134 = vld [vmem:[%s2096 + $0x1c] sm:$0xf]
        %v3135 = vld [vmem:[%s2096 + $0x20] sm:$0x3]
        %v3136 = vld [vmem:[%s2096 + $0x24] sm:$0xe]
        %v3137 = vld [vmem:[%s2096 + $0x28] sm:$0xf]
        %v3138 = vld [vmem:[%s2096 + $0x2c] sm:$0x3]
        %v3139 = vld [vmem:[%s2096 + $0x30] sm:$0xe]
        %v3140 = vld [vmem:[%s2096 + $0x34] sm:$0xf]
        %v3141 = vld [vmem:[%s2096 + $0x38] sm:$0x3]
        %v3142 = vld [vmem:[%s2096 + $0x3c] sm:$0xe]
        %v3143 = vld [vmem:[%s2096 + $0x40] sm:$0xf]
        %v3144 = vld [vmem:[%s2096 + $0x44] sm:$0x3]
        %v3145 = vld [vmem:[%s2096 + $0x48] sm:$0xe]
        %v3146 = vld [vmem:[%s2096 + $0x4c] sm:$0xf]
        %v3147 = vld [vmem:[%s2096 + $0x50] sm:$0x3]
        %v3148 = vld [vmem:[%s2096 + $0x54] sm:$0xe]
        %v3149 = vld [vmem:[%s2096 + $0x58] sm:$0xf]
        %v3150 = vld [vmem:[%s2096 + $0x5c] sm:$0x3]
        %v3152 = vshrl.u32 %v3127, 16
        %v3154 = vrot.slane %v3152, 5
        %v3155 = vshll.u32 %v3127, 16
        %v3157 = vrot.slane %v3155, 6
        %v3158 = vor.u32 %v3154, %v3157
        %v3159 = vrot.slane %v3158, 4
        %v3161 = vshrl.u32 %v3128, 16
        %v3163 = vrot.slane %v3161, 5
        %v3164 = vshll.u32 %v3128, 16
        %v3166 = vrot.slane %v3164, 6
        %v3167 = vor.u32 %v3163, %v3166
        %v3168 = vsel %vm1309, %v3159, %v3167
        %v3169 = vrot.slane %v3167, 4
        %v3171 = vshrl.u32 %v3129, 16
        %v3173 = vrot.slane %v3171, 5
        %v3174 = vshll.u32 %v3129, 16
        %v3176 = vrot.slane %v3174, 6
        %v3177 = vor.u32 %v3173, %v3176
        %v3178 = vsel %vm1309, %v3169, %v3177
        %v3180 = vshrl.u32 %v3130, 16
        %v3182 = vrot.slane %v3180, 5
        %v3183 = vshll.u32 %v3130, 16
        %v3185 = vrot.slane %v3183, 6
        %v3186 = vor.u32 %v3182, %v3185
        %v3187 = vrot.slane %v3186, 4
        %v3189 = vshrl.u32 %v3131, 16
        %v3191 = vrot.slane %v3189, 5
        %v3192 = vshll.u32 %v3131, 16
        %v3194 = vrot.slane %v3192, 6
        %v3195 = vor.u32 %v3191, %v3194
        %v3196 = vsel %vm1309, %v3187, %v3195
        %v3197 = vrot.slane %v3195, 4
        %v3199 = vshrl.u32 %v3132, 16
        %v3201 = vrot.slane %v3199, 5
        %v3202 = vshll.u32 %v3132, 16
        %v3204 = vrot.slane %v3202, 6
        %v3205 = vor.u32 %v3201, %v3204
        %v3206 = vsel %vm1309, %v3197, %v3205
        %v3208 = vshrl.u32 %v3133, 16
        %v3210 = vrot.slane %v3208, 5
        %v3211 = vshll.u32 %v3133, 16
        %v3213 = vrot.slane %v3211, 6
        %v3214 = vor.u32 %v3210, %v3213
        %v3215 = vrot.slane %v3214, 4
        %v3217 = vshrl.u32 %v3134, 16
        %v3219 = vrot.slane %v3217, 5
        %v3220 = vshll.u32 %v3134, 16
        %v3222 = vrot.slane %v3220, 6
        %v3223 = vor.u32 %v3219, %v3222
        %v3224 = vsel %vm1309, %v3215, %v3223
        %v3225 = vrot.slane %v3223, 4
        %v3227 = vshrl.u32 %v3135, 16
        %v3229 = vrot.slane %v3227, 5
        %v3230 = vshll.u32 %v3135, 16
        %v3232 = vrot.slane %v3230, 6
        %v3233 = vor.u32 %v3229, %v3232
        %v3234 = vsel %vm1309, %v3225, %v3233
        %v3236 = vshrl.u32 %v3136, 16
        %v3238 = vrot.slane %v3236, 5
        %v3239 = vshll.u32 %v3136, 16
        %v3241 = vrot.slane %v3239, 6
        %v3242 = vor.u32 %v3238, %v3241
        %v3243 = vrot.slane %v3242, 4
        %v3245 = vshrl.u32 %v3137, 16
        %v3247 = vrot.slane %v3245, 5
        %v3248 = vshll.u32 %v3137, 16
        %v3250 = vrot.slane %v3248, 6
        %v3251 = vor.u32 %v3247, %v3250
        %v3252 = vsel %vm1309, %v3243, %v3251
        %v3253 = vrot.slane %v3251, 4
        %v3255 = vshrl.u32 %v3138, 16
        %v3257 = vrot.slane %v3255, 5
        %v3258 = vshll.u32 %v3138, 16
        %v3260 = vrot.slane %v3258, 6
        %v3261 = vor.u32 %v3257, %v3260
        %v3262 = vsel %vm1309, %v3253, %v3261
        %v3264 = vshrl.u32 %v3139, 16
        %v3266 = vrot.slane %v3264, 5
        %v3267 = vshll.u32 %v3139, 16
        %v3269 = vrot.slane %v3267, 6
        %v3270 = vor.u32 %v3266, %v3269
        %v3271 = vrot.slane %v3270, 4
        %v3273 = vshrl.u32 %v3140, 16
        %v3275 = vrot.slane %v3273, 5
        %v3276 = vshll.u32 %v3140, 16
        %v3278 = vrot.slane %v3276, 6
        %v3279 = vor.u32 %v3275, %v3278
        %v3280 = vsel %vm1309, %v3271, %v3279
        %v3281 = vrot.slane %v3279, 4
        %v3283 = vshrl.u32 %v3141, 16
        %v3285 = vrot.slane %v3283, 5
        %v3286 = vshll.u32 %v3141, 16
        %v3288 = vrot.slane %v3286, 6
        %v3289 = vor.u32 %v3285, %v3288
        %v3290 = vsel %vm1309, %v3281, %v3289
        %v3292 = vshrl.u32 %v3142, 16
        %v3294 = vrot.slane %v3292, 5
        %v3295 = vshll.u32 %v3142, 16
        %v3297 = vrot.slane %v3295, 6
        %v3298 = vor.u32 %v3294, %v3297
        %v3299 = vrot.slane %v3298, 4
        %v3301 = vshrl.u32 %v3143, 16
        %v3303 = vrot.slane %v3301, 5
        %v3304 = vshll.u32 %v3143, 16
        %v3306 = vrot.slane %v3304, 6
        %v3307 = vor.u32 %v3303, %v3306
        %v3308 = vsel %vm1309, %v3299, %v3307
        %v3309 = vrot.slane %v3307, 4
        %v3311 = vshrl.u32 %v3144, 16
        %v3313 = vrot.slane %v3311, 5
        %v3314 = vshll.u32 %v3144, 16
        %v3316 = vrot.slane %v3314, 6
        %v3317 = vor.u32 %v3313, %v3316
        %v3318 = vsel %vm1309, %v3309, %v3317
        %v3320 = vshrl.u32 %v3145, 16
        %v3322 = vrot.slane %v3320, 5
        %v3323 = vshll.u32 %v3145, 16
        %v3325 = vrot.slane %v3323, 6
        %v3326 = vor.u32 %v3322, %v3325
        %v3327 = vrot.slane %v3326, 4
        %v3329 = vshrl.u32 %v3146, 16
        %v3331 = vrot.slane %v3329, 5
        %v3332 = vshll.u32 %v3146, 16
        %v3334 = vrot.slane %v3332, 6
        %v3335 = vor.u32 %v3331, %v3334
        %v3336 = vsel %vm1309, %v3327, %v3335
        %v3337 = vrot.slane %v3335, 4
        %v3339 = vshrl.u32 %v3147, 16
        %v3341 = vrot.slane %v3339, 5
        %v3342 = vshll.u32 %v3147, 16
        %v3344 = vrot.slane %v3342, 6
        %v3345 = vor.u32 %v3341, %v3344
        %v3346 = vsel %vm1309, %v3337, %v3345
        %v3348 = vshrl.u32 %v3148, 16
        %v3350 = vrot.slane %v3348, 5
        %v3351 = vshll.u32 %v3148, 16
        %v3353 = vrot.slane %v3351, 6
        %v3354 = vor.u32 %v3350, %v3353
        %v3355 = vrot.slane %v3354, 4
        %v3357 = vshrl.u32 %v3149, 16
        %v3359 = vrot.slane %v3357, 5
        %v3360 = vshll.u32 %v3149, 16
        %v3362 = vrot.slane %v3360, 6
        %v3363 = vor.u32 %v3359, %v3362
        %v3364 = vsel %vm1309, %v3355, %v3363
        %v3365 = vrot.slane %v3363, 4
        %v3367 = vshrl.u32 %v3150, 16
        %v3369 = vrot.slane %v3367, 5
        %v3370 = vshll.u32 %v3150, 16
        %v3372 = vrot.slane %v3370, 6
        %v3373 = vor.u32 %v3369, %v3372
        %v3374 = vsel %vm1309, %v3365, %v3373
        %v3375 = vld [vmem:[#allocation2] sm:$0xff]
        %v3376 = vld [vmem:[#allocation2 + $0x8] sm:$0xff]
        %v3377 = vld [vmem:[#allocation2 + $0x10] sm:$0xff]
        %v3378 = vld [vmem:[#allocation2 + $0x18] sm:$0xff]
        %v3379 = vld [vmem:[#allocation2 + $0x20] sm:$0xff]
        %v3380 = vld [vmem:[#allocation2 + $0x28] sm:$0xff]
        %v3381 = vld [vmem:[#allocation2 + $0x30] sm:$0xff]
        %v3382 = vld [vmem:[#allocation2 + $0x38] sm:$0xff]
        %v3383 = vld [vmem:[#allocation2 + $0x40] sm:$0xff]
        %v3384 = vld [vmem:[#allocation2 + $0x48] sm:$0xff]
        %v3385 = vld [vmem:[#allocation2 + $0x50] sm:$0xff]
        %v3386 = vld [vmem:[#allocation2 + $0x58] sm:$0xff]
        %v3387 = vld [vmem:[#allocation2 + $0x60] sm:$0xff]
        %v3388 = vld [vmem:[#allocation2 + $0x68] sm:$0xff]
        %v3389 = vld [vmem:[#allocation2 + $0x70] sm:$0xff]
        %v3390 = vld [vmem:[#allocation2 + $0x78] sm:$0xff]
        %s3391 = scalar_lea.vmem %s1, 256
        %v3392 = vld [vmem:[%s3391] sm:$0xf]
        %v3393 = vld [vmem:[%s3391 + $0x4] sm:$0xf]
        %v3394 = vld [vmem:[%s3391 + $0x8] sm:$0xf]
        %v3395 = vld [vmem:[%s3391 + $0xc] sm:$0xf]
        %v3396 = vld [vmem:[%s3391 + $0x10] sm:$0xf]
        %v3397 = vld [vmem:[%s3391 + $0x14] sm:$0xf]
        %v3398 = vld [vmem:[%s3391 + $0x18] sm:$0xf]
        %v3399 = vld [vmem:[%s3391 + $0x1c] sm:$0xf]
        %v3400 = vunpack.c.l.b16 %v3168
        %v3401 = vunpack.c.l.b16 %v3178
        %v3402 = vunpack.c.l.b16 %v3196
        %v3403 = vunpack.c.l.b16 %v3206
        %v3404 = vunpack.c.l.b16 %v3224
        %v3405 = vunpack.c.l.b16 %v3234
        %v3406 = vunpack.c.l.b16 %v3252
        %v3407 = vunpack.c.l.b16 %v3262
        %v3408 = vunpack.c.l.b16 %v3280
        %v3409 = vunpack.c.l.b16 %v3290
        %v3410 = vunpack.c.l.b16 %v3308
        %v3411 = vunpack.c.l.b16 %v3318
        %v3412 = vunpack.c.l.b16 %v3336
        %v3413 = vunpack.c.l.b16 %v3346
        %v3414 = vunpack.c.l.b16 %v3364
        %v3415 = vunpack.c.l.b16 %v3374
        %v3416 = vpack.c.b16 %v3401, %v3400
        %v3417 = vpack.c.b16 %v3403, %v3402
        %v3418 = vpack.c.b16 %v3405, %v3404
        %v3419 = vpack.c.b16 %v3407, %v3406
        %v3420 = vpack.c.b16 %v3409, %v3408
        %v3421 = vpack.c.b16 %v3411, %v3410
        %v3422 = vpack.c.b16 %v3413, %v3412
        %v3423 = vpack.c.b16 %v3415, %v3414
        %v3432 = vunpack.c.l.b16 %v3392
        %v3433 = vunpack.c.l.b16 %v3393
        %v3434 = vunpack.c.l.b16 %v3394
        %v3435 = vunpack.c.l.b16 %v3395
        %v3436 = vunpack.c.l.b16 %v3396
        %v3437 = vunpack.c.l.b16 %v3397
        %v3438 = vunpack.c.l.b16 %v3398
        %v3439 = vunpack.c.l.b16 %v3399
        %v3440 = vpack.c.b16 %v3433, %v3432
        %v3441 = vpack.c.b16 %v3435, %v3434
        %v3442 = vpack.c.b16 %v3437, %v3436
        %v3443 = vpack.c.b16 %v3439, %v3438
        %v3449 = vsel %vm351, %v3416, 0
        %v3452 = vsel %vm351, %v3417, 0
        %v3455 = vsel %vm351, %v3418, 0
        %v3458 = vsel %vm351, %v3419, 0
        %v3461 = vsel %vm351, %v3420, 0
        %v3464 = vsel %vm351, %v3421, 0
        %v3467 = vsel %vm351, %v3422, 0
        %v3470 = vsel %vm351, %v3423, 0
        %3472 = vmatprep.subr.bf16.mxu0 0
        %3473 = vmatpush1.bf16.msra.mxu0 0
        %3474 = vmatprep.subr.bf16.mxu0 0
        %3475 = vmatpush1.bf16.msra.mxu0 0
        %3476 = vmatprep.subr.bf16.mxu0 0
        %3477 = vmatpush1.bf16.msra.mxu0 0
        %3478 = vmatprep.subr.bf16.mxu0 0
        %3479 = vmatpush1.bf16.msra.mxu0 0
        %3480 = vmatprep.subr.bf16.mxu0 0
        %3481 = vmatpush1.bf16.msra.mxu0 %v3443
        %3482 = vmatprep.subr.bf16.mxu0 0
        %3483 = vmatpush1.bf16.msra.mxu0 %v3442
        %3484 = vmatprep.subr.bf16.mxu0 0
        %3485 = vmatpush1.bf16.msra.mxu0 %v3441
        %3486 = vmatprep.subr.bf16.mxu0 0
        %3487 = vmatpush1.bf16.msra.mxu0 %v3440
        %3488 = vmatprep.subr.bf16.mxu0 0
        %3489 = vmatpush2.bf16.msra.mxu0 0
        %3490 = vmatprep.subr.bf16.mxu0 0
        %3491 = vmatpush2.bf16.msra.mxu0 0
        %3492 = vmatprep.subr.bf16.mxu0 0
        %3493 = vmatpush2.bf16.msra.mxu0 0
        %3494 = vmatprep.subr.bf16.mxu0 0
        %3495 = vmatpush2.bf16.msra.mxu0 0
        %3496 = vmatprep.subr.bf16.mxu0 0
        %3497 = vmatpush2.bf16.msra.mxu0 0
        %3498 = vmatprep.subr.bf16.mxu0 0
        %3499 = vmatpush2.bf16.msra.mxu0 0
        %3500 = vmatprep.subr.bf16.mxu0 0
        %3501 = vmatpush2.bf16.msra.mxu0 0
        %3502 = vmatprep.subr.bf16.mxu0 0
        %3503 = vmatpush2.bf16.msra.mxu0 0
        %3504 = vmatprep.mubr.bf16.mxu0 0
        %3505 = vmatmul.mubr.bf16.gmra.mxu0 %v3449
        %v3506 = vpop.f32.mrf.mxu0
        %v3507 = vadd.f32 0.0, %v3506
        %v3508 = vpop.f32.mrf.mxu0
        %v3509 = vpop.f32.mrf.mxu0
        %v3510 = vadd.f32 0.0, %v3509
        %v3511 = vpop.f32.mrf.mxu0
        %3512 = vmatprep.mubr.bf16.mxu0 0
        %3513 = vmatmul.mubr.bf16.gmra.mxu0 %v3452
        %v3514 = vpop.f32.mrf.mxu0
        %v3515 = vadd.f32 0.0, %v3514
        %v3516 = vpop.f32.mrf.mxu0
        %v3517 = vpop.f32.mrf.mxu0
        %v3518 = vadd.f32 0.0, %v3517
        %v3519 = vpop.f32.mrf.mxu0
        %3520 = vmatprep.mubr.bf16.mxu0 0
        %3521 = vmatmul.mubr.bf16.gmra.mxu0 %v3455
        %v3522 = vpop.f32.mrf.mxu0
        %v3523 = vadd.f32 0.0, %v3522
        %v3524 = vpop.f32.mrf.mxu0
        %v3525 = vpop.f32.mrf.mxu0
        %v3526 = vadd.f32 0.0, %v3525
        %v3527 = vpop.f32.mrf.mxu0
        %3528 = vmatprep.mubr.bf16.mxu0 0
        %3529 = vmatmul.mubr.bf16.gmra.mxu0 %v3458
        %v3530 = vpop.f32.mrf.mxu0
        %v3531 = vadd.f32 0.0, %v3530
        %v3532 = vpop.f32.mrf.mxu0
        %v3533 = vpop.f32.mrf.mxu0
        %v3534 = vadd.f32 0.0, %v3533
        %v3535 = vpop.f32.mrf.mxu0
        %3536 = vmatprep.mubr.bf16.mxu0 0
        %3537 = vmatmul.mubr.bf16.gmra.mxu0 %v3461
        %v3538 = vpop.f32.mrf.mxu0
        %v3539 = vadd.f32 0.0, %v3538
        %v3540 = vpop.f32.mrf.mxu0
        %v3541 = vpop.f32.mrf.mxu0
        %v3542 = vadd.f32 0.0, %v3541
        %v3543 = vpop.f32.mrf.mxu0
        %3544 = vmatprep.mubr.bf16.mxu0 0
        %3545 = vmatmul.mubr.bf16.gmra.mxu0 %v3464
        %v3546 = vpop.f32.mrf.mxu0
        %v3547 = vadd.f32 0.0, %v3546
        %v3548 = vpop.f32.mrf.mxu0
        %v3549 = vpop.f32.mrf.mxu0
        %v3550 = vadd.f32 0.0, %v3549
        %v3551 = vpop.f32.mrf.mxu0
        %3552 = vmatprep.mubr.bf16.mxu0 0
        %3553 = vmatmul.mubr.bf16.gmra.mxu0 %v3467
        %v3554 = vpop.f32.mrf.mxu0
        %v3555 = vadd.f32 0.0, %v3554
        %v3556 = vpop.f32.mrf.mxu0
        %v3557 = vpop.f32.mrf.mxu0
        %v3558 = vadd.f32 0.0, %v3557
        %v3559 = vpop.f32.mrf.mxu0
        %3560 = vmatprep.mubr.bf16.mxu0 0
        %3561 = vmatmul.mubr.bf16.gmra.mxu0 %v3470
        %v3562 = vpop.f32.mrf.mxu0
        %v3563 = vadd.f32 0.0, %v3562
        %v3564 = vpop.f32.mrf.mxu0
        %v3565 = vpop.f32.mrf.mxu0
        %v3566 = vadd.f32 0.0, %v3565
        %v3567 = vpop.f32.mrf.mxu0
        %3568 = vdwg.mxu0
        %v3569 = vadd.f32 %v3375, %v3507
        %v3570 = vadd.f32 %v3376, %v3510
        %v3571 = vadd.f32 %v3377, %v3515
        %v3572 = vadd.f32 %v3378, %v3518
        %v3573 = vadd.f32 %v3379, %v3523
        %v3574 = vadd.f32 %v3380, %v3526
        %v3575 = vadd.f32 %v3381, %v3531
        %v3576 = vadd.f32 %v3382, %v3534
        %v3577 = vadd.f32 %v3383, %v3539
        %v3578 = vadd.f32 %v3384, %v3542
        %v3579 = vadd.f32 %v3385, %v3547
        %v3580 = vadd.f32 %v3386, %v3550
        %v3581 = vadd.f32 %v3387, %v3555
        %v3582 = vadd.f32 %v3388, %v3558
        %v3583 = vadd.f32 %v3389, %v3563
        %v3584 = vadd.f32 %v3390, %v3566
        %3585 = vst [vmem:[#allocation2] sm:$0xff] %v3569
        %3586 = vst [vmem:[#allocation2 + $0x8] sm:$0xff] %v3570
        %3587 = vst [vmem:[#allocation2 + $0x10] sm:$0xff] %v3571
        %3588 = vst [vmem:[#allocation2 + $0x18] sm:$0xff] %v3572
        %3589 = vst [vmem:[#allocation2 + $0x20] sm:$0xff] %v3573
        %3590 = vst [vmem:[#allocation2 + $0x28] sm:$0xff] %v3574
        %3591 = vst [vmem:[#allocation2 + $0x30] sm:$0xff] %v3575
        %3592 = vst [vmem:[#allocation2 + $0x38] sm:$0xff] %v3576
        %3593 = vst [vmem:[#allocation2 + $0x40] sm:$0xff] %v3577
        %3594 = vst [vmem:[#allocation2 + $0x48] sm:$0xff] %v3578
        %3595 = vst [vmem:[#allocation2 + $0x50] sm:$0xff] %v3579
        %3596 = vst [vmem:[#allocation2 + $0x58] sm:$0xff] %v3580
        %3597 = vst [vmem:[#allocation2 + $0x60] sm:$0xff] %v3581
        %3598 = vst [vmem:[#allocation2 + $0x68] sm:$0xff] %v3582
        %3599 = vst [vmem:[#allocation2 + $0x70] sm:$0xff] %v3583
        %3600 = vst [vmem:[#allocation2 + $0x78] sm:$0xff] %v3584
        %v3601 = vld [vmem:[%s2096] sm:$0xc]
        %v3602 = vld [vmem:[%s2096 + $0x4] sm:$0xf]
        %v3603 = vld [vmem:[%s2096 + $0x8] sm:$0x3]
        %v3604 = vld [vmem:[%s2096 + $0xc] sm:$0xc]
        %v3605 = vld [vmem:[%s2096 + $0x10] sm:$0xf]
        %v3606 = vld [vmem:[%s2096 + $0x14] sm:$0x3]
        %v3607 = vld [vmem:[%s2096 + $0x18] sm:$0xc]
        %v3608 = vld [vmem:[%s2096 + $0x1c] sm:$0xf]
        %v3609 = vld [vmem:[%s2096 + $0x20] sm:$0x3]
        %v3610 = vld [vmem:[%s2096 + $0x24] sm:$0xc]
        %v3611 = vld [vmem:[%s2096 + $0x28] sm:$0xf]
        %v3612 = vld [vmem:[%s2096 + $0x2c] sm:$0x3]
        %v3613 = vld [vmem:[%s2096 + $0x30] sm:$0xc]
        %v3614 = vld [vmem:[%s2096 + $0x34] sm:$0xf]
        %v3615 = vld [vmem:[%s2096 + $0x38] sm:$0x3]
        %v3616 = vld [vmem:[%s2096 + $0x3c] sm:$0xc]
        %v3617 = vld [vmem:[%s2096 + $0x40] sm:$0xf]
        %v3618 = vld [vmem:[%s2096 + $0x44] sm:$0x3]
        %v3619 = vld [vmem:[%s2096 + $0x48] sm:$0xc]
        %v3620 = vld [vmem:[%s2096 + $0x4c] sm:$0xf]
        %v3621 = vld [vmem:[%s2096 + $0x50] sm:$0x3]
        %v3622 = vld [vmem:[%s2096 + $0x54] sm:$0xc]
        %v3623 = vld [vmem:[%s2096 + $0x58] sm:$0xf]
        %v3624 = vld [vmem:[%s2096 + $0x5c] sm:$0x3]
        %v3649 = vrot.slane %v3601, 6
        %v3650 = vrot.slane %v3649, 4
        %v3651 = vrot.slane %v3602, 6
        %v3652 = vsel %vm1810, %v3650, %v3651
        %v3653 = vrot.slane %v3651, 4
        %v3654 = vrot.slane %v3603, 6
        %v3655 = vsel %vm1810, %v3653, %v3654
        %v3656 = vrot.slane %v3604, 6
        %v3657 = vrot.slane %v3656, 4
        %v3658 = vrot.slane %v3605, 6
        %v3659 = vsel %vm1810, %v3657, %v3658
        %v3660 = vrot.slane %v3658, 4
        %v3661 = vrot.slane %v3606, 6
        %v3662 = vsel %vm1810, %v3660, %v3661
        %v3663 = vrot.slane %v3607, 6
        %v3664 = vrot.slane %v3663, 4
        %v3665 = vrot.slane %v3608, 6
        %v3666 = vsel %vm1810, %v3664, %v3665
        %v3667 = vrot.slane %v3665, 4
        %v3668 = vrot.slane %v3609, 6
        %v3669 = vsel %vm1810, %v3667, %v3668
        %v3670 = vrot.slane %v3610, 6
        %v3671 = vrot.slane %v3670, 4
        %v3672 = vrot.slane %v3611, 6
        %v3673 = vsel %vm1810, %v3671, %v3672
        %v3674 = vrot.slane %v3672, 4
        %v3675 = vrot.slane %v3612, 6
        %v3676 = vsel %vm1810, %v3674, %v3675
        %v3677 = vrot.slane %v3613, 6
        %v3678 = vrot.slane %v3677, 4
        %v3679 = vrot.slane %v3614, 6
        %v3680 = vsel %vm1810, %v3678, %v3679
        %v3681 = vrot.slane %v3679, 4
        %v3682 = vrot.slane %v3615, 6
        %v3683 = vsel %vm1810, %v3681, %v3682
        %v3684 = vrot.slane %v3616, 6
        %v3685 = vrot.slane %v3684, 4
        %v3686 = vrot.slane %v3617, 6
        %v3687 = vsel %vm1810, %v3685, %v3686
        %v3688 = vrot.slane %v3686, 4
        %v3689 = vrot.slane %v3618, 6
        %v3690 = vsel %vm1810, %v3688, %v3689
        %v3691 = vrot.slane %v3619, 6
        %v3692 = vrot.slane %v3691, 4
        %v3693 = vrot.slane %v3620, 6
        %v3694 = vsel %vm1810, %v3692, %v3693
        %v3695 = vrot.slane %v3693, 4
        %v3696 = vrot.slane %v3621, 6
        %v3697 = vsel %vm1810, %v3695, %v3696
        %v3698 = vrot.slane %v3622, 6
        %v3699 = vrot.slane %v3698, 4
        %v3700 = vrot.slane %v3623, 6
        %v3701 = vsel %vm1810, %v3699, %v3700
        %v3702 = vrot.slane %v3700, 4
        %v3703 = vrot.slane %v3624, 6
        %v3704 = vsel %vm1810, %v3702, %v3703
        %v3705 = vld [vmem:[#allocation2] sm:$0xff]
        %v3706 = vld [vmem:[#allocation2 + $0x8] sm:$0xff]
        %v3707 = vld [vmem:[#allocation2 + $0x10] sm:$0xff]
        %v3708 = vld [vmem:[#allocation2 + $0x18] sm:$0xff]
        %v3709 = vld [vmem:[#allocation2 + $0x20] sm:$0xff]
        %v3710 = vld [vmem:[#allocation2 + $0x28] sm:$0xff]
        %v3711 = vld [vmem:[#allocation2 + $0x30] sm:$0xff]
        %v3712 = vld [vmem:[#allocation2 + $0x38] sm:$0xff]
        %v3713 = vld [vmem:[#allocation2 + $0x40] sm:$0xff]
        %v3714 = vld [vmem:[#allocation2 + $0x48] sm:$0xff]
        %v3715 = vld [vmem:[#allocation2 + $0x50] sm:$0xff]
        %v3716 = vld [vmem:[#allocation2 + $0x58] sm:$0xff]
        %v3717 = vld [vmem:[#allocation2 + $0x60] sm:$0xff]
        %v3718 = vld [vmem:[#allocation2 + $0x68] sm:$0xff]
        %v3719 = vld [vmem:[#allocation2 + $0x70] sm:$0xff]
        %v3720 = vld [vmem:[#allocation2 + $0x78] sm:$0xff]
        %s3721 = scalar_lea.vmem %s1, 288
        %v3722 = vld [vmem:[%s3721] sm:$0xf]
        %v3723 = vld [vmem:[%s3721 + $0x4] sm:$0xf]
        %v3724 = vld [vmem:[%s3721 + $0x8] sm:$0xf]
        %v3725 = vld [vmem:[%s3721 + $0xc] sm:$0xf]
        %v3726 = vld [vmem:[%s3721 + $0x10] sm:$0xf]
        %v3727 = vld [vmem:[%s3721 + $0x14] sm:$0xf]
        %v3728 = vld [vmem:[%s3721 + $0x18] sm:$0xf]
        %v3729 = vld [vmem:[%s3721 + $0x1c] sm:$0xf]
        %v3730 = vunpack.c.l.b16 %v3652
        %v3731 = vunpack.c.l.b16 %v3655
        %v3732 = vunpack.c.l.b16 %v3659
        %v3733 = vunpack.c.l.b16 %v3662
        %v3734 = vunpack.c.l.b16 %v3666
        %v3735 = vunpack.c.l.b16 %v3669
        %v3736 = vunpack.c.l.b16 %v3673
        %v3737 = vunpack.c.l.b16 %v3676
        %v3738 = vunpack.c.l.b16 %v3680
        %v3739 = vunpack.c.l.b16 %v3683
        %v3740 = vunpack.c.l.b16 %v3687
        %v3741 = vunpack.c.l.b16 %v3690
        %v3742 = vunpack.c.l.b16 %v3694
        %v3743 = vunpack.c.l.b16 %v3697
        %v3744 = vunpack.c.l.b16 %v3701
        %v3745 = vunpack.c.l.b16 %v3704
        %v3746 = vpack.c.b16 %v3731, %v3730
        %v3747 = vpack.c.b16 %v3733, %v3732
        %v3748 = vpack.c.b16 %v3735, %v3734
        %v3749 = vpack.c.b16 %v3737, %v3736
        %v3750 = vpack.c.b16 %v3739, %v3738
        %v3751 = vpack.c.b16 %v3741, %v3740
        %v3752 = vpack.c.b16 %v3743, %v3742
        %v3753 = vpack.c.b16 %v3745, %v3744
        %v3762 = vunpack.c.l.b16 %v3722
        %v3763 = vunpack.c.l.b16 %v3723
        %v3764 = vunpack.c.l.b16 %v3724
        %v3765 = vunpack.c.l.b16 %v3725
        %v3766 = vunpack.c.l.b16 %v3726
        %v3767 = vunpack.c.l.b16 %v3727
        %v3768 = vunpack.c.l.b16 %v3728
        %v3769 = vunpack.c.l.b16 %v3729
        %v3770 = vpack.c.b16 %v3763, %v3762
        %v3771 = vpack.c.b16 %v3765, %v3764
        %v3772 = vpack.c.b16 %v3767, %v3766
        %v3773 = vpack.c.b16 %v3769, %v3768
        %v3779 = vsel %vm351, %v3746, 0
        %v3782 = vsel %vm351, %v3747, 0
        %v3785 = vsel %vm351, %v3748, 0
        %v3788 = vsel %vm351, %v3749, 0
        %v3791 = vsel %vm351, %v3750, 0
        %v3794 = vsel %vm351, %v3751, 0
        %v3797 = vsel %vm351, %v3752, 0
        %v3800 = vsel %vm351, %v3753, 0
        %3802 = vmatprep.subr.bf16.mxu0 0
        %3803 = vmatpush1.bf16.msra.mxu0 0
        %3804 = vmatprep.subr.bf16.mxu0 0
        %3805 = vmatpush1.bf16.msra.mxu0 0
        %3806 = vmatprep.subr.bf16.mxu0 0
        %3807 = vmatpush1.bf16.msra.mxu0 0
        %3808 = vmatprep.subr.bf16.mxu0 0
        %3809 = vmatpush1.bf16.msra.mxu0 0
        %3810 = vmatprep.subr.bf16.mxu0 0
        %3811 = vmatpush1.bf16.msra.mxu0 %v3773
        %3812 = vmatprep.subr.bf16.mxu0 0
        %3813 = vmatpush1.bf16.msra.mxu0 %v3772
        %3814 = vmatprep.subr.bf16.mxu0 0
        %3815 = vmatpush1.bf16.msra.mxu0 %v3771
        %3816 = vmatprep.subr.bf16.mxu0 0
        %3817 = vmatpush1.bf16.msra.mxu0 %v3770
        %3818 = vmatprep.subr.bf16.mxu0 0
        %3819 = vmatpush2.bf16.msra.mxu0 0
        %3820 = vmatprep.subr.bf16.mxu0 0
        %3821 = vmatpush2.bf16.msra.mxu0 0
        %3822 = vmatprep.subr.bf16.mxu0 0
        %3823 = vmatpush2.bf16.msra.mxu0 0
        %3824 = vmatprep.subr.bf16.mxu0 0
        %3825 = vmatpush2.bf16.msra.mxu0 0
        %3826 = vmatprep.subr.bf16.mxu0 0
        %3827 = vmatpush2.bf16.msra.mxu0 0
        %3828 = vmatprep.subr.bf16.mxu0 0
        %3829 = vmatpush2.bf16.msra.mxu0 0
        %3830 = vmatprep.subr.bf16.mxu0 0
        %3831 = vmatpush2.bf16.msra.mxu0 0
        %3832 = vmatprep.subr.bf16.mxu0 0
        %3833 = vmatpush2.bf16.msra.mxu0 0
        %3834 = vmatprep.mubr.bf16.mxu0 0
        %3835 = vmatmul.mubr.bf16.gmra.mxu0 %v3779
        %v3836 = vpop.f32.mrf.mxu0
        %v3837 = vadd.f32 0.0, %v3836
        %v3838 = vpop.f32.mrf.mxu0
        %v3839 = vpop.f32.mrf.mxu0
        %v3840 = vadd.f32 0.0, %v3839
        %v3841 = vpop.f32.mrf.mxu0
        %3842 = vmatprep.mubr.bf16.mxu0 0
        %3843 = vmatmul.mubr.bf16.gmra.mxu0 %v3782
        %v3844 = vpop.f32.mrf.mxu0
        %v3845 = vadd.f32 0.0, %v3844
        %v3846 = vpop.f32.mrf.mxu0
        %v3847 = vpop.f32.mrf.mxu0
        %v3848 = vadd.f32 0.0, %v3847
        %v3849 = vpop.f32.mrf.mxu0
        %3850 = vmatprep.mubr.bf16.mxu0 0
        %3851 = vmatmul.mubr.bf16.gmra.mxu0 %v3785
        %v3852 = vpop.f32.mrf.mxu0
        %v3853 = vadd.f32 0.0, %v3852
        %v3854 = vpop.f32.mrf.mxu0
        %v3855 = vpop.f32.mrf.mxu0
        %v3856 = vadd.f32 0.0, %v3855
        %v3857 = vpop.f32.mrf.mxu0
        %3858 = vmatprep.mubr.bf16.mxu0 0
        %3859 = vmatmul.mubr.bf16.gmra.mxu0 %v3788
        %v3860 = vpop.f32.mrf.mxu0
        %v3861 = vadd.f32 0.0, %v3860
        %v3862 = vpop.f32.mrf.mxu0
        %v3863 = vpop.f32.mrf.mxu0
        %v3864 = vadd.f32 0.0, %v3863
        %v3865 = vpop.f32.mrf.mxu0
        %3866 = vmatprep.mubr.bf16.mxu0 0
        %3867 = vmatmul.mubr.bf16.gmra.mxu0 %v3791
        %v3868 = vpop.f32.mrf.mxu0
        %v3869 = vadd.f32 0.0, %v3868
        %v3870 = vpop.f32.mrf.mxu0
        %v3871 = vpop.f32.mrf.mxu0
        %v3872 = vadd.f32 0.0, %v3871
        %v3873 = vpop.f32.mrf.mxu0
        %3874 = vmatprep.mubr.bf16.mxu0 0
        %3875 = vmatmul.mubr.bf16.gmra.mxu0 %v3794
        %v3876 = vpop.f32.mrf.mxu0
        %v3877 = vadd.f32 0.0, %v3876
        %v3878 = vpop.f32.mrf.mxu0
        %v3879 = vpop.f32.mrf.mxu0
        %v3880 = vadd.f32 0.0, %v3879
        %v3881 = vpop.f32.mrf.mxu0
        %3882 = vmatprep.mubr.bf16.mxu0 0
        %3883 = vmatmul.mubr.bf16.gmra.mxu0 %v3797
        %v3884 = vpop.f32.mrf.mxu0
        %v3885 = vadd.f32 0.0, %v3884
        %v3886 = vpop.f32.mrf.mxu0
        %v3887 = vpop.f32.mrf.mxu0
        %v3888 = vadd.f32 0.0, %v3887
        %v3889 = vpop.f32.mrf.mxu0
        %3890 = vmatprep.mubr.bf16.mxu0 0
        %3891 = vmatmul.mubr.bf16.gmra.mxu0 %v3800
        %v3892 = vpop.f32.mrf.mxu0
        %v3893 = vadd.f32 0.0, %v3892
        %v3894 = vpop.f32.mrf.mxu0
        %v3895 = vpop.f32.mrf.mxu0
        %v3896 = vadd.f32 0.0, %v3895
        %v3897 = vpop.f32.mrf.mxu0
        %3898 = vdwg.mxu0
        %v3899 = vadd.f32 %v3705, %v3837
        %v3900 = vadd.f32 %v3706, %v3840
        %v3901 = vadd.f32 %v3707, %v3845
        %v3902 = vadd.f32 %v3708, %v3848
        %v3903 = vadd.f32 %v3709, %v3853
        %v3904 = vadd.f32 %v3710, %v3856
        %v3905 = vadd.f32 %v3711, %v3861
        %v3906 = vadd.f32 %v3712, %v3864
        %v3907 = vadd.f32 %v3713, %v3869
        %v3908 = vadd.f32 %v3714, %v3872
        %v3909 = vadd.f32 %v3715, %v3877
        %v3910 = vadd.f32 %v3716, %v3880
        %v3911 = vadd.f32 %v3717, %v3885
        %v3912 = vadd.f32 %v3718, %v3888
        %v3913 = vadd.f32 %v3719, %v3893
        %v3914 = vadd.f32 %v3720, %v3896
        %3915 = vst [vmem:[#allocation2] sm:$0xff] %v3899
        %3916 = vst [vmem:[#allocation2 + $0x8] sm:$0xff] %v3900
        %3917 = vst [vmem:[#allocation2 + $0x10] sm:$0xff] %v3901
        %3918 = vst [vmem:[#allocation2 + $0x18] sm:$0xff] %v3902
        %3919 = vst [vmem:[#allocation2 + $0x20] sm:$0xff] %v3903
        %3920 = vst [vmem:[#allocation2 + $0x28] sm:$0xff] %v3904
        %3921 = vst [vmem:[#allocation2 + $0x30] sm:$0xff] %v3905
        %3922 = vst [vmem:[#allocation2 + $0x38] sm:$0xff] %v3906
        %3923 = vst [vmem:[#allocation2 + $0x40] sm:$0xff] %v3907
        %3924 = vst [vmem:[#allocation2 + $0x48] sm:$0xff] %v3908
        %3925 = vst [vmem:[#allocation2 + $0x50] sm:$0xff] %v3909
        %3926 = vst [vmem:[#allocation2 + $0x58] sm:$0xff] %v3910
        %3927 = vst [vmem:[#allocation2 + $0x60] sm:$0xff] %v3911
        %3928 = vst [vmem:[#allocation2 + $0x68] sm:$0xff] %v3912
        %3929 = vst [vmem:[#allocation2 + $0x70] sm:$0xff] %v3913
        %3930 = vst [vmem:[#allocation2 + $0x78] sm:$0xff] %v3914
        %s3931 = sadd.s32 %s227, 2
        %s3932 = smul.u32 %s3931, 3
        %s3933 = smul.addr %s3932, 4
        %s3934 = scalar_lea.vmem %s222, %s3933
        %v3935 = vld [vmem:[%s3934] sm:$0xf]
        %v3936 = vld [vmem:[%s3934 + $0x4] sm:$0xf]
        %v3937 = vld [vmem:[%s3934 + $0xc] sm:$0xf]
        %v3938 = vld [vmem:[%s3934 + $0x10] sm:$0xf]
        %v3939 = vld [vmem:[%s3934 + $0x18] sm:$0xf]
        %v3940 = vld [vmem:[%s3934 + $0x1c] sm:$0xf]
        %v3941 = vld [vmem:[%s3934 + $0x24] sm:$0xf]
        %v3942 = vld [vmem:[%s3934 + $0x28] sm:$0xf]
        %v3943 = vld [vmem:[%s3934 + $0x30] sm:$0xf]
        %v3944 = vld [vmem:[%s3934 + $0x34] sm:$0xf]
        %v3945 = vld [vmem:[%s3934 + $0x3c] sm:$0xf]
        %v3946 = vld [vmem:[%s3934 + $0x40] sm:$0xf]
        %v3947 = vld [vmem:[%s3934 + $0x48] sm:$0xf]
        %v3948 = vld [vmem:[%s3934 + $0x4c] sm:$0xf]
        %v3949 = vld [vmem:[%s3934 + $0x54] sm:$0xf]
        %v3950 = vld [vmem:[%s3934 + $0x58] sm:$0xf]
        %v3951 = vld [vmem:[#allocation2] sm:$0xff]
        %v3952 = vld [vmem:[#allocation2 + $0x8] sm:$0xff]
        %v3953 = vld [vmem:[#allocation2 + $0x10] sm:$0xff]
        %v3954 = vld [vmem:[#allocation2 + $0x18] sm:$0xff]
        %v3955 = vld [vmem:[#allocation2 + $0x20] sm:$0xff]
        %v3956 = vld [vmem:[#allocation2 + $0x28] sm:$0xff]
        %v3957 = vld [vmem:[#allocation2 + $0x30] sm:$0xff]
        %v3958 = vld [vmem:[#allocation2 + $0x38] sm:$0xff]
        %v3959 = vld [vmem:[#allocation2 + $0x40] sm:$0xff]
        %v3960 = vld [vmem:[#allocation2 + $0x48] sm:$0xff]
        %v3961 = vld [vmem:[#allocation2 + $0x50] sm:$0xff]
        %v3962 = vld [vmem:[#allocation2 + $0x58] sm:$0xff]
        %v3963 = vld [vmem:[#allocation2 + $0x60] sm:$0xff]
        %v3964 = vld [vmem:[#allocation2 + $0x68] sm:$0xff]
        %v3965 = vld [vmem:[#allocation2 + $0x70] sm:$0xff]
        %v3966 = vld [vmem:[#allocation2 + $0x78] sm:$0xff]
        %s3967 = scalar_lea.vmem %s1, 320
        %v3968 = vld [vmem:[%s3967] sm:$0xf]
        %v3969 = vld [vmem:[%s3967 + $0x4] sm:$0xf]
        %v3970 = vld [vmem:[%s3967 + $0x8] sm:$0xf]
        %v3971 = vld [vmem:[%s3967 + $0xc] sm:$0xf]
        %v3972 = vld [vmem:[%s3967 + $0x10] sm:$0xf]
        %v3973 = vld [vmem:[%s3967 + $0x14] sm:$0xf]
        %v3974 = vld [vmem:[%s3967 + $0x18] sm:$0xf]
        %v3975 = vld [vmem:[%s3967 + $0x1c] sm:$0xf]
        %v3992 = vunpack.c.l.b16 %v3935
        %v3993 = vunpack.c.l.b16 %v3936
        %v3994 = vunpack.c.l.b16 %v3937
        %v3995 = vunpack.c.l.b16 %v3938
        %v3996 = vunpack.c.l.b16 %v3939
        %v3997 = vunpack.c.l.b16 %v3940
        %v3998 = vunpack.c.l.b16 %v3941
        %v3999 = vunpack.c.l.b16 %v3942
        %v4000 = vunpack.c.l.b16 %v3943
        %v4001 = vunpack.c.l.b16 %v3944
        %v4002 = vunpack.c.l.b16 %v3945
        %v4003 = vunpack.c.l.b16 %v3946
        %v4004 = vunpack.c.l.b16 %v3947
        %v4005 = vunpack.c.l.b16 %v3948
        %v4006 = vunpack.c.l.b16 %v3949
        %v4007 = vunpack.c.l.b16 %v3950
        %v4008 = vpack.c.b16 %v3993, %v3992
        %v4009 = vpack.c.b16 %v3995, %v3994
        %v4010 = vpack.c.b16 %v3997, %v3996
        %v4011 = vpack.c.b16 %v3999, %v3998
        %v4012 = vpack.c.b16 %v4001, %v4000
        %v4013 = vpack.c.b16 %v4003, %v4002
        %v4014 = vpack.c.b16 %v4005, %v4004
        %v4015 = vpack.c.b16 %v4007, %v4006
        %v4024 = vunpack.c.l.b16 %v3968
        %v4025 = vunpack.c.l.b16 %v3969
        %v4026 = vunpack.c.l.b16 %v3970
        %v4027 = vunpack.c.l.b16 %v3971
        %v4028 = vunpack.c.l.b16 %v3972
        %v4029 = vunpack.c.l.b16 %v3973
        %v4030 = vunpack.c.l.b16 %v3974
        %v4031 = vunpack.c.l.b16 %v3975
        %v4032 = vpack.c.b16 %v4025, %v4024
        %v4033 = vpack.c.b16 %v4027, %v4026
        %v4034 = vpack.c.b16 %v4029, %v4028
        %v4035 = vpack.c.b16 %v4031, %v4030
        %v4041 = vsel %vm351, %v4008, 0
        %v4044 = vsel %vm351, %v4009, 0
        %v4047 = vsel %vm351, %v4010, 0
        %v4050 = vsel %vm351, %v4011, 0
        %v4053 = vsel %vm351, %v4012, 0
        %v4056 = vsel %vm351, %v4013, 0
        %v4059 = vsel %vm351, %v4014, 0
        %v4062 = vsel %vm351, %v4015, 0
        %4064 = vmatprep.subr.bf16.mxu0 0
        %4065 = vmatpush1.bf16.msra.mxu0 0
        %4066 = vmatprep.subr.bf16.mxu0 0
        %4067 = vmatpush1.bf16.msra.mxu0 0
        %4068 = vmatprep.subr.bf16.mxu0 0
        %4069 = vmatpush1.bf16.msra.mxu0 0
        %4070 = vmatprep.subr.bf16.mxu0 0
        %4071 = vmatpush1.bf16.msra.mxu0 0
        %4072 = vmatprep.subr.bf16.mxu0 0
        %4073 = vmatpush1.bf16.msra.mxu0 %v4035
        %4074 = vmatprep.subr.bf16.mxu0 0
        %4075 = vmatpush1.bf16.msra.mxu0 %v4034
        %4076 = vmatprep.subr.bf16.mxu0 0
        %4077 = vmatpush1.bf16.msra.mxu0 %v4033
        %4078 = vmatprep.subr.bf16.mxu0 0
        %4079 = vmatpush1.bf16.msra.mxu0 %v4032
        %4080 = vmatprep.subr.bf16.mxu0 0
        %4081 = vmatpush2.bf16.msra.mxu0 0
        %4082 = vmatprep.subr.bf16.mxu0 0
        %4083 = vmatpush2.bf16.msra.mxu0 0
        %4084 = vmatprep.subr.bf16.mxu0 0
        %4085 = vmatpush2.bf16.msra.mxu0 0
        %4086 = vmatprep.subr.bf16.mxu0 0
        %4087 = vmatpush2.bf16.msra.mxu0 0
        %4088 = vmatprep.subr.bf16.mxu0 0
        %4089 = vmatpush2.bf16.msra.mxu0 0
        %4090 = vmatprep.subr.bf16.mxu0 0
        %4091 = vmatpush2.bf16.msra.mxu0 0
        %4092 = vmatprep.subr.bf16.mxu0 0
        %4093 = vmatpush2.bf16.msra.mxu0 0
        %4094 = vmatprep.subr.bf16.mxu0 0
        %4095 = vmatpush2.bf16.msra.mxu0 0
        %4096 = vmatprep.mubr.bf16.mxu0 0
        %4097 = vmatmul.mubr.bf16.gmra.mxu0 %v4041
        %v4098 = vpop.f32.mrf.mxu0
        %v4099 = vadd.f32 0.0, %v4098
        %v4100 = vpop.f32.mrf.mxu0
        %v4101 = vpop.f32.mrf.mxu0
        %v4102 = vadd.f32 0.0, %v4101
        %v4103 = vpop.f32.mrf.mxu0
        %4104 = vmatprep.mubr.bf16.mxu0 0
        %4105 = vmatmul.mubr.bf16.gmra.mxu0 %v4044
        %v4106 = vpop.f32.mrf.mxu0
        %v4107 = vadd.f32 0.0, %v4106
        %v4108 = vpop.f32.mrf.mxu0
        %v4109 = vpop.f32.mrf.mxu0
        %v4110 = vadd.f32 0.0, %v4109
        %v4111 = vpop.f32.mrf.mxu0
        %4112 = vmatprep.mubr.bf16.mxu0 0
        %4113 = vmatmul.mubr.bf16.gmra.mxu0 %v4047
        %v4114 = vpop.f32.mrf.mxu0
        %v4115 = vadd.f32 0.0, %v4114
        %v4116 = vpop.f32.mrf.mxu0
        %v4117 = vpop.f32.mrf.mxu0
        %v4118 = vadd.f32 0.0, %v4117
        %v4119 = vpop.f32.mrf.mxu0
        %4120 = vmatprep.mubr.bf16.mxu0 0
        %4121 = vmatmul.mubr.bf16.gmra.mxu0 %v4050
        %v4122 = vpop.f32.mrf.mxu0
        %v4123 = vadd.f32 0.0, %v4122
        %v4124 = vpop.f32.mrf.mxu0
        %v4125 = vpop.f32.mrf.mxu0
        %v4126 = vadd.f32 0.0, %v4125
        %v4127 = vpop.f32.mrf.mxu0
        %4128 = vmatprep.mubr.bf16.mxu0 0
        %4129 = vmatmul.mubr.bf16.gmra.mxu0 %v4053
        %v4130 = vpop.f32.mrf.mxu0
        %v4131 = vadd.f32 0.0, %v4130
        %v4132 = vpop.f32.mrf.mxu0
        %v4133 = vpop.f32.mrf.mxu0
        %v4134 = vadd.f32 0.0, %v4133
        %v4135 = vpop.f32.mrf.mxu0
        %4136 = vmatprep.mubr.bf16.mxu0 0
        %4137 = vmatmul.mubr.bf16.gmra.mxu0 %v4056
        %v4138 = vpop.f32.mrf.mxu0
        %v4139 = vadd.f32 0.0, %v4138
        %v4140 = vpop.f32.mrf.mxu0
        %v4141 = vpop.f32.mrf.mxu0
        %v4142 = vadd.f32 0.0, %v4141
        %v4143 = vpop.f32.mrf.mxu0
        %4144 = vmatprep.mubr.bf16.mxu0 0
        %4145 = vmatmul.mubr.bf16.gmra.mxu0 %v4059
        %v4146 = vpop.f32.mrf.mxu0
        %v4147 = vadd.f32 0.0, %v4146
        %v4148 = vpop.f32.mrf.mxu0
        %v4149 = vpop.f32.mrf.mxu0
        %v4150 = vadd.f32 0.0, %v4149
        %v4151 = vpop.f32.mrf.mxu0
        %4152 = vmatprep.mubr.bf16.mxu0 0
        %4153 = vmatmul.mubr.bf16.gmra.mxu0 %v4062
        %v4154 = vpop.f32.mrf.mxu0
        %v4155 = vadd.f32 0.0, %v4154
        %v4156 = vpop.f32.mrf.mxu0
        %v4157 = vpop.f32.mrf.mxu0
        %v4158 = vadd.f32 0.0, %v4157
        %v4159 = vpop.f32.mrf.mxu0
        %4160 = vdwg.mxu0
        %v4161 = vadd.f32 %v3951, %v4099
        %v4162 = vadd.f32 %v3952, %v4102
        %v4163 = vadd.f32 %v3953, %v4107
        %v4164 = vadd.f32 %v3954, %v4110
        %v4165 = vadd.f32 %v3955, %v4115
        %v4166 = vadd.f32 %v3956, %v4118
        %v4167 = vadd.f32 %v3957, %v4123
        %v4168 = vadd.f32 %v3958, %v4126
        %v4169 = vadd.f32 %v3959, %v4131
        %v4170 = vadd.f32 %v3960, %v4134
        %v4171 = vadd.f32 %v3961, %v4139
        %v4172 = vadd.f32 %v3962, %v4142
        %v4173 = vadd.f32 %v3963, %v4147
        %v4174 = vadd.f32 %v3964, %v4150
        %v4175 = vadd.f32 %v3965, %v4155
        %v4176 = vadd.f32 %v3966, %v4158
        %4177 = vst [vmem:[#allocation2] sm:$0xff] %v4161
        %4178 = vst [vmem:[#allocation2 + $0x8] sm:$0xff] %v4162
        %4179 = vst [vmem:[#allocation2 + $0x10] sm:$0xff] %v4163
        %4180 = vst [vmem:[#allocation2 + $0x18] sm:$0xff] %v4164
        %4181 = vst [vmem:[#allocation2 + $0x20] sm:$0xff] %v4165
        %4182 = vst [vmem:[#allocation2 + $0x28] sm:$0xff] %v4166
        %4183 = vst [vmem:[#allocation2 + $0x30] sm:$0xff] %v4167
        %4184 = vst [vmem:[#allocation2 + $0x38] sm:$0xff] %v4168
        %4185 = vst [vmem:[#allocation2 + $0x40] sm:$0xff] %v4169
        %4186 = vst [vmem:[#allocation2 + $0x48] sm:$0xff] %v4170
        %4187 = vst [vmem:[#allocation2 + $0x50] sm:$0xff] %v4171
        %4188 = vst [vmem:[#allocation2 + $0x58] sm:$0xff] %v4172
        %4189 = vst [vmem:[#allocation2 + $0x60] sm:$0xff] %v4173
        %4190 = vst [vmem:[#allocation2 + $0x68] sm:$0xff] %v4174
        %4191 = vst [vmem:[#allocation2 + $0x70] sm:$0xff] %v4175
        %4192 = vst [vmem:[#allocation2 + $0x78] sm:$0xff] %v4176
        %v4193 = vld [vmem:[%s3934] sm:$0xf]
        %v4194 = vld [vmem:[%s3934 + $0x4] sm:$0xf]
        %v4195 = vld [vmem:[%s3934 + $0x8] sm:$0x1]
        %v4196 = vld [vmem:[%s3934 + $0xc] sm:$0xf]
        %v4197 = vld [vmem:[%s3934 + $0x10] sm:$0xf]
        %v4198 = vld [vmem:[%s3934 + $0x14] sm:$0x1]
        %v4199 = vld [vmem:[%s3934 + $0x18] sm:$0xf]
        %v4200 = vld [vmem:[%s3934 + $0x1c] sm:$0xf]
        %v4201 = vld [vmem:[%s3934 + $0x20] sm:$0x1]
        %v4202 = vld [vmem:[%s3934 + $0x24] sm:$0xf]
        %v4203 = vld [vmem:[%s3934 + $0x28] sm:$0xf]
        %v4204 = vld [vmem:[%s3934 + $0x2c] sm:$0x1]
        %v4205 = vld [vmem:[%s3934 + $0x30] sm:$0xf]
        %v4206 = vld [vmem:[%s3934 + $0x34] sm:$0xf]
        %v4207 = vld [vmem:[%s3934 + $0x38] sm:$0x1]
        %v4208 = vld [vmem:[%s3934 + $0x3c] sm:$0xf]
        %v4209 = vld [vmem:[%s3934 + $0x40] sm:$0xf]
        %v4210 = vld [vmem:[%s3934 + $0x44] sm:$0x1]
        %v4211 = vld [vmem:[%s3934 + $0x48] sm:$0xf]
        %v4212 = vld [vmem:[%s3934 + $0x4c] sm:$0xf]
        %v4213 = vld [vmem:[%s3934 + $0x50] sm:$0x1]
        %v4214 = vld [vmem:[%s3934 + $0x54] sm:$0xf]
        %v4215 = vld [vmem:[%s3934 + $0x58] sm:$0xf]
        %v4216 = vld [vmem:[%s3934 + $0x5c] sm:$0x1]
        %v4218 = vshrl.u32 %v4193, 16
        %v4220 = vrot.slane %v4218, 4
        %v4221 = vshll.u32 %v4193, 16
        %v4223 = vrot.slane %v4221, 5
        %v4224 = vor.u32 %v4220, %v4223
        %v4225 = vrot.slane %v4224, 4
        %v4227 = vshll.u32 %v4194, 16
        %v4229 = vrot.slane %v4227, 5
        %v4230 = vsel %vm531, %v4225, %v4229
        %v4231 = vshrl.u32 %v4194, 16
        %v4233 = vrot.slane %v4231, 4
        %v4234 = vor.u32 %v4233, %v4229
        %v4235 = vrot.slane %v4234, 4
        %v4237 = vshll.u32 %v4195, 16
        %v4239 = vrot.slane %v4237, 5
        %v4240 = vsel %vm531, %v4235, %v4239
        %v4242 = vshrl.u32 %v4196, 16
        %v4244 = vrot.slane %v4242, 4
        %v4245 = vshll.u32 %v4196, 16
        %v4247 = vrot.slane %v4245, 5
        %v4248 = vor.u32 %v4244, %v4247
        %v4249 = vrot.slane %v4248, 4
        %v4251 = vshll.u32 %v4197, 16
        %v4253 = vrot.slane %v4251, 5
        %v4254 = vsel %vm531, %v4249, %v4253
        %v4255 = vshrl.u32 %v4197, 16
        %v4257 = vrot.slane %v4255, 4
        %v4258 = vor.u32 %v4257, %v4253
        %v4259 = vrot.slane %v4258, 4
        %v4261 = vshll.u32 %v4198, 16
        %v4263 = vrot.slane %v4261, 5
        %v4264 = vsel %vm531, %v4259, %v4263
        %v4266 = vshrl.u32 %v4199, 16
        %v4268 = vrot.slane %v4266, 4
        %v4269 = vshll.u32 %v4199, 16
        %v4271 = vrot.slane %v4269, 5
        %v4272 = vor.u32 %v4268, %v4271
        %v4273 = vrot.slane %v4272, 4
        %v4275 = vshll.u32 %v4200, 16
        %v4277 = vrot.slane %v4275, 5
        %v4278 = vsel %vm531, %v4273, %v4277
        %v4279 = vshrl.u32 %v4200, 16
        %v4281 = vrot.slane %v4279, 4
        %v4282 = vor.u32 %v4281, %v4277
        %v4283 = vrot.slane %v4282, 4
        %v4285 = vshll.u32 %v4201, 16
        %v4287 = vrot.slane %v4285, 5
        %v4288 = vsel %vm531, %v4283, %v4287
        %v4290 = vshrl.u32 %v4202, 16
        %v4292 = vrot.slane %v4290, 4
        %v4293 = vshll.u32 %v4202, 16
        %v4295 = vrot.slane %v4293, 5
        %v4296 = vor.u32 %v4292, %v4295
        %v4297 = vrot.slane %v4296, 4
        %v4299 = vshll.u32 %v4203, 16
        %v4301 = vrot.slane %v4299, 5
        %v4302 = vsel %vm531, %v4297, %v4301
        %v4303 = vshrl.u32 %v4203, 16
        %v4305 = vrot.slane %v4303, 4
        %v4306 = vor.u32 %v4305, %v4301
        %v4307 = vrot.slane %v4306, 4
        %v4309 = vshll.u32 %v4204, 16
        %v4311 = vrot.slane %v4309, 5
        %v4312 = vsel %vm531, %v4307, %v4311
        %v4314 = vshrl.u32 %v4205, 16
        %v4316 = vrot.slane %v4314, 4
        %v4317 = vshll.u32 %v4205, 16
        %v4319 = vrot.slane %v4317, 5
        %v4320 = vor.u32 %v4316, %v4319
        %v4321 = vrot.slane %v4320, 4
        %v4323 = vshll.u32 %v4206, 16
        %v4325 = vrot.slane %v4323, 5
        %v4326 = vsel %vm531, %v4321, %v4325
        %v4327 = vshrl.u32 %v4206, 16
        %v4329 = vrot.slane %v4327, 4
        %v4330 = vor.u32 %v4329, %v4325
        %v4331 = vrot.slane %v4330, 4
        %v4333 = vshll.u32 %v4207, 16
        %v4335 = vrot.slane %v4333, 5
        %v4336 = vsel %vm531, %v4331, %v4335
        %v4338 = vshrl.u32 %v4208, 16
        %v4340 = vrot.slane %v4338, 4
        %v4341 = vshll.u32 %v4208, 16
        %v4343 = vrot.slane %v4341, 5
        %v4344 = vor.u32 %v4340, %v4343
        %v4345 = vrot.slane %v4344, 4
        %v4347 = vshll.u32 %v4209, 16
        %v4349 = vrot.slane %v4347, 5
        %v4350 = vsel %vm531, %v4345, %v4349
        %v4351 = vshrl.u32 %v4209, 16
        %v4353 = vrot.slane %v4351, 4
        %v4354 = vor.u32 %v4353, %v4349
        %v4355 = vrot.slane %v4354, 4
        %v4357 = vshll.u32 %v4210, 16
        %v4359 = vrot.slane %v4357, 5
        %v4360 = vsel %vm531, %v4355, %v4359
        %v4362 = vshrl.u32 %v4211, 16
        %v4364 = vrot.slane %v4362, 4
        %v4365 = vshll.u32 %v4211, 16
        %v4367 = vrot.slane %v4365, 5
        %v4368 = vor.u32 %v4364, %v4367
        %v4369 = vrot.slane %v4368, 4
        %v4371 = vshll.u32 %v4212, 16
        %v4373 = vrot.slane %v4371, 5
        %v4374 = vsel %vm531, %v4369, %v4373
        %v4375 = vshrl.u32 %v4212, 16
        %v4377 = vrot.slane %v4375, 4
        %v4378 = vor.u32 %v4377, %v4373
        %v4379 = vrot.slane %v4378, 4
        %v4381 = vshll.u32 %v4213, 16
        %v4383 = vrot.slane %v4381, 5
        %v4384 = vsel %vm531, %v4379, %v4383
        %v4386 = vshrl.u32 %v4214, 16
        %v4388 = vrot.slane %v4386, 4
        %v4389 = vshll.u32 %v4214, 16
        %v4391 = vrot.slane %v4389, 5
        %v4392 = vor.u32 %v4388, %v4391
        %v4393 = vrot.slane %v4392, 4
        %v4395 = vshll.u32 %v4215, 16
        %v4397 = vrot.slane %v4395, 5
        %v4398 = vsel %vm531, %v4393, %v4397
        %v4399 = vshrl.u32 %v4215, 16
        %v4401 = vrot.slane %v4399, 4
        %v4402 = vor.u32 %v4401, %v4397
        %v4403 = vrot.slane %v4402, 4
        %v4405 = vshll.u32 %v4216, 16
        %v4407 = vrot.slane %v4405, 5
        %v4408 = vsel %vm531, %v4403, %v4407
        %v4409 = vld [vmem:[#allocation2] sm:$0xff]
        %v4410 = vld [vmem:[#allocation2 + $0x8] sm:$0xff]
        %v4411 = vld [vmem:[#allocation2 + $0x10] sm:$0xff]
        %v4412 = vld [vmem:[#allocation2 + $0x18] sm:$0xff]
        %v4413 = vld [vmem:[#allocation2 + $0x20] sm:$0xff]
        %v4414 = vld [vmem:[#allocation2 + $0x28] sm:$0xff]
        %v4415 = vld [vmem:[#allocation2 + $0x30] sm:$0xff]
        %v4416 = vld [vmem:[#allocation2 + $0x38] sm:$0xff]
        %v4417 = vld [vmem:[#allocation2 + $0x40] sm:$0xff]
        %v4418 = vld [vmem:[#allocation2 + $0x48] sm:$0xff]
        %v4419 = vld [vmem:[#allocation2 + $0x50] sm:$0xff]
        %v4420 = vld [vmem:[#allocation2 + $0x58] sm:$0xff]
        %v4421 = vld [vmem:[#allocation2 + $0x60] sm:$0xff]
        %v4422 = vld [vmem:[#allocation2 + $0x68] sm:$0xff]
        %v4423 = vld [vmem:[#allocation2 + $0x70] sm:$0xff]
        %v4424 = vld [vmem:[#allocation2 + $0x78] sm:$0xff]
        %s4425 = scalar_lea.vmem %s1, 352
        %v4426 = vld [vmem:[%s4425] sm:$0xf]
        %v4427 = vld [vmem:[%s4425 + $0x4] sm:$0xf]
        %v4428 = vld [vmem:[%s4425 + $0x8] sm:$0xf]
        %v4429 = vld [vmem:[%s4425 + $0xc] sm:$0xf]
        %v4430 = vld [vmem:[%s4425 + $0x10] sm:$0xf]
        %v4431 = vld [vmem:[%s4425 + $0x14] sm:$0xf]
        %v4432 = vld [vmem:[%s4425 + $0x18] sm:$0xf]
        %v4433 = vld [vmem:[%s4425 + $0x1c] sm:$0xf]
        %v4434 = vunpack.c.l.b16 %v4230
        %v4435 = vunpack.c.l.b16 %v4240
        %v4436 = vunpack.c.l.b16 %v4254
        %v4437 = vunpack.c.l.b16 %v4264
        %v4438 = vunpack.c.l.b16 %v4278
        %v4439 = vunpack.c.l.b16 %v4288
        %v4440 = vunpack.c.l.b16 %v4302
        %v4441 = vunpack.c.l.b16 %v4312
        %v4442 = vunpack.c.l.b16 %v4326
        %v4443 = vunpack.c.l.b16 %v4336
        %v4444 = vunpack.c.l.b16 %v4350
        %v4445 = vunpack.c.l.b16 %v4360
        %v4446 = vunpack.c.l.b16 %v4374
        %v4447 = vunpack.c.l.b16 %v4384
        %v4448 = vunpack.c.l.b16 %v4398
        %v4449 = vunpack.c.l.b16 %v4408
        %v4450 = vpack.c.b16 %v4435, %v4434
        %v4451 = vpack.c.b16 %v4437, %v4436
        %v4452 = vpack.c.b16 %v4439, %v4438
        %v4453 = vpack.c.b16 %v4441, %v4440
        %v4454 = vpack.c.b16 %v4443, %v4442
        %v4455 = vpack.c.b16 %v4445, %v4444
        %v4456 = vpack.c.b16 %v4447, %v4446
        %v4457 = vpack.c.b16 %v4449, %v4448
        %v4466 = vunpack.c.l.b16 %v4426
        %v4467 = vunpack.c.l.b16 %v4427
        %v4468 = vunpack.c.l.b16 %v4428
        %v4469 = vunpack.c.l.b16 %v4429
        %v4470 = vunpack.c.l.b16 %v4430
        %v4471 = vunpack.c.l.b16 %v4431
        %v4472 = vunpack.c.l.b16 %v4432
        %v4473 = vunpack.c.l.b16 %v4433
        %v4474 = vpack.c.b16 %v4467, %v4466
        %v4475 = vpack.c.b16 %v4469, %v4468
        %v4476 = vpack.c.b16 %v4471, %v4470
        %v4477 = vpack.c.b16 %v4473, %v4472
        %v4483 = vsel %vm351, %v4450, 0
        %v4486 = vsel %vm351, %v4451, 0
        %v4489 = vsel %vm351, %v4452, 0
        %v4492 = vsel %vm351, %v4453, 0
        %v4495 = vsel %vm351, %v4454, 0
        %v4498 = vsel %vm351, %v4455, 0
        %v4501 = vsel %vm351, %v4456, 0
        %v4504 = vsel %vm351, %v4457, 0
        %4506 = vmatprep.subr.bf16.mxu0 0
        %4507 = vmatpush1.bf16.msra.mxu0 0
        %4508 = vmatprep.subr.bf16.mxu0 0
        %4509 = vmatpush1.bf16.msra.mxu0 0
        %4510 = vmatprep.subr.bf16.mxu0 0
        %4511 = vmatpush1.bf16.msra.mxu0 0
        %4512 = vmatprep.subr.bf16.mxu0 0
        %4513 = vmatpush1.bf16.msra.mxu0 0
        %4514 = vmatprep.subr.bf16.mxu0 0
        %4515 = vmatpush1.bf16.msra.mxu0 %v4477
        %4516 = vmatprep.subr.bf16.mxu0 0
        %4517 = vmatpush1.bf16.msra.mxu0 %v4476
        %4518 = vmatprep.subr.bf16.mxu0 0
        %4519 = vmatpush1.bf16.msra.mxu0 %v4475
        %4520 = vmatprep.subr.bf16.mxu0 0
        %4521 = vmatpush1.bf16.msra.mxu0 %v4474
        %4522 = vmatprep.subr.bf16.mxu0 0
        %4523 = vmatpush2.bf16.msra.mxu0 0
        %4524 = vmatprep.subr.bf16.mxu0 0
        %4525 = vmatpush2.bf16.msra.mxu0 0
        %4526 = vmatprep.subr.bf16.mxu0 0
        %4527 = vmatpush2.bf16.msra.mxu0 0
        %4528 = vmatprep.subr.bf16.mxu0 0
        %4529 = vmatpush2.bf16.msra.mxu0 0
        %4530 = vmatprep.subr.bf16.mxu0 0
        %4531 = vmatpush2.bf16.msra.mxu0 0
        %4532 = vmatprep.subr.bf16.mxu0 0
        %4533 = vmatpush2.bf16.msra.mxu0 0
        %4534 = vmatprep.subr.bf16.mxu0 0
        %4535 = vmatpush2.bf16.msra.mxu0 0
        %4536 = vmatprep.subr.bf16.mxu0 0
        %4537 = vmatpush2.bf16.msra.mxu0 0
        %4538 = vmatprep.mubr.bf16.mxu0 0
        %4539 = vmatmul.mubr.bf16.gmra.mxu0 %v4483
        %v4540 = vpop.f32.mrf.mxu0
        %v4541 = vadd.f32 0.0, %v4540
        %v4542 = vpop.f32.mrf.mxu0
        %v4543 = vpop.f32.mrf.mxu0
        %v4544 = vadd.f32 0.0, %v4543
        %v4545 = vpop.f32.mrf.mxu0
        %4546 = vmatprep.mubr.bf16.mxu0 0
        %4547 = vmatmul.mubr.bf16.gmra.mxu0 %v4486
        %v4548 = vpop.f32.mrf.mxu0
        %v4549 = vadd.f32 0.0, %v4548
        %v4550 = vpop.f32.mrf.mxu0
        %v4551 = vpop.f32.mrf.mxu0
        %v4552 = vadd.f32 0.0, %v4551
        %v4553 = vpop.f32.mrf.mxu0
        %4554 = vmatprep.mubr.bf16.mxu0 0
        %4555 = vmatmul.mubr.bf16.gmra.mxu0 %v4489
        %v4556 = vpop.f32.mrf.mxu0
        %v4557 = vadd.f32 0.0, %v4556
        %v4558 = vpop.f32.mrf.mxu0
        %v4559 = vpop.f32.mrf.mxu0
        %v4560 = vadd.f32 0.0, %v4559
        %v4561 = vpop.f32.mrf.mxu0
        %4562 = vmatprep.mubr.bf16.mxu0 0
        %4563 = vmatmul.mubr.bf16.gmra.mxu0 %v4492
        %v4564 = vpop.f32.mrf.mxu0
        %v4565 = vadd.f32 0.0, %v4564
        %v4566 = vpop.f32.mrf.mxu0
        %v4567 = vpop.f32.mrf.mxu0
        %v4568 = vadd.f32 0.0, %v4567
        %v4569 = vpop.f32.mrf.mxu0
        %4570 = vmatprep.mubr.bf16.mxu0 0
        %4571 = vmatmul.mubr.bf16.gmra.mxu0 %v4495
        %v4572 = vpop.f32.mrf.mxu0
        %v4573 = vadd.f32 0.0, %v4572
        %v4574 = vpop.f32.mrf.mxu0
        %v4575 = vpop.f32.mrf.mxu0
        %v4576 = vadd.f32 0.0, %v4575
        %v4577 = vpop.f32.mrf.mxu0
        %4578 = vmatprep.mubr.bf16.mxu0 0
        %4579 = vmatmul.mubr.bf16.gmra.mxu0 %v4498
        %v4580 = vpop.f32.mrf.mxu0
        %v4581 = vadd.f32 0.0, %v4580
        %v4582 = vpop.f32.mrf.mxu0
        %v4583 = vpop.f32.mrf.mxu0
        %v4584 = vadd.f32 0.0, %v4583
        %v4585 = vpop.f32.mrf.mxu0
        %4586 = vmatprep.mubr.bf16.mxu0 0
        %4587 = vmatmul.mubr.bf16.gmra.mxu0 %v4501
        %v4588 = vpop.f32.mrf.mxu0
        %v4589 = vadd.f32 0.0, %v4588
        %v4590 = vpop.f32.mrf.mxu0
        %v4591 = vpop.f32.mrf.mxu0
        %v4592 = vadd.f32 0.0, %v4591
        %v4593 = vpop.f32.mrf.mxu0
        %4594 = vmatprep.mubr.bf16.mxu0 0
        %4595 = vmatmul.mubr.bf16.gmra.mxu0 %v4504
        %v4596 = vpop.f32.mrf.mxu0
        %v4597 = vadd.f32 0.0, %v4596
        %v4598 = vpop.f32.mrf.mxu0
        %v4599 = vpop.f32.mrf.mxu0
        %v4600 = vadd.f32 0.0, %v4599
        %v4601 = vpop.f32.mrf.mxu0
        %4602 = vdwg.mxu0
        %v4603 = vadd.f32 %v4409, %v4541
        %v4604 = vadd.f32 %v4410, %v4544
        %v4605 = vadd.f32 %v4411, %v4549
        %v4606 = vadd.f32 %v4412, %v4552
        %v4607 = vadd.f32 %v4413, %v4557
        %v4608 = vadd.f32 %v4414, %v4560
        %v4609 = vadd.f32 %v4415, %v4565
        %v4610 = vadd.f32 %v4416, %v4568
        %v4611 = vadd.f32 %v4417, %v4573
        %v4612 = vadd.f32 %v4418, %v4576
        %v4613 = vadd.f32 %v4419, %v4581
        %v4614 = vadd.f32 %v4420, %v4584
        %v4615 = vadd.f32 %v4421, %v4589
        %v4616 = vadd.f32 %v4422, %v4592
        %v4617 = vadd.f32 %v4423, %v4597
        %v4618 = vadd.f32 %v4424, %v4600
        %4619 = vst [vmem:[#allocation2] sm:$0xff] %v4603
        %4620 = vst [vmem:[#allocation2 + $0x8] sm:$0xff] %v4604
        %4621 = vst [vmem:[#allocation2 + $0x10] sm:$0xff] %v4605
        %4622 = vst [vmem:[#allocation2 + $0x18] sm:$0xff] %v4606
        %4623 = vst [vmem:[#allocation2 + $0x20] sm:$0xff] %v4607
        %4624 = vst [vmem:[#allocation2 + $0x28] sm:$0xff] %v4608
        %4625 = vst [vmem:[#allocation2 + $0x30] sm:$0xff] %v4609
        %4626 = vst [vmem:[#allocation2 + $0x38] sm:$0xff] %v4610
        %4627 = vst [vmem:[#allocation2 + $0x40] sm:$0xff] %v4611
        %4628 = vst [vmem:[#allocation2 + $0x48] sm:$0xff] %v4612
        %4629 = vst [vmem:[#allocation2 + $0x50] sm:$0xff] %v4613
        %4630 = vst [vmem:[#allocation2 + $0x58] sm:$0xff] %v4614
        %4631 = vst [vmem:[#allocation2 + $0x60] sm:$0xff] %v4615
        %4632 = vst [vmem:[#allocation2 + $0x68] sm:$0xff] %v4616
        %4633 = vst [vmem:[#allocation2 + $0x70] sm:$0xff] %v4617
        %4634 = vst [vmem:[#allocation2 + $0x78] sm:$0xff] %v4618
        %v4635 = vld [vmem:[%s3934] sm:$0xe]
        %v4636 = vld [vmem:[%s3934 + $0x4] sm:$0xf]
        %v4637 = vld [vmem:[%s3934 + $0x8] sm:$0x1]
        %v4638 = vld [vmem:[%s3934 + $0xc] sm:$0xe]
        %v4639 = vld [vmem:[%s3934 + $0x10] sm:$0xf]
        %v4640 = vld [vmem:[%s3934 + $0x14] sm:$0x1]
        %v4641 = vld [vmem:[%s3934 + $0x18] sm:$0xe]
        %v4642 = vld [vmem:[%s3934 + $0x1c] sm:$0xf]
        %v4643 = vld [vmem:[%s3934 + $0x20] sm:$0x1]
        %v4644 = vld [vmem:[%s3934 + $0x24] sm:$0xe]
        %v4645 = vld [vmem:[%s3934 + $0x28] sm:$0xf]
        %v4646 = vld [vmem:[%s3934 + $0x2c] sm:$0x1]
        %v4647 = vld [vmem:[%s3934 + $0x30] sm:$0xe]
        %v4648 = vld [vmem:[%s3934 + $0x34] sm:$0xf]
        %v4649 = vld [vmem:[%s3934 + $0x38] sm:$0x1]
        %v4650 = vld [vmem:[%s3934 + $0x3c] sm:$0xe]
        %v4651 = vld [vmem:[%s3934 + $0x40] sm:$0xf]
        %v4652 = vld [vmem:[%s3934 + $0x44] sm:$0x1]
        %v4653 = vld [vmem:[%s3934 + $0x48] sm:$0xe]
        %v4654 = vld [vmem:[%s3934 + $0x4c] sm:$0xf]
        %v4655 = vld [vmem:[%s3934 + $0x50] sm:$0x1]
        %v4656 = vld [vmem:[%s3934 + $0x54] sm:$0xe]
        %v4657 = vld [vmem:[%s3934 + $0x58] sm:$0xf]
        %v4658 = vld [vmem:[%s3934 + $0x5c] sm:$0x1]
        %v4683 = vrot.slane %v4635, 5
        %v4684 = vrot.slane %v4683, 4
        %v4685 = vrot.slane %v4636, 5
        %v4686 = vsel %vm1000, %v4684, %v4685
        %v4687 = vrot.slane %v4685, 4
        %v4688 = vrot.slane %v4637, 5
        %v4689 = vsel %vm1000, %v4687, %v4688
        %v4690 = vrot.slane %v4638, 5
        %v4691 = vrot.slane %v4690, 4
        %v4692 = vrot.slane %v4639, 5
        %v4693 = vsel %vm1000, %v4691, %v4692
        %v4694 = vrot.slane %v4692, 4
        %v4695 = vrot.slane %v4640, 5
        %v4696 = vsel %vm1000, %v4694, %v4695
        %v4697 = vrot.slane %v4641, 5
        %v4698 = vrot.slane %v4697, 4
        %v4699 = vrot.slane %v4642, 5
        %v4700 = vsel %vm1000, %v4698, %v4699
        %v4701 = vrot.slane %v4699, 4
        %v4702 = vrot.slane %v4643, 5
        %v4703 = vsel %vm1000, %v4701, %v4702
        %v4704 = vrot.slane %v4644, 5
        %v4705 = vrot.slane %v4704, 4
        %v4706 = vrot.slane %v4645, 5
        %v4707 = vsel %vm1000, %v4705, %v4706
        %v4708 = vrot.slane %v4706, 4
        %v4709 = vrot.slane %v4646, 5
        %v4710 = vsel %vm1000, %v4708, %v4709
        %v4711 = vrot.slane %v4647, 5
        %v4712 = vrot.slane %v4711, 4
        %v4713 = vrot.slane %v4648, 5
        %v4714 = vsel %vm1000, %v4712, %v4713
        %v4715 = vrot.slane %v4713, 4
        %v4716 = vrot.slane %v4649, 5
        %v4717 = vsel %vm1000, %v4715, %v4716
        %v4718 = vrot.slane %v4650, 5
        %v4719 = vrot.slane %v4718, 4
        %v4720 = vrot.slane %v4651, 5
        %v4721 = vsel %vm1000, %v4719, %v4720
        %v4722 = vrot.slane %v4720, 4
        %v4723 = vrot.slane %v4652, 5
        %v4724 = vsel %vm1000, %v4722, %v4723
        %v4725 = vrot.slane %v4653, 5
        %v4726 = vrot.slane %v4725, 4
        %v4727 = vrot.slane %v4654, 5
        %v4728 = vsel %vm1000, %v4726, %v4727
        %v4729 = vrot.slane %v4727, 4
        %v4730 = vrot.slane %v4655, 5
        %v4731 = vsel %vm1000, %v4729, %v4730
        %v4732 = vrot.slane %v4656, 5
        %v4733 = vrot.slane %v4732, 4
        %v4734 = vrot.slane %v4657, 5
        %v4735 = vsel %vm1000, %v4733, %v4734
        %v4736 = vrot.slane %v4734, 4
        %v4737 = vrot.slane %v4658, 5
        %v4738 = vsel %vm1000, %v4736, %v4737
        %v4739 = vld [vmem:[#allocation2] sm:$0xff]
        %v4740 = vld [vmem:[#allocation2 + $0x8] sm:$0xff]
        %v4741 = vld [vmem:[#allocation2 + $0x10] sm:$0xff]
        %v4742 = vld [vmem:[#allocation2 + $0x18] sm:$0xff]
        %v4743 = vld [vmem:[#allocation2 + $0x20] sm:$0xff]
        %v4744 = vld [vmem:[#allocation2 + $0x28] sm:$0xff]
        %v4745 = vld [vmem:[#allocation2 + $0x30] sm:$0xff]
        %v4746 = vld [vmem:[#allocation2 + $0x38] sm:$0xff]
        %v4747 = vld [vmem:[#allocation2 + $0x40] sm:$0xff]
        %v4748 = vld [vmem:[#allocation2 + $0x48] sm:$0xff]
        %v4749 = vld [vmem:[#allocation2 + $0x50] sm:$0xff]
        %v4750 = vld [vmem:[#allocation2 + $0x58] sm:$0xff]
        %v4751 = vld [vmem:[#allocation2 + $0x60] sm:$0xff]
        %v4752 = vld [vmem:[#allocation2 + $0x68] sm:$0xff]
        %v4753 = vld [vmem:[#allocation2 + $0x70] sm:$0xff]
        %v4754 = vld [vmem:[#allocation2 + $0x78] sm:$0xff]
        %s4755 = scalar_lea.vmem %s1, 384
        %v4756 = vld [vmem:[%s4755] sm:$0xf]
        %v4757 = vld [vmem:[%s4755 + $0x4] sm:$0xf]
        %v4758 = vld [vmem:[%s4755 + $0x8] sm:$0xf]
        %v4759 = vld [vmem:[%s4755 + $0xc] sm:$0xf]
        %v4760 = vld [vmem:[%s4755 + $0x10] sm:$0xf]
        %v4761 = vld [vmem:[%s4755 + $0x14] sm:$0xf]
        %v4762 = vld [vmem:[%s4755 + $0x18] sm:$0xf]
        %v4763 = vld [vmem:[%s4755 + $0x1c] sm:$0xf]
        %v4764 = vunpack.c.l.b16 %v4686
        %v4765 = vunpack.c.l.b16 %v4689
        %v4766 = vunpack.c.l.b16 %v4693
        %v4767 = vunpack.c.l.b16 %v4696
        %v4768 = vunpack.c.l.b16 %v4700
        %v4769 = vunpack.c.l.b16 %v4703
        %v4770 = vunpack.c.l.b16 %v4707
        %v4771 = vunpack.c.l.b16 %v4710
        %v4772 = vunpack.c.l.b16 %v4714
        %v4773 = vunpack.c.l.b16 %v4717
        %v4774 = vunpack.c.l.b16 %v4721
        %v4775 = vunpack.c.l.b16 %v4724
        %v4776 = vunpack.c.l.b16 %v4728
        %v4777 = vunpack.c.l.b16 %v4731
        %v4778 = vunpack.c.l.b16 %v4735
        %v4779 = vunpack.c.l.b16 %v4738
        %v4780 = vpack.c.b16 %v4765, %v4764
        %v4781 = vpack.c.b16 %v4767, %v4766
        %v4782 = vpack.c.b16 %v4769, %v4768
        %v4783 = vpack.c.b16 %v4771, %v4770
        %v4784 = vpack.c.b16 %v4773, %v4772
        %v4785 = vpack.c.b16 %v4775, %v4774
        %v4786 = vpack.c.b16 %v4777, %v4776
        %v4787 = vpack.c.b16 %v4779, %v4778
        %v4796 = vunpack.c.l.b16 %v4756
        %v4797 = vunpack.c.l.b16 %v4757
        %v4798 = vunpack.c.l.b16 %v4758
        %v4799 = vunpack.c.l.b16 %v4759
        %v4800 = vunpack.c.l.b16 %v4760
        %v4801 = vunpack.c.l.b16 %v4761
        %v4802 = vunpack.c.l.b16 %v4762
        %v4803 = vunpack.c.l.b16 %v4763
        %v4804 = vpack.c.b16 %v4797, %v4796
        %v4805 = vpack.c.b16 %v4799, %v4798
        %v4806 = vpack.c.b16 %v4801, %v4800
        %v4807 = vpack.c.b16 %v4803, %v4802
        %v4813 = vsel %vm351, %v4780, 0
        %v4816 = vsel %vm351, %v4781, 0
        %v4819 = vsel %vm351, %v4782, 0
        %v4822 = vsel %vm351, %v4783, 0
        %v4825 = vsel %vm351, %v4784, 0
        %v4828 = vsel %vm351, %v4785, 0
        %v4831 = vsel %vm351, %v4786, 0
        %v4834 = vsel %vm351, %v4787, 0
        %4836 = vmatprep.subr.bf16.mxu0 0
        %4837 = vmatpush1.bf16.msra.mxu0 0
        %4838 = vmatprep.subr.bf16.mxu0 0
        %4839 = vmatpush1.bf16.msra.mxu0 0
        %4840 = vmatprep.subr.bf16.mxu0 0
        %4841 = vmatpush1.bf16.msra.mxu0 0
        %4842 = vmatprep.subr.bf16.mxu0 0
        %4843 = vmatpush1.bf16.msra.mxu0 0
        %4844 = vmatprep.subr.bf16.mxu0 0
        %4845 = vmatpush1.bf16.msra.mxu0 %v4807
        %4846 = vmatprep.subr.bf16.mxu0 0
        %4847 = vmatpush1.bf16.msra.mxu0 %v4806
        %4848 = vmatprep.subr.bf16.mxu0 0
        %4849 = vmatpush1.bf16.msra.mxu0 %v4805
        %4850 = vmatprep.subr.bf16.mxu0 0
        %4851 = vmatpush1.bf16.msra.mxu0 %v4804
        %4852 = vmatprep.subr.bf16.mxu0 0
        %4853 = vmatpush2.bf16.msra.mxu0 0
        %4854 = vmatprep.subr.bf16.mxu0 0
        %4855 = vmatpush2.bf16.msra.mxu0 0
        %4856 = vmatprep.subr.bf16.mxu0 0
        %4857 = vmatpush2.bf16.msra.mxu0 0
        %4858 = vmatprep.subr.bf16.mxu0 0
        %4859 = vmatpush2.bf16.msra.mxu0 0
        %4860 = vmatprep.subr.bf16.mxu0 0
        %4861 = vmatpush2.bf16.msra.mxu0 0
        %4862 = vmatprep.subr.bf16.mxu0 0
        %4863 = vmatpush2.bf16.msra.mxu0 0
        %4864 = vmatprep.subr.bf16.mxu0 0
        %4865 = vmatpush2.bf16.msra.mxu0 0
        %4866 = vmatprep.subr.bf16.mxu0 0
        %4867 = vmatpush2.bf16.msra.mxu0 0
        %4868 = vmatprep.mubr.bf16.mxu0 0
        %4869 = vmatmul.mubr.bf16.gmra.mxu0 %v4813
        %v4870 = vpop.f32.mrf.mxu0
        %v4871 = vadd.f32 0.0, %v4870
        %v4872 = vpop.f32.mrf.mxu0
        %v4873 = vpop.f32.mrf.mxu0
        %v4874 = vadd.f32 0.0, %v4873
        %v4875 = vpop.f32.mrf.mxu0
        %4876 = vmatprep.mubr.bf16.mxu0 0
        %4877 = vmatmul.mubr.bf16.gmra.mxu0 %v4816
        %v4878 = vpop.f32.mrf.mxu0
        %v4879 = vadd.f32 0.0, %v4878
        %v4880 = vpop.f32.mrf.mxu0
        %v4881 = vpop.f32.mrf.mxu0
        %v4882 = vadd.f32 0.0, %v4881
        %v4883 = vpop.f32.mrf.mxu0
        %4884 = vmatprep.mubr.bf16.mxu0 0
        %4885 = vmatmul.mubr.bf16.gmra.mxu0 %v4819
        %v4886 = vpop.f32.mrf.mxu0
        %v4887 = vadd.f32 0.0, %v4886
        %v4888 = vpop.f32.mrf.mxu0
        %v4889 = vpop.f32.mrf.mxu0
        %v4890 = vadd.f32 0.0, %v4889
        %v4891 = vpop.f32.mrf.mxu0
        %4892 = vmatprep.mubr.bf16.mxu0 0
        %4893 = vmatmul.mubr.bf16.gmra.mxu0 %v4822
        %v4894 = vpop.f32.mrf.mxu0
        %v4895 = vadd.f32 0.0, %v4894
        %v4896 = vpop.f32.mrf.mxu0
        %v4897 = vpop.f32.mrf.mxu0
        %v4898 = vadd.f32 0.0, %v4897
        %v4899 = vpop.f32.mrf.mxu0
        %4900 = vmatprep.mubr.bf16.mxu0 0
        %4901 = vmatmul.mubr.bf16.gmra.mxu0 %v4825
        %v4902 = vpop.f32.mrf.mxu0
        %v4903 = vadd.f32 0.0, %v4902
        %v4904 = vpop.f32.mrf.mxu0
        %v4905 = vpop.f32.mrf.mxu0
        %v4906 = vadd.f32 0.0, %v4905
        %v4907 = vpop.f32.mrf.mxu0
        %4908 = vmatprep.mubr.bf16.mxu0 0
        %4909 = vmatmul.mubr.bf16.gmra.mxu0 %v4828
        %v4910 = vpop.f32.mrf.mxu0
        %v4911 = vadd.f32 0.0, %v4910
        %v4912 = vpop.f32.mrf.mxu0
        %v4913 = vpop.f32.mrf.mxu0
        %v4914 = vadd.f32 0.0, %v4913
        %v4915 = vpop.f32.mrf.mxu0
        %4916 = vmatprep.mubr.bf16.mxu0 0
        %4917 = vmatmul.mubr.bf16.gmra.mxu0 %v4831
        %v4918 = vpop.f32.mrf.mxu0
        %v4919 = vadd.f32 0.0, %v4918
        %v4920 = vpop.f32.mrf.mxu0
        %v4921 = vpop.f32.mrf.mxu0
        %v4922 = vadd.f32 0.0, %v4921
        %v4923 = vpop.f32.mrf.mxu0
        %4924 = vmatprep.mubr.bf16.mxu0 0
        %4925 = vmatmul.mubr.bf16.gmra.mxu0 %v4834
        %v4926 = vpop.f32.mrf.mxu0
        %v4927 = vadd.f32 0.0, %v4926
        %v4928 = vpop.f32.mrf.mxu0
        %v4929 = vpop.f32.mrf.mxu0
        %v4930 = vadd.f32 0.0, %v4929
        %v4931 = vpop.f32.mrf.mxu0
        %4932 = vdwg.mxu0
        %v4933 = vadd.f32 %v4739, %v4871
        %v4934 = vadd.f32 %v4740, %v4874
        %v4935 = vadd.f32 %v4741, %v4879
        %v4936 = vadd.f32 %v4742, %v4882
        %v4937 = vadd.f32 %v4743, %v4887
        %v4938 = vadd.f32 %v4744, %v4890
        %v4939 = vadd.f32 %v4745, %v4895
        %v4940 = vadd.f32 %v4746, %v4898
        %v4941 = vadd.f32 %v4747, %v4903
        %v4942 = vadd.f32 %v4748, %v4906
        %v4943 = vadd.f32 %v4749, %v4911
        %v4944 = vadd.f32 %v4750, %v4914
        %v4945 = vadd.f32 %v4751, %v4919
        %v4946 = vadd.f32 %v4752, %v4922
        %v4947 = vadd.f32 %v4753, %v4927
        %v4948 = vadd.f32 %v4754, %v4930
        %4949 = vst [vmem:[#allocation2] sm:$0xff] %v4933
        %4950 = vst [vmem:[#allocation2 + $0x8] sm:$0xff] %v4934
        %4951 = vst [vmem:[#allocation2 + $0x10] sm:$0xff] %v4935
        %4952 = vst [vmem:[#allocation2 + $0x18] sm:$0xff] %v4936
        %4953 = vst [vmem:[#allocation2 + $0x20] sm:$0xff] %v4937
        %4954 = vst [vmem:[#allocation2 + $0x28] sm:$0xff] %v4938
        %4955 = vst [vmem:[#allocation2 + $0x30] sm:$0xff] %v4939
        %4956 = vst [vmem:[#allocation2 + $0x38] sm:$0xff] %v4940
        %4957 = vst [vmem:[#allocation2 + $0x40] sm:$0xff] %v4941
        %4958 = vst [vmem:[#allocation2 + $0x48] sm:$0xff] %v4942
        %4959 = vst [vmem:[#allocation2 + $0x50] sm:$0xff] %v4943
        %4960 = vst [vmem:[#allocation2 + $0x58] sm:$0xff] %v4944
        %4961 = vst [vmem:[#allocation2 + $0x60] sm:$0xff] %v4945
        %4962 = vst [vmem:[#allocation2 + $0x68] sm:$0xff] %v4946
        %4963 = vst [vmem:[#allocation2 + $0x70] sm:$0xff] %v4947
        %4964 = vst [vmem:[#allocation2 + $0x78] sm:$0xff] %v4948
        %v4965 = vld [vmem:[%s3934] sm:$0xe]
        %v4966 = vld [vmem:[%s3934 + $0x4] sm:$0xf]
        %v4967 = vld [vmem:[%s3934 + $0x8] sm:$0x3]
        %v4968 = vld [vmem:[%s3934 + $0xc] sm:$0xe]
        %v4969 = vld [vmem:[%s3934 + $0x10] sm:$0xf]
        %v4970 = vld [vmem:[%s3934 + $0x14] sm:$0x3]
        %v4971 = vld [vmem:[%s3934 + $0x18] sm:$0xe]
        %v4972 = vld [vmem:[%s3934 + $0x1c] sm:$0xf]
        %v4973 = vld [vmem:[%s3934 + $0x20] sm:$0x3]
        %v4974 = vld [vmem:[%s3934 + $0x24] sm:$0xe]
        %v4975 = vld [vmem:[%s3934 + $0x28] sm:$0xf]
        %v4976 = vld [vmem:[%s3934 + $0x2c] sm:$0x3]
        %v4977 = vld [vmem:[%s3934 + $0x30] sm:$0xe]
        %v4978 = vld [vmem:[%s3934 + $0x34] sm:$0xf]
        %v4979 = vld [vmem:[%s3934 + $0x38] sm:$0x3]
        %v4980 = vld [vmem:[%s3934 + $0x3c] sm:$0xe]
        %v4981 = vld [vmem:[%s3934 + $0x40] sm:$0xf]
        %v4982 = vld [vmem:[%s3934 + $0x44] sm:$0x3]
        %v4983 = vld [vmem:[%s3934 + $0x48] sm:$0xe]
        %v4984 = vld [vmem:[%s3934 + $0x4c] sm:$0xf]
        %v4985 = vld [vmem:[%s3934 + $0x50] sm:$0x3]
        %v4986 = vld [vmem:[%s3934 + $0x54] sm:$0xe]
        %v4987 = vld [vmem:[%s3934 + $0x58] sm:$0xf]
        %v4988 = vld [vmem:[%s3934 + $0x5c] sm:$0x3]
        %v4990 = vshrl.u32 %v4965, 16
        %v4992 = vrot.slane %v4990, 5
        %v4993 = vshll.u32 %v4965, 16
        %v4995 = vrot.slane %v4993, 6
        %v4996 = vor.u32 %v4992, %v4995
        %v4997 = vrot.slane %v4996, 4
        %v4999 = vshrl.u32 %v4966, 16
        %v5001 = vrot.slane %v4999, 5
        %v5002 = vshll.u32 %v4966, 16
        %v5004 = vrot.slane %v5002, 6
        %v5005 = vor.u32 %v5001, %v5004
        %v5006 = vsel %vm1309, %v4997, %v5005
        %v5007 = vrot.slane %v5005, 4
        %v5009 = vshrl.u32 %v4967, 16
        %v5011 = vrot.slane %v5009, 5
        %v5012 = vshll.u32 %v4967, 16
        %v5014 = vrot.slane %v5012, 6
        %v5015 = vor.u32 %v5011, %v5014
        %v5016 = vsel %vm1309, %v5007, %v5015
        %v5018 = vshrl.u32 %v4968, 16
        %v5020 = vrot.slane %v5018, 5
        %v5021 = vshll.u32 %v4968, 16
        %v5023 = vrot.slane %v5021, 6
        %v5024 = vor.u32 %v5020, %v5023
        %v5025 = vrot.slane %v5024, 4
        %v5027 = vshrl.u32 %v4969, 16
        %v5029 = vrot.slane %v5027, 5
        %v5030 = vshll.u32 %v4969, 16
        %v5032 = vrot.slane %v5030, 6
        %v5033 = vor.u32 %v5029, %v5032
        %v5034 = vsel %vm1309, %v5025, %v5033
        %v5035 = vrot.slane %v5033, 4
        %v5037 = vshrl.u32 %v4970, 16
        %v5039 = vrot.slane %v5037, 5
        %v5040 = vshll.u32 %v4970, 16
        %v5042 = vrot.slane %v5040, 6
        %v5043 = vor.u32 %v5039, %v5042
        %v5044 = vsel %vm1309, %v5035, %v5043
        %v5046 = vshrl.u32 %v4971, 16
        %v5048 = vrot.slane %v5046, 5
        %v5049 = vshll.u32 %v4971, 16
        %v5051 = vrot.slane %v5049, 6
        %v5052 = vor.u32 %v5048, %v5051
        %v5053 = vrot.slane %v5052, 4
        %v5055 = vshrl.u32 %v4972, 16
        %v5057 = vrot.slane %v5055, 5
        %v5058 = vshll.u32 %v4972, 16
        %v5060 = vrot.slane %v5058, 6
        %v5061 = vor.u32 %v5057, %v5060
        %v5062 = vsel %vm1309, %v5053, %v5061
        %v5063 = vrot.slane %v5061, 4
        %v5065 = vshrl.u32 %v4973, 16
        %v5067 = vrot.slane %v5065, 5
        %v5068 = vshll.u32 %v4973, 16
        %v5070 = vrot.slane %v5068, 6
        %v5071 = vor.u32 %v5067, %v5070
        %v5072 = vsel %vm1309, %v5063, %v5071
        %v5074 = vshrl.u32 %v4974, 16
        %v5076 = vrot.slane %v5074, 5
        %v5077 = vshll.u32 %v4974, 16
        %v5079 = vrot.slane %v5077, 6
        %v5080 = vor.u32 %v5076, %v5079
        %v5081 = vrot.slane %v5080, 4
        %v5083 = vshrl.u32 %v4975, 16
        %v5085 = vrot.slane %v5083, 5
        %v5086 = vshll.u32 %v4975, 16
        %v5088 = vrot.slane %v5086, 6
        %v5089 = vor.u32 %v5085, %v5088
        %v5090 = vsel %vm1309, %v5081, %v5089
        %v5091 = vrot.slane %v5089, 4
        %v5093 = vshrl.u32 %v4976, 16
        %v5095 = vrot.slane %v5093, 5
        %v5096 = vshll.u32 %v4976, 16
        %v5098 = vrot.slane %v5096, 6
        %v5099 = vor.u32 %v5095, %v5098
        %v5100 = vsel %vm1309, %v5091, %v5099
        %v5102 = vshrl.u32 %v4977, 16
        %v5104 = vrot.slane %v5102, 5
        %v5105 = vshll.u32 %v4977, 16
        %v5107 = vrot.slane %v5105, 6
        %v5108 = vor.u32 %v5104, %v5107
        %v5109 = vrot.slane %v5108, 4
        %v5111 = vshrl.u32 %v4978, 16
        %v5113 = vrot.slane %v5111, 5
        %v5114 = vshll.u32 %v4978, 16
        %v5116 = vrot.slane %v5114, 6
        %v5117 = vor.u32 %v5113, %v5116
        %v5118 = vsel %vm1309, %v5109, %v5117
        %v5119 = vrot.slane %v5117, 4
        %v5121 = vshrl.u32 %v4979, 16
        %v5123 = vrot.slane %v5121, 5
        %v5124 = vshll.u32 %v4979, 16
        %v5126 = vrot.slane %v5124, 6
        %v5127 = vor.u32 %v5123, %v5126
        %v5128 = vsel %vm1309, %v5119, %v5127
        %v5130 = vshrl.u32 %v4980, 16
        %v5132 = vrot.slane %v5130, 5
        %v5133 = vshll.u32 %v4980, 16
        %v5135 = vrot.slane %v5133, 6
        %v5136 = vor.u32 %v5132, %v5135
        %v5137 = vrot.slane %v5136, 4
        %v5139 = vshrl.u32 %v4981, 16
        %v5141 = vrot.slane %v5139, 5
        %v5142 = vshll.u32 %v4981, 16
        %v5144 = vrot.slane %v5142, 6
        %v5145 = vor.u32 %v5141, %v5144
        %v5146 = vsel %vm1309, %v5137, %v5145
        %v5147 = vrot.slane %v5145, 4
        %v5149 = vshrl.u32 %v4982, 16
        %v5151 = vrot.slane %v5149, 5
        %v5152 = vshll.u32 %v4982, 16
        %v5154 = vrot.slane %v5152, 6
        %v5155 = vor.u32 %v5151, %v5154
        %v5156 = vsel %vm1309, %v5147, %v5155
        %v5158 = vshrl.u32 %v4983, 16
        %v5160 = vrot.slane %v5158, 5
        %v5161 = vshll.u32 %v4983, 16
        %v5163 = vrot.slane %v5161, 6
        %v5164 = vor.u32 %v5160, %v5163
        %v5165 = vrot.slane %v5164, 4
        %v5167 = vshrl.u32 %v4984, 16
        %v5169 = vrot.slane %v5167, 5
        %v5170 = vshll.u32 %v4984, 16
        %v5172 = vrot.slane %v5170, 6
        %v5173 = vor.u32 %v5169, %v5172
        %v5174 = vsel %vm1309, %v5165, %v5173
        %v5175 = vrot.slane %v5173, 4
        %v5177 = vshrl.u32 %v4985, 16
        %v5179 = vrot.slane %v5177, 5
        %v5180 = vshll.u32 %v4985, 16
        %v5182 = vrot.slane %v5180, 6
        %v5183 = vor.u32 %v5179, %v5182
        %v5184 = vsel %vm1309, %v5175, %v5183
        %v5186 = vshrl.u32 %v4986, 16
        %v5188 = vrot.slane %v5186, 5
        %v5189 = vshll.u32 %v4986, 16
        %v5191 = vrot.slane %v5189, 6
        %v5192 = vor.u32 %v5188, %v5191
        %v5193 = vrot.slane %v5192, 4
        %v5195 = vshrl.u32 %v4987, 16
        %v5197 = vrot.slane %v5195, 5
        %v5198 = vshll.u32 %v4987, 16
        %v5200 = vrot.slane %v5198, 6
        %v5201 = vor.u32 %v5197, %v5200
        %v5202 = vsel %vm1309, %v5193, %v5201
        %v5203 = vrot.slane %v5201, 4
        %v5205 = vshrl.u32 %v4988, 16
        %v5207 = vrot.slane %v5205, 5
        %v5208 = vshll.u32 %v4988, 16
        %v5210 = vrot.slane %v5208, 6
        %v5211 = vor.u32 %v5207, %v5210
        %v5212 = vsel %vm1309, %v5203, %v5211
        %v5213 = vld [vmem:[#allocation2] sm:$0xff]
        %v5214 = vld [vmem:[#allocation2 + $0x8] sm:$0xff]
        %v5215 = vld [vmem:[#allocation2 + $0x10] sm:$0xff]
        %v5216 = vld [vmem:[#allocation2 + $0x18] sm:$0xff]
        %v5217 = vld [vmem:[#allocation2 + $0x20] sm:$0xff]
        %v5218 = vld [vmem:[#allocation2 + $0x28] sm:$0xff]
        %v5219 = vld [vmem:[#allocation2 + $0x30] sm:$0xff]
        %v5220 = vld [vmem:[#allocation2 + $0x38] sm:$0xff]
        %v5221 = vld [vmem:[#allocation2 + $0x40] sm:$0xff]
        %v5222 = vld [vmem:[#allocation2 + $0x48] sm:$0xff]
        %v5223 = vld [vmem:[#allocation2 + $0x50] sm:$0xff]
        %v5224 = vld [vmem:[#allocation2 + $0x58] sm:$0xff]
        %v5225 = vld [vmem:[#allocation2 + $0x60] sm:$0xff]
        %v5226 = vld [vmem:[#allocation2 + $0x68] sm:$0xff]
        %v5227 = vld [vmem:[#allocation2 + $0x70] sm:$0xff]
        %v5228 = vld [vmem:[#allocation2 + $0x78] sm:$0xff]
        %s5229 = scalar_lea.vmem %s1, 416
        %v5230 = vld [vmem:[%s5229] sm:$0xf]
        %v5231 = vld [vmem:[%s5229 + $0x4] sm:$0xf]
        %v5232 = vld [vmem:[%s5229 + $0x8] sm:$0xf]
        %v5233 = vld [vmem:[%s5229 + $0xc] sm:$0xf]
        %v5234 = vld [vmem:[%s5229 + $0x10] sm:$0xf]
        %v5235 = vld [vmem:[%s5229 + $0x14] sm:$0xf]
        %v5236 = vld [vmem:[%s5229 + $0x18] sm:$0xf]
        %v5237 = vld [vmem:[%s5229 + $0x1c] sm:$0xf]
        %v5238 = vunpack.c.l.b16 %v5006
        %v5239 = vunpack.c.l.b16 %v5016
        %v5240 = vunpack.c.l.b16 %v5034
        %v5241 = vunpack.c.l.b16 %v5044
        %v5242 = vunpack.c.l.b16 %v5062
        %v5243 = vunpack.c.l.b16 %v5072
        %v5244 = vunpack.c.l.b16 %v5090
        %v5245 = vunpack.c.l.b16 %v5100
        %v5246 = vunpack.c.l.b16 %v5118
        %v5247 = vunpack.c.l.b16 %v5128
        %v5248 = vunpack.c.l.b16 %v5146
        %v5249 = vunpack.c.l.b16 %v5156
        %v5250 = vunpack.c.l.b16 %v5174
        %v5251 = vunpack.c.l.b16 %v5184
        %v5252 = vunpack.c.l.b16 %v5202
        %v5253 = vunpack.c.l.b16 %v5212
        %v5254 = vpack.c.b16 %v5239, %v5238
        %v5255 = vpack.c.b16 %v5241, %v5240
        %v5256 = vpack.c.b16 %v5243, %v5242
        %v5257 = vpack.c.b16 %v5245, %v5244
        %v5258 = vpack.c.b16 %v5247, %v5246
        %v5259 = vpack.c.b16 %v5249, %v5248
        %v5260 = vpack.c.b16 %v5251, %v5250
        %v5261 = vpack.c.b16 %v5253, %v5252
        %v5270 = vunpack.c.l.b16 %v5230
        %v5271 = vunpack.c.l.b16 %v5231
        %v5272 = vunpack.c.l.b16 %v5232
        %v5273 = vunpack.c.l.b16 %v5233
        %v5274 = vunpack.c.l.b16 %v5234
        %v5275 = vunpack.c.l.b16 %v5235
        %v5276 = vunpack.c.l.b16 %v5236
        %v5277 = vunpack.c.l.b16 %v5237
        %v5278 = vpack.c.b16 %v5271, %v5270
        %v5279 = vpack.c.b16 %v5273, %v5272
        %v5280 = vpack.c.b16 %v5275, %v5274
        %v5281 = vpack.c.b16 %v5277, %v5276
        %v5287 = vsel %vm351, %v5254, 0
        %v5290 = vsel %vm351, %v5255, 0
        %v5293 = vsel %vm351, %v5256, 0
        %v5296 = vsel %vm351, %v5257, 0
        %v5299 = vsel %vm351, %v5258, 0
        %v5302 = vsel %vm351, %v5259, 0
        %v5305 = vsel %vm351, %v5260, 0
        %v5308 = vsel %vm351, %v5261, 0
        %5310 = vmatprep.subr.bf16.mxu0 0
        %5311 = vmatpush1.bf16.msra.mxu0 0
        %5312 = vmatprep.subr.bf16.mxu0 0
        %5313 = vmatpush1.bf16.msra.mxu0 0
        %5314 = vmatprep.subr.bf16.mxu0 0
        %5315 = vmatpush1.bf16.msra.mxu0 0
        %5316 = vmatprep.subr.bf16.mxu0 0
        %5317 = vmatpush1.bf16.msra.mxu0 0
        %5318 = vmatprep.subr.bf16.mxu0 0
        %5319 = vmatpush1.bf16.msra.mxu0 %v5281
        %5320 = vmatprep.subr.bf16.mxu0 0
        %5321 = vmatpush1.bf16.msra.mxu0 %v5280
        %5322 = vmatprep.subr.bf16.mxu0 0
        %5323 = vmatpush1.bf16.msra.mxu0 %v5279
        %5324 = vmatprep.subr.bf16.mxu0 0
        %5325 = vmatpush1.bf16.msra.mxu0 %v5278
        %5326 = vmatprep.subr.bf16.mxu0 0
        %5327 = vmatpush2.bf16.msra.mxu0 0
        %5328 = vmatprep.subr.bf16.mxu0 0
        %5329 = vmatpush2.bf16.msra.mxu0 0
        %5330 = vmatprep.subr.bf16.mxu0 0
        %5331 = vmatpush2.bf16.msra.mxu0 0
        %5332 = vmatprep.subr.bf16.mxu0 0
        %5333 = vmatpush2.bf16.msra.mxu0 0
        %5334 = vmatprep.subr.bf16.mxu0 0
        %5335 = vmatpush2.bf16.msra.mxu0 0
        %5336 = vmatprep.subr.bf16.mxu0 0
        %5337 = vmatpush2.bf16.msra.mxu0 0
        %5338 = vmatprep.subr.bf16.mxu0 0
        %5339 = vmatpush2.bf16.msra.mxu0 0
        %5340 = vmatprep.subr.bf16.mxu0 0
        %5341 = vmatpush2.bf16.msra.mxu0 0
        %5342 = vmatprep.mubr.bf16.mxu0 0
        %5343 = vmatmul.mubr.bf16.gmra.mxu0 %v5287
        %v5344 = vpop.f32.mrf.mxu0
        %v5345 = vadd.f32 0.0, %v5344
        %v5346 = vpop.f32.mrf.mxu0
        %v5347 = vpop.f32.mrf.mxu0
        %v5348 = vadd.f32 0.0, %v5347
        %v5349 = vpop.f32.mrf.mxu0
        %5350 = vmatprep.mubr.bf16.mxu0 0
        %5351 = vmatmul.mubr.bf16.gmra.mxu0 %v5290
        %v5352 = vpop.f32.mrf.mxu0
        %v5353 = vadd.f32 0.0, %v5352
        %v5354 = vpop.f32.mrf.mxu0
        %v5355 = vpop.f32.mrf.mxu0
        %v5356 = vadd.f32 0.0, %v5355
        %v5357 = vpop.f32.mrf.mxu0
        %5358 = vmatprep.mubr.bf16.mxu0 0
        %5359 = vmatmul.mubr.bf16.gmra.mxu0 %v5293
        %v5360 = vpop.f32.mrf.mxu0
        %v5361 = vadd.f32 0.0, %v5360
        %v5362 = vpop.f32.mrf.mxu0
        %v5363 = vpop.f32.mrf.mxu0
        %v5364 = vadd.f32 0.0, %v5363
        %v5365 = vpop.f32.mrf.mxu0
        %5366 = vmatprep.mubr.bf16.mxu0 0
        %5367 = vmatmul.mubr.bf16.gmra.mxu0 %v5296
        %v5368 = vpop.f32.mrf.mxu0
        %v5369 = vadd.f32 0.0, %v5368
        %v5370 = vpop.f32.mrf.mxu0
        %v5371 = vpop.f32.mrf.mxu0
        %v5372 = vadd.f32 0.0, %v5371
        %v5373 = vpop.f32.mrf.mxu0
        %5374 = vmatprep.mubr.bf16.mxu0 0
        %5375 = vmatmul.mubr.bf16.gmra.mxu0 %v5299
        %v5376 = vpop.f32.mrf.mxu0
        %v5377 = vadd.f32 0.0, %v5376
        %v5378 = vpop.f32.mrf.mxu0
        %v5379 = vpop.f32.mrf.mxu0
        %v5380 = vadd.f32 0.0, %v5379
        %v5381 = vpop.f32.mrf.mxu0
        %5382 = vmatprep.mubr.bf16.mxu0 0
        %5383 = vmatmul.mubr.bf16.gmra.mxu0 %v5302
        %v5384 = vpop.f32.mrf.mxu0
        %v5385 = vadd.f32 0.0, %v5384
        %v5386 = vpop.f32.mrf.mxu0
        %v5387 = vpop.f32.mrf.mxu0
        %v5388 = vadd.f32 0.0, %v5387
        %v5389 = vpop.f32.mrf.mxu0
        %5390 = vmatprep.mubr.bf16.mxu0 0
        %5391 = vmatmul.mubr.bf16.gmra.mxu0 %v5305
        %v5392 = vpop.f32.mrf.mxu0
        %v5393 = vadd.f32 0.0, %v5392
        %v5394 = vpop.f32.mrf.mxu0
        %v5395 = vpop.f32.mrf.mxu0
        %v5396 = vadd.f32 0.0, %v5395
        %v5397 = vpop.f32.mrf.mxu0
        %5398 = vmatprep.mubr.bf16.mxu0 0
        %5399 = vmatmul.mubr.bf16.gmra.mxu0 %v5308
        %v5400 = vpop.f32.mrf.mxu0
        %v5401 = vadd.f32 0.0, %v5400
        %v5402 = vpop.f32.mrf.mxu0
        %v5403 = vpop.f32.mrf.mxu0
        %v5404 = vadd.f32 0.0, %v5403
        %v5405 = vpop.f32.mrf.mxu0
        %5406 = vdwg.mxu0
        %v5407 = vadd.f32 %v5213, %v5345
        %v5408 = vadd.f32 %v5214, %v5348
        %v5409 = vadd.f32 %v5215, %v5353
        %v5410 = vadd.f32 %v5216, %v5356
        %v5411 = vadd.f32 %v5217, %v5361
        %v5412 = vadd.f32 %v5218, %v5364
        %v5413 = vadd.f32 %v5219, %v5369
        %v5414 = vadd.f32 %v5220, %v5372
        %v5415 = vadd.f32 %v5221, %v5377
        %v5416 = vadd.f32 %v5222, %v5380
        %v5417 = vadd.f32 %v5223, %v5385
        %v5418 = vadd.f32 %v5224, %v5388
        %v5419 = vadd.f32 %v5225, %v5393
        %v5420 = vadd.f32 %v5226, %v5396
        %v5421 = vadd.f32 %v5227, %v5401
        %v5422 = vadd.f32 %v5228, %v5404
        %5423 = vst [vmem:[#allocation2] sm:$0xff] %v5407
        %5424 = vst [vmem:[#allocation2 + $0x8] sm:$0xff] %v5408
        %5425 = vst [vmem:[#allocation2 + $0x10] sm:$0xff] %v5409
        %5426 = vst [vmem:[#allocation2 + $0x18] sm:$0xff] %v5410
        %5427 = vst [vmem:[#allocation2 + $0x20] sm:$0xff] %v5411
        %5428 = vst [vmem:[#allocation2 + $0x28] sm:$0xff] %v5412
        %5429 = vst [vmem:[#allocation2 + $0x30] sm:$0xff] %v5413
        %5430 = vst [vmem:[#allocation2 + $0x38] sm:$0xff] %v5414
        %5431 = vst [vmem:[#allocation2 + $0x40] sm:$0xff] %v5415
        %5432 = vst [vmem:[#allocation2 + $0x48] sm:$0xff] %v5416
        %5433 = vst [vmem:[#allocation2 + $0x50] sm:$0xff] %v5417
        %5434 = vst [vmem:[#allocation2 + $0x58] sm:$0xff] %v5418
        %5435 = vst [vmem:[#allocation2 + $0x60] sm:$0xff] %v5419
        %5436 = vst [vmem:[#allocation2 + $0x68] sm:$0xff] %v5420
        %5437 = vst [vmem:[#allocation2 + $0x70] sm:$0xff] %v5421
        %5438 = vst [vmem:[#allocation2 + $0x78] sm:$0xff] %v5422
        %v5439 = vld [vmem:[%s3934] sm:$0xc]
        %v5440 = vld [vmem:[%s3934 + $0x4] sm:$0xf]
        %v5441 = vld [vmem:[%s3934 + $0x8] sm:$0x3]
        %v5442 = vld [vmem:[%s3934 + $0xc] sm:$0xc]
        %v5443 = vld [vmem:[%s3934 + $0x10] sm:$0xf]
        %v5444 = vld [vmem:[%s3934 + $0x14] sm:$0x3]
        %v5445 = vld [vmem:[%s3934 + $0x18] sm:$0xc]
        %v5446 = vld [vmem:[%s3934 + $0x1c] sm:$0xf]
        %v5447 = vld [vmem:[%s3934 + $0x20] sm:$0x3]
        %v5448 = vld [vmem:[%s3934 + $0x24] sm:$0xc]
        %v5449 = vld [vmem:[%s3934 + $0x28] sm:$0xf]
        %v5450 = vld [vmem:[%s3934 + $0x2c] sm:$0x3]
        %v5451 = vld [vmem:[%s3934 + $0x30] sm:$0xc]
        %v5452 = vld [vmem:[%s3934 + $0x34] sm:$0xf]
        %v5453 = vld [vmem:[%s3934 + $0x38] sm:$0x3]
        %v5454 = vld [vmem:[%s3934 + $0x3c] sm:$0xc]
        %v5455 = vld [vmem:[%s3934 + $0x40] sm:$0xf]
        %v5456 = vld [vmem:[%s3934 + $0x44] sm:$0x3]
        %v5457 = vld [vmem:[%s3934 + $0x48] sm:$0xc]
        %v5458 = vld [vmem:[%s3934 + $0x4c] sm:$0xf]
        %v5459 = vld [vmem:[%s3934 + $0x50] sm:$0x3]
        %v5460 = vld [vmem:[%s3934 + $0x54] sm:$0xc]
        %v5461 = vld [vmem:[%s3934 + $0x58] sm:$0xf]
        %v5462 = vld [vmem:[%s3934 + $0x5c] sm:$0x3]
        %v5487 = vrot.slane %v5439, 6
        %v5488 = vrot.slane %v5487, 4
        %v5489 = vrot.slane %v5440, 6
        %v5490 = vsel %vm1810, %v5488, %v5489
        %v5491 = vrot.slane %v5489, 4
        %v5492 = vrot.slane %v5441, 6
        %v5493 = vsel %vm1810, %v5491, %v5492
        %v5494 = vrot.slane %v5442, 6
        %v5495 = vrot.slane %v5494, 4
        %v5496 = vrot.slane %v5443, 6
        %v5497 = vsel %vm1810, %v5495, %v5496
        %v5498 = vrot.slane %v5496, 4
        %v5499 = vrot.slane %v5444, 6
        %v5500 = vsel %vm1810, %v5498, %v5499
        %v5501 = vrot.slane %v5445, 6
        %v5502 = vrot.slane %v5501, 4
        %v5503 = vrot.slane %v5446, 6
        %v5504 = vsel %vm1810, %v5502, %v5503
        %v5505 = vrot.slane %v5503, 4
        %v5506 = vrot.slane %v5447, 6
        %v5507 = vsel %vm1810, %v5505, %v5506
        %v5508 = vrot.slane %v5448, 6
        %v5509 = vrot.slane %v5508, 4
        %v5510 = vrot.slane %v5449, 6
        %v5511 = vsel %vm1810, %v5509, %v5510
        %v5512 = vrot.slane %v5510, 4
        %v5513 = vrot.slane %v5450, 6
        %v5514 = vsel %vm1810, %v5512, %v5513
        %v5515 = vrot.slane %v5451, 6
        %v5516 = vrot.slane %v5515, 4
        %v5517 = vrot.slane %v5452, 6
        %v5518 = vsel %vm1810, %v5516, %v5517
        %v5519 = vrot.slane %v5517, 4
        %v5520 = vrot.slane %v5453, 6
        %v5521 = vsel %vm1810, %v5519, %v5520
        %v5522 = vrot.slane %v5454, 6
        %v5523 = vrot.slane %v5522, 4
        %v5524 = vrot.slane %v5455, 6
        %v5525 = vsel %vm1810, %v5523, %v5524
        %v5526 = vrot.slane %v5524, 4
        %v5527 = vrot.slane %v5456, 6
        %v5528 = vsel %vm1810, %v5526, %v5527
        %v5529 = vrot.slane %v5457, 6
        %v5530 = vrot.slane %v5529, 4
        %v5531 = vrot.slane %v5458, 6
        %v5532 = vsel %vm1810, %v5530, %v5531
        %v5533 = vrot.slane %v5531, 4
        %v5534 = vrot.slane %v5459, 6
        %v5535 = vsel %vm1810, %v5533, %v5534
        %v5536 = vrot.slane %v5460, 6
        %v5537 = vrot.slane %v5536, 4
        %v5538 = vrot.slane %v5461, 6
        %v5539 = vsel %vm1810, %v5537, %v5538
        %v5540 = vrot.slane %v5538, 4
        %v5541 = vrot.slane %v5462, 6
        %v5542 = vsel %vm1810, %v5540, %v5541
        %v5543 = vld [vmem:[#allocation2] sm:$0xff]
        %v5544 = vld [vmem:[#allocation2 + $0x8] sm:$0xff]
        %v5545 = vld [vmem:[#allocation2 + $0x10] sm:$0xff]
        %v5546 = vld [vmem:[#allocation2 + $0x18] sm:$0xff]
        %v5547 = vld [vmem:[#allocation2 + $0x20] sm:$0xff]
        %v5548 = vld [vmem:[#allocation2 + $0x28] sm:$0xff]
        %v5549 = vld [vmem:[#allocation2 + $0x30] sm:$0xff]
        %v5550 = vld [vmem:[#allocation2 + $0x38] sm:$0xff]
        %v5551 = vld [vmem:[#allocation2 + $0x40] sm:$0xff]
        %v5552 = vld [vmem:[#allocation2 + $0x48] sm:$0xff]
        %v5553 = vld [vmem:[#allocation2 + $0x50] sm:$0xff]
        %v5554 = vld [vmem:[#allocation2 + $0x58] sm:$0xff]
        %v5555 = vld [vmem:[#allocation2 + $0x60] sm:$0xff]
        %v5556 = vld [vmem:[#allocation2 + $0x68] sm:$0xff]
        %v5557 = vld [vmem:[#allocation2 + $0x70] sm:$0xff]
        %v5558 = vld [vmem:[#allocation2 + $0x78] sm:$0xff]
        %s5559 = scalar_lea.vmem %s1, 448
        %v5560 = vld [vmem:[%s5559] sm:$0xf]
        %v5561 = vld [vmem:[%s5559 + $0x4] sm:$0xf]
        %v5562 = vld [vmem:[%s5559 + $0x8] sm:$0xf]
        %v5563 = vld [vmem:[%s5559 + $0xc] sm:$0xf]
        %v5564 = vld [vmem:[%s5559 + $0x10] sm:$0xf]
        %v5565 = vld [vmem:[%s5559 + $0x14] sm:$0xf]
        %v5566 = vld [vmem:[%s5559 + $0x18] sm:$0xf]
        %v5567 = vld [vmem:[%s5559 + $0x1c] sm:$0xf]
        %v5568 = vunpack.c.l.b16 %v5490
        %v5569 = vunpack.c.l.b16 %v5493
        %v5570 = vunpack.c.l.b16 %v5497
        %v5571 = vunpack.c.l.b16 %v5500
        %v5572 = vunpack.c.l.b16 %v5504
        %v5573 = vunpack.c.l.b16 %v5507
        %v5574 = vunpack.c.l.b16 %v5511
        %v5575 = vunpack.c.l.b16 %v5514
        %v5576 = vunpack.c.l.b16 %v5518
        %v5577 = vunpack.c.l.b16 %v5521
        %v5578 = vunpack.c.l.b16 %v5525
        %v5579 = vunpack.c.l.b16 %v5528
        %v5580 = vunpack.c.l.b16 %v5532
        %v5581 = vunpack.c.l.b16 %v5535
        %v5582 = vunpack.c.l.b16 %v5539
        %v5583 = vunpack.c.l.b16 %v5542
        %v5584 = vpack.c.b16 %v5569, %v5568
        %v5585 = vpack.c.b16 %v5571, %v5570
        %v5586 = vpack.c.b16 %v5573, %v5572
        %v5587 = vpack.c.b16 %v5575, %v5574
        %v5588 = vpack.c.b16 %v5577, %v5576
        %v5589 = vpack.c.b16 %v5579, %v5578
        %v5590 = vpack.c.b16 %v5581, %v5580
        %v5591 = vpack.c.b16 %v5583, %v5582
        %v5600 = vunpack.c.l.b16 %v5560
        %v5601 = vunpack.c.l.b16 %v5561
        %v5602 = vunpack.c.l.b16 %v5562
        %v5603 = vunpack.c.l.b16 %v5563
        %v5604 = vunpack.c.l.b16 %v5564
        %v5605 = vunpack.c.l.b16 %v5565
        %v5606 = vunpack.c.l.b16 %v5566
        %v5607 = vunpack.c.l.b16 %v5567
        %v5608 = vpack.c.b16 %v5601, %v5600
        %v5609 = vpack.c.b16 %v5603, %v5602
        %v5610 = vpack.c.b16 %v5605, %v5604
        %v5611 = vpack.c.b16 %v5607, %v5606
        %v5617 = vsel %vm351, %v5584, 0
        %v5620 = vsel %vm351, %v5585, 0
        %v5623 = vsel %vm351, %v5586, 0
        %v5626 = vsel %vm351, %v5587, 0
        %v5629 = vsel %vm351, %v5588, 0
        %v5632 = vsel %vm351, %v5589, 0
        %v5635 = vsel %vm351, %v5590, 0
        %v5638 = vsel %vm351, %v5591, 0
        %5640 = vmatprep.subr.bf16.mxu0 0
        %5641 = vmatpush1.bf16.msra.mxu0 0
        %5642 = vmatprep.subr.bf16.mxu0 0
        %5643 = vmatpush1.bf16.msra.mxu0 0
        %5644 = vmatprep.subr.bf16.mxu0 0
        %5645 = vmatpush1.bf16.msra.mxu0 0
        %5646 = vmatprep.subr.bf16.mxu0 0
        %5647 = vmatpush1.bf16.msra.mxu0 0
        %5648 = vmatprep.subr.bf16.mxu0 0
        %5649 = vmatpush1.bf16.msra.mxu0 %v5611
        %5650 = vmatprep.subr.bf16.mxu0 0
        %5651 = vmatpush1.bf16.msra.mxu0 %v5610
        %5652 = vmatprep.subr.bf16.mxu0 0
        %5653 = vmatpush1.bf16.msra.mxu0 %v5609
        %5654 = vmatprep.subr.bf16.mxu0 0
        %5655 = vmatpush1.bf16.msra.mxu0 %v5608
        %5656 = vmatprep.subr.bf16.mxu0 0
        %5657 = vmatpush2.bf16.msra.mxu0 0
        %5658 = vmatprep.subr.bf16.mxu0 0
        %5659 = vmatpush2.bf16.msra.mxu0 0
        %5660 = vmatprep.subr.bf16.mxu0 0
        %5661 = vmatpush2.bf16.msra.mxu0 0
        %5662 = vmatprep.subr.bf16.mxu0 0
        %5663 = vmatpush2.bf16.msra.mxu0 0
        %5664 = vmatprep.subr.bf16.mxu0 0
        %5665 = vmatpush2.bf16.msra.mxu0 0
        %5666 = vmatprep.subr.bf16.mxu0 0
        %5667 = vmatpush2.bf16.msra.mxu0 0
        %5668 = vmatprep.subr.bf16.mxu0 0
        %5669 = vmatpush2.bf16.msra.mxu0 0
        %5670 = vmatprep.subr.bf16.mxu0 0
        %5671 = vmatpush2.bf16.msra.mxu0 0
        %5672 = vmatprep.mubr.bf16.mxu0 0
        %5673 = vmatmul.mubr.bf16.gmra.mxu0 %v5617
        %v5674 = vpop.f32.mrf.mxu0
        %v5675 = vadd.f32 0.0, %v5674
        %v5676 = vpop.f32.mrf.mxu0
        %v5677 = vpop.f32.mrf.mxu0
        %v5678 = vadd.f32 0.0, %v5677
        %v5679 = vpop.f32.mrf.mxu0
        %5680 = vmatprep.mubr.bf16.mxu0 0
        %5681 = vmatmul.mubr.bf16.gmra.mxu0 %v5620
        %v5682 = vpop.f32.mrf.mxu0
        %v5683 = vadd.f32 0.0, %v5682
        %v5684 = vpop.f32.mrf.mxu0
        %v5685 = vpop.f32.mrf.mxu0
        %v5686 = vadd.f32 0.0, %v5685
        %v5687 = vpop.f32.mrf.mxu0
        %5688 = vmatprep.mubr.bf16.mxu0 0
        %5689 = vmatmul.mubr.bf16.gmra.mxu0 %v5623
        %v5690 = vpop.f32.mrf.mxu0
        %v5691 = vadd.f32 0.0, %v5690
        %v5692 = vpop.f32.mrf.mxu0
        %v5693 = vpop.f32.mrf.mxu0
        %v5694 = vadd.f32 0.0, %v5693
        %v5695 = vpop.f32.mrf.mxu0
        %5696 = vmatprep.mubr.bf16.mxu0 0
        %5697 = vmatmul.mubr.bf16.gmra.mxu0 %v5626
        %v5698 = vpop.f32.mrf.mxu0
        %v5699 = vadd.f32 0.0, %v5698
        %v5700 = vpop.f32.mrf.mxu0
        %v5701 = vpop.f32.mrf.mxu0
        %v5702 = vadd.f32 0.0, %v5701
        %v5703 = vpop.f32.mrf.mxu0
        %5704 = vmatprep.mubr.bf16.mxu0 0
        %5705 = vmatmul.mubr.bf16.gmra.mxu0 %v5629
        %v5706 = vpop.f32.mrf.mxu0
        %v5707 = vadd.f32 0.0, %v5706
        %v5708 = vpop.f32.mrf.mxu0
        %v5709 = vpop.f32.mrf.mxu0
        %v5710 = vadd.f32 0.0, %v5709
        %v5711 = vpop.f32.mrf.mxu0
        %5712 = vmatprep.mubr.bf16.mxu0 0
        %5713 = vmatmul.mubr.bf16.gmra.mxu0 %v5632
        %v5714 = vpop.f32.mrf.mxu0
        %v5715 = vadd.f32 0.0, %v5714
        %v5716 = vpop.f32.mrf.mxu0
        %v5717 = vpop.f32.mrf.mxu0
        %v5718 = vadd.f32 0.0, %v5717
        %v5719 = vpop.f32.mrf.mxu0
        %5720 = vmatprep.mubr.bf16.mxu0 0
        %5721 = vmatmul.mubr.bf16.gmra.mxu0 %v5635
        %v5722 = vpop.f32.mrf.mxu0
        %v5723 = vadd.f32 0.0, %v5722
        %v5724 = vpop.f32.mrf.mxu0
        %v5725 = vpop.f32.mrf.mxu0
        %v5726 = vadd.f32 0.0, %v5725
        %v5727 = vpop.f32.mrf.mxu0
        %5728 = vmatprep.mubr.bf16.mxu0 0
        %5729 = vmatmul.mubr.bf16.gmra.mxu0 %v5638
        %v5730 = vpop.f32.mrf.mxu0
        %v5731 = vadd.f32 0.0, %v5730
        %v5732 = vpop.f32.mrf.mxu0
        %v5733 = vpop.f32.mrf.mxu0
        %v5734 = vadd.f32 0.0, %v5733
        %v5735 = vpop.f32.mrf.mxu0
        %5736 = vdwg.mxu0
        %v5737 = vadd.f32 %v5543, %v5675
        %v5738 = vadd.f32 %v5544, %v5678
        %v5739 = vadd.f32 %v5545, %v5683
        %v5740 = vadd.f32 %v5546, %v5686
        %v5741 = vadd.f32 %v5547, %v5691
        %v5742 = vadd.f32 %v5548, %v5694
        %v5743 = vadd.f32 %v5549, %v5699
        %v5744 = vadd.f32 %v5550, %v5702
        %v5745 = vadd.f32 %v5551, %v5707
        %v5746 = vadd.f32 %v5552, %v5710
        %v5747 = vadd.f32 %v5553, %v5715
        %v5748 = vadd.f32 %v5554, %v5718
        %v5749 = vadd.f32 %v5555, %v5723
        %v5750 = vadd.f32 %v5556, %v5726
        %v5751 = vadd.f32 %v5557, %v5731
        %v5752 = vadd.f32 %v5558, %v5734
        %5753 = vst [vmem:[#allocation2] sm:$0xff] %v5737
        %5754 = vst [vmem:[#allocation2 + $0x8] sm:$0xff] %v5738
        %5755 = vst [vmem:[#allocation2 + $0x10] sm:$0xff] %v5739
        %5756 = vst [vmem:[#allocation2 + $0x18] sm:$0xff] %v5740
        %5757 = vst [vmem:[#allocation2 + $0x20] sm:$0xff] %v5741
        %5758 = vst [vmem:[#allocation2 + $0x28] sm:$0xff] %v5742
        %5759 = vst [vmem:[#allocation2 + $0x30] sm:$0xff] %v5743
        %5760 = vst [vmem:[#allocation2 + $0x38] sm:$0xff] %v5744
        %5761 = vst [vmem:[#allocation2 + $0x40] sm:$0xff] %v5745
        %5762 = vst [vmem:[#allocation2 + $0x48] sm:$0xff] %v5746
        %5763 = vst [vmem:[#allocation2 + $0x50] sm:$0xff] %v5747
        %5764 = vst [vmem:[#allocation2 + $0x58] sm:$0xff] %v5748
        %5765 = vst [vmem:[#allocation2 + $0x60] sm:$0xff] %v5749
        %5766 = vst [vmem:[#allocation2 + $0x68] sm:$0xff] %v5750
        %5767 = vst [vmem:[#allocation2 + $0x70] sm:$0xff] %v5751
        %5768 = vst [vmem:[#allocation2 + $0x78] sm:$0xff] %v5752
        %s5769 = sadd.s32 %s227, 3
        %s5770 = smul.u32 %s5769, 3
        %s5771 = smul.addr %s5770, 4
        %s5772 = scalar_lea.vmem %s222, %s5771
        %v5773 = vld [vmem:[%s5772] sm:$0xf]
        %v5774 = vld [vmem:[%s5772 + $0x4] sm:$0xf]
        %v5775 = vld [vmem:[%s5772 + $0xc] sm:$0xf]
        %v5776 = vld [vmem:[%s5772 + $0x10] sm:$0xf]
        %v5777 = vld [vmem:[%s5772 + $0x18] sm:$0xf]
        %v5778 = vld [vmem:[%s5772 + $0x1c] sm:$0xf]
        %v5779 = vld [vmem:[%s5772 + $0x24] sm:$0xf]
        %v5780 = vld [vmem:[%s5772 + $0x28] sm:$0xf]
        %v5781 = vld [vmem:[%s5772 + $0x30] sm:$0xf]
        %v5782 = vld [vmem:[%s5772 + $0x34] sm:$0xf]
        %v5783 = vld [vmem:[%s5772 + $0x3c] sm:$0xf]
        %v5784 = vld [vmem:[%s5772 + $0x40] sm:$0xf]
        %v5785 = vld [vmem:[%s5772 + $0x48] sm:$0xf]
        %v5786 = vld [vmem:[%s5772 + $0x4c] sm:$0xf]
        %v5787 = vld [vmem:[%s5772 + $0x54] sm:$0xf]
        %v5788 = vld [vmem:[%s5772 + $0x58] sm:$0xf]
        %v5789 = vld [vmem:[#allocation2] sm:$0xff]
        %v5790 = vld [vmem:[#allocation2 + $0x8] sm:$0xff]
        %v5791 = vld [vmem:[#allocation2 + $0x10] sm:$0xff]
        %v5792 = vld [vmem:[#allocation2 + $0x18] sm:$0xff]
        %v5793 = vld [vmem:[#allocation2 + $0x20] sm:$0xff]
        %v5794 = vld [vmem:[#allocation2 + $0x28] sm:$0xff]
        %v5795 = vld [vmem:[#allocation2 + $0x30] sm:$0xff]
        %v5796 = vld [vmem:[#allocation2 + $0x38] sm:$0xff]
        %v5797 = vld [vmem:[#allocation2 + $0x40] sm:$0xff]
        %v5798 = vld [vmem:[#allocation2 + $0x48] sm:$0xff]
        %v5799 = vld [vmem:[#allocation2 + $0x50] sm:$0xff]
        %v5800 = vld [vmem:[#allocation2 + $0x58] sm:$0xff]
        %v5801 = vld [vmem:[#allocation2 + $0x60] sm:$0xff]
        %v5802 = vld [vmem:[#allocation2 + $0x68] sm:$0xff]
        %v5803 = vld [vmem:[#allocation2 + $0x70] sm:$0xff]
        %v5804 = vld [vmem:[#allocation2 + $0x78] sm:$0xff]
        %s5805 = scalar_lea.vmem %s1, 480
        %v5806 = vld [vmem:[%s5805] sm:$0xf]
        %v5807 = vld [vmem:[%s5805 + $0x4] sm:$0xf]
        %v5808 = vld [vmem:[%s5805 + $0x8] sm:$0xf]
        %v5809 = vld [vmem:[%s5805 + $0xc] sm:$0xf]
        %v5810 = vld [vmem:[%s5805 + $0x10] sm:$0xf]
        %v5811 = vld [vmem:[%s5805 + $0x14] sm:$0xf]
        %v5812 = vld [vmem:[%s5805 + $0x18] sm:$0xf]
        %v5813 = vld [vmem:[%s5805 + $0x1c] sm:$0xf]
        %v5830 = vunpack.c.l.b16 %v5773
        %v5831 = vunpack.c.l.b16 %v5774
        %v5832 = vunpack.c.l.b16 %v5775
        %v5833 = vunpack.c.l.b16 %v5776
        %v5834 = vunpack.c.l.b16 %v5777
        %v5835 = vunpack.c.l.b16 %v5778
        %v5836 = vunpack.c.l.b16 %v5779
        %v5837 = vunpack.c.l.b16 %v5780
        %v5838 = vunpack.c.l.b16 %v5781
        %v5839 = vunpack.c.l.b16 %v5782
        %v5840 = vunpack.c.l.b16 %v5783
        %v5841 = vunpack.c.l.b16 %v5784
        %v5842 = vunpack.c.l.b16 %v5785
        %v5843 = vunpack.c.l.b16 %v5786
        %v5844 = vunpack.c.l.b16 %v5787
        %v5845 = vunpack.c.l.b16 %v5788
        %v5846 = vpack.c.b16 %v5831, %v5830
        %v5847 = vpack.c.b16 %v5833, %v5832
        %v5848 = vpack.c.b16 %v5835, %v5834
        %v5849 = vpack.c.b16 %v5837, %v5836
        %v5850 = vpack.c.b16 %v5839, %v5838
        %v5851 = vpack.c.b16 %v5841, %v5840
        %v5852 = vpack.c.b16 %v5843, %v5842
        %v5853 = vpack.c.b16 %v5845, %v5844
        %v5862 = vunpack.c.l.b16 %v5806
        %v5863 = vunpack.c.l.b16 %v5807
        %v5864 = vunpack.c.l.b16 %v5808
        %v5865 = vunpack.c.l.b16 %v5809
        %v5866 = vunpack.c.l.b16 %v5810
        %v5867 = vunpack.c.l.b16 %v5811
        %v5868 = vunpack.c.l.b16 %v5812
        %v5869 = vunpack.c.l.b16 %v5813
        %v5870 = vpack.c.b16 %v5863, %v5862
        %v5871 = vpack.c.b16 %v5865, %v5864
        %v5872 = vpack.c.b16 %v5867, %v5866
        %v5873 = vpack.c.b16 %v5869, %v5868
        %v5879 = vsel %vm351, %v5846, 0
        %v5882 = vsel %vm351, %v5847, 0
        %v5885 = vsel %vm351, %v5848, 0
        %v5888 = vsel %vm351, %v5849, 0
        %v5891 = vsel %vm351, %v5850, 0
        %v5894 = vsel %vm351, %v5851, 0
        %v5897 = vsel %vm351, %v5852, 0
        %v5900 = vsel %vm351, %v5853, 0
        %5902 = vmatprep.subr.bf16.mxu0 0
        %5903 = vmatpush1.bf16.msra.mxu0 0
        %5904 = vmatprep.subr.bf16.mxu0 0
        %5905 = vmatpush1.bf16.msra.mxu0 0
        %5906 = vmatprep.subr.bf16.mxu0 0
        %5907 = vmatpush1.bf16.msra.mxu0 0
        %5908 = vmatprep.subr.bf16.mxu0 0
        %5909 = vmatpush1.bf16.msra.mxu0 0
        %5910 = vmatprep.subr.bf16.mxu0 0
        %5911 = vmatpush1.bf16.msra.mxu0 %v5873
        %5912 = vmatprep.subr.bf16.mxu0 0
        %5913 = vmatpush1.bf16.msra.mxu0 %v5872
        %5914 = vmatprep.subr.bf16.mxu0 0
        %5915 = vmatpush1.bf16.msra.mxu0 %v5871
        %5916 = vmatprep.subr.bf16.mxu0 0
        %5917 = vmatpush1.bf16.msra.mxu0 %v5870
        %5918 = vmatprep.subr.bf16.mxu0 0
        %5919 = vmatpush2.bf16.msra.mxu0 0
        %5920 = vmatprep.subr.bf16.mxu0 0
        %5921 = vmatpush2.bf16.msra.mxu0 0
        %5922 = vmatprep.subr.bf16.mxu0 0
        %5923 = vmatpush2.bf16.msra.mxu0 0
        %5924 = vmatprep.subr.bf16.mxu0 0
        %5925 = vmatpush2.bf16.msra.mxu0 0
        %5926 = vmatprep.subr.bf16.mxu0 0
        %5927 = vmatpush2.bf16.msra.mxu0 0
        %5928 = vmatprep.subr.bf16.mxu0 0
        %5929 = vmatpush2.bf16.msra.mxu0 0
        %5930 = vmatprep.subr.bf16.mxu0 0
        %5931 = vmatpush2.bf16.msra.mxu0 0
        %5932 = vmatprep.subr.bf16.mxu0 0
        %5933 = vmatpush2.bf16.msra.mxu0 0
        %5934 = vmatprep.mubr.bf16.mxu0 0
        %5935 = vmatmul.mubr.bf16.gmra.mxu0 %v5879
        %v5936 = vpop.f32.mrf.mxu0
        %v5937 = vadd.f32 0.0, %v5936
        %v5938 = vpop.f32.mrf.mxu0
        %v5939 = vpop.f32.mrf.mxu0
        %v5940 = vadd.f32 0.0, %v5939
        %v5941 = vpop.f32.mrf.mxu0
        %5942 = vmatprep.mubr.bf16.mxu0 0
        %5943 = vmatmul.mubr.bf16.gmra.mxu0 %v5882
        %v5944 = vpop.f32.mrf.mxu0
        %v5945 = vadd.f32 0.0, %v5944
        %v5946 = vpop.f32.mrf.mxu0
        %v5947 = vpop.f32.mrf.mxu0
        %v5948 = vadd.f32 0.0, %v5947
        %v5949 = vpop.f32.mrf.mxu0
        %5950 = vmatprep.mubr.bf16.mxu0 0
        %5951 = vmatmul.mubr.bf16.gmra.mxu0 %v5885
        %v5952 = vpop.f32.mrf.mxu0
        %v5953 = vadd.f32 0.0, %v5952
        %v5954 = vpop.f32.mrf.mxu0
        %v5955 = vpop.f32.mrf.mxu0
        %v5956 = vadd.f32 0.0, %v5955
        %v5957 = vpop.f32.mrf.mxu0
        %5958 = vmatprep.mubr.bf16.mxu0 0
        %5959 = vmatmul.mubr.bf16.gmra.mxu0 %v5888
        %v5960 = vpop.f32.mrf.mxu0
        %v5961 = vadd.f32 0.0, %v5960
        %v5962 = vpop.f32.mrf.mxu0
        %v5963 = vpop.f32.mrf.mxu0
        %v5964 = vadd.f32 0.0, %v5963
        %v5965 = vpop.f32.mrf.mxu0
        %5966 = vmatprep.mubr.bf16.mxu0 0
        %5967 = vmatmul.mubr.bf16.gmra.mxu0 %v5891
        %v5968 = vpop.f32.mrf.mxu0
        %v5969 = vadd.f32 0.0, %v5968
        %v5970 = vpop.f32.mrf.mxu0
        %v5971 = vpop.f32.mrf.mxu0
        %v5972 = vadd.f32 0.0, %v5971
        %v5973 = vpop.f32.mrf.mxu0
        %5974 = vmatprep.mubr.bf16.mxu0 0
        %5975 = vmatmul.mubr.bf16.gmra.mxu0 %v5894
        %v5976 = vpop.f32.mrf.mxu0
        %v5977 = vadd.f32 0.0, %v5976
        %v5978 = vpop.f32.mrf.mxu0
        %v5979 = vpop.f32.mrf.mxu0
        %v5980 = vadd.f32 0.0, %v5979
        %v5981 = vpop.f32.mrf.mxu0
        %5982 = vmatprep.mubr.bf16.mxu0 0
        %5983 = vmatmul.mubr.bf16.gmra.mxu0 %v5897
        %v5984 = vpop.f32.mrf.mxu0
        %v5985 = vadd.f32 0.0, %v5984
        %v5986 = vpop.f32.mrf.mxu0
        %v5987 = vpop.f32.mrf.mxu0
        %v5988 = vadd.f32 0.0, %v5987
        %v5989 = vpop.f32.mrf.mxu0
        %5990 = vmatprep.mubr.bf16.mxu0 0
        %5991 = vmatmul.mubr.bf16.gmra.mxu0 %v5900
        %v5992 = vpop.f32.mrf.mxu0
        %v5993 = vadd.f32 0.0, %v5992
        %v5994 = vpop.f32.mrf.mxu0
        %v5995 = vpop.f32.mrf.mxu0
        %v5996 = vadd.f32 0.0, %v5995
        %v5997 = vpop.f32.mrf.mxu0
        %5998 = vdwg.mxu0
        %v5999 = vadd.f32 %v5789, %v5937
        %v6000 = vadd.f32 %v5790, %v5940
        %v6001 = vadd.f32 %v5791, %v5945
        %v6002 = vadd.f32 %v5792, %v5948
        %v6003 = vadd.f32 %v5793, %v5953
        %v6004 = vadd.f32 %v5794, %v5956
        %v6005 = vadd.f32 %v5795, %v5961
        %v6006 = vadd.f32 %v5796, %v5964
        %v6007 = vadd.f32 %v5797, %v5969
        %v6008 = vadd.f32 %v5798, %v5972
        %v6009 = vadd.f32 %v5799, %v5977
        %v6010 = vadd.f32 %v5800, %v5980
        %v6011 = vadd.f32 %v5801, %v5985
        %v6012 = vadd.f32 %v5802, %v5988
        %v6013 = vadd.f32 %v5803, %v5993
        %v6014 = vadd.f32 %v5804, %v5996
        %6015 = vst [vmem:[#allocation2] sm:$0xff] %v5999
        %6016 = vst [vmem:[#allocation2 + $0x8] sm:$0xff] %v6000
        %6017 = vst [vmem:[#allocation2 + $0x10] sm:$0xff] %v6001
        %6018 = vst [vmem:[#allocation2 + $0x18] sm:$0xff] %v6002
        %6019 = vst [vmem:[#allocation2 + $0x20] sm:$0xff] %v6003
        %6020 = vst [vmem:[#allocation2 + $0x28] sm:$0xff] %v6004
        %6021 = vst [vmem:[#allocation2 + $0x30] sm:$0xff] %v6005
        %6022 = vst [vmem:[#allocation2 + $0x38] sm:$0xff] %v6006
        %6023 = vst [vmem:[#allocation2 + $0x40] sm:$0xff] %v6007
        %6024 = vst [vmem:[#allocation2 + $0x48] sm:$0xff] %v6008
        %6025 = vst [vmem:[#allocation2 + $0x50] sm:$0xff] %v6009
        %6026 = vst [vmem:[#allocation2 + $0x58] sm:$0xff] %v6010
        %6027 = vst [vmem:[#allocation2 + $0x60] sm:$0xff] %v6011
        %6028 = vst [vmem:[#allocation2 + $0x68] sm:$0xff] %v6012
        %6029 = vst [vmem:[#allocation2 + $0x70] sm:$0xff] %v6013
        %6030 = vst [vmem:[#allocation2 + $0x78] sm:$0xff] %v6014
        %v6031 = vld [vmem:[%s5772] sm:$0xf]
        %v6032 = vld [vmem:[%s5772 + $0x4] sm:$0xf]
        %v6033 = vld [vmem:[%s5772 + $0x8] sm:$0x1]
        %v6034 = vld [vmem:[%s5772 + $0xc] sm:$0xf]
        %v6035 = vld [vmem:[%s5772 + $0x10] sm:$0xf]
        %v6036 = vld [vmem:[%s5772 + $0x14] sm:$0x1]
        %v6037 = vld [vmem:[%s5772 + $0x18] sm:$0xf]
        %v6038 = vld [vmem:[%s5772 + $0x1c] sm:$0xf]
        %v6039 = vld [vmem:[%s5772 + $0x20] sm:$0x1]
        %v6040 = vld [vmem:[%s5772 + $0x24] sm:$0xf]
        %v6041 = vld [vmem:[%s5772 + $0x28] sm:$0xf]
        %v6042 = vld [vmem:[%s5772 + $0x2c] sm:$0x1]
        %v6043 = vld [vmem:[%s5772 + $0x30] sm:$0xf]
        %v6044 = vld [vmem:[%s5772 + $0x34] sm:$0xf]
        %v6045 = vld [vmem:[%s5772 + $0x38] sm:$0x1]
        %v6046 = vld [vmem:[%s5772 + $0x3c] sm:$0xf]
        %v6047 = vld [vmem:[%s5772 + $0x40] sm:$0xf]
        %v6048 = vld [vmem:[%s5772 + $0x44] sm:$0x1]
        %v6049 = vld [vmem:[%s5772 + $0x48] sm:$0xf]
        %v6050 = vld [vmem:[%s5772 + $0x4c] sm:$0xf]
        %v6051 = vld [vmem:[%s5772 + $0x50] sm:$0x1]
        %v6052 = vld [vmem:[%s5772 + $0x54] sm:$0xf]
        %v6053 = vld [vmem:[%s5772 + $0x58] sm:$0xf]
        %v6054 = vld [vmem:[%s5772 + $0x5c] sm:$0x1]
        %v6056 = vshrl.u32 %v6031, 16
        %v6058 = vrot.slane %v6056, 4
        %v6059 = vshll.u32 %v6031, 16
        %v6061 = vrot.slane %v6059, 5
        %v6062 = vor.u32 %v6058, %v6061
        %v6063 = vrot.slane %v6062, 4
        %v6065 = vshll.u32 %v6032, 16
        %v6067 = vrot.slane %v6065, 5
        %v6068 = vsel %vm531, %v6063, %v6067
        %v6069 = vshrl.u32 %v6032, 16
        %v6071 = vrot.slane %v6069, 4
        %v6072 = vor.u32 %v6071, %v6067
        %v6073 = vrot.slane %v6072, 4
        %v6075 = vshll.u32 %v6033, 16
        %v6077 = vrot.slane %v6075, 5
        %v6078 = vsel %vm531, %v6073, %v6077
        %v6080 = vshrl.u32 %v6034, 16
        %v6082 = vrot.slane %v6080, 4
        %v6083 = vshll.u32 %v6034, 16
        %v6085 = vrot.slane %v6083, 5
        %v6086 = vor.u32 %v6082, %v6085
        %v6087 = vrot.slane %v6086, 4
        %v6089 = vshll.u32 %v6035, 16
        %v6091 = vrot.slane %v6089, 5
        %v6092 = vsel %vm531, %v6087, %v6091
        %v6093 = vshrl.u32 %v6035, 16
        %v6095 = vrot.slane %v6093, 4
        %v6096 = vor.u32 %v6095, %v6091
        %v6097 = vrot.slane %v6096, 4
        %v6099 = vshll.u32 %v6036, 16
        %v6101 = vrot.slane %v6099, 5
        %v6102 = vsel %vm531, %v6097, %v6101
        %v6104 = vshrl.u32 %v6037, 16
        %v6106 = vrot.slane %v6104, 4
        %v6107 = vshll.u32 %v6037, 16
        %v6109 = vrot.slane %v6107, 5
        %v6110 = vor.u32 %v6106, %v6109
        %v6111 = vrot.slane %v6110, 4
        %v6113 = vshll.u32 %v6038, 16
        %v6115 = vrot.slane %v6113, 5
        %v6116 = vsel %vm531, %v6111, %v6115
        %v6117 = vshrl.u32 %v6038, 16
        %v6119 = vrot.slane %v6117, 4
        %v6120 = vor.u32 %v6119, %v6115
        %v6121 = vrot.slane %v6120, 4
        %v6123 = vshll.u32 %v6039, 16
        %v6125 = vrot.slane %v6123, 5
        %v6126 = vsel %vm531, %v6121, %v6125
        %v6128 = vshrl.u32 %v6040, 16
        %v6130 = vrot.slane %v6128, 4
        %v6131 = vshll.u32 %v6040, 16
        %v6133 = vrot.slane %v6131, 5
        %v6134 = vor.u32 %v6130, %v6133
        %v6135 = vrot.slane %v6134, 4
        %v6137 = vshll.u32 %v6041, 16
        %v6139 = vrot.slane %v6137, 5
        %v6140 = vsel %vm531, %v6135, %v6139
        %v6141 = vshrl.u32 %v6041, 16
        %v6143 = vrot.slane %v6141, 4
        %v6144 = vor.u32 %v6143, %v6139
        %v6145 = vrot.slane %v6144, 4
        %v6147 = vshll.u32 %v6042, 16
        %v6149 = vrot.slane %v6147, 5
        %v6150 = vsel %vm531, %v6145, %v6149
        %v6152 = vshrl.u32 %v6043, 16
        %v6154 = vrot.slane %v6152, 4
        %v6155 = vshll.u32 %v6043, 16
        %v6157 = vrot.slane %v6155, 5
        %v6158 = vor.u32 %v6154, %v6157
        %v6159 = vrot.slane %v6158, 4
        %v6161 = vshll.u32 %v6044, 16
        %v6163 = vrot.slane %v6161, 5
        %v6164 = vsel %vm531, %v6159, %v6163
        %v6165 = vshrl.u32 %v6044, 16
        %v6167 = vrot.slane %v6165, 4
        %v6168 = vor.u32 %v6167, %v6163
        %v6169 = vrot.slane %v6168, 4
        %v6171 = vshll.u32 %v6045, 16
        %v6173 = vrot.slane %v6171, 5
        %v6174 = vsel %vm531, %v6169, %v6173
        %v6176 = vshrl.u32 %v6046, 16
        %v6178 = vrot.slane %v6176, 4
        %v6179 = vshll.u32 %v6046, 16
        %v6181 = vrot.slane %v6179, 5
        %v6182 = vor.u32 %v6178, %v6181
        %v6183 = vrot.slane %v6182, 4
        %v6185 = vshll.u32 %v6047, 16
        %v6187 = vrot.slane %v6185, 5
        %v6188 = vsel %vm531, %v6183, %v6187
        %v6189 = vshrl.u32 %v6047, 16
        %v6191 = vrot.slane %v6189, 4
        %v6192 = vor.u32 %v6191, %v6187
        %v6193 = vrot.slane %v6192, 4
        %v6195 = vshll.u32 %v6048, 16
        %v6197 = vrot.slane %v6195, 5
        %v6198 = vsel %vm531, %v6193, %v6197
        %v6200 = vshrl.u32 %v6049, 16
        %v6202 = vrot.slane %v6200, 4
        %v6203 = vshll.u32 %v6049, 16
        %v6205 = vrot.slane %v6203, 5
        %v6206 = vor.u32 %v6202, %v6205
        %v6207 = vrot.slane %v6206, 4
        %v6209 = vshll.u32 %v6050, 16
        %v6211 = vrot.slane %v6209, 5
        %v6212 = vsel %vm531, %v6207, %v6211
        %v6213 = vshrl.u32 %v6050, 16
        %v6215 = vrot.slane %v6213, 4
        %v6216 = vor.u32 %v6215, %v6211
        %v6217 = vrot.slane %v6216, 4
        %v6219 = vshll.u32 %v6051, 16
        %v6221 = vrot.slane %v6219, 5
        %v6222 = vsel %vm531, %v6217, %v6221
        %v6224 = vshrl.u32 %v6052, 16
        %v6226 = vrot.slane %v6224, 4
        %v6227 = vshll.u32 %v6052, 16
        %v6229 = vrot.slane %v6227, 5
        %v6230 = vor.u32 %v6226, %v6229
        %v6231 = vrot.slane %v6230, 4
        %v6233 = vshll.u32 %v6053, 16
        %v6235 = vrot.slane %v6233, 5
        %v6236 = vsel %vm531, %v6231, %v6235
        %v6237 = vshrl.u32 %v6053, 16
        %v6239 = vrot.slane %v6237, 4
        %v6240 = vor.u32 %v6239, %v6235
        %v6241 = vrot.slane %v6240, 4
        %v6243 = vshll.u32 %v6054, 16
        %v6245 = vrot.slane %v6243, 5
        %v6246 = vsel %vm531, %v6241, %v6245
        %v6247 = vld [vmem:[#allocation2] sm:$0xff]
        %v6248 = vld [vmem:[#allocation2 + $0x8] sm:$0xff]
        %v6249 = vld [vmem:[#allocation2 + $0x10] sm:$0xff]
        %v6250 = vld [vmem:[#allocation2 + $0x18] sm:$0xff]
        %v6251 = vld [vmem:[#allocation2 + $0x20] sm:$0xff]
        %v6252 = vld [vmem:[#allocation2 + $0x28] sm:$0xff]
        %v6253 = vld [vmem:[#allocation2 + $0x30] sm:$0xff]
        %v6254 = vld [vmem:[#allocation2 + $0x38] sm:$0xff]
        %v6255 = vld [vmem:[#allocation2 + $0x40] sm:$0xff]
        %v6256 = vld [vmem:[#allocation2 + $0x48] sm:$0xff]
        %v6257 = vld [vmem:[#allocation2 + $0x50] sm:$0xff]
        %v6258 = vld [vmem:[#allocation2 + $0x58] sm:$0xff]
        %v6259 = vld [vmem:[#allocation2 + $0x60] sm:$0xff]
        %v6260 = vld [vmem:[#allocation2 + $0x68] sm:$0xff]
        %v6261 = vld [vmem:[#allocation2 + $0x70] sm:$0xff]
        %v6262 = vld [vmem:[#allocation2 + $0x78] sm:$0xff]
        %s6263 = scalar_lea.vmem %s1, 512
        %v6264 = vld [vmem:[%s6263] sm:$0xf]
        %v6265 = vld [vmem:[%s6263 + $0x4] sm:$0xf]
        %v6266 = vld [vmem:[%s6263 + $0x8] sm:$0xf]
        %v6267 = vld [vmem:[%s6263 + $0xc] sm:$0xf]
        %v6268 = vld [vmem:[%s6263 + $0x10] sm:$0xf]
        %v6269 = vld [vmem:[%s6263 + $0x14] sm:$0xf]
        %v6270 = vld [vmem:[%s6263 + $0x18] sm:$0xf]
        %v6271 = vld [vmem:[%s6263 + $0x1c] sm:$0xf]
        %v6272 = vunpack.c.l.b16 %v6068
        %v6273 = vunpack.c.l.b16 %v6078
        %v6274 = vunpack.c.l.b16 %v6092
        %v6275 = vunpack.c.l.b16 %v6102
        %v6276 = vunpack.c.l.b16 %v6116
        %v6277 = vunpack.c.l.b16 %v6126
        %v6278 = vunpack.c.l.b16 %v6140
        %v6279 = vunpack.c.l.b16 %v6150
        %v6280 = vunpack.c.l.b16 %v6164
        %v6281 = vunpack.c.l.b16 %v6174
        %v6282 = vunpack.c.l.b16 %v6188
        %v6283 = vunpack.c.l.b16 %v6198
        %v6284 = vunpack.c.l.b16 %v6212
        %v6285 = vunpack.c.l.b16 %v6222
        %v6286 = vunpack.c.l.b16 %v6236
        %v6287 = vunpack.c.l.b16 %v6246
        %v6288 = vpack.c.b16 %v6273, %v6272
        %v6289 = vpack.c.b16 %v6275, %v6274
        %v6290 = vpack.c.b16 %v6277, %v6276
        %v6291 = vpack.c.b16 %v6279, %v6278
        %v6292 = vpack.c.b16 %v6281, %v6280
        %v6293 = vpack.c.b16 %v6283, %v6282
        %v6294 = vpack.c.b16 %v6285, %v6284
        %v6295 = vpack.c.b16 %v6287, %v6286
        %v6304 = vunpack.c.l.b16 %v6264
        %v6305 = vunpack.c.l.b16 %v6265
        %v6306 = vunpack.c.l.b16 %v6266
        %v6307 = vunpack.c.l.b16 %v6267
        %v6308 = vunpack.c.l.b16 %v6268
        %v6309 = vunpack.c.l.b16 %v6269
        %v6310 = vunpack.c.l.b16 %v6270
        %v6311 = vunpack.c.l.b16 %v6271
        %v6312 = vpack.c.b16 %v6305, %v6304
        %v6313 = vpack.c.b16 %v6307, %v6306
        %v6314 = vpack.c.b16 %v6309, %v6308
        %v6315 = vpack.c.b16 %v6311, %v6310
        %v6321 = vsel %vm351, %v6288, 0
        %v6324 = vsel %vm351, %v6289, 0
        %v6327 = vsel %vm351, %v6290, 0
        %v6330 = vsel %vm351, %v6291, 0
        %v6333 = vsel %vm351, %v6292, 0
        %v6336 = vsel %vm351, %v6293, 0
        %v6339 = vsel %vm351, %v6294, 0
        %v6342 = vsel %vm351, %v6295, 0
        %6344 = vmatprep.subr.bf16.mxu0 0
        %6345 = vmatpush1.bf16.msra.mxu0 0
        %6346 = vmatprep.subr.bf16.mxu0 0
        %6347 = vmatpush1.bf16.msra.mxu0 0
        %6348 = vmatprep.subr.bf16.mxu0 0
        %6349 = vmatpush1.bf16.msra.mxu0 0
        %6350 = vmatprep.subr.bf16.mxu0 0
        %6351 = vmatpush1.bf16.msra.mxu0 0
        %6352 = vmatprep.subr.bf16.mxu0 0
        %6353 = vmatpush1.bf16.msra.mxu0 %v6315
        %6354 = vmatprep.subr.bf16.mxu0 0
        %6355 = vmatpush1.bf16.msra.mxu0 %v6314
        %6356 = vmatprep.subr.bf16.mxu0 0
        %6357 = vmatpush1.bf16.msra.mxu0 %v6313
        %6358 = vmatprep.subr.bf16.mxu0 0
        %6359 = vmatpush1.bf16.msra.mxu0 %v6312
        %6360 = vmatprep.subr.bf16.mxu0 0
        %6361 = vmatpush2.bf16.msra.mxu0 0
        %6362 = vmatprep.subr.bf16.mxu0 0
        %6363 = vmatpush2.bf16.msra.mxu0 0
        %6364 = vmatprep.subr.bf16.mxu0 0
        %6365 = vmatpush2.bf16.msra.mxu0 0
        %6366 = vmatprep.subr.bf16.mxu0 0
        %6367 = vmatpush2.bf16.msra.mxu0 0
        %6368 = vmatprep.subr.bf16.mxu0 0
        %6369 = vmatpush2.bf16.msra.mxu0 0
        %6370 = vmatprep.subr.bf16.mxu0 0
        %6371 = vmatpush2.bf16.msra.mxu0 0
        %6372 = vmatprep.subr.bf16.mxu0 0
        %6373 = vmatpush2.bf16.msra.mxu0 0
        %6374 = vmatprep.subr.bf16.mxu0 0
        %6375 = vmatpush2.bf16.msra.mxu0 0
        %6376 = vmatprep.mubr.bf16.mxu0 0
        %6377 = vmatmul.mubr.bf16.gmra.mxu0 %v6321
        %v6378 = vpop.f32.mrf.mxu0
        %v6379 = vadd.f32 0.0, %v6378
        %v6380 = vpop.f32.mrf.mxu0
        %v6381 = vpop.f32.mrf.mxu0
        %v6382 = vadd.f32 0.0, %v6381
        %v6383 = vpop.f32.mrf.mxu0
        %6384 = vmatprep.mubr.bf16.mxu0 0
        %6385 = vmatmul.mubr.bf16.gmra.mxu0 %v6324
        %v6386 = vpop.f32.mrf.mxu0
        %v6387 = vadd.f32 0.0, %v6386
        %v6388 = vpop.f32.mrf.mxu0
        %v6389 = vpop.f32.mrf.mxu0
        %v6390 = vadd.f32 0.0, %v6389
        %v6391 = vpop.f32.mrf.mxu0
        %6392 = vmatprep.mubr.bf16.mxu0 0
        %6393 = vmatmul.mubr.bf16.gmra.mxu0 %v6327
        %v6394 = vpop.f32.mrf.mxu0
        %v6395 = vadd.f32 0.0, %v6394
        %v6396 = vpop.f32.mrf.mxu0
        %v6397 = vpop.f32.mrf.mxu0
        %v6398 = vadd.f32 0.0, %v6397
        %v6399 = vpop.f32.mrf.mxu0
        %6400 = vmatprep.mubr.bf16.mxu0 0
        %6401 = vmatmul.mubr.bf16.gmra.mxu0 %v6330
        %v6402 = vpop.f32.mrf.mxu0
        %v6403 = vadd.f32 0.0, %v6402
        %v6404 = vpop.f32.mrf.mxu0
        %v6405 = vpop.f32.mrf.mxu0
        %v6406 = vadd.f32 0.0, %v6405
        %v6407 = vpop.f32.mrf.mxu0
        %6408 = vmatprep.mubr.bf16.mxu0 0
        %6409 = vmatmul.mubr.bf16.gmra.mxu0 %v6333
        %v6410 = vpop.f32.mrf.mxu0
        %v6411 = vadd.f32 0.0, %v6410
        %v6412 = vpop.f32.mrf.mxu0
        %v6413 = vpop.f32.mrf.mxu0
        %v6414 = vadd.f32 0.0, %v6413
        %v6415 = vpop.f32.mrf.mxu0
        %6416 = vmatprep.mubr.bf16.mxu0 0
        %6417 = vmatmul.mubr.bf16.gmra.mxu0 %v6336
        %v6418 = vpop.f32.mrf.mxu0
        %v6419 = vadd.f32 0.0, %v6418
        %v6420 = vpop.f32.mrf.mxu0
        %v6421 = vpop.f32.mrf.mxu0
        %v6422 = vadd.f32 0.0, %v6421
        %v6423 = vpop.f32.mrf.mxu0
        %6424 = vmatprep.mubr.bf16.mxu0 0
        %6425 = vmatmul.mubr.bf16.gmra.mxu0 %v6339
        %v6426 = vpop.f32.mrf.mxu0
        %v6427 = vadd.f32 0.0, %v6426
        %v6428 = vpop.f32.mrf.mxu0
        %v6429 = vpop.f32.mrf.mxu0
        %v6430 = vadd.f32 0.0, %v6429
        %v6431 = vpop.f32.mrf.mxu0
        %6432 = vmatprep.mubr.bf16.mxu0 0
        %6433 = vmatmul.mubr.bf16.gmra.mxu0 %v6342
        %v6434 = vpop.f32.mrf.mxu0
        %v6435 = vadd.f32 0.0, %v6434
        %v6436 = vpop.f32.mrf.mxu0
        %v6437 = vpop.f32.mrf.mxu0
        %v6438 = vadd.f32 0.0, %v6437
        %v6439 = vpop.f32.mrf.mxu0
        %6440 = vdwg.mxu0
        %v6441 = vadd.f32 %v6247, %v6379
        %v6442 = vadd.f32 %v6248, %v6382
        %v6443 = vadd.f32 %v6249, %v6387
        %v6444 = vadd.f32 %v6250, %v6390
        %v6445 = vadd.f32 %v6251, %v6395
        %v6446 = vadd.f32 %v6252, %v6398
        %v6447 = vadd.f32 %v6253, %v6403
        %v6448 = vadd.f32 %v6254, %v6406
        %v6449 = vadd.f32 %v6255, %v6411
        %v6450 = vadd.f32 %v6256, %v6414
        %v6451 = vadd.f32 %v6257, %v6419
        %v6452 = vadd.f32 %v6258, %v6422
        %v6453 = vadd.f32 %v6259, %v6427
        %v6454 = vadd.f32 %v6260, %v6430
        %v6455 = vadd.f32 %v6261, %v6435
        %v6456 = vadd.f32 %v6262, %v6438
        %6457 = vst [vmem:[#allocation2] sm:$0xff] %v6441
        %6458 = vst [vmem:[#allocation2 + $0x8] sm:$0xff] %v6442
        %6459 = vst [vmem:[#allocation2 + $0x10] sm:$0xff] %v6443
        %6460 = vst [vmem:[#allocation2 + $0x18] sm:$0xff] %v6444
        %6461 = vst [vmem:[#allocation2 + $0x20] sm:$0xff] %v6445
        %6462 = vst [vmem:[#allocation2 + $0x28] sm:$0xff] %v6446
        %6463 = vst [vmem:[#allocation2 + $0x30] sm:$0xff] %v6447
        %6464 = vst [vmem:[#allocation2 + $0x38] sm:$0xff] %v6448
        %6465 = vst [vmem:[#allocation2 + $0x40] sm:$0xff] %v6449
        %6466 = vst [vmem:[#allocation2 + $0x48] sm:$0xff] %v6450
        %6467 = vst [vmem:[#allocation2 + $0x50] sm:$0xff] %v6451
        %6468 = vst [vmem:[#allocation2 + $0x58] sm:$0xff] %v6452
        %6469 = vst [vmem:[#allocation2 + $0x60] sm:$0xff] %v6453
        %6470 = vst [vmem:[#allocation2 + $0x68] sm:$0xff] %v6454
        %6471 = vst [vmem:[#allocation2 + $0x70] sm:$0xff] %v6455
        %6472 = vst [vmem:[#allocation2 + $0x78] sm:$0xff] %v6456
        %v6473 = vld [vmem:[%s5772] sm:$0xe]
        %v6474 = vld [vmem:[%s5772 + $0x4] sm:$0xf]
        %v6475 = vld [vmem:[%s5772 + $0x8] sm:$0x1]
        %v6476 = vld [vmem:[%s5772 + $0xc] sm:$0xe]
        %v6477 = vld [vmem:[%s5772 + $0x10] sm:$0xf]
        %v6478 = vld [vmem:[%s5772 + $0x14] sm:$0x1]
        %v6479 = vld [vmem:[%s5772 + $0x18] sm:$0xe]
        %v6480 = vld [vmem:[%s5772 + $0x1c] sm:$0xf]
        %v6481 = vld [vmem:[%s5772 + $0x20] sm:$0x1]
        %v6482 = vld [vmem:[%s5772 + $0x24] sm:$0xe]
        %v6483 = vld [vmem:[%s5772 + $0x28] sm:$0xf]
        %v6484 = vld [vmem:[%s5772 + $0x2c] sm:$0x1]
        %v6485 = vld [vmem:[%s5772 + $0x30] sm:$0xe]
        %v6486 = vld [vmem:[%s5772 + $0x34] sm:$0xf]
        %v6487 = vld [vmem:[%s5772 + $0x38] sm:$0x1]
        %v6488 = vld [vmem:[%s5772 + $0x3c] sm:$0xe]
        %v6489 = vld [vmem:[%s5772 + $0x40] sm:$0xf]
        %v6490 = vld [vmem:[%s5772 + $0x44] sm:$0x1]
        %v6491 = vld [vmem:[%s5772 + $0x48] sm:$0xe]
        %v6492 = vld [vmem:[%s5772 + $0x4c] sm:$0xf]
        %v6493 = vld [vmem:[%s5772 + $0x50] sm:$0x1]
        %v6494 = vld [vmem:[%s5772 + $0x54] sm:$0xe]
        %v6495 = vld [vmem:[%s5772 + $0x58] sm:$0xf]
        %v6496 = vld [vmem:[%s5772 + $0x5c] sm:$0x1]
        %v6521 = vrot.slane %v6473, 5
        %v6522 = vrot.slane %v6521, 4
        %v6523 = vrot.slane %v6474, 5
        %v6524 = vsel %vm1000, %v6522, %v6523
        %v6525 = vrot.slane %v6523, 4
        %v6526 = vrot.slane %v6475, 5
        %v6527 = vsel %vm1000, %v6525, %v6526
        %v6528 = vrot.slane %v6476, 5
        %v6529 = vrot.slane %v6528, 4
        %v6530 = vrot.slane %v6477, 5
        %v6531 = vsel %vm1000, %v6529, %v6530
        %v6532 = vrot.slane %v6530, 4
        %v6533 = vrot.slane %v6478, 5
        %v6534 = vsel %vm1000, %v6532, %v6533
        %v6535 = vrot.slane %v6479, 5
        %v6536 = vrot.slane %v6535, 4
        %v6537 = vrot.slane %v6480, 5
        %v6538 = vsel %vm1000, %v6536, %v6537
        %v6539 = vrot.slane %v6537, 4
        %v6540 = vrot.slane %v6481, 5
        %v6541 = vsel %vm1000, %v6539, %v6540
        %v6542 = vrot.slane %v6482, 5
        %v6543 = vrot.slane %v6542, 4
        %v6544 = vrot.slane %v6483, 5
        %v6545 = vsel %vm1000, %v6543, %v6544
        %v6546 = vrot.slane %v6544, 4
        %v6547 = vrot.slane %v6484, 5
        %v6548 = vsel %vm1000, %v6546, %v6547
        %v6549 = vrot.slane %v6485, 5
        %v6550 = vrot.slane %v6549, 4
        %v6551 = vrot.slane %v6486, 5
        %v6552 = vsel %vm1000, %v6550, %v6551
        %v6553 = vrot.slane %v6551, 4
        %v6554 = vrot.slane %v6487, 5
        %v6555 = vsel %vm1000, %v6553, %v6554
        %v6556 = vrot.slane %v6488, 5
        %v6557 = vrot.slane %v6556, 4
        %v6558 = vrot.slane %v6489, 5
        %v6559 = vsel %vm1000, %v6557, %v6558
        %v6560 = vrot.slane %v6558, 4
        %v6561 = vrot.slane %v6490, 5
        %v6562 = vsel %vm1000, %v6560, %v6561
        %v6563 = vrot.slane %v6491, 5
        %v6564 = vrot.slane %v6563, 4
        %v6565 = vrot.slane %v6492, 5
        %v6566 = vsel %vm1000, %v6564, %v6565
        %v6567 = vrot.slane %v6565, 4
        %v6568 = vrot.slane %v6493, 5
        %v6569 = vsel %vm1000, %v6567, %v6568
        %v6570 = vrot.slane %v6494, 5
        %v6571 = vrot.slane %v6570, 4
        %v6572 = vrot.slane %v6495, 5
        %v6573 = vsel %vm1000, %v6571, %v6572
        %v6574 = vrot.slane %v6572, 4
        %v6575 = vrot.slane %v6496, 5
        %v6576 = vsel %vm1000, %v6574, %v6575
        %v6577 = vld [vmem:[#allocation2] sm:$0xff]
        %v6578 = vld [vmem:[#allocation2 + $0x8] sm:$0xff]
        %v6579 = vld [vmem:[#allocation2 + $0x10] sm:$0xff]
        %v6580 = vld [vmem:[#allocation2 + $0x18] sm:$0xff]
        %v6581 = vld [vmem:[#allocation2 + $0x20] sm:$0xff]
        %v6582 = vld [vmem:[#allocation2 + $0x28] sm:$0xff]
        %v6583 = vld [vmem:[#allocation2 + $0x30] sm:$0xff]
        %v6584 = vld [vmem:[#allocation2 + $0x38] sm:$0xff]
        %v6585 = vld [vmem:[#allocation2 + $0x40] sm:$0xff]
        %v6586 = vld [vmem:[#allocation2 + $0x48] sm:$0xff]
        %v6587 = vld [vmem:[#allocation2 + $0x50] sm:$0xff]
        %v6588 = vld [vmem:[#allocation2 + $0x58] sm:$0xff]
        %v6589 = vld [vmem:[#allocation2 + $0x60] sm:$0xff]
        %v6590 = vld [vmem:[#allocation2 + $0x68] sm:$0xff]
        %v6591 = vld [vmem:[#allocation2 + $0x70] sm:$0xff]
        %v6592 = vld [vmem:[#allocation2 + $0x78] sm:$0xff]
        %s6593 = scalar_lea.vmem %s1, 544
        %v6594 = vld [vmem:[%s6593] sm:$0xf]
        %v6595 = vld [vmem:[%s6593 + $0x4] sm:$0xf]
        %v6596 = vld [vmem:[%s6593 + $0x8] sm:$0xf]
        %v6597 = vld [vmem:[%s6593 + $0xc] sm:$0xf]
        %v6598 = vld [vmem:[%s6593 + $0x10] sm:$0xf]
        %v6599 = vld [vmem:[%s6593 + $0x14] sm:$0xf]
        %v6600 = vld [vmem:[%s6593 + $0x18] sm:$0xf]
        %v6601 = vld [vmem:[%s6593 + $0x1c] sm:$0xf]
        %v6602 = vunpack.c.l.b16 %v6524
        %v6603 = vunpack.c.l.b16 %v6527
        %v6604 = vunpack.c.l.b16 %v6531
        %v6605 = vunpack.c.l.b16 %v6534
        %v6606 = vunpack.c.l.b16 %v6538
        %v6607 = vunpack.c.l.b16 %v6541
        %v6608 = vunpack.c.l.b16 %v6545
        %v6609 = vunpack.c.l.b16 %v6548
        %v6610 = vunpack.c.l.b16 %v6552
        %v6611 = vunpack.c.l.b16 %v6555
        %v6612 = vunpack.c.l.b16 %v6559
        %v6613 = vunpack.c.l.b16 %v6562
        %v6614 = vunpack.c.l.b16 %v6566
        %v6615 = vunpack.c.l.b16 %v6569
        %v6616 = vunpack.c.l.b16 %v6573
        %v6617 = vunpack.c.l.b16 %v6576
        %v6618 = vpack.c.b16 %v6603, %v6602
        %v6619 = vpack.c.b16 %v6605, %v6604
        %v6620 = vpack.c.b16 %v6607, %v6606
        %v6621 = vpack.c.b16 %v6609, %v6608
        %v6622 = vpack.c.b16 %v6611, %v6610
        %v6623 = vpack.c.b16 %v6613, %v6612
        %v6624 = vpack.c.b16 %v6615, %v6614
        %v6625 = vpack.c.b16 %v6617, %v6616
        %v6634 = vunpack.c.l.b16 %v6594
        %v6635 = vunpack.c.l.b16 %v6595
        %v6636 = vunpack.c.l.b16 %v6596
        %v6637 = vunpack.c.l.b16 %v6597
        %v6638 = vunpack.c.l.b16 %v6598
        %v6639 = vunpack.c.l.b16 %v6599
        %v6640 = vunpack.c.l.b16 %v6600
        %v6641 = vunpack.c.l.b16 %v6601
        %v6642 = vpack.c.b16 %v6635, %v6634
        %v6643 = vpack.c.b16 %v6637, %v6636
        %v6644 = vpack.c.b16 %v6639, %v6638
        %v6645 = vpack.c.b16 %v6641, %v6640
        %v6651 = vsel %vm351, %v6618, 0
        %v6654 = vsel %vm351, %v6619, 0
        %v6657 = vsel %vm351, %v6620, 0
        %v6660 = vsel %vm351, %v6621, 0
        %v6663 = vsel %vm351, %v6622, 0
        %v6666 = vsel %vm351, %v6623, 0
        %v6669 = vsel %vm351, %v6624, 0
        %v6672 = vsel %vm351, %v6625, 0
        %6674 = vmatprep.subr.bf16.mxu0 0
        %6675 = vmatpush1.bf16.msra.mxu0 0
        %6676 = vmatprep.subr.bf16.mxu0 0
        %6677 = vmatpush1.bf16.msra.mxu0 0
        %6678 = vmatprep.subr.bf16.mxu0 0
        %6679 = vmatpush1.bf16.msra.mxu0 0
        %6680 = vmatprep.subr.bf16.mxu0 0
        %6681 = vmatpush1.bf16.msra.mxu0 0
        %6682 = vmatprep.subr.bf16.mxu0 0
        %6683 = vmatpush1.bf16.msra.mxu0 %v6645
        %6684 = vmatprep.subr.bf16.mxu0 0
        %6685 = vmatpush1.bf16.msra.mxu0 %v6644
        %6686 = vmatprep.subr.bf16.mxu0 0
        %6687 = vmatpush1.bf16.msra.mxu0 %v6643
        %6688 = vmatprep.subr.bf16.mxu0 0
        %6689 = vmatpush1.bf16.msra.mxu0 %v6642
        %6690 = vmatprep.subr.bf16.mxu0 0
        %6691 = vmatpush2.bf16.msra.mxu0 0
        %6692 = vmatprep.subr.bf16.mxu0 0
        %6693 = vmatpush2.bf16.msra.mxu0 0
        %6694 = vmatprep.subr.bf16.mxu0 0
        %6695 = vmatpush2.bf16.msra.mxu0 0
        %6696 = vmatprep.subr.bf16.mxu0 0
        %6697 = vmatpush2.bf16.msra.mxu0 0
        %6698 = vmatprep.subr.bf16.mxu0 0
        %6699 = vmatpush2.bf16.msra.mxu0 0
        %6700 = vmatprep.subr.bf16.mxu0 0
        %6701 = vmatpush2.bf16.msra.mxu0 0
        %6702 = vmatprep.subr.bf16.mxu0 0
        %6703 = vmatpush2.bf16.msra.mxu0 0
        %6704 = vmatprep.subr.bf16.mxu0 0
        %6705 = vmatpush2.bf16.msra.mxu0 0
        %6706 = vmatprep.mubr.bf16.mxu0 0
        %6707 = vmatmul.mubr.bf16.gmra.mxu0 %v6651
        %v6708 = vpop.f32.mrf.mxu0
        %v6709 = vadd.f32 0.0, %v6708
        %v6710 = vpop.f32.mrf.mxu0
        %v6711 = vpop.f32.mrf.mxu0
        %v6712 = vadd.f32 0.0, %v6711
        %v6713 = vpop.f32.mrf.mxu0
        %6714 = vmatprep.mubr.bf16.mxu0 0
        %6715 = vmatmul.mubr.bf16.gmra.mxu0 %v6654
        %v6716 = vpop.f32.mrf.mxu0
        %v6717 = vadd.f32 0.0, %v6716
        %v6718 = vpop.f32.mrf.mxu0
        %v6719 = vpop.f32.mrf.mxu0
        %v6720 = vadd.f32 0.0, %v6719
        %v6721 = vpop.f32.mrf.mxu0
        %6722 = vmatprep.mubr.bf16.mxu0 0
        %6723 = vmatmul.mubr.bf16.gmra.mxu0 %v6657
        %v6724 = vpop.f32.mrf.mxu0
        %v6725 = vadd.f32 0.0, %v6724
        %v6726 = vpop.f32.mrf.mxu0
        %v6727 = vpop.f32.mrf.mxu0
        %v6728 = vadd.f32 0.0, %v6727
        %v6729 = vpop.f32.mrf.mxu0
        %6730 = vmatprep.mubr.bf16.mxu0 0
        %6731 = vmatmul.mubr.bf16.gmra.mxu0 %v6660
        %v6732 = vpop.f32.mrf.mxu0
        %v6733 = vadd.f32 0.0, %v6732
        %v6734 = vpop.f32.mrf.mxu0
        %v6735 = vpop.f32.mrf.mxu0
        %v6736 = vadd.f32 0.0, %v6735
        %v6737 = vpop.f32.mrf.mxu0
        %6738 = vmatprep.mubr.bf16.mxu0 0
        %6739 = vmatmul.mubr.bf16.gmra.mxu0 %v6663
        %v6740 = vpop.f32.mrf.mxu0
        %v6741 = vadd.f32 0.0, %v6740
        %v6742 = vpop.f32.mrf.mxu0
        %v6743 = vpop.f32.mrf.mxu0
        %v6744 = vadd.f32 0.0, %v6743
        %v6745 = vpop.f32.mrf.mxu0
        %6746 = vmatprep.mubr.bf16.mxu0 0
        %6747 = vmatmul.mubr.bf16.gmra.mxu0 %v6666
        %v6748 = vpop.f32.mrf.mxu0
        %v6749 = vadd.f32 0.0, %v6748
        %v6750 = vpop.f32.mrf.mxu0
        %v6751 = vpop.f32.mrf.mxu0
        %v6752 = vadd.f32 0.0, %v6751
        %v6753 = vpop.f32.mrf.mxu0
        %6754 = vmatprep.mubr.bf16.mxu0 0
        %6755 = vmatmul.mubr.bf16.gmra.mxu0 %v6669
        %v6756 = vpop.f32.mrf.mxu0
        %v6757 = vadd.f32 0.0, %v6756
        %v6758 = vpop.f32.mrf.mxu0
        %v6759 = vpop.f32.mrf.mxu0
        %v6760 = vadd.f32 0.0, %v6759
        %v6761 = vpop.f32.mrf.mxu0
        %6762 = vmatprep.mubr.bf16.mxu0 0
        %6763 = vmatmul.mubr.bf16.gmra.mxu0 %v6672
        %v6764 = vpop.f32.mrf.mxu0
        %v6765 = vadd.f32 0.0, %v6764
        %v6766 = vpop.f32.mrf.mxu0
        %v6767 = vpop.f32.mrf.mxu0
        %v6768 = vadd.f32 0.0, %v6767
        %v6769 = vpop.f32.mrf.mxu0
        %6770 = vdwg.mxu0
        %v6771 = vadd.f32 %v6577, %v6709
        %v6772 = vadd.f32 %v6578, %v6712
        %v6773 = vadd.f32 %v6579, %v6717
        %v6774 = vadd.f32 %v6580, %v6720
        %v6775 = vadd.f32 %v6581, %v6725
        %v6776 = vadd.f32 %v6582, %v6728
        %v6777 = vadd.f32 %v6583, %v6733
        %v6778 = vadd.f32 %v6584, %v6736
        %v6779 = vadd.f32 %v6585, %v6741
        %v6780 = vadd.f32 %v6586, %v6744
        %v6781 = vadd.f32 %v6587, %v6749
        %v6782 = vadd.f32 %v6588, %v6752
        %v6783 = vadd.f32 %v6589, %v6757
        %v6784 = vadd.f32 %v6590, %v6760
        %v6785 = vadd.f32 %v6591, %v6765
        %v6786 = vadd.f32 %v6592, %v6768
        %6787 = vst [vmem:[#allocation2] sm:$0xff] %v6771
        %6788 = vst [vmem:[#allocation2 + $0x8] sm:$0xff] %v6772
        %6789 = vst [vmem:[#allocation2 + $0x10] sm:$0xff] %v6773
        %6790 = vst [vmem:[#allocation2 + $0x18] sm:$0xff] %v6774
        %6791 = vst [vmem:[#allocation2 + $0x20] sm:$0xff] %v6775
        %6792 = vst [vmem:[#allocation2 + $0x28] sm:$0xff] %v6776
        %6793 = vst [vmem:[#allocation2 + $0x30] sm:$0xff] %v6777
        %6794 = vst [vmem:[#allocation2 + $0x38] sm:$0xff] %v6778
        %6795 = vst [vmem:[#allocation2 + $0x40] sm:$0xff] %v6779
        %6796 = vst [vmem:[#allocation2 + $0x48] sm:$0xff] %v6780
        %6797 = vst [vmem:[#allocation2 + $0x50] sm:$0xff] %v6781
        %6798 = vst [vmem:[#allocation2 + $0x58] sm:$0xff] %v6782
        %6799 = vst [vmem:[#allocation2 + $0x60] sm:$0xff] %v6783
        %6800 = vst [vmem:[#allocation2 + $0x68] sm:$0xff] %v6784
        %6801 = vst [vmem:[#allocation2 + $0x70] sm:$0xff] %v6785
        %6802 = vst [vmem:[#allocation2 + $0x78] sm:$0xff] %v6786
        %v6803 = vld [vmem:[%s5772] sm:$0xe]
        %v6804 = vld [vmem:[%s5772 + $0x4] sm:$0xf]
        %v6805 = vld [vmem:[%s5772 + $0x8] sm:$0x3]
        %v6806 = vld [vmem:[%s5772 + $0xc] sm:$0xe]
        %v6807 = vld [vmem:[%s5772 + $0x10] sm:$0xf]
        %v6808 = vld [vmem:[%s5772 + $0x14] sm:$0x3]
        %v6809 = vld [vmem:[%s5772 + $0x18] sm:$0xe]
        %v6810 = vld [vmem:[%s5772 + $0x1c] sm:$0xf]
        %v6811 = vld [vmem:[%s5772 + $0x20] sm:$0x3]
        %v6812 = vld [vmem:[%s5772 + $0x24] sm:$0xe]
        %v6813 = vld [vmem:[%s5772 + $0x28] sm:$0xf]
        %v6814 = vld [vmem:[%s5772 + $0x2c] sm:$0x3]
        %v6815 = vld [vmem:[%s5772 + $0x30] sm:$0xe]
        %v6816 = vld [vmem:[%s5772 + $0x34] sm:$0xf]
        %v6817 = vld [vmem:[%s5772 + $0x38] sm:$0x3]
        %v6818 = vld [vmem:[%s5772 + $0x3c] sm:$0xe]
        %v6819 = vld [vmem:[%s5772 + $0x40] sm:$0xf]
        %v6820 = vld [vmem:[%s5772 + $0x44] sm:$0x3]
        %v6821 = vld [vmem:[%s5772 + $0x48] sm:$0xe]
        %v6822 = vld [vmem:[%s5772 + $0x4c] sm:$0xf]
        %v6823 = vld [vmem:[%s5772 + $0x50] sm:$0x3]
        %v6824 = vld [vmem:[%s5772 + $0x54] sm:$0xe]
        %v6825 = vld [vmem:[%s5772 + $0x58] sm:$0xf]
        %v6826 = vld [vmem:[%s5772 + $0x5c] sm:$0x3]
        %v6828 = vshrl.u32 %v6803, 16
        %v6830 = vrot.slane %v6828, 5
        %v6831 = vshll.u32 %v6803, 16
        %v6833 = vrot.slane %v6831, 6
        %v6834 = vor.u32 %v6830, %v6833
        %v6835 = vrot.slane %v6834, 4
        %v6837 = vshrl.u32 %v6804, 16
        %v6839 = vrot.slane %v6837, 5
        %v6840 = vshll.u32 %v6804, 16
        %v6842 = vrot.slane %v6840, 6
        %v6843 = vor.u32 %v6839, %v6842
        %v6844 = vsel %vm1309, %v6835, %v6843
        %v6845 = vrot.slane %v6843, 4
        %v6847 = vshrl.u32 %v6805, 16
        %v6849 = vrot.slane %v6847, 5
        %v6850 = vshll.u32 %v6805, 16
        %v6852 = vrot.slane %v6850, 6
        %v6853 = vor.u32 %v6849, %v6852
        %v6854 = vsel %vm1309, %v6845, %v6853
        %v6856 = vshrl.u32 %v6806, 16
        %v6858 = vrot.slane %v6856, 5
        %v6859 = vshll.u32 %v6806, 16
        %v6861 = vrot.slane %v6859, 6
        %v6862 = vor.u32 %v6858, %v6861
        %v6863 = vrot.slane %v6862, 4
        %v6865 = vshrl.u32 %v6807, 16
        %v6867 = vrot.slane %v6865, 5
        %v6868 = vshll.u32 %v6807, 16
        %v6870 = vrot.slane %v6868, 6
        %v6871 = vor.u32 %v6867, %v6870
        %v6872 = vsel %vm1309, %v6863, %v6871
        %v6873 = vrot.slane %v6871, 4
        %v6875 = vshrl.u32 %v6808, 16
        %v6877 = vrot.slane %v6875, 5
        %v6878 = vshll.u32 %v6808, 16
        %v6880 = vrot.slane %v6878, 6
        %v6881 = vor.u32 %v6877, %v6880
        %v6882 = vsel %vm1309, %v6873, %v6881
        %v6884 = vshrl.u32 %v6809, 16
        %v6886 = vrot.slane %v6884, 5
        %v6887 = vshll.u32 %v6809, 16
        %v6889 = vrot.slane %v6887, 6
        %v6890 = vor.u32 %v6886, %v6889
        %v6891 = vrot.slane %v6890, 4
        %v6893 = vshrl.u32 %v6810, 16
        %v6895 = vrot.slane %v6893, 5
        %v6896 = vshll.u32 %v6810, 16
        %v6898 = vrot.slane %v6896, 6
        %v6899 = vor.u32 %v6895, %v6898
        %v6900 = vsel %vm1309, %v6891, %v6899
        %v6901 = vrot.slane %v6899, 4
        %v6903 = vshrl.u32 %v6811, 16
        %v6905 = vrot.slane %v6903, 5
        %v6906 = vshll.u32 %v6811, 16
        %v6908 = vrot.slane %v6906, 6
        %v6909 = vor.u32 %v6905, %v6908
        %v6910 = vsel %vm1309, %v6901, %v6909
        %v6912 = vshrl.u32 %v6812, 16
        %v6914 = vrot.slane %v6912, 5
        %v6915 = vshll.u32 %v6812, 16
        %v6917 = vrot.slane %v6915, 6
        %v6918 = vor.u32 %v6914, %v6917
        %v6919 = vrot.slane %v6918, 4
        %v6921 = vshrl.u32 %v6813, 16
        %v6923 = vrot.slane %v6921, 5
        %v6924 = vshll.u32 %v6813, 16
        %v6926 = vrot.slane %v6924, 6
        %v6927 = vor.u32 %v6923, %v6926
        %v6928 = vsel %vm1309, %v6919, %v6927
        %v6929 = vrot.slane %v6927, 4
        %v6931 = vshrl.u32 %v6814, 16
        %v6933 = vrot.slane %v6931, 5
        %v6934 = vshll.u32 %v6814, 16
        %v6936 = vrot.slane %v6934, 6
        %v6937 = vor.u32 %v6933, %v6936
        %v6938 = vsel %vm1309, %v6929, %v6937
        %v6940 = vshrl.u32 %v6815, 16
        %v6942 = vrot.slane %v6940, 5
        %v6943 = vshll.u32 %v6815, 16
        %v6945 = vrot.slane %v6943, 6
        %v6946 = vor.u32 %v6942, %v6945
        %v6947 = vrot.slane %v6946, 4
        %v6949 = vshrl.u32 %v6816, 16
        %v6951 = vrot.slane %v6949, 5
        %v6952 = vshll.u32 %v6816, 16
        %v6954 = vrot.slane %v6952, 6
        %v6955 = vor.u32 %v6951, %v6954
        %v6956 = vsel %vm1309, %v6947, %v6955
        %v6957 = vrot.slane %v6955, 4
        %v6959 = vshrl.u32 %v6817, 16
        %v6961 = vrot.slane %v6959, 5
        %v6962 = vshll.u32 %v6817, 16
        %v6964 = vrot.slane %v6962, 6
        %v6965 = vor.u32 %v6961, %v6964
        %v6966 = vsel %vm1309, %v6957, %v6965
        %v6968 = vshrl.u32 %v6818, 16
        %v6970 = vrot.slane %v6968, 5
        %v6971 = vshll.u32 %v6818, 16
        %v6973 = vrot.slane %v6971, 6
        %v6974 = vor.u32 %v6970, %v6973
        %v6975 = vrot.slane %v6974, 4
        %v6977 = vshrl.u32 %v6819, 16
        %v6979 = vrot.slane %v6977, 5
        %v6980 = vshll.u32 %v6819, 16
        %v6982 = vrot.slane %v6980, 6
        %v6983 = vor.u32 %v6979, %v6982
        %v6984 = vsel %vm1309, %v6975, %v6983
        %v6985 = vrot.slane %v6983, 4
        %v6987 = vshrl.u32 %v6820, 16
        %v6989 = vrot.slane %v6987, 5
        %v6990 = vshll.u32 %v6820, 16
        %v6992 = vrot.slane %v6990, 6
        %v6993 = vor.u32 %v6989, %v6992
        %v6994 = vsel %vm1309, %v6985, %v6993
        %v6996 = vshrl.u32 %v6821, 16
        %v6998 = vrot.slane %v6996, 5
        %v6999 = vshll.u32 %v6821, 16
        %v7001 = vrot.slane %v6999, 6
        %v7002 = vor.u32 %v6998, %v7001
        %v7003 = vrot.slane %v7002, 4
        %v7005 = vshrl.u32 %v6822, 16
        %v7007 = vrot.slane %v7005, 5
        %v7008 = vshll.u32 %v6822, 16
        %v7010 = vrot.slane %v7008, 6
        %v7011 = vor.u32 %v7007, %v7010
        %v7012 = vsel %vm1309, %v7003, %v7011
        %v7013 = vrot.slane %v7011, 4
        %v7015 = vshrl.u32 %v6823, 16
        %v7017 = vrot.slane %v7015, 5
        %v7018 = vshll.u32 %v6823, 16
        %v7020 = vrot.slane %v7018, 6
        %v7021 = vor.u32 %v7017, %v7020
        %v7022 = vsel %vm1309, %v7013, %v7021
        %v7024 = vshrl.u32 %v6824, 16
        %v7026 = vrot.slane %v7024, 5
        %v7027 = vshll.u32 %v6824, 16
        %v7029 = vrot.slane %v7027, 6
        %v7030 = vor.u32 %v7026, %v7029
        %v7031 = vrot.slane %v7030, 4
        %v7033 = vshrl.u32 %v6825, 16
        %v7035 = vrot.slane %v7033, 5
        %v7036 = vshll.u32 %v6825, 16
        %v7038 = vrot.slane %v7036, 6
        %v7039 = vor.u32 %v7035, %v7038
        %v7040 = vsel %vm1309, %v7031, %v7039
        %v7041 = vrot.slane %v7039, 4
        %v7043 = vshrl.u32 %v6826, 16
        %v7045 = vrot.slane %v7043, 5
        %v7046 = vshll.u32 %v6826, 16
        %v7048 = vrot.slane %v7046, 6
        %v7049 = vor.u32 %v7045, %v7048
        %v7050 = vsel %vm1309, %v7041, %v7049
        %v7051 = vld [vmem:[#allocation2] sm:$0xff]
        %v7052 = vld [vmem:[#allocation2 + $0x8] sm:$0xff]
        %v7053 = vld [vmem:[#allocation2 + $0x10] sm:$0xff]
        %v7054 = vld [vmem:[#allocation2 + $0x18] sm:$0xff]
        %v7055 = vld [vmem:[#allocation2 + $0x20] sm:$0xff]
        %v7056 = vld [vmem:[#allocation2 + $0x28] sm:$0xff]
        %v7057 = vld [vmem:[#allocation2 + $0x30] sm:$0xff]
        %v7058 = vld [vmem:[#allocation2 + $0x38] sm:$0xff]
        %v7059 = vld [vmem:[#allocation2 + $0x40] sm:$0xff]
        %v7060 = vld [vmem:[#allocation2 + $0x48] sm:$0xff]
        %v7061 = vld [vmem:[#allocation2 + $0x50] sm:$0xff]
        %v7062 = vld [vmem:[#allocation2 + $0x58] sm:$0xff]
        %v7063 = vld [vmem:[#allocation2 + $0x60] sm:$0xff]
        %v7064 = vld [vmem:[#allocation2 + $0x68] sm:$0xff]
        %v7065 = vld [vmem:[#allocation2 + $0x70] sm:$0xff]
        %v7066 = vld [vmem:[#allocation2 + $0x78] sm:$0xff]
        %s7067 = scalar_lea.vmem %s1, 576
        %v7068 = vld [vmem:[%s7067] sm:$0xf]
        %v7069 = vld [vmem:[%s7067 + $0x4] sm:$0xf]
        %v7070 = vld [vmem:[%s7067 + $0x8] sm:$0xf]
        %v7071 = vld [vmem:[%s7067 + $0xc] sm:$0xf]
        %v7072 = vld [vmem:[%s7067 + $0x10] sm:$0xf]
        %v7073 = vld [vmem:[%s7067 + $0x14] sm:$0xf]
        %v7074 = vld [vmem:[%s7067 + $0x18] sm:$0xf]
        %v7075 = vld [vmem:[%s7067 + $0x1c] sm:$0xf]
        %v7076 = vunpack.c.l.b16 %v6844
        %v7077 = vunpack.c.l.b16 %v6854
        %v7078 = vunpack.c.l.b16 %v6872
        %v7079 = vunpack.c.l.b16 %v6882
        %v7080 = vunpack.c.l.b16 %v6900
        %v7081 = vunpack.c.l.b16 %v6910
        %v7082 = vunpack.c.l.b16 %v6928
        %v7083 = vunpack.c.l.b16 %v6938
        %v7084 = vunpack.c.l.b16 %v6956
        %v7085 = vunpack.c.l.b16 %v6966
        %v7086 = vunpack.c.l.b16 %v6984
        %v7087 = vunpack.c.l.b16 %v6994
        %v7088 = vunpack.c.l.b16 %v7012
        %v7089 = vunpack.c.l.b16 %v7022
        %v7090 = vunpack.c.l.b16 %v7040
        %v7091 = vunpack.c.l.b16 %v7050
        %v7092 = vpack.c.b16 %v7077, %v7076
        %v7093 = vpack.c.b16 %v7079, %v7078
        %v7094 = vpack.c.b16 %v7081, %v7080
        %v7095 = vpack.c.b16 %v7083, %v7082
        %v7096 = vpack.c.b16 %v7085, %v7084
        %v7097 = vpack.c.b16 %v7087, %v7086
        %v7098 = vpack.c.b16 %v7089, %v7088
        %v7099 = vpack.c.b16 %v7091, %v7090
        %v7108 = vunpack.c.l.b16 %v7068
        %v7109 = vunpack.c.l.b16 %v7069
        %v7110 = vunpack.c.l.b16 %v7070
        %v7111 = vunpack.c.l.b16 %v7071
        %v7112 = vunpack.c.l.b16 %v7072
        %v7113 = vunpack.c.l.b16 %v7073
        %v7114 = vunpack.c.l.b16 %v7074
        %v7115 = vunpack.c.l.b16 %v7075
        %v7116 = vpack.c.b16 %v7109, %v7108
        %v7117 = vpack.c.b16 %v7111, %v7110
        %v7118 = vpack.c.b16 %v7113, %v7112
        %v7119 = vpack.c.b16 %v7115, %v7114
        %v7125 = vsel %vm351, %v7092, 0
        %v7128 = vsel %vm351, %v7093, 0
        %v7131 = vsel %vm351, %v7094, 0
        %v7134 = vsel %vm351, %v7095, 0
        %v7137 = vsel %vm351, %v7096, 0
        %v7140 = vsel %vm351, %v7097, 0
        %v7143 = vsel %vm351, %v7098, 0
        %v7146 = vsel %vm351, %v7099, 0
        %7148 = vmatprep.subr.bf16.mxu0 0
        %7149 = vmatpush1.bf16.msra.mxu0 0
        %7150 = vmatprep.subr.bf16.mxu0 0
        %7151 = vmatpush1.bf16.msra.mxu0 0
        %7152 = vmatprep.subr.bf16.mxu0 0
        %7153 = vmatpush1.bf16.msra.mxu0 0
        %7154 = vmatprep.subr.bf16.mxu0 0
        %7155 = vmatpush1.bf16.msra.mxu0 0
        %7156 = vmatprep.subr.bf16.mxu0 0
        %7157 = vmatpush1.bf16.msra.mxu0 %v7119
        %7158 = vmatprep.subr.bf16.mxu0 0
        %7159 = vmatpush1.bf16.msra.mxu0 %v7118
        %7160 = vmatprep.subr.bf16.mxu0 0
        %7161 = vmatpush1.bf16.msra.mxu0 %v7117
        %7162 = vmatprep.subr.bf16.mxu0 0
        %7163 = vmatpush1.bf16.msra.mxu0 %v7116
        %7164 = vmatprep.subr.bf16.mxu0 0
        %7165 = vmatpush2.bf16.msra.mxu0 0
        %7166 = vmatprep.subr.bf16.mxu0 0
        %7167 = vmatpush2.bf16.msra.mxu0 0
        %7168 = vmatprep.subr.bf16.mxu0 0
        %7169 = vmatpush2.bf16.msra.mxu0 0
        %7170 = vmatprep.subr.bf16.mxu0 0
        %7171 = vmatpush2.bf16.msra.mxu0 0
        %7172 = vmatprep.subr.bf16.mxu0 0
        %7173 = vmatpush2.bf16.msra.mxu0 0
        %7174 = vmatprep.subr.bf16.mxu0 0
        %7175 = vmatpush2.bf16.msra.mxu0 0
        %7176 = vmatprep.subr.bf16.mxu0 0
        %7177 = vmatpush2.bf16.msra.mxu0 0
        %7178 = vmatprep.subr.bf16.mxu0 0
        %7179 = vmatpush2.bf16.msra.mxu0 0
        %7180 = vmatprep.mubr.bf16.mxu0 0
        %7181 = vmatmul.mubr.bf16.gmra.mxu0 %v7125
        %v7182 = vpop.f32.mrf.mxu0
        %v7183 = vadd.f32 0.0, %v7182
        %v7184 = vpop.f32.mrf.mxu0
        %v7185 = vpop.f32.mrf.mxu0
        %v7186 = vadd.f32 0.0, %v7185
        %v7187 = vpop.f32.mrf.mxu0
        %7188 = vmatprep.mubr.bf16.mxu0 0
        %7189 = vmatmul.mubr.bf16.gmra.mxu0 %v7128
        %v7190 = vpop.f32.mrf.mxu0
        %v7191 = vadd.f32 0.0, %v7190
        %v7192 = vpop.f32.mrf.mxu0
        %v7193 = vpop.f32.mrf.mxu0
        %v7194 = vadd.f32 0.0, %v7193
        %v7195 = vpop.f32.mrf.mxu0
        %7196 = vmatprep.mubr.bf16.mxu0 0
        %7197 = vmatmul.mubr.bf16.gmra.mxu0 %v7131
        %v7198 = vpop.f32.mrf.mxu0
        %v7199 = vadd.f32 0.0, %v7198
        %v7200 = vpop.f32.mrf.mxu0
        %v7201 = vpop.f32.mrf.mxu0
        %v7202 = vadd.f32 0.0, %v7201
        %v7203 = vpop.f32.mrf.mxu0
        %7204 = vmatprep.mubr.bf16.mxu0 0
        %7205 = vmatmul.mubr.bf16.gmra.mxu0 %v7134
        %v7206 = vpop.f32.mrf.mxu0
        %v7207 = vadd.f32 0.0, %v7206
        %v7208 = vpop.f32.mrf.mxu0
        %v7209 = vpop.f32.mrf.mxu0
        %v7210 = vadd.f32 0.0, %v7209
        %v7211 = vpop.f32.mrf.mxu0
        %7212 = vmatprep.mubr.bf16.mxu0 0
        %7213 = vmatmul.mubr.bf16.gmra.mxu0 %v7137
        %v7214 = vpop.f32.mrf.mxu0
        %v7215 = vadd.f32 0.0, %v7214
        %v7216 = vpop.f32.mrf.mxu0
        %v7217 = vpop.f32.mrf.mxu0
        %v7218 = vadd.f32 0.0, %v7217
        %v7219 = vpop.f32.mrf.mxu0
        %7220 = vmatprep.mubr.bf16.mxu0 0
        %7221 = vmatmul.mubr.bf16.gmra.mxu0 %v7140
        %v7222 = vpop.f32.mrf.mxu0
        %v7223 = vadd.f32 0.0, %v7222
        %v7224 = vpop.f32.mrf.mxu0
        %v7225 = vpop.f32.mrf.mxu0
        %v7226 = vadd.f32 0.0, %v7225
        %v7227 = vpop.f32.mrf.mxu0
        %7228 = vmatprep.mubr.bf16.mxu0 0
        %7229 = vmatmul.mubr.bf16.gmra.mxu0 %v7143
        %v7230 = vpop.f32.mrf.mxu0
        %v7231 = vadd.f32 0.0, %v7230
        %v7232 = vpop.f32.mrf.mxu0
        %v7233 = vpop.f32.mrf.mxu0
        %v7234 = vadd.f32 0.0, %v7233
        %v7235 = vpop.f32.mrf.mxu0
        %7236 = vmatprep.mubr.bf16.mxu0 0
        %7237 = vmatmul.mubr.bf16.gmra.mxu0 %v7146
        %v7238 = vpop.f32.mrf.mxu0
        %v7239 = vadd.f32 0.0, %v7238
        %v7240 = vpop.f32.mrf.mxu0
        %v7241 = vpop.f32.mrf.mxu0
        %v7242 = vadd.f32 0.0, %v7241
        %v7243 = vpop.f32.mrf.mxu0
        %7244 = vdwg.mxu0
        %v7245 = vadd.f32 %v7051, %v7183
        %v7246 = vadd.f32 %v7052, %v7186
        %v7247 = vadd.f32 %v7053, %v7191
        %v7248 = vadd.f32 %v7054, %v7194
        %v7249 = vadd.f32 %v7055, %v7199
        %v7250 = vadd.f32 %v7056, %v7202
        %v7251 = vadd.f32 %v7057, %v7207
        %v7252 = vadd.f32 %v7058, %v7210
        %v7253 = vadd.f32 %v7059, %v7215
        %v7254 = vadd.f32 %v7060, %v7218
        %v7255 = vadd.f32 %v7061, %v7223
        %v7256 = vadd.f32 %v7062, %v7226
        %v7257 = vadd.f32 %v7063, %v7231
        %v7258 = vadd.f32 %v7064, %v7234
        %v7259 = vadd.f32 %v7065, %v7239
        %v7260 = vadd.f32 %v7066, %v7242
        %7261 = vst [vmem:[#allocation2] sm:$0xff] %v7245
        %7262 = vst [vmem:[#allocation2 + $0x8] sm:$0xff] %v7246
        %7263 = vst [vmem:[#allocation2 + $0x10] sm:$0xff] %v7247
        %7264 = vst [vmem:[#allocation2 + $0x18] sm:$0xff] %v7248
        %7265 = vst [vmem:[#allocation2 + $0x20] sm:$0xff] %v7249
        %7266 = vst [vmem:[#allocation2 + $0x28] sm:$0xff] %v7250
        %7267 = vst [vmem:[#allocation2 + $0x30] sm:$0xff] %v7251
        %7268 = vst [vmem:[#allocation2 + $0x38] sm:$0xff] %v7252
        %7269 = vst [vmem:[#allocation2 + $0x40] sm:$0xff] %v7253
        %7270 = vst [vmem:[#allocation2 + $0x48] sm:$0xff] %v7254
        %7271 = vst [vmem:[#allocation2 + $0x50] sm:$0xff] %v7255
        %7272 = vst [vmem:[#allocation2 + $0x58] sm:$0xff] %v7256
        %7273 = vst [vmem:[#allocation2 + $0x60] sm:$0xff] %v7257
        %7274 = vst [vmem:[#allocation2 + $0x68] sm:$0xff] %v7258
        %7275 = vst [vmem:[#allocation2 + $0x70] sm:$0xff] %v7259
        %7276 = vst [vmem:[#allocation2 + $0x78] sm:$0xff] %v7260
        %v7277 = vld [vmem:[%s5772] sm:$0xc]
        %v7278 = vld [vmem:[%s5772 + $0x4] sm:$0xf]
        %v7279 = vld [vmem:[%s5772 + $0x8] sm:$0x3]
        %v7280 = vld [vmem:[%s5772 + $0xc] sm:$0xc]
        %v7281 = vld [vmem:[%s5772 + $0x10] sm:$0xf]
        %v7282 = vld [vmem:[%s5772 + $0x14] sm:$0x3]
        %v7283 = vld [vmem:[%s5772 + $0x18] sm:$0xc]
        %v7284 = vld [vmem:[%s5772 + $0x1c] sm:$0xf]
        %v7285 = vld [vmem:[%s5772 + $0x20] sm:$0x3]
        %v7286 = vld [vmem:[%s5772 + $0x24] sm:$0xc]
        %v7287 = vld [vmem:[%s5772 + $0x28] sm:$0xf]
        %v7288 = vld [vmem:[%s5772 + $0x2c] sm:$0x3]
        %v7289 = vld [vmem:[%s5772 + $0x30] sm:$0xc]
        %v7290 = vld [vmem:[%s5772 + $0x34] sm:$0xf]
        %v7291 = vld [vmem:[%s5772 + $0x38] sm:$0x3]
        %v7292 = vld [vmem:[%s5772 + $0x3c] sm:$0xc]
        %v7293 = vld [vmem:[%s5772 + $0x40] sm:$0xf]
        %v7294 = vld [vmem:[%s5772 + $0x44] sm:$0x3]
        %v7295 = vld [vmem:[%s5772 + $0x48] sm:$0xc]
        %v7296 = vld [vmem:[%s5772 + $0x4c] sm:$0xf]
        %v7297 = vld [vmem:[%s5772 + $0x50] sm:$0x3]
        %v7298 = vld [vmem:[%s5772 + $0x54] sm:$0xc]
        %v7299 = vld [vmem:[%s5772 + $0x58] sm:$0xf]
        %v7300 = vld [vmem:[%s5772 + $0x5c] sm:$0x3]
        %v7325 = vrot.slane %v7277, 6
        %v7326 = vrot.slane %v7325, 4
        %v7327 = vrot.slane %v7278, 6
        %v7328 = vsel %vm1810, %v7326, %v7327
        %v7329 = vrot.slane %v7327, 4
        %v7330 = vrot.slane %v7279, 6
        %v7331 = vsel %vm1810, %v7329, %v7330
        %v7332 = vrot.slane %v7280, 6
        %v7333 = vrot.slane %v7332, 4
        %v7334 = vrot.slane %v7281, 6
        %v7335 = vsel %vm1810, %v7333, %v7334
        %v7336 = vrot.slane %v7334, 4
        %v7337 = vrot.slane %v7282, 6
        %v7338 = vsel %vm1810, %v7336, %v7337
        %v7339 = vrot.slane %v7283, 6
        %v7340 = vrot.slane %v7339, 4
        %v7341 = vrot.slane %v7284, 6
        %v7342 = vsel %vm1810, %v7340, %v7341
        %v7343 = vrot.slane %v7341, 4
        %v7344 = vrot.slane %v7285, 6
        %v7345 = vsel %vm1810, %v7343, %v7344
        %v7346 = vrot.slane %v7286, 6
        %v7347 = vrot.slane %v7346, 4
        %v7348 = vrot.slane %v7287, 6
        %v7349 = vsel %vm1810, %v7347, %v7348
        %v7350 = vrot.slane %v7348, 4
        %v7351 = vrot.slane %v7288, 6
        %v7352 = vsel %vm1810, %v7350, %v7351
        %v7353 = vrot.slane %v7289, 6
        %v7354 = vrot.slane %v7353, 4
        %v7355 = vrot.slane %v7290, 6
        %v7356 = vsel %vm1810, %v7354, %v7355
        %v7357 = vrot.slane %v7355, 4
        %v7358 = vrot.slane %v7291, 6
        %v7359 = vsel %vm1810, %v7357, %v7358
        %v7360 = vrot.slane %v7292, 6
        %v7361 = vrot.slane %v7360, 4
        %v7362 = vrot.slane %v7293, 6
        %v7363 = vsel %vm1810, %v7361, %v7362
        %v7364 = vrot.slane %v7362, 4
        %v7365 = vrot.slane %v7294, 6
        %v7366 = vsel %vm1810, %v7364, %v7365
        %v7367 = vrot.slane %v7295, 6
        %v7368 = vrot.slane %v7367, 4
        %v7369 = vrot.slane %v7296, 6
        %v7370 = vsel %vm1810, %v7368, %v7369
        %v7371 = vrot.slane %v7369, 4
        %v7372 = vrot.slane %v7297, 6
        %v7373 = vsel %vm1810, %v7371, %v7372
        %v7374 = vrot.slane %v7298, 6
        %v7375 = vrot.slane %v7374, 4
        %v7376 = vrot.slane %v7299, 6
        %v7377 = vsel %vm1810, %v7375, %v7376
        %v7378 = vrot.slane %v7376, 4
        %v7379 = vrot.slane %v7300, 6
        %v7380 = vsel %vm1810, %v7378, %v7379
        %v7381 = vld [vmem:[#allocation2] sm:$0xff]
        %v7382 = vld [vmem:[#allocation2 + $0x8] sm:$0xff]
        %v7383 = vld [vmem:[#allocation2 + $0x10] sm:$0xff]
        %v7384 = vld [vmem:[#allocation2 + $0x18] sm:$0xff]
        %v7385 = vld [vmem:[#allocation2 + $0x20] sm:$0xff]
        %v7386 = vld [vmem:[#allocation2 + $0x28] sm:$0xff]
        %v7387 = vld [vmem:[#allocation2 + $0x30] sm:$0xff]
        %v7388 = vld [vmem:[#allocation2 + $0x38] sm:$0xff]
        %v7389 = vld [vmem:[#allocation2 + $0x40] sm:$0xff]
        %v7390 = vld [vmem:[#allocation2 + $0x48] sm:$0xff]
        %v7391 = vld [vmem:[#allocation2 + $0x50] sm:$0xff]
        %v7392 = vld [vmem:[#allocation2 + $0x58] sm:$0xff]
        %v7393 = vld [vmem:[#allocation2 + $0x60] sm:$0xff]
        %v7394 = vld [vmem:[#allocation2 + $0x68] sm:$0xff]
        %v7395 = vld [vmem:[#allocation2 + $0x70] sm:$0xff]
        %v7396 = vld [vmem:[#allocation2 + $0x78] sm:$0xff]
        %s7397 = scalar_lea.vmem %s1, 608
        %v7398 = vld [vmem:[%s7397] sm:$0xf]
        %v7399 = vld [vmem:[%s7397 + $0x4] sm:$0xf]
        %v7400 = vld [vmem:[%s7397 + $0x8] sm:$0xf]
        %v7401 = vld [vmem:[%s7397 + $0xc] sm:$0xf]
        %v7402 = vld [vmem:[%s7397 + $0x10] sm:$0xf]
        %v7403 = vld [vmem:[%s7397 + $0x14] sm:$0xf]
        %v7404 = vld [vmem:[%s7397 + $0x18] sm:$0xf]
        %v7405 = vld [vmem:[%s7397 + $0x1c] sm:$0xf]
        %v7406 = vunpack.c.l.b16 %v7328
        %v7407 = vunpack.c.l.b16 %v7331
        %v7408 = vunpack.c.l.b16 %v7335
        %v7409 = vunpack.c.l.b16 %v7338
        %v7410 = vunpack.c.l.b16 %v7342
        %v7411 = vunpack.c.l.b16 %v7345
        %v7412 = vunpack.c.l.b16 %v7349
        %v7413 = vunpack.c.l.b16 %v7352
        %v7414 = vunpack.c.l.b16 %v7356
        %v7415 = vunpack.c.l.b16 %v7359
        %v7416 = vunpack.c.l.b16 %v7363
        %v7417 = vunpack.c.l.b16 %v7366
        %v7418 = vunpack.c.l.b16 %v7370
        %v7419 = vunpack.c.l.b16 %v7373
        %v7420 = vunpack.c.l.b16 %v7377
        %v7421 = vunpack.c.l.b16 %v7380
        %v7422 = vpack.c.b16 %v7407, %v7406
        %v7423 = vpack.c.b16 %v7409, %v7408
        %v7424 = vpack.c.b16 %v7411, %v7410
        %v7425 = vpack.c.b16 %v7413, %v7412
        %v7426 = vpack.c.b16 %v7415, %v7414
        %v7427 = vpack.c.b16 %v7417, %v7416
        %v7428 = vpack.c.b16 %v7419, %v7418
        %v7429 = vpack.c.b16 %v7421, %v7420
        %v7438 = vunpack.c.l.b16 %v7398
        %v7439 = vunpack.c.l.b16 %v7399
        %v7440 = vunpack.c.l.b16 %v7400
        %v7441 = vunpack.c.l.b16 %v7401
        %v7442 = vunpack.c.l.b16 %v7402
        %v7443 = vunpack.c.l.b16 %v7403
        %v7444 = vunpack.c.l.b16 %v7404
        %v7445 = vunpack.c.l.b16 %v7405
        %v7446 = vpack.c.b16 %v7439, %v7438
        %v7447 = vpack.c.b16 %v7441, %v7440
        %v7448 = vpack.c.b16 %v7443, %v7442
        %v7449 = vpack.c.b16 %v7445, %v7444
        %v7455 = vsel %vm351, %v7422, 0
        %v7458 = vsel %vm351, %v7423, 0
        %v7461 = vsel %vm351, %v7424, 0
        %v7464 = vsel %vm351, %v7425, 0
        %v7467 = vsel %vm351, %v7426, 0
        %v7470 = vsel %vm351, %v7427, 0
        %v7473 = vsel %vm351, %v7428, 0
        %v7476 = vsel %vm351, %v7429, 0
        %7478 = vmatprep.subr.bf16.mxu0 0
        %7479 = vmatpush1.bf16.msra.mxu0 0
        %7480 = vmatprep.subr.bf16.mxu0 0
        %7481 = vmatpush1.bf16.msra.mxu0 0
        %7482 = vmatprep.subr.bf16.mxu0 0
        %7483 = vmatpush1.bf16.msra.mxu0 0
        %7484 = vmatprep.subr.bf16.mxu0 0
        %7485 = vmatpush1.bf16.msra.mxu0 0
        %7486 = vmatprep.subr.bf16.mxu0 0
        %7487 = vmatpush1.bf16.msra.mxu0 %v7449
        %7488 = vmatprep.subr.bf16.mxu0 0
        %7489 = vmatpush1.bf16.msra.mxu0 %v7448
        %7490 = vmatprep.subr.bf16.mxu0 0
        %7491 = vmatpush1.bf16.msra.mxu0 %v7447
        %7492 = vmatprep.subr.bf16.mxu0 0
        %7493 = vmatpush1.bf16.msra.mxu0 %v7446
        %7494 = vmatprep.subr.bf16.mxu0 0
        %7495 = vmatpush2.bf16.msra.mxu0 0
        %7496 = vmatprep.subr.bf16.mxu0 0
        %7497 = vmatpush2.bf16.msra.mxu0 0
        %7498 = vmatprep.subr.bf16.mxu0 0
        %7499 = vmatpush2.bf16.msra.mxu0 0
        %7500 = vmatprep.subr.bf16.mxu0 0
        %7501 = vmatpush2.bf16.msra.mxu0 0
        %7502 = vmatprep.subr.bf16.mxu0 0
        %7503 = vmatpush2.bf16.msra.mxu0 0
        %7504 = vmatprep.subr.bf16.mxu0 0
        %7505 = vmatpush2.bf16.msra.mxu0 0
        %7506 = vmatprep.subr.bf16.mxu0 0
        %7507 = vmatpush2.bf16.msra.mxu0 0
        %7508 = vmatprep.subr.bf16.mxu0 0
        %7509 = vmatpush2.bf16.msra.mxu0 0
        %7510 = vmatprep.mubr.bf16.mxu0 0
        %7511 = vmatmul.mubr.bf16.gmra.mxu0 %v7455
        %v7512 = vpop.f32.mrf.mxu0
        %v7513 = vadd.f32 0.0, %v7512
        %v7514 = vpop.f32.mrf.mxu0
        %v7515 = vpop.f32.mrf.mxu0
        %v7516 = vadd.f32 0.0, %v7515
        %v7517 = vpop.f32.mrf.mxu0
        %7518 = vmatprep.mubr.bf16.mxu0 0
        %7519 = vmatmul.mubr.bf16.gmra.mxu0 %v7458
        %v7520 = vpop.f32.mrf.mxu0
        %v7521 = vadd.f32 0.0, %v7520
        %v7522 = vpop.f32.mrf.mxu0
        %v7523 = vpop.f32.mrf.mxu0
        %v7524 = vadd.f32 0.0, %v7523
        %v7525 = vpop.f32.mrf.mxu0
        %7526 = vmatprep.mubr.bf16.mxu0 0
        %7527 = vmatmul.mubr.bf16.gmra.mxu0 %v7461
        %v7528 = vpop.f32.mrf.mxu0
        %v7529 = vadd.f32 0.0, %v7528
        %v7530 = vpop.f32.mrf.mxu0
        %v7531 = vpop.f32.mrf.mxu0
        %v7532 = vadd.f32 0.0, %v7531
        %v7533 = vpop.f32.mrf.mxu0
        %7534 = vmatprep.mubr.bf16.mxu0 0
        %7535 = vmatmul.mubr.bf16.gmra.mxu0 %v7464
        %v7536 = vpop.f32.mrf.mxu0
        %v7537 = vadd.f32 0.0, %v7536
        %v7538 = vpop.f32.mrf.mxu0
        %v7539 = vpop.f32.mrf.mxu0
        %v7540 = vadd.f32 0.0, %v7539
        %v7541 = vpop.f32.mrf.mxu0
        %7542 = vmatprep.mubr.bf16.mxu0 0
        %7543 = vmatmul.mubr.bf16.gmra.mxu0 %v7467
        %v7544 = vpop.f32.mrf.mxu0
        %v7545 = vadd.f32 0.0, %v7544
        %v7546 = vpop.f32.mrf.mxu0
        %v7547 = vpop.f32.mrf.mxu0
        %v7548 = vadd.f32 0.0, %v7547
        %v7549 = vpop.f32.mrf.mxu0
        %7550 = vmatprep.mubr.bf16.mxu0 0
        %7551 = vmatmul.mubr.bf16.gmra.mxu0 %v7470
        %v7552 = vpop.f32.mrf.mxu0
        %v7553 = vadd.f32 0.0, %v7552
        %v7554 = vpop.f32.mrf.mxu0
        %v7555 = vpop.f32.mrf.mxu0
        %v7556 = vadd.f32 0.0, %v7555
        %v7557 = vpop.f32.mrf.mxu0
        %7558 = vmatprep.mubr.bf16.mxu0 0
        %7559 = vmatmul.mubr.bf16.gmra.mxu0 %v7473
        %v7560 = vpop.f32.mrf.mxu0
        %v7561 = vadd.f32 0.0, %v7560
        %v7562 = vpop.f32.mrf.mxu0
        %v7563 = vpop.f32.mrf.mxu0
        %v7564 = vadd.f32 0.0, %v7563
        %v7565 = vpop.f32.mrf.mxu0
        %7566 = vmatprep.mubr.bf16.mxu0 0
        %7567 = vmatmul.mubr.bf16.gmra.mxu0 %v7476
        %v7568 = vpop.f32.mrf.mxu0
        %v7569 = vadd.f32 0.0, %v7568
        %v7570 = vpop.f32.mrf.mxu0
        %v7571 = vpop.f32.mrf.mxu0
        %v7572 = vadd.f32 0.0, %v7571
        %v7573 = vpop.f32.mrf.mxu0
        %7574 = vdwg.mxu0
        %v7575 = vadd.f32 %v7381, %v7513
        %v7576 = vadd.f32 %v7382, %v7516
        %v7577 = vadd.f32 %v7383, %v7521
        %v7578 = vadd.f32 %v7384, %v7524
        %v7579 = vadd.f32 %v7385, %v7529
        %v7580 = vadd.f32 %v7386, %v7532
        %v7581 = vadd.f32 %v7387, %v7537
        %v7582 = vadd.f32 %v7388, %v7540
        %v7583 = vadd.f32 %v7389, %v7545
        %v7584 = vadd.f32 %v7390, %v7548
        %v7585 = vadd.f32 %v7391, %v7553
        %v7586 = vadd.f32 %v7392, %v7556
        %v7587 = vadd.f32 %v7393, %v7561
        %v7588 = vadd.f32 %v7394, %v7564
        %v7589 = vadd.f32 %v7395, %v7569
        %v7590 = vadd.f32 %v7396, %v7572
        %7591 = vst [vmem:[#allocation2] sm:$0xff] %v7575
        %7592 = vst [vmem:[#allocation2 + $0x8] sm:$0xff] %v7576
        %7593 = vst [vmem:[#allocation2 + $0x10] sm:$0xff] %v7577
        %7594 = vst [vmem:[#allocation2 + $0x18] sm:$0xff] %v7578
        %7595 = vst [vmem:[#allocation2 + $0x20] sm:$0xff] %v7579
        %7596 = vst [vmem:[#allocation2 + $0x28] sm:$0xff] %v7580
        %7597 = vst [vmem:[#allocation2 + $0x30] sm:$0xff] %v7581
        %7598 = vst [vmem:[#allocation2 + $0x38] sm:$0xff] %v7582
        %7599 = vst [vmem:[#allocation2 + $0x40] sm:$0xff] %v7583
        %7600 = vst [vmem:[#allocation2 + $0x48] sm:$0xff] %v7584
        %7601 = vst [vmem:[#allocation2 + $0x50] sm:$0xff] %v7585
        %7602 = vst [vmem:[#allocation2 + $0x58] sm:$0xff] %v7586
        %7603 = vst [vmem:[#allocation2 + $0x60] sm:$0xff] %v7587
        %7604 = vst [vmem:[#allocation2 + $0x68] sm:$0xff] %v7588
        %7605 = vst [vmem:[#allocation2 + $0x70] sm:$0xff] %v7589
        %7606 = vst [vmem:[#allocation2 + $0x78] sm:$0xff] %v7590
        %s7607 = sadd.s32 %s227, 4
        %s7608 = smul.u32 %s7607, 3
        %s7609 = smul.addr %s7608, 4
        %s7610 = scalar_lea.vmem %s222, %s7609
        %v7611 = vld [vmem:[%s7610] sm:$0xf]
        %v7612 = vld [vmem:[%s7610 + $0x4] sm:$0xf]
        %v7613 = vld [vmem:[%s7610 + $0xc] sm:$0xf]
        %v7614 = vld [vmem:[%s7610 + $0x10] sm:$0xf]
        %v7615 = vld [vmem:[%s7610 + $0x18] sm:$0xf]
        %v7616 = vld [vmem:[%s7610 + $0x1c] sm:$0xf]
        %v7617 = vld [vmem:[%s7610 + $0x24] sm:$0xf]
        %v7618 = vld [vmem:[%s7610 + $0x28] sm:$0xf]
        %v7619 = vld [vmem:[%s7610 + $0x30] sm:$0xf]
        %v7620 = vld [vmem:[%s7610 + $0x34] sm:$0xf]
        %v7621 = vld [vmem:[%s7610 + $0x3c] sm:$0xf]
        %v7622 = vld [vmem:[%s7610 + $0x40] sm:$0xf]
        %v7623 = vld [vmem:[%s7610 + $0x48] sm:$0xf]
        %v7624 = vld [vmem:[%s7610 + $0x4c] sm:$0xf]
        %v7625 = vld [vmem:[%s7610 + $0x54] sm:$0xf]
        %v7626 = vld [vmem:[%s7610 + $0x58] sm:$0xf]
        %v7627 = vld [vmem:[#allocation2] sm:$0xff]
        %v7628 = vld [vmem:[#allocation2 + $0x8] sm:$0xff]
        %v7629 = vld [vmem:[#allocation2 + $0x10] sm:$0xff]
        %v7630 = vld [vmem:[#allocation2 + $0x18] sm:$0xff]
        %v7631 = vld [vmem:[#allocation2 + $0x20] sm:$0xff]
        %v7632 = vld [vmem:[#allocation2 + $0x28] sm:$0xff]
        %v7633 = vld [vmem:[#allocation2 + $0x30] sm:$0xff]
        %v7634 = vld [vmem:[#allocation2 + $0x38] sm:$0xff]
        %v7635 = vld [vmem:[#allocation2 + $0x40] sm:$0xff]
        %v7636 = vld [vmem:[#allocation2 + $0x48] sm:$0xff]
        %v7637 = vld [vmem:[#allocation2 + $0x50] sm:$0xff]
        %v7638 = vld [vmem:[#allocation2 + $0x58] sm:$0xff]
        %v7639 = vld [vmem:[#allocation2 + $0x60] sm:$0xff]
        %v7640 = vld [vmem:[#allocation2 + $0x68] sm:$0xff]
        %v7641 = vld [vmem:[#allocation2 + $0x70] sm:$0xff]
        %v7642 = vld [vmem:[#allocation2 + $0x78] sm:$0xff]
        %s7643 = scalar_lea.vmem %s1, 640
        %v7644 = vld [vmem:[%s7643] sm:$0xf]
        %v7645 = vld [vmem:[%s7643 + $0x4] sm:$0xf]
        %v7646 = vld [vmem:[%s7643 + $0x8] sm:$0xf]
        %v7647 = vld [vmem:[%s7643 + $0xc] sm:$0xf]
        %v7648 = vld [vmem:[%s7643 + $0x10] sm:$0xf]
        %v7649 = vld [vmem:[%s7643 + $0x14] sm:$0xf]
        %v7650 = vld [vmem:[%s7643 + $0x18] sm:$0xf]
        %v7651 = vld [vmem:[%s7643 + $0x1c] sm:$0xf]
        %v7668 = vunpack.c.l.b16 %v7611
        %v7669 = vunpack.c.l.b16 %v7612
        %v7670 = vunpack.c.l.b16 %v7613
        %v7671 = vunpack.c.l.b16 %v7614
        %v7672 = vunpack.c.l.b16 %v7615
        %v7673 = vunpack.c.l.b16 %v7616
        %v7674 = vunpack.c.l.b16 %v7617
        %v7675 = vunpack.c.l.b16 %v7618
        %v7676 = vunpack.c.l.b16 %v7619
        %v7677 = vunpack.c.l.b16 %v7620
        %v7678 = vunpack.c.l.b16 %v7621
        %v7679 = vunpack.c.l.b16 %v7622
        %v7680 = vunpack.c.l.b16 %v7623
        %v7681 = vunpack.c.l.b16 %v7624
        %v7682 = vunpack.c.l.b16 %v7625
        %v7683 = vunpack.c.l.b16 %v7626
        %v7684 = vpack.c.b16 %v7669, %v7668
        %v7685 = vpack.c.b16 %v7671, %v7670
        %v7686 = vpack.c.b16 %v7673, %v7672
        %v7687 = vpack.c.b16 %v7675, %v7674
        %v7688 = vpack.c.b16 %v7677, %v7676
        %v7689 = vpack.c.b16 %v7679, %v7678
        %v7690 = vpack.c.b16 %v7681, %v7680
        %v7691 = vpack.c.b16 %v7683, %v7682
        %v7700 = vunpack.c.l.b16 %v7644
        %v7701 = vunpack.c.l.b16 %v7645
        %v7702 = vunpack.c.l.b16 %v7646
        %v7703 = vunpack.c.l.b16 %v7647
        %v7704 = vunpack.c.l.b16 %v7648
        %v7705 = vunpack.c.l.b16 %v7649
        %v7706 = vunpack.c.l.b16 %v7650
        %v7707 = vunpack.c.l.b16 %v7651
        %v7708 = vpack.c.b16 %v7701, %v7700
        %v7709 = vpack.c.b16 %v7703, %v7702
        %v7710 = vpack.c.b16 %v7705, %v7704
        %v7711 = vpack.c.b16 %v7707, %v7706
        %v7717 = vsel %vm351, %v7684, 0
        %v7720 = vsel %vm351, %v7685, 0
        %v7723 = vsel %vm351, %v7686, 0
        %v7726 = vsel %vm351, %v7687, 0
        %v7729 = vsel %vm351, %v7688, 0
        %v7732 = vsel %vm351, %v7689, 0
        %v7735 = vsel %vm351, %v7690, 0
        %v7738 = vsel %vm351, %v7691, 0
        %7740 = vmatprep.subr.bf16.mxu0 0
        %7741 = vmatpush1.bf16.msra.mxu0 0
        %7742 = vmatprep.subr.bf16.mxu0 0
        %7743 = vmatpush1.bf16.msra.mxu0 0
        %7744 = vmatprep.subr.bf16.mxu0 0
        %7745 = vmatpush1.bf16.msra.mxu0 0
        %7746 = vmatprep.subr.bf16.mxu0 0
        %7747 = vmatpush1.bf16.msra.mxu0 0
        %7748 = vmatprep.subr.bf16.mxu0 0
        %7749 = vmatpush1.bf16.msra.mxu0 %v7711
        %7750 = vmatprep.subr.bf16.mxu0 0
        %7751 = vmatpush1.bf16.msra.mxu0 %v7710
        %7752 = vmatprep.subr.bf16.mxu0 0
        %7753 = vmatpush1.bf16.msra.mxu0 %v7709
        %7754 = vmatprep.subr.bf16.mxu0 0
        %7755 = vmatpush1.bf16.msra.mxu0 %v7708
        %7756 = vmatprep.subr.bf16.mxu0 0
        %7757 = vmatpush2.bf16.msra.mxu0 0
        %7758 = vmatprep.subr.bf16.mxu0 0
        %7759 = vmatpush2.bf16.msra.mxu0 0
        %7760 = vmatprep.subr.bf16.mxu0 0
        %7761 = vmatpush2.bf16.msra.mxu0 0
        %7762 = vmatprep.subr.bf16.mxu0 0
        %7763 = vmatpush2.bf16.msra.mxu0 0
        %7764 = vmatprep.subr.bf16.mxu0 0
        %7765 = vmatpush2.bf16.msra.mxu0 0
        %7766 = vmatprep.subr.bf16.mxu0 0
        %7767 = vmatpush2.bf16.msra.mxu0 0
        %7768 = vmatprep.subr.bf16.mxu0 0
        %7769 = vmatpush2.bf16.msra.mxu0 0
        %7770 = vmatprep.subr.bf16.mxu0 0
        %7771 = vmatpush2.bf16.msra.mxu0 0
        %7772 = vmatprep.mubr.bf16.mxu0 0
        %7773 = vmatmul.mubr.bf16.gmra.mxu0 %v7717
        %v7774 = vpop.f32.mrf.mxu0
        %v7775 = vadd.f32 0.0, %v7774
        %v7776 = vpop.f32.mrf.mxu0
        %v7777 = vpop.f32.mrf.mxu0
        %v7778 = vadd.f32 0.0, %v7777
        %v7779 = vpop.f32.mrf.mxu0
        %7780 = vmatprep.mubr.bf16.mxu0 0
        %7781 = vmatmul.mubr.bf16.gmra.mxu0 %v7720
        %v7782 = vpop.f32.mrf.mxu0
        %v7783 = vadd.f32 0.0, %v7782
        %v7784 = vpop.f32.mrf.mxu0
        %v7785 = vpop.f32.mrf.mxu0
        %v7786 = vadd.f32 0.0, %v7785
        %v7787 = vpop.f32.mrf.mxu0
        %7788 = vmatprep.mubr.bf16.mxu0 0
        %7789 = vmatmul.mubr.bf16.gmra.mxu0 %v7723
        %v7790 = vpop.f32.mrf.mxu0
        %v7791 = vadd.f32 0.0, %v7790
        %v7792 = vpop.f32.mrf.mxu0
        %v7793 = vpop.f32.mrf.mxu0
        %v7794 = vadd.f32 0.0, %v7793
        %v7795 = vpop.f32.mrf.mxu0
        %7796 = vmatprep.mubr.bf16.mxu0 0
        %7797 = vmatmul.mubr.bf16.gmra.mxu0 %v7726
        %v7798 = vpop.f32.mrf.mxu0
        %v7799 = vadd.f32 0.0, %v7798
        %v7800 = vpop.f32.mrf.mxu0
        %v7801 = vpop.f32.mrf.mxu0
        %v7802 = vadd.f32 0.0, %v7801
        %v7803 = vpop.f32.mrf.mxu0
        %7804 = vmatprep.mubr.bf16.mxu0 0
        %7805 = vmatmul.mubr.bf16.gmra.mxu0 %v7729
        %v7806 = vpop.f32.mrf.mxu0
        %v7807 = vadd.f32 0.0, %v7806
        %v7808 = vpop.f32.mrf.mxu0
        %v7809 = vpop.f32.mrf.mxu0
        %v7810 = vadd.f32 0.0, %v7809
        %v7811 = vpop.f32.mrf.mxu0
        %7812 = vmatprep.mubr.bf16.mxu0 0
        %7813 = vmatmul.mubr.bf16.gmra.mxu0 %v7732
        %v7814 = vpop.f32.mrf.mxu0
        %v7815 = vadd.f32 0.0, %v7814
        %v7816 = vpop.f32.mrf.mxu0
        %v7817 = vpop.f32.mrf.mxu0
        %v7818 = vadd.f32 0.0, %v7817
        %v7819 = vpop.f32.mrf.mxu0
        %7820 = vmatprep.mubr.bf16.mxu0 0
        %7821 = vmatmul.mubr.bf16.gmra.mxu0 %v7735
        %v7822 = vpop.f32.mrf.mxu0
        %v7823 = vadd.f32 0.0, %v7822
        %v7824 = vpop.f32.mrf.mxu0
        %v7825 = vpop.f32.mrf.mxu0
        %v7826 = vadd.f32 0.0, %v7825
        %v7827 = vpop.f32.mrf.mxu0
        %7828 = vmatprep.mubr.bf16.mxu0 0
        %7829 = vmatmul.mubr.bf16.gmra.mxu0 %v7738
        %v7830 = vpop.f32.mrf.mxu0
        %v7831 = vadd.f32 0.0, %v7830
        %v7832 = vpop.f32.mrf.mxu0
        %v7833 = vpop.f32.mrf.mxu0
        %v7834 = vadd.f32 0.0, %v7833
        %v7835 = vpop.f32.mrf.mxu0
        %7836 = vdwg.mxu0
        %v7837 = vadd.f32 %v7627, %v7775
        %v7838 = vadd.f32 %v7628, %v7778
        %v7839 = vadd.f32 %v7629, %v7783
        %v7840 = vadd.f32 %v7630, %v7786
        %v7841 = vadd.f32 %v7631, %v7791
        %v7842 = vadd.f32 %v7632, %v7794
        %v7843 = vadd.f32 %v7633, %v7799
        %v7844 = vadd.f32 %v7634, %v7802
        %v7845 = vadd.f32 %v7635, %v7807
        %v7846 = vadd.f32 %v7636, %v7810
        %v7847 = vadd.f32 %v7637, %v7815
        %v7848 = vadd.f32 %v7638, %v7818
        %v7849 = vadd.f32 %v7639, %v7823
        %v7850 = vadd.f32 %v7640, %v7826
        %v7851 = vadd.f32 %v7641, %v7831
        %v7852 = vadd.f32 %v7642, %v7834
        %7853 = vst [vmem:[#allocation2] sm:$0xff] %v7837
        %7854 = vst [vmem:[#allocation2 + $0x8] sm:$0xff] %v7838
        %7855 = vst [vmem:[#allocation2 + $0x10] sm:$0xff] %v7839
        %7856 = vst [vmem:[#allocation2 + $0x18] sm:$0xff] %v7840
        %7857 = vst [vmem:[#allocation2 + $0x20] sm:$0xff] %v7841
        %7858 = vst [vmem:[#allocation2 + $0x28] sm:$0xff] %v7842
        %7859 = vst [vmem:[#allocation2 + $0x30] sm:$0xff] %v7843
        %7860 = vst [vmem:[#allocation2 + $0x38] sm:$0xff] %v7844
        %7861 = vst [vmem:[#allocation2 + $0x40] sm:$0xff] %v7845
        %7862 = vst [vmem:[#allocation2 + $0x48] sm:$0xff] %v7846
        %7863 = vst [vmem:[#allocation2 + $0x50] sm:$0xff] %v7847
        %7864 = vst [vmem:[#allocation2 + $0x58] sm:$0xff] %v7848
        %7865 = vst [vmem:[#allocation2 + $0x60] sm:$0xff] %v7849
        %7866 = vst [vmem:[#allocation2 + $0x68] sm:$0xff] %v7850
        %7867 = vst [vmem:[#allocation2 + $0x70] sm:$0xff] %v7851
        %7868 = vst [vmem:[#allocation2 + $0x78] sm:$0xff] %v7852
        %v7869 = vld [vmem:[%s7610] sm:$0xf]
        %v7870 = vld [vmem:[%s7610 + $0x4] sm:$0xf]
        %v7871 = vld [vmem:[%s7610 + $0x8] sm:$0x1]
        %v7872 = vld [vmem:[%s7610 + $0xc] sm:$0xf]
        %v7873 = vld [vmem:[%s7610 + $0x10] sm:$0xf]
        %v7874 = vld [vmem:[%s7610 + $0x14] sm:$0x1]
        %v7875 = vld [vmem:[%s7610 + $0x18] sm:$0xf]
        %v7876 = vld [vmem:[%s7610 + $0x1c] sm:$0xf]
        %v7877 = vld [vmem:[%s7610 + $0x20] sm:$0x1]
        %v7878 = vld [vmem:[%s7610 + $0x24] sm:$0xf]
        %v7879 = vld [vmem:[%s7610 + $0x28] sm:$0xf]
        %v7880 = vld [vmem:[%s7610 + $0x2c] sm:$0x1]
        %v7881 = vld [vmem:[%s7610 + $0x30] sm:$0xf]
        %v7882 = vld [vmem:[%s7610 + $0x34] sm:$0xf]
        %v7883 = vld [vmem:[%s7610 + $0x38] sm:$0x1]
        %v7884 = vld [vmem:[%s7610 + $0x3c] sm:$0xf]
        %v7885 = vld [vmem:[%s7610 + $0x40] sm:$0xf]
        %v7886 = vld [vmem:[%s7610 + $0x44] sm:$0x1]
        %v7887 = vld [vmem:[%s7610 + $0x48] sm:$0xf]
        %v7888 = vld [vmem:[%s7610 + $0x4c] sm:$0xf]
        %v7889 = vld [vmem:[%s7610 + $0x50] sm:$0x1]
        %v7890 = vld [vmem:[%s7610 + $0x54] sm:$0xf]
        %v7891 = vld [vmem:[%s7610 + $0x58] sm:$0xf]
        %v7892 = vld [vmem:[%s7610 + $0x5c] sm:$0x1]
        %v7894 = vshrl.u32 %v7869, 16
        %v7896 = vrot.slane %v7894, 4
        %v7897 = vshll.u32 %v7869, 16
        %v7899 = vrot.slane %v7897, 5
        %v7900 = vor.u32 %v7896, %v7899
        %v7901 = vrot.slane %v7900, 4
        %v7903 = vshll.u32 %v7870, 16
        %v7905 = vrot.slane %v7903, 5
        %v7906 = vsel %vm531, %v7901, %v7905
        %v7907 = vshrl.u32 %v7870, 16
        %v7909 = vrot.slane %v7907, 4
        %v7910 = vor.u32 %v7909, %v7905
        %v7911 = vrot.slane %v7910, 4
        %v7913 = vshll.u32 %v7871, 16
        %v7915 = vrot.slane %v7913, 5
        %v7916 = vsel %vm531, %v7911, %v7915
        %v7918 = vshrl.u32 %v7872, 16
        %v7920 = vrot.slane %v7918, 4
        %v7921 = vshll.u32 %v7872, 16
        %v7923 = vrot.slane %v7921, 5
        %v7924 = vor.u32 %v7920, %v7923
        %v7925 = vrot.slane %v7924, 4
        %v7927 = vshll.u32 %v7873, 16
        %v7929 = vrot.slane %v7927, 5
        %v7930 = vsel %vm531, %v7925, %v7929
        %v7931 = vshrl.u32 %v7873, 16
        %v7933 = vrot.slane %v7931, 4
        %v7934 = vor.u32 %v7933, %v7929
        %v7935 = vrot.slane %v7934, 4
        %v7937 = vshll.u32 %v7874, 16
        %v7939 = vrot.slane %v7937, 5
        %v7940 = vsel %vm531, %v7935, %v7939
        %v7942 = vshrl.u32 %v7875, 16
        %v7944 = vrot.slane %v7942, 4
        %v7945 = vshll.u32 %v7875, 16
        %v7947 = vrot.slane %v7945, 5
        %v7948 = vor.u32 %v7944, %v7947
        %v7949 = vrot.slane %v7948, 4
        %v7951 = vshll.u32 %v7876, 16
        %v7953 = vrot.slane %v7951, 5
        %v7954 = vsel %vm531, %v7949, %v7953
        %v7955 = vshrl.u32 %v7876, 16
        %v7957 = vrot.slane %v7955, 4
        %v7958 = vor.u32 %v7957, %v7953
        %v7959 = vrot.slane %v7958, 4
        %v7961 = vshll.u32 %v7877, 16
        %v7963 = vrot.slane %v7961, 5
        %v7964 = vsel %vm531, %v7959, %v7963
        %v7966 = vshrl.u32 %v7878, 16
        %v7968 = vrot.slane %v7966, 4
        %v7969 = vshll.u32 %v7878, 16
        %v7971 = vrot.slane %v7969, 5
        %v7972 = vor.u32 %v7968, %v7971
        %v7973 = vrot.slane %v7972, 4
        %v7975 = vshll.u32 %v7879, 16
        %v7977 = vrot.slane %v7975, 5
        %v7978 = vsel %vm531, %v7973, %v7977
        %v7979 = vshrl.u32 %v7879, 16
        %v7981 = vrot.slane %v7979, 4
        %v7982 = vor.u32 %v7981, %v7977
        %v7983 = vrot.slane %v7982, 4
        %v7985 = vshll.u32 %v7880, 16
        %v7987 = vrot.slane %v7985, 5
        %v7988 = vsel %vm531, %v7983, %v7987
        %v7990 = vshrl.u32 %v7881, 16
        %v7992 = vrot.slane %v7990, 4
        %v7993 = vshll.u32 %v7881, 16
        %v7995 = vrot.slane %v7993, 5
        %v7996 = vor.u32 %v7992, %v7995
        %v7997 = vrot.slane %v7996, 4
        %v7999 = vshll.u32 %v7882, 16
        %v8001 = vrot.slane %v7999, 5
        %v8002 = vsel %vm531, %v7997, %v8001
        %v8003 = vshrl.u32 %v7882, 16
        %v8005 = vrot.slane %v8003, 4
        %v8006 = vor.u32 %v8005, %v8001
        %v8007 = vrot.slane %v8006, 4
        %v8009 = vshll.u32 %v7883, 16
        %v8011 = vrot.slane %v8009, 5
        %v8012 = vsel %vm531, %v8007, %v8011
        %v8014 = vshrl.u32 %v7884, 16
        %v8016 = vrot.slane %v8014, 4
        %v8017 = vshll.u32 %v7884, 16
        %v8019 = vrot.slane %v8017, 5
        %v8020 = vor.u32 %v8016, %v8019
        %v8021 = vrot.slane %v8020, 4
        %v8023 = vshll.u32 %v7885, 16
        %v8025 = vrot.slane %v8023, 5
        %v8026 = vsel %vm531, %v8021, %v8025
        %v8027 = vshrl.u32 %v7885, 16
        %v8029 = vrot.slane %v8027, 4
        %v8030 = vor.u32 %v8029, %v8025
        %v8031 = vrot.slane %v8030, 4
        %v8033 = vshll.u32 %v7886, 16
        %v8035 = vrot.slane %v8033, 5
        %v8036 = vsel %vm531, %v8031, %v8035
        %v8038 = vshrl.u32 %v7887, 16
        %v8040 = vrot.slane %v8038, 4
        %v8041 = vshll.u32 %v7887, 16
        %v8043 = vrot.slane %v8041, 5
        %v8044 = vor.u32 %v8040, %v8043
        %v8045 = vrot.slane %v8044, 4
        %v8047 = vshll.u32 %v7888, 16
        %v8049 = vrot.slane %v8047, 5
        %v8050 = vsel %vm531, %v8045, %v8049
        %v8051 = vshrl.u32 %v7888, 16
        %v8053 = vrot.slane %v8051, 4
        %v8054 = vor.u32 %v8053, %v8049
        %v8055 = vrot.slane %v8054, 4
        %v8057 = vshll.u32 %v7889, 16
        %v8059 = vrot.slane %v8057, 5
        %v8060 = vsel %vm531, %v8055, %v8059
        %v8062 = vshrl.u32 %v7890, 16
        %v8064 = vrot.slane %v8062, 4
        %v8065 = vshll.u32 %v7890, 16
        %v8067 = vrot.slane %v8065, 5
        %v8068 = vor.u32 %v8064, %v8067
        %v8069 = vrot.slane %v8068, 4
        %v8071 = vshll.u32 %v7891, 16
        %v8073 = vrot.slane %v8071, 5
        %v8074 = vsel %vm531, %v8069, %v8073
        %v8075 = vshrl.u32 %v7891, 16
        %v8077 = vrot.slane %v8075, 4
        %v8078 = vor.u32 %v8077, %v8073
        %v8079 = vrot.slane %v8078, 4
        %v8081 = vshll.u32 %v7892, 16
        %v8083 = vrot.slane %v8081, 5
        %v8084 = vsel %vm531, %v8079, %v8083
        %v8085 = vld [vmem:[#allocation2] sm:$0xff]
        %v8086 = vld [vmem:[#allocation2 + $0x8] sm:$0xff]
        %v8087 = vld [vmem:[#allocation2 + $0x10] sm:$0xff]
        %v8088 = vld [vmem:[#allocation2 + $0x18] sm:$0xff]
        %v8089 = vld [vmem:[#allocation2 + $0x20] sm:$0xff]
        %v8090 = vld [vmem:[#allocation2 + $0x28] sm:$0xff]
        %v8091 = vld [vmem:[#allocation2 + $0x30] sm:$0xff]
        %v8092 = vld [vmem:[#allocation2 + $0x38] sm:$0xff]
        %v8093 = vld [vmem:[#allocation2 + $0x40] sm:$0xff]
        %v8094 = vld [vmem:[#allocation2 + $0x48] sm:$0xff]
        %v8095 = vld [vmem:[#allocation2 + $0x50] sm:$0xff]
        %v8096 = vld [vmem:[#allocation2 + $0x58] sm:$0xff]
        %v8097 = vld [vmem:[#allocation2 + $0x60] sm:$0xff]
        %v8098 = vld [vmem:[#allocation2 + $0x68] sm:$0xff]
        %v8099 = vld [vmem:[#allocation2 + $0x70] sm:$0xff]
        %v8100 = vld [vmem:[#allocation2 + $0x78] sm:$0xff]
        %s8101 = scalar_lea.vmem %s1, 672
        %v8102 = vld [vmem:[%s8101] sm:$0xf]
        %v8103 = vld [vmem:[%s8101 + $0x4] sm:$0xf]
        %v8104 = vld [vmem:[%s8101 + $0x8] sm:$0xf]
        %v8105 = vld [vmem:[%s8101 + $0xc] sm:$0xf]
        %v8106 = vld [vmem:[%s8101 + $0x10] sm:$0xf]
        %v8107 = vld [vmem:[%s8101 + $0x14] sm:$0xf]
        %v8108 = vld [vmem:[%s8101 + $0x18] sm:$0xf]
        %v8109 = vld [vmem:[%s8101 + $0x1c] sm:$0xf]
        %v8110 = vunpack.c.l.b16 %v7906
        %v8111 = vunpack.c.l.b16 %v7916
        %v8112 = vunpack.c.l.b16 %v7930
        %v8113 = vunpack.c.l.b16 %v7940
        %v8114 = vunpack.c.l.b16 %v7954
        %v8115 = vunpack.c.l.b16 %v7964
        %v8116 = vunpack.c.l.b16 %v7978
        %v8117 = vunpack.c.l.b16 %v7988
        %v8118 = vunpack.c.l.b16 %v8002
        %v8119 = vunpack.c.l.b16 %v8012
        %v8120 = vunpack.c.l.b16 %v8026
        %v8121 = vunpack.c.l.b16 %v8036
        %v8122 = vunpack.c.l.b16 %v8050
        %v8123 = vunpack.c.l.b16 %v8060
        %v8124 = vunpack.c.l.b16 %v8074
        %v8125 = vunpack.c.l.b16 %v8084
        %v8126 = vpack.c.b16 %v8111, %v8110
        %v8127 = vpack.c.b16 %v8113, %v8112
        %v8128 = vpack.c.b16 %v8115, %v8114
        %v8129 = vpack.c.b16 %v8117, %v8116
        %v8130 = vpack.c.b16 %v8119, %v8118
        %v8131 = vpack.c.b16 %v8121, %v8120
        %v8132 = vpack.c.b16 %v8123, %v8122
        %v8133 = vpack.c.b16 %v8125, %v8124
        %v8142 = vunpack.c.l.b16 %v8102
        %v8143 = vunpack.c.l.b16 %v8103
        %v8144 = vunpack.c.l.b16 %v8104
        %v8145 = vunpack.c.l.b16 %v8105
        %v8146 = vunpack.c.l.b16 %v8106
        %v8147 = vunpack.c.l.b16 %v8107
        %v8148 = vunpack.c.l.b16 %v8108
        %v8149 = vunpack.c.l.b16 %v8109
        %v8150 = vpack.c.b16 %v8143, %v8142
        %v8151 = vpack.c.b16 %v8145, %v8144
        %v8152 = vpack.c.b16 %v8147, %v8146
        %v8153 = vpack.c.b16 %v8149, %v8148
        %v8159 = vsel %vm351, %v8126, 0
        %v8162 = vsel %vm351, %v8127, 0
        %v8165 = vsel %vm351, %v8128, 0
        %v8168 = vsel %vm351, %v8129, 0
        %v8171 = vsel %vm351, %v8130, 0
        %v8174 = vsel %vm351, %v8131, 0
        %v8177 = vsel %vm351, %v8132, 0
        %v8180 = vsel %vm351, %v8133, 0
        %8182 = vmatprep.subr.bf16.mxu0 0
        %8183 = vmatpush1.bf16.msra.mxu0 0
        %8184 = vmatprep.subr.bf16.mxu0 0
        %8185 = vmatpush1.bf16.msra.mxu0 0
        %8186 = vmatprep.subr.bf16.mxu0 0
        %8187 = vmatpush1.bf16.msra.mxu0 0
        %8188 = vmatprep.subr.bf16.mxu0 0
        %8189 = vmatpush1.bf16.msra.mxu0 0
        %8190 = vmatprep.subr.bf16.mxu0 0
        %8191 = vmatpush1.bf16.msra.mxu0 %v8153
        %8192 = vmatprep.subr.bf16.mxu0 0
        %8193 = vmatpush1.bf16.msra.mxu0 %v8152
        %8194 = vmatprep.subr.bf16.mxu0 0
        %8195 = vmatpush1.bf16.msra.mxu0 %v8151
        %8196 = vmatprep.subr.bf16.mxu0 0
        %8197 = vmatpush1.bf16.msra.mxu0 %v8150
        %8198 = vmatprep.subr.bf16.mxu0 0
        %8199 = vmatpush2.bf16.msra.mxu0 0
        %8200 = vmatprep.subr.bf16.mxu0 0
        %8201 = vmatpush2.bf16.msra.mxu0 0
        %8202 = vmatprep.subr.bf16.mxu0 0
        %8203 = vmatpush2.bf16.msra.mxu0 0
        %8204 = vmatprep.subr.bf16.mxu0 0
        %8205 = vmatpush2.bf16.msra.mxu0 0
        %8206 = vmatprep.subr.bf16.mxu0 0
        %8207 = vmatpush2.bf16.msra.mxu0 0
        %8208 = vmatprep.subr.bf16.mxu0 0
        %8209 = vmatpush2.bf16.msra.mxu0 0
        %8210 = vmatprep.subr.bf16.mxu0 0
        %8211 = vmatpush2.bf16.msra.mxu0 0
        %8212 = vmatprep.subr.bf16.mxu0 0
        %8213 = vmatpush2.bf16.msra.mxu0 0
        %8214 = vmatprep.mubr.bf16.mxu0 0
        %8215 = vmatmul.mubr.bf16.gmra.mxu0 %v8159
        %v8216 = vpop.f32.mrf.mxu0
        %v8217 = vadd.f32 0.0, %v8216
        %v8218 = vpop.f32.mrf.mxu0
        %v8219 = vpop.f32.mrf.mxu0
        %v8220 = vadd.f32 0.0, %v8219
        %v8221 = vpop.f32.mrf.mxu0
        %8222 = vmatprep.mubr.bf16.mxu0 0
        %8223 = vmatmul.mubr.bf16.gmra.mxu0 %v8162
        %v8224 = vpop.f32.mrf.mxu0
        %v8225 = vadd.f32 0.0, %v8224
        %v8226 = vpop.f32.mrf.mxu0
        %v8227 = vpop.f32.mrf.mxu0
        %v8228 = vadd.f32 0.0, %v8227
        %v8229 = vpop.f32.mrf.mxu0
        %8230 = vmatprep.mubr.bf16.mxu0 0
        %8231 = vmatmul.mubr.bf16.gmra.mxu0 %v8165
        %v8232 = vpop.f32.mrf.mxu0
        %v8233 = vadd.f32 0.0, %v8232
        %v8234 = vpop.f32.mrf.mxu0
        %v8235 = vpop.f32.mrf.mxu0
        %v8236 = vadd.f32 0.0, %v8235
        %v8237 = vpop.f32.mrf.mxu0
        %8238 = vmatprep.mubr.bf16.mxu0 0
        %8239 = vmatmul.mubr.bf16.gmra.mxu0 %v8168
        %v8240 = vpop.f32.mrf.mxu0
        %v8241 = vadd.f32 0.0, %v8240
        %v8242 = vpop.f32.mrf.mxu0
        %v8243 = vpop.f32.mrf.mxu0
        %v8244 = vadd.f32 0.0, %v8243
        %v8245 = vpop.f32.mrf.mxu0
        %8246 = vmatprep.mubr.bf16.mxu0 0
        %8247 = vmatmul.mubr.bf16.gmra.mxu0 %v8171
        %v8248 = vpop.f32.mrf.mxu0
        %v8249 = vadd.f32 0.0, %v8248
        %v8250 = vpop.f32.mrf.mxu0
        %v8251 = vpop.f32.mrf.mxu0
        %v8252 = vadd.f32 0.0, %v8251
        %v8253 = vpop.f32.mrf.mxu0
        %8254 = vmatprep.mubr.bf16.mxu0 0
        %8255 = vmatmul.mubr.bf16.gmra.mxu0 %v8174
        %v8256 = vpop.f32.mrf.mxu0
        %v8257 = vadd.f32 0.0, %v8256
        %v8258 = vpop.f32.mrf.mxu0
        %v8259 = vpop.f32.mrf.mxu0
        %v8260 = vadd.f32 0.0, %v8259
        %v8261 = vpop.f32.mrf.mxu0
        %8262 = vmatprep.mubr.bf16.mxu0 0
        %8263 = vmatmul.mubr.bf16.gmra.mxu0 %v8177
        %v8264 = vpop.f32.mrf.mxu0
        %v8265 = vadd.f32 0.0, %v8264
        %v8266 = vpop.f32.mrf.mxu0
        %v8267 = vpop.f32.mrf.mxu0
        %v8268 = vadd.f32 0.0, %v8267
        %v8269 = vpop.f32.mrf.mxu0
        %8270 = vmatprep.mubr.bf16.mxu0 0
        %8271 = vmatmul.mubr.bf16.gmra.mxu0 %v8180
        %v8272 = vpop.f32.mrf.mxu0
        %v8273 = vadd.f32 0.0, %v8272
        %v8274 = vpop.f32.mrf.mxu0
        %v8275 = vpop.f32.mrf.mxu0
        %v8276 = vadd.f32 0.0, %v8275
        %v8277 = vpop.f32.mrf.mxu0
        %8278 = vdwg.mxu0
        %v8279 = vadd.f32 %v8085, %v8217
        %v8280 = vadd.f32 %v8086, %v8220
        %v8281 = vadd.f32 %v8087, %v8225
        %v8282 = vadd.f32 %v8088, %v8228
        %v8283 = vadd.f32 %v8089, %v8233
        %v8284 = vadd.f32 %v8090, %v8236
        %v8285 = vadd.f32 %v8091, %v8241
        %v8286 = vadd.f32 %v8092, %v8244
        %v8287 = vadd.f32 %v8093, %v8249
        %v8288 = vadd.f32 %v8094, %v8252
        %v8289 = vadd.f32 %v8095, %v8257
        %v8290 = vadd.f32 %v8096, %v8260
        %v8291 = vadd.f32 %v8097, %v8265
        %v8292 = vadd.f32 %v8098, %v8268
        %v8293 = vadd.f32 %v8099, %v8273
        %v8294 = vadd.f32 %v8100, %v8276
        %8295 = vst [vmem:[#allocation2] sm:$0xff] %v8279
        %8296 = vst [vmem:[#allocation2 + $0x8] sm:$0xff] %v8280
        %8297 = vst [vmem:[#allocation2 + $0x10] sm:$0xff] %v8281
        %8298 = vst [vmem:[#allocation2 + $0x18] sm:$0xff] %v8282
        %8299 = vst [vmem:[#allocation2 + $0x20] sm:$0xff] %v8283
        %8300 = vst [vmem:[#allocation2 + $0x28] sm:$0xff] %v8284
        %8301 = vst [vmem:[#allocation2 + $0x30] sm:$0xff] %v8285
        %8302 = vst [vmem:[#allocation2 + $0x38] sm:$0xff] %v8286
        %8303 = vst [vmem:[#allocation2 + $0x40] sm:$0xff] %v8287
        %8304 = vst [vmem:[#allocation2 + $0x48] sm:$0xff] %v8288
        %8305 = vst [vmem:[#allocation2 + $0x50] sm:$0xff] %v8289
        %8306 = vst [vmem:[#allocation2 + $0x58] sm:$0xff] %v8290
        %8307 = vst [vmem:[#allocation2 + $0x60] sm:$0xff] %v8291
        %8308 = vst [vmem:[#allocation2 + $0x68] sm:$0xff] %v8292
        %8309 = vst [vmem:[#allocation2 + $0x70] sm:$0xff] %v8293
        %8310 = vst [vmem:[#allocation2 + $0x78] sm:$0xff] %v8294
        %v8311 = vld [vmem:[%s7610] sm:$0xe]
        %v8312 = vld [vmem:[%s7610 + $0x4] sm:$0xf]
        %v8313 = vld [vmem:[%s7610 + $0x8] sm:$0x1]
        %v8314 = vld [vmem:[%s7610 + $0xc] sm:$0xe]
        %v8315 = vld [vmem:[%s7610 + $0x10] sm:$0xf]
        %v8316 = vld [vmem:[%s7610 + $0x14] sm:$0x1]
        %v8317 = vld [vmem:[%s7610 + $0x18] sm:$0xe]
        %v8318 = vld [vmem:[%s7610 + $0x1c] sm:$0xf]
        %v8319 = vld [vmem:[%s7610 + $0x20] sm:$0x1]
        %v8320 = vld [vmem:[%s7610 + $0x24] sm:$0xe]
        %v8321 = vld [vmem:[%s7610 + $0x28] sm:$0xf]
        %v8322 = vld [vmem:[%s7610 + $0x2c] sm:$0x1]
        %v8323 = vld [vmem:[%s7610 + $0x30] sm:$0xe]
        %v8324 = vld [vmem:[%s7610 + $0x34] sm:$0xf]
        %v8325 = vld [vmem:[%s7610 + $0x38] sm:$0x1]
        %v8326 = vld [vmem:[%s7610 + $0x3c] sm:$0xe]
        %v8327 = vld [vmem:[%s7610 + $0x40] sm:$0xf]
        %v8328 = vld [vmem:[%s7610 + $0x44] sm:$0x1]
        %v8329 = vld [vmem:[%s7610 + $0x48] sm:$0xe]
        %v8330 = vld [vmem:[%s7610 + $0x4c] sm:$0xf]
        %v8331 = vld [vmem:[%s7610 + $0x50] sm:$0x1]
        %v8332 = vld [vmem:[%s7610 + $0x54] sm:$0xe]
        %v8333 = vld [vmem:[%s7610 + $0x58] sm:$0xf]
        %v8334 = vld [vmem:[%s7610 + $0x5c] sm:$0x1]
        %v8359 = vrot.slane %v8311, 5
        %v8360 = vrot.slane %v8359, 4
        %v8361 = vrot.slane %v8312, 5
        %v8362 = vsel %vm1000, %v8360, %v8361
        %v8363 = vrot.slane %v8361, 4
        %v8364 = vrot.slane %v8313, 5
        %v8365 = vsel %vm1000, %v8363, %v8364
        %v8366 = vrot.slane %v8314, 5
        %v8367 = vrot.slane %v8366, 4
        %v8368 = vrot.slane %v8315, 5
        %v8369 = vsel %vm1000, %v8367, %v8368
        %v8370 = vrot.slane %v8368, 4
        %v8371 = vrot.slane %v8316, 5
        %v8372 = vsel %vm1000, %v8370, %v8371
        %v8373 = vrot.slane %v8317, 5
        %v8374 = vrot.slane %v8373, 4
        %v8375 = vrot.slane %v8318, 5
        %v8376 = vsel %vm1000, %v8374, %v8375
        %v8377 = vrot.slane %v8375, 4
        %v8378 = vrot.slane %v8319, 5
        %v8379 = vsel %vm1000, %v8377, %v8378
        %v8380 = vrot.slane %v8320, 5
        %v8381 = vrot.slane %v8380, 4
        %v8382 = vrot.slane %v8321, 5
        %v8383 = vsel %vm1000, %v8381, %v8382
        %v8384 = vrot.slane %v8382, 4
        %v8385 = vrot.slane %v8322, 5
        %v8386 = vsel %vm1000, %v8384, %v8385
        %v8387 = vrot.slane %v8323, 5
        %v8388 = vrot.slane %v8387, 4
        %v8389 = vrot.slane %v8324, 5
        %v8390 = vsel %vm1000, %v8388, %v8389
        %v8391 = vrot.slane %v8389, 4
        %v8392 = vrot.slane %v8325, 5
        %v8393 = vsel %vm1000, %v8391, %v8392
        %v8394 = vrot.slane %v8326, 5
        %v8395 = vrot.slane %v8394, 4
        %v8396 = vrot.slane %v8327, 5
        %v8397 = vsel %vm1000, %v8395, %v8396
        %v8398 = vrot.slane %v8396, 4
        %v8399 = vrot.slane %v8328, 5
        %v8400 = vsel %vm1000, %v8398, %v8399
        %v8401 = vrot.slane %v8329, 5
        %v8402 = vrot.slane %v8401, 4
        %v8403 = vrot.slane %v8330, 5
        %v8404 = vsel %vm1000, %v8402, %v8403
        %v8405 = vrot.slane %v8403, 4
        %v8406 = vrot.slane %v8331, 5
        %v8407 = vsel %vm1000, %v8405, %v8406
        %v8408 = vrot.slane %v8332, 5
        %v8409 = vrot.slane %v8408, 4
        %v8410 = vrot.slane %v8333, 5
        %v8411 = vsel %vm1000, %v8409, %v8410
        %v8412 = vrot.slane %v8410, 4
        %v8413 = vrot.slane %v8334, 5
        %v8414 = vsel %vm1000, %v8412, %v8413
        %v8415 = vld [vmem:[#allocation2] sm:$0xff]
        %v8416 = vld [vmem:[#allocation2 + $0x8] sm:$0xff]
        %v8417 = vld [vmem:[#allocation2 + $0x10] sm:$0xff]
        %v8418 = vld [vmem:[#allocation2 + $0x18] sm:$0xff]
        %v8419 = vld [vmem:[#allocation2 + $0x20] sm:$0xff]
        %v8420 = vld [vmem:[#allocation2 + $0x28] sm:$0xff]
        %v8421 = vld [vmem:[#allocation2 + $0x30] sm:$0xff]
        %v8422 = vld [vmem:[#allocation2 + $0x38] sm:$0xff]
        %v8423 = vld [vmem:[#allocation2 + $0x40] sm:$0xff]
        %v8424 = vld [vmem:[#allocation2 + $0x48] sm:$0xff]
        %v8425 = vld [vmem:[#allocation2 + $0x50] sm:$0xff]
        %v8426 = vld [vmem:[#allocation2 + $0x58] sm:$0xff]
        %v8427 = vld [vmem:[#allocation2 + $0x60] sm:$0xff]
        %v8428 = vld [vmem:[#allocation2 + $0x68] sm:$0xff]
        %v8429 = vld [vmem:[#allocation2 + $0x70] sm:$0xff]
        %v8430 = vld [vmem:[#allocation2 + $0x78] sm:$0xff]
        %s8431 = scalar_lea.vmem %s1, 704
        %v8432 = vld [vmem:[%s8431] sm:$0xf]
        %v8433 = vld [vmem:[%s8431 + $0x4] sm:$0xf]
        %v8434 = vld [vmem:[%s8431 + $0x8] sm:$0xf]
        %v8435 = vld [vmem:[%s8431 + $0xc] sm:$0xf]
        %v8436 = vld [vmem:[%s8431 + $0x10] sm:$0xf]
        %v8437 = vld [vmem:[%s8431 + $0x14] sm:$0xf]
        %v8438 = vld [vmem:[%s8431 + $0x18] sm:$0xf]
        %v8439 = vld [vmem:[%s8431 + $0x1c] sm:$0xf]
        %v8440 = vunpack.c.l.b16 %v8362
        %v8441 = vunpack.c.l.b16 %v8365
        %v8442 = vunpack.c.l.b16 %v8369
        %v8443 = vunpack.c.l.b16 %v8372
        %v8444 = vunpack.c.l.b16 %v8376
        %v8445 = vunpack.c.l.b16 %v8379
        %v8446 = vunpack.c.l.b16 %v8383
        %v8447 = vunpack.c.l.b16 %v8386
        %v8448 = vunpack.c.l.b16 %v8390
        %v8449 = vunpack.c.l.b16 %v8393
        %v8450 = vunpack.c.l.b16 %v8397
        %v8451 = vunpack.c.l.b16 %v8400
        %v8452 = vunpack.c.l.b16 %v8404
        %v8453 = vunpack.c.l.b16 %v8407
        %v8454 = vunpack.c.l.b16 %v8411
        %v8455 = vunpack.c.l.b16 %v8414
        %v8456 = vpack.c.b16 %v8441, %v8440
        %v8457 = vpack.c.b16 %v8443, %v8442
        %v8458 = vpack.c.b16 %v8445, %v8444
        %v8459 = vpack.c.b16 %v8447, %v8446
        %v8460 = vpack.c.b16 %v8449, %v8448
        %v8461 = vpack.c.b16 %v8451, %v8450
        %v8462 = vpack.c.b16 %v8453, %v8452
        %v8463 = vpack.c.b16 %v8455, %v8454
        %v8472 = vunpack.c.l.b16 %v8432
        %v8473 = vunpack.c.l.b16 %v8433
        %v8474 = vunpack.c.l.b16 %v8434
        %v8475 = vunpack.c.l.b16 %v8435
        %v8476 = vunpack.c.l.b16 %v8436
        %v8477 = vunpack.c.l.b16 %v8437
        %v8478 = vunpack.c.l.b16 %v8438
        %v8479 = vunpack.c.l.b16 %v8439
        %v8480 = vpack.c.b16 %v8473, %v8472
        %v8481 = vpack.c.b16 %v8475, %v8474
        %v8482 = vpack.c.b16 %v8477, %v8476
        %v8483 = vpack.c.b16 %v8479, %v8478
        %v8489 = vsel %vm351, %v8456, 0
        %v8492 = vsel %vm351, %v8457, 0
        %v8495 = vsel %vm351, %v8458, 0
        %v8498 = vsel %vm351, %v8459, 0
        %v8501 = vsel %vm351, %v8460, 0
        %v8504 = vsel %vm351, %v8461, 0
        %v8507 = vsel %vm351, %v8462, 0
        %v8510 = vsel %vm351, %v8463, 0
        %8512 = vmatprep.subr.bf16.mxu0 0
        %8513 = vmatpush1.bf16.msra.mxu0 0
        %8514 = vmatprep.subr.bf16.mxu0 0
        %8515 = vmatpush1.bf16.msra.mxu0 0
        %8516 = vmatprep.subr.bf16.mxu0 0
        %8517 = vmatpush1.bf16.msra.mxu0 0
        %8518 = vmatprep.subr.bf16.mxu0 0
        %8519 = vmatpush1.bf16.msra.mxu0 0
        %8520 = vmatprep.subr.bf16.mxu0 0
        %8521 = vmatpush1.bf16.msra.mxu0 %v8483
        %8522 = vmatprep.subr.bf16.mxu0 0
        %8523 = vmatpush1.bf16.msra.mxu0 %v8482
        %8524 = vmatprep.subr.bf16.mxu0 0
        %8525 = vmatpush1.bf16.msra.mxu0 %v8481
        %8526 = vmatprep.subr.bf16.mxu0 0
        %8527 = vmatpush1.bf16.msra.mxu0 %v8480
        %8528 = vmatprep.subr.bf16.mxu0 0
        %8529 = vmatpush2.bf16.msra.mxu0 0
        %8530 = vmatprep.subr.bf16.mxu0 0
        %8531 = vmatpush2.bf16.msra.mxu0 0
        %8532 = vmatprep.subr.bf16.mxu0 0
        %8533 = vmatpush2.bf16.msra.mxu0 0
        %8534 = vmatprep.subr.bf16.mxu0 0
        %8535 = vmatpush2.bf16.msra.mxu0 0
        %8536 = vmatprep.subr.bf16.mxu0 0
        %8537 = vmatpush2.bf16.msra.mxu0 0
        %8538 = vmatprep.subr.bf16.mxu0 0
        %8539 = vmatpush2.bf16.msra.mxu0 0
        %8540 = vmatprep.subr.bf16.mxu0 0
        %8541 = vmatpush2.bf16.msra.mxu0 0
        %8542 = vmatprep.subr.bf16.mxu0 0
        %8543 = vmatpush2.bf16.msra.mxu0 0
        %8544 = vmatprep.mubr.bf16.mxu0 0
        %8545 = vmatmul.mubr.bf16.gmra.mxu0 %v8489
        %v8546 = vpop.f32.mrf.mxu0
        %v8547 = vadd.f32 0.0, %v8546
        %v8548 = vpop.f32.mrf.mxu0
        %v8549 = vpop.f32.mrf.mxu0
        %v8550 = vadd.f32 0.0, %v8549
        %v8551 = vpop.f32.mrf.mxu0
        %8552 = vmatprep.mubr.bf16.mxu0 0
        %8553 = vmatmul.mubr.bf16.gmra.mxu0 %v8492
        %v8554 = vpop.f32.mrf.mxu0
        %v8555 = vadd.f32 0.0, %v8554
        %v8556 = vpop.f32.mrf.mxu0
        %v8557 = vpop.f32.mrf.mxu0
        %v8558 = vadd.f32 0.0, %v8557
        %v8559 = vpop.f32.mrf.mxu0
        %8560 = vmatprep.mubr.bf16.mxu0 0
        %8561 = vmatmul.mubr.bf16.gmra.mxu0 %v8495
        %v8562 = vpop.f32.mrf.mxu0
        %v8563 = vadd.f32 0.0, %v8562
        %v8564 = vpop.f32.mrf.mxu0
        %v8565 = vpop.f32.mrf.mxu0
        %v8566 = vadd.f32 0.0, %v8565
        %v8567 = vpop.f32.mrf.mxu0
        %8568 = vmatprep.mubr.bf16.mxu0 0
        %8569 = vmatmul.mubr.bf16.gmra.mxu0 %v8498
        %v8570 = vpop.f32.mrf.mxu0
        %v8571 = vadd.f32 0.0, %v8570
        %v8572 = vpop.f32.mrf.mxu0
        %v8573 = vpop.f32.mrf.mxu0
        %v8574 = vadd.f32 0.0, %v8573
        %v8575 = vpop.f32.mrf.mxu0
        %8576 = vmatprep.mubr.bf16.mxu0 0
        %8577 = vmatmul.mubr.bf16.gmra.mxu0 %v8501
        %v8578 = vpop.f32.mrf.mxu0
        %v8579 = vadd.f32 0.0, %v8578
        %v8580 = vpop.f32.mrf.mxu0
        %v8581 = vpop.f32.mrf.mxu0
        %v8582 = vadd.f32 0.0, %v8581
        %v8583 = vpop.f32.mrf.mxu0
        %8584 = vmatprep.mubr.bf16.mxu0 0
        %8585 = vmatmul.mubr.bf16.gmra.mxu0 %v8504
        %v8586 = vpop.f32.mrf.mxu0
        %v8587 = vadd.f32 0.0, %v8586
        %v8588 = vpop.f32.mrf.mxu0
        %v8589 = vpop.f32.mrf.mxu0
        %v8590 = vadd.f32 0.0, %v8589
        %v8591 = vpop.f32.mrf.mxu0
        %8592 = vmatprep.mubr.bf16.mxu0 0
        %8593 = vmatmul.mubr.bf16.gmra.mxu0 %v8507
        %v8594 = vpop.f32.mrf.mxu0
        %v8595 = vadd.f32 0.0, %v8594
        %v8596 = vpop.f32.mrf.mxu0
        %v8597 = vpop.f32.mrf.mxu0
        %v8598 = vadd.f32 0.0, %v8597
        %v8599 = vpop.f32.mrf.mxu0
        %8600 = vmatprep.mubr.bf16.mxu0 0
        %8601 = vmatmul.mubr.bf16.gmra.mxu0 %v8510
        %v8602 = vpop.f32.mrf.mxu0
        %v8603 = vadd.f32 0.0, %v8602
        %v8604 = vpop.f32.mrf.mxu0
        %v8605 = vpop.f32.mrf.mxu0
        %v8606 = vadd.f32 0.0, %v8605
        %v8607 = vpop.f32.mrf.mxu0
        %8608 = vdwg.mxu0
        %v8609 = vadd.f32 %v8415, %v8547
        %v8610 = vadd.f32 %v8416, %v8550
        %v8611 = vadd.f32 %v8417, %v8555
        %v8612 = vadd.f32 %v8418, %v8558
        %v8613 = vadd.f32 %v8419, %v8563
        %v8614 = vadd.f32 %v8420, %v8566
        %v8615 = vadd.f32 %v8421, %v8571
        %v8616 = vadd.f32 %v8422, %v8574
        %v8617 = vadd.f32 %v8423, %v8579
        %v8618 = vadd.f32 %v8424, %v8582
        %v8619 = vadd.f32 %v8425, %v8587
        %v8620 = vadd.f32 %v8426, %v8590
        %v8621 = vadd.f32 %v8427, %v8595
        %v8622 = vadd.f32 %v8428, %v8598
        %v8623 = vadd.f32 %v8429, %v8603
        %v8624 = vadd.f32 %v8430, %v8606
        %8625 = vst [vmem:[#allocation2] sm:$0xff] %v8609
        %8626 = vst [vmem:[#allocation2 + $0x8] sm:$0xff] %v8610
        %8627 = vst [vmem:[#allocation2 + $0x10] sm:$0xff] %v8611
        %8628 = vst [vmem:[#allocation2 + $0x18] sm:$0xff] %v8612
        %8629 = vst [vmem:[#allocation2 + $0x20] sm:$0xff] %v8613
        %8630 = vst [vmem:[#allocation2 + $0x28] sm:$0xff] %v8614
        %8631 = vst [vmem:[#allocation2 + $0x30] sm:$0xff] %v8615
        %8632 = vst [vmem:[#allocation2 + $0x38] sm:$0xff] %v8616
        %8633 = vst [vmem:[#allocation2 + $0x40] sm:$0xff] %v8617
        %8634 = vst [vmem:[#allocation2 + $0x48] sm:$0xff] %v8618
        %8635 = vst [vmem:[#allocation2 + $0x50] sm:$0xff] %v8619
        %8636 = vst [vmem:[#allocation2 + $0x58] sm:$0xff] %v8620
        %8637 = vst [vmem:[#allocation2 + $0x60] sm:$0xff] %v8621
        %8638 = vst [vmem:[#allocation2 + $0x68] sm:$0xff] %v8622
        %8639 = vst [vmem:[#allocation2 + $0x70] sm:$0xff] %v8623
        %8640 = vst [vmem:[#allocation2 + $0x78] sm:$0xff] %v8624
        %v8641 = vld [vmem:[%s7610] sm:$0xe]
        %v8642 = vld [vmem:[%s7610 + $0x4] sm:$0xf]
        %v8643 = vld [vmem:[%s7610 + $0x8] sm:$0x3]
        %v8644 = vld [vmem:[%s7610 + $0xc] sm:$0xe]
        %v8645 = vld [vmem:[%s7610 + $0x10] sm:$0xf]
        %v8646 = vld [vmem:[%s7610 + $0x14] sm:$0x3]
        %v8647 = vld [vmem:[%s7610 + $0x18] sm:$0xe]
        %v8648 = vld [vmem:[%s7610 + $0x1c] sm:$0xf]
        %v8649 = vld [vmem:[%s7610 + $0x20] sm:$0x3]
        %v8650 = vld [vmem:[%s7610 + $0x24] sm:$0xe]
        %v8651 = vld [vmem:[%s7610 + $0x28] sm:$0xf]
        %v8652 = vld [vmem:[%s7610 + $0x2c] sm:$0x3]
        %v8653 = vld [vmem:[%s7610 + $0x30] sm:$0xe]
        %v8654 = vld [vmem:[%s7610 + $0x34] sm:$0xf]
        %v8655 = vld [vmem:[%s7610 + $0x38] sm:$0x3]
        %v8656 = vld [vmem:[%s7610 + $0x3c] sm:$0xe]
        %v8657 = vld [vmem:[%s7610 + $0x40] sm:$0xf]
        %v8658 = vld [vmem:[%s7610 + $0x44] sm:$0x3]
        %v8659 = vld [vmem:[%s7610 + $0x48] sm:$0xe]
        %v8660 = vld [vmem:[%s7610 + $0x4c] sm:$0xf]
        %v8661 = vld [vmem:[%s7610 + $0x50] sm:$0x3]
        %v8662 = vld [vmem:[%s7610 + $0x54] sm:$0xe]
        %v8663 = vld [vmem:[%s7610 + $0x58] sm:$0xf]
        %v8664 = vld [vmem:[%s7610 + $0x5c] sm:$0x3]
        %v8666 = vshrl.u32 %v8641, 16
        %v8668 = vrot.slane %v8666, 5
        %v8669 = vshll.u32 %v8641, 16
        %v8671 = vrot.slane %v8669, 6
        %v8672 = vor.u32 %v8668, %v8671
        %v8673 = vrot.slane %v8672, 4
        %v8675 = vshrl.u32 %v8642, 16
        %v8677 = vrot.slane %v8675, 5
        %v8678 = vshll.u32 %v8642, 16
        %v8680 = vrot.slane %v8678, 6
        %v8681 = vor.u32 %v8677, %v8680
        %v8682 = vsel %vm1309, %v8673, %v8681
        %v8683 = vrot.slane %v8681, 4
        %v8685 = vshrl.u32 %v8643, 16
        %v8687 = vrot.slane %v8685, 5
        %v8688 = vshll.u32 %v8643, 16
        %v8690 = vrot.slane %v8688, 6
        %v8691 = vor.u32 %v8687, %v8690
        %v8692 = vsel %vm1309, %v8683, %v8691
        %v8694 = vshrl.u32 %v8644, 16
        %v8696 = vrot.slane %v8694, 5
        %v8697 = vshll.u32 %v8644, 16
        %v8699 = vrot.slane %v8697, 6
        %v8700 = vor.u32 %v8696, %v8699
        %v8701 = vrot.slane %v8700, 4
        %v8703 = vshrl.u32 %v8645, 16
        %v8705 = vrot.slane %v8703, 5
        %v8706 = vshll.u32 %v8645, 16
        %v8708 = vrot.slane %v8706, 6
        %v8709 = vor.u32 %v8705, %v8708
        %v8710 = vsel %vm1309, %v8701, %v8709
        %v8711 = vrot.slane %v8709, 4
        %v8713 = vshrl.u32 %v8646, 16
        %v8715 = vrot.slane %v8713, 5
        %v8716 = vshll.u32 %v8646, 16
        %v8718 = vrot.slane %v8716, 6
        %v8719 = vor.u32 %v8715, %v8718
        %v8720 = vsel %vm1309, %v8711, %v8719
        %v8722 = vshrl.u32 %v8647, 16
        %v8724 = vrot.slane %v8722, 5
        %v8725 = vshll.u32 %v8647, 16
        %v8727 = vrot.slane %v8725, 6
        %v8728 = vor.u32 %v8724, %v8727
        %v8729 = vrot.slane %v8728, 4
        %v8731 = vshrl.u32 %v8648, 16
        %v8733 = vrot.slane %v8731, 5
        %v8734 = vshll.u32 %v8648, 16
        %v8736 = vrot.slane %v8734, 6
        %v8737 = vor.u32 %v8733, %v8736
        %v8738 = vsel %vm1309, %v8729, %v8737
        %v8739 = vrot.slane %v8737, 4
        %v8741 = vshrl.u32 %v8649, 16
        %v8743 = vrot.slane %v8741, 5
        %v8744 = vshll.u32 %v8649, 16
        %v8746 = vrot.slane %v8744, 6
        %v8747 = vor.u32 %v8743, %v8746
        %v8748 = vsel %vm1309, %v8739, %v8747
        %v8750 = vshrl.u32 %v8650, 16
        %v8752 = vrot.slane %v8750, 5
        %v8753 = vshll.u32 %v8650, 16
        %v8755 = vrot.slane %v8753, 6
        %v8756 = vor.u32 %v8752, %v8755
        %v8757 = vrot.slane %v8756, 4
        %v8759 = vshrl.u32 %v8651, 16
        %v8761 = vrot.slane %v8759, 5
        %v8762 = vshll.u32 %v8651, 16
        %v8764 = vrot.slane %v8762, 6
        %v8765 = vor.u32 %v8761, %v8764
        %v8766 = vsel %vm1309, %v8757, %v8765
        %v8767 = vrot.slane %v8765, 4
        %v8769 = vshrl.u32 %v8652, 16
        %v8771 = vrot.slane %v8769, 5
        %v8772 = vshll.u32 %v8652, 16
        %v8774 = vrot.slane %v8772, 6
        %v8775 = vor.u32 %v8771, %v8774
        %v8776 = vsel %vm1309, %v8767, %v8775
        %v8778 = vshrl.u32 %v8653, 16
        %v8780 = vrot.slane %v8778, 5
        %v8781 = vshll.u32 %v8653, 16
        %v8783 = vrot.slane %v8781, 6
        %v8784 = vor.u32 %v8780, %v8783
        %v8785 = vrot.slane %v8784, 4
        %v8787 = vshrl.u32 %v8654, 16
        %v8789 = vrot.slane %v8787, 5
        %v8790 = vshll.u32 %v8654, 16
        %v8792 = vrot.slane %v8790, 6
        %v8793 = vor.u32 %v8789, %v8792
        %v8794 = vsel %vm1309, %v8785, %v8793
        %v8795 = vrot.slane %v8793, 4
        %v8797 = vshrl.u32 %v8655, 16
        %v8799 = vrot.slane %v8797, 5
        %v8800 = vshll.u32 %v8655, 16
        %v8802 = vrot.slane %v8800, 6
        %v8803 = vor.u32 %v8799, %v8802
        %v8804 = vsel %vm1309, %v8795, %v8803
        %v8806 = vshrl.u32 %v8656, 16
        %v8808 = vrot.slane %v8806, 5
        %v8809 = vshll.u32 %v8656, 16
        %v8811 = vrot.slane %v8809, 6
        %v8812 = vor.u32 %v8808, %v8811
        %v8813 = vrot.slane %v8812, 4
        %v8815 = vshrl.u32 %v8657, 16
        %v8817 = vrot.slane %v8815, 5
        %v8818 = vshll.u32 %v8657, 16
        %v8820 = vrot.slane %v8818, 6
        %v8821 = vor.u32 %v8817, %v8820
        %v8822 = vsel %vm1309, %v8813, %v8821
        %v8823 = vrot.slane %v8821, 4
        %v8825 = vshrl.u32 %v8658, 16
        %v8827 = vrot.slane %v8825, 5
        %v8828 = vshll.u32 %v8658, 16
        %v8830 = vrot.slane %v8828, 6
        %v8831 = vor.u32 %v8827, %v8830
        %v8832 = vsel %vm1309, %v8823, %v8831
        %v8834 = vshrl.u32 %v8659, 16
        %v8836 = vrot.slane %v8834, 5
        %v8837 = vshll.u32 %v8659, 16
        %v8839 = vrot.slane %v8837, 6
        %v8840 = vor.u32 %v8836, %v8839
        %v8841 = vrot.slane %v8840, 4
        %v8843 = vshrl.u32 %v8660, 16
        %v8845 = vrot.slane %v8843, 5
        %v8846 = vshll.u32 %v8660, 16
        %v8848 = vrot.slane %v8846, 6
        %v8849 = vor.u32 %v8845, %v8848
        %v8850 = vsel %vm1309, %v8841, %v8849
        %v8851 = vrot.slane %v8849, 4
        %v8853 = vshrl.u32 %v8661, 16
        %v8855 = vrot.slane %v8853, 5
        %v8856 = vshll.u32 %v8661, 16
        %v8858 = vrot.slane %v8856, 6
        %v8859 = vor.u32 %v8855, %v8858
        %v8860 = vsel %vm1309, %v8851, %v8859
        %v8862 = vshrl.u32 %v8662, 16
        %v8864 = vrot.slane %v8862, 5
        %v8865 = vshll.u32 %v8662, 16
        %v8867 = vrot.slane %v8865, 6
        %v8868 = vor.u32 %v8864, %v8867
        %v8869 = vrot.slane %v8868, 4
        %v8871 = vshrl.u32 %v8663, 16
        %v8873 = vrot.slane %v8871, 5
        %v8874 = vshll.u32 %v8663, 16
        %v8876 = vrot.slane %v8874, 6
        %v8877 = vor.u32 %v8873, %v8876
        %v8878 = vsel %vm1309, %v8869, %v8877
        %v8879 = vrot.slane %v8877, 4
        %v8881 = vshrl.u32 %v8664, 16
        %v8883 = vrot.slane %v8881, 5
        %v8884 = vshll.u32 %v8664, 16
        %v8886 = vrot.slane %v8884, 6
        %v8887 = vor.u32 %v8883, %v8886
        %v8888 = vsel %vm1309, %v8879, %v8887
        %v8889 = vld [vmem:[#allocation2] sm:$0xff]
        %v8890 = vld [vmem:[#allocation2 + $0x8] sm:$0xff]
        %v8891 = vld [vmem:[#allocation2 + $0x10] sm:$0xff]
        %v8892 = vld [vmem:[#allocation2 + $0x18] sm:$0xff]
        %v8893 = vld [vmem:[#allocation2 + $0x20] sm:$0xff]
        %v8894 = vld [vmem:[#allocation2 + $0x28] sm:$0xff]
        %v8895 = vld [vmem:[#allocation2 + $0x30] sm:$0xff]
        %v8896 = vld [vmem:[#allocation2 + $0x38] sm:$0xff]
        %v8897 = vld [vmem:[#allocation2 + $0x40] sm:$0xff]
        %v8898 = vld [vmem:[#allocation2 + $0x48] sm:$0xff]
        %v8899 = vld [vmem:[#allocation2 + $0x50] sm:$0xff]
        %v8900 = vld [vmem:[#allocation2 + $0x58] sm:$0xff]
        %v8901 = vld [vmem:[#allocation2 + $0x60] sm:$0xff]
        %v8902 = vld [vmem:[#allocation2 + $0x68] sm:$0xff]
        %v8903 = vld [vmem:[#allocation2 + $0x70] sm:$0xff]
        %v8904 = vld [vmem:[#allocation2 + $0x78] sm:$0xff]
        %s8905 = scalar_lea.vmem %s1, 736
        %v8906 = vld [vmem:[%s8905] sm:$0xf]
        %v8907 = vld [vmem:[%s8905 + $0x4] sm:$0xf]
        %v8908 = vld [vmem:[%s8905 + $0x8] sm:$0xf]
        %v8909 = vld [vmem:[%s8905 + $0xc] sm:$0xf]
        %v8910 = vld [vmem:[%s8905 + $0x10] sm:$0xf]
        %v8911 = vld [vmem:[%s8905 + $0x14] sm:$0xf]
        %v8912 = vld [vmem:[%s8905 + $0x18] sm:$0xf]
        %v8913 = vld [vmem:[%s8905 + $0x1c] sm:$0xf]
        %v8914 = vunpack.c.l.b16 %v8682
        %v8915 = vunpack.c.l.b16 %v8692
        %v8916 = vunpack.c.l.b16 %v8710
        %v8917 = vunpack.c.l.b16 %v8720
        %v8918 = vunpack.c.l.b16 %v8738
        %v8919 = vunpack.c.l.b16 %v8748
        %v8920 = vunpack.c.l.b16 %v8766
        %v8921 = vunpack.c.l.b16 %v8776
        %v8922 = vunpack.c.l.b16 %v8794
        %v8923 = vunpack.c.l.b16 %v8804
        %v8924 = vunpack.c.l.b16 %v8822
        %v8925 = vunpack.c.l.b16 %v8832
        %v8926 = vunpack.c.l.b16 %v8850
        %v8927 = vunpack.c.l.b16 %v8860
        %v8928 = vunpack.c.l.b16 %v8878
        %v8929 = vunpack.c.l.b16 %v8888
        %v8930 = vpack.c.b16 %v8915, %v8914
        %v8931 = vpack.c.b16 %v8917, %v8916
        %v8932 = vpack.c.b16 %v8919, %v8918
        %v8933 = vpack.c.b16 %v8921, %v8920
        %v8934 = vpack.c.b16 %v8923, %v8922
        %v8935 = vpack.c.b16 %v8925, %v8924
        %v8936 = vpack.c.b16 %v8927, %v8926
        %v8937 = vpack.c.b16 %v8929, %v8928
        %v8946 = vunpack.c.l.b16 %v8906
        %v8947 = vunpack.c.l.b16 %v8907
        %v8948 = vunpack.c.l.b16 %v8908
        %v8949 = vunpack.c.l.b16 %v8909
        %v8950 = vunpack.c.l.b16 %v8910
        %v8951 = vunpack.c.l.b16 %v8911
        %v8952 = vunpack.c.l.b16 %v8912
        %v8953 = vunpack.c.l.b16 %v8913
        %v8954 = vpack.c.b16 %v8947, %v8946
        %v8955 = vpack.c.b16 %v8949, %v8948
        %v8956 = vpack.c.b16 %v8951, %v8950
        %v8957 = vpack.c.b16 %v8953, %v8952
        %v8963 = vsel %vm351, %v8930, 0
        %v8966 = vsel %vm351, %v8931, 0
        %v8969 = vsel %vm351, %v8932, 0
        %v8972 = vsel %vm351, %v8933, 0
        %v8975 = vsel %vm351, %v8934, 0
        %v8978 = vsel %vm351, %v8935, 0
        %v8981 = vsel %vm351, %v8936, 0
        %v8984 = vsel %vm351, %v8937, 0
        %8986 = vmatprep.subr.bf16.mxu0 0
        %8987 = vmatpush1.bf16.msra.mxu0 0
        %8988 = vmatprep.subr.bf16.mxu0 0
        %8989 = vmatpush1.bf16.msra.mxu0 0
        %8990 = vmatprep.subr.bf16.mxu0 0
        %8991 = vmatpush1.bf16.msra.mxu0 0
        %8992 = vmatprep.subr.bf16.mxu0 0
        %8993 = vmatpush1.bf16.msra.mxu0 0
        %8994 = vmatprep.subr.bf16.mxu0 0
        %8995 = vmatpush1.bf16.msra.mxu0 %v8957
        %8996 = vmatprep.subr.bf16.mxu0 0
        %8997 = vmatpush1.bf16.msra.mxu0 %v8956
        %8998 = vmatprep.subr.bf16.mxu0 0
        %8999 = vmatpush1.bf16.msra.mxu0 %v8955
        %9000 = vmatprep.subr.bf16.mxu0 0
        %9001 = vmatpush1.bf16.msra.mxu0 %v8954
        %9002 = vmatprep.subr.bf16.mxu0 0
        %9003 = vmatpush2.bf16.msra.mxu0 0
        %9004 = vmatprep.subr.bf16.mxu0 0
        %9005 = vmatpush2.bf16.msra.mxu0 0
        %9006 = vmatprep.subr.bf16.mxu0 0
        %9007 = vmatpush2.bf16.msra.mxu0 0
        %9008 = vmatprep.subr.bf16.mxu0 0
        %9009 = vmatpush2.bf16.msra.mxu0 0
        %9010 = vmatprep.subr.bf16.mxu0 0
        %9011 = vmatpush2.bf16.msra.mxu0 0
        %9012 = vmatprep.subr.bf16.mxu0 0
        %9013 = vmatpush2.bf16.msra.mxu0 0
        %9014 = vmatprep.subr.bf16.mxu0 0
        %9015 = vmatpush2.bf16.msra.mxu0 0
        %9016 = vmatprep.subr.bf16.mxu0 0
        %9017 = vmatpush2.bf16.msra.mxu0 0
        %9018 = vmatprep.mubr.bf16.mxu0 0
        %9019 = vmatmul.mubr.bf16.gmra.mxu0 %v8963
        %v9020 = vpop.f32.mrf.mxu0
        %v9021 = vadd.f32 0.0, %v9020
        %v9022 = vpop.f32.mrf.mxu0
        %v9023 = vpop.f32.mrf.mxu0
        %v9024 = vadd.f32 0.0, %v9023
        %v9025 = vpop.f32.mrf.mxu0
        %9026 = vmatprep.mubr.bf16.mxu0 0
        %9027 = vmatmul.mubr.bf16.gmra.mxu0 %v8966
        %v9028 = vpop.f32.mrf.mxu0
        %v9029 = vadd.f32 0.0, %v9028
        %v9030 = vpop.f32.mrf.mxu0
        %v9031 = vpop.f32.mrf.mxu0
        %v9032 = vadd.f32 0.0, %v9031
        %v9033 = vpop.f32.mrf.mxu0
        %9034 = vmatprep.mubr.bf16.mxu0 0
        %9035 = vmatmul.mubr.bf16.gmra.mxu0 %v8969
        %v9036 = vpop.f32.mrf.mxu0
        %v9037 = vadd.f32 0.0, %v9036
        %v9038 = vpop.f32.mrf.mxu0
        %v9039 = vpop.f32.mrf.mxu0
        %v9040 = vadd.f32 0.0, %v9039
        %v9041 = vpop.f32.mrf.mxu0
        %9042 = vmatprep.mubr.bf16.mxu0 0
        %9043 = vmatmul.mubr.bf16.gmra.mxu0 %v8972
        %v9044 = vpop.f32.mrf.mxu0
        %v9045 = vadd.f32 0.0, %v9044
        %v9046 = vpop.f32.mrf.mxu0
        %v9047 = vpop.f32.mrf.mxu0
        %v9048 = vadd.f32 0.0, %v9047
        %v9049 = vpop.f32.mrf.mxu0
        %9050 = vmatprep.mubr.bf16.mxu0 0
        %9051 = vmatmul.mubr.bf16.gmra.mxu0 %v8975
        %v9052 = vpop.f32.mrf.mxu0
        %v9053 = vadd.f32 0.0, %v9052
        %v9054 = vpop.f32.mrf.mxu0
        %v9055 = vpop.f32.mrf.mxu0
        %v9056 = vadd.f32 0.0, %v9055
        %v9057 = vpop.f32.mrf.mxu0
        %9058 = vmatprep.mubr.bf16.mxu0 0
        %9059 = vmatmul.mubr.bf16.gmra.mxu0 %v8978
        %v9060 = vpop.f32.mrf.mxu0
        %v9061 = vadd.f32 0.0, %v9060
        %v9062 = vpop.f32.mrf.mxu0
        %v9063 = vpop.f32.mrf.mxu0
        %v9064 = vadd.f32 0.0, %v9063
        %v9065 = vpop.f32.mrf.mxu0
        %9066 = vmatprep.mubr.bf16.mxu0 0
        %9067 = vmatmul.mubr.bf16.gmra.mxu0 %v8981
        %v9068 = vpop.f32.mrf.mxu0
        %v9069 = vadd.f32 0.0, %v9068
        %v9070 = vpop.f32.mrf.mxu0
        %v9071 = vpop.f32.mrf.mxu0
        %v9072 = vadd.f32 0.0, %v9071
        %v9073 = vpop.f32.mrf.mxu0
        %9074 = vmatprep.mubr.bf16.mxu0 0
        %9075 = vmatmul.mubr.bf16.gmra.mxu0 %v8984
        %v9076 = vpop.f32.mrf.mxu0
        %v9077 = vadd.f32 0.0, %v9076
        %v9078 = vpop.f32.mrf.mxu0
        %v9079 = vpop.f32.mrf.mxu0
        %v9080 = vadd.f32 0.0, %v9079
        %v9081 = vpop.f32.mrf.mxu0
        %9082 = vdwg.mxu0
        %v9083 = vadd.f32 %v8889, %v9021
        %v9084 = vadd.f32 %v8890, %v9024
        %v9085 = vadd.f32 %v8891, %v9029
        %v9086 = vadd.f32 %v8892, %v9032
        %v9087 = vadd.f32 %v8893, %v9037
        %v9088 = vadd.f32 %v8894, %v9040
        %v9089 = vadd.f32 %v8895, %v9045
        %v9090 = vadd.f32 %v8896, %v9048
        %v9091 = vadd.f32 %v8897, %v9053
        %v9092 = vadd.f32 %v8898, %v9056
        %v9093 = vadd.f32 %v8899, %v9061
        %v9094 = vadd.f32 %v8900, %v9064
        %v9095 = vadd.f32 %v8901, %v9069
        %v9096 = vadd.f32 %v8902, %v9072
        %v9097 = vadd.f32 %v8903, %v9077
        %v9098 = vadd.f32 %v8904, %v9080
        %9099 = vst [vmem:[#allocation2] sm:$0xff] %v9083
        %9100 = vst [vmem:[#allocation2 + $0x8] sm:$0xff] %v9084
        %9101 = vst [vmem:[#allocation2 + $0x10] sm:$0xff] %v9085
        %9102 = vst [vmem:[#allocation2 + $0x18] sm:$0xff] %v9086
        %9103 = vst [vmem:[#allocation2 + $0x20] sm:$0xff] %v9087
        %9104 = vst [vmem:[#allocation2 + $0x28] sm:$0xff] %v9088
        %9105 = vst [vmem:[#allocation2 + $0x30] sm:$0xff] %v9089
        %9106 = vst [vmem:[#allocation2 + $0x38] sm:$0xff] %v9090
        %9107 = vst [vmem:[#allocation2 + $0x40] sm:$0xff] %v9091
        %9108 = vst [vmem:[#allocation2 + $0x48] sm:$0xff] %v9092
        %9109 = vst [vmem:[#allocation2 + $0x50] sm:$0xff] %v9093
        %9110 = vst [vmem:[#allocation2 + $0x58] sm:$0xff] %v9094
        %9111 = vst [vmem:[#allocation2 + $0x60] sm:$0xff] %v9095
        %9112 = vst [vmem:[#allocation2 + $0x68] sm:$0xff] %v9096
        %9113 = vst [vmem:[#allocation2 + $0x70] sm:$0xff] %v9097
        %9114 = vst [vmem:[#allocation2 + $0x78] sm:$0xff] %v9098
        %v9115 = vld [vmem:[%s7610] sm:$0xc]
        %v9116 = vld [vmem:[%s7610 + $0x4] sm:$0xf]
        %v9117 = vld [vmem:[%s7610 + $0x8] sm:$0x3]
        %v9118 = vld [vmem:[%s7610 + $0xc] sm:$0xc]
        %v9119 = vld [vmem:[%s7610 + $0x10] sm:$0xf]
        %v9120 = vld [vmem:[%s7610 + $0x14] sm:$0x3]
        %v9121 = vld [vmem:[%s7610 + $0x18] sm:$0xc]
        %v9122 = vld [vmem:[%s7610 + $0x1c] sm:$0xf]
        %v9123 = vld [vmem:[%s7610 + $0x20] sm:$0x3]
        %v9124 = vld [vmem:[%s7610 + $0x24] sm:$0xc]
        %v9125 = vld [vmem:[%s7610 + $0x28] sm:$0xf]
        %v9126 = vld [vmem:[%s7610 + $0x2c] sm:$0x3]
        %v9127 = vld [vmem:[%s7610 + $0x30] sm:$0xc]
        %v9128 = vld [vmem:[%s7610 + $0x34] sm:$0xf]
        %v9129 = vld [vmem:[%s7610 + $0x38] sm:$0x3]
        %v9130 = vld [vmem:[%s7610 + $0x3c] sm:$0xc]
        %v9131 = vld [vmem:[%s7610 + $0x40] sm:$0xf]
        %v9132 = vld [vmem:[%s7610 + $0x44] sm:$0x3]
        %v9133 = vld [vmem:[%s7610 + $0x48] sm:$0xc]
        %v9134 = vld [vmem:[%s7610 + $0x4c] sm:$0xf]
        %v9135 = vld [vmem:[%s7610 + $0x50] sm:$0x3]
        %v9136 = vld [vmem:[%s7610 + $0x54] sm:$0xc]
        %v9137 = vld [vmem:[%s7610 + $0x58] sm:$0xf]
        %v9138 = vld [vmem:[%s7610 + $0x5c] sm:$0x3]
        %v9163 = vrot.slane %v9115, 6
        %v9164 = vrot.slane %v9163, 4
        %v9165 = vrot.slane %v9116, 6
        %v9166 = vsel %vm1810, %v9164, %v9165
        %v9167 = vrot.slane %v9165, 4
        %v9168 = vrot.slane %v9117, 6
        %v9169 = vsel %vm1810, %v9167, %v9168
        %v9170 = vrot.slane %v9118, 6
        %v9171 = vrot.slane %v9170, 4
        %v9172 = vrot.slane %v9119, 6
        %v9173 = vsel %vm1810, %v9171, %v9172
        %v9174 = vrot.slane %v9172, 4
        %v9175 = vrot.slane %v9120, 6
        %v9176 = vsel %vm1810, %v9174, %v9175
        %v9177 = vrot.slane %v9121, 6
        %v9178 = vrot.slane %v9177, 4
        %v9179 = vrot.slane %v9122, 6
        %v9180 = vsel %vm1810, %v9178, %v9179
        %v9181 = vrot.slane %v9179, 4
        %v9182 = vrot.slane %v9123, 6
        %v9183 = vsel %vm1810, %v9181, %v9182
        %v9184 = vrot.slane %v9124, 6
        %v9185 = vrot.slane %v9184, 4
        %v9186 = vrot.slane %v9125, 6
        %v9187 = vsel %vm1810, %v9185, %v9186
        %v9188 = vrot.slane %v9186, 4
        %v9189 = vrot.slane %v9126, 6
        %v9190 = vsel %vm1810, %v9188, %v9189
        %v9191 = vrot.slane %v9127, 6
        %v9192 = vrot.slane %v9191, 4
        %v9193 = vrot.slane %v9128, 6
        %v9194 = vsel %vm1810, %v9192, %v9193
        %v9195 = vrot.slane %v9193, 4
        %v9196 = vrot.slane %v9129, 6
        %v9197 = vsel %vm1810, %v9195, %v9196
        %v9198 = vrot.slane %v9130, 6
        %v9199 = vrot.slane %v9198, 4
        %v9200 = vrot.slane %v9131, 6
        %v9201 = vsel %vm1810, %v9199, %v9200
        %v9202 = vrot.slane %v9200, 4
        %v9203 = vrot.slane %v9132, 6
        %v9204 = vsel %vm1810, %v9202, %v9203
        %v9205 = vrot.slane %v9133, 6
        %v9206 = vrot.slane %v9205, 4
        %v9207 = vrot.slane %v9134, 6
        %v9208 = vsel %vm1810, %v9206, %v9207
        %v9209 = vrot.slane %v9207, 4
        %v9210 = vrot.slane %v9135, 6
        %v9211 = vsel %vm1810, %v9209, %v9210
        %v9212 = vrot.slane %v9136, 6
        %v9213 = vrot.slane %v9212, 4
        %v9214 = vrot.slane %v9137, 6
        %v9215 = vsel %vm1810, %v9213, %v9214
        %v9216 = vrot.slane %v9214, 4
        %v9217 = vrot.slane %v9138, 6
        %v9218 = vsel %vm1810, %v9216, %v9217
        %v9219 = vld [vmem:[#allocation2] sm:$0xff]
        %v9220 = vld [vmem:[#allocation2 + $0x8] sm:$0xff]
        %v9221 = vld [vmem:[#allocation2 + $0x10] sm:$0xff]
        %v9222 = vld [vmem:[#allocation2 + $0x18] sm:$0xff]
        %v9223 = vld [vmem:[#allocation2 + $0x20] sm:$0xff]
        %v9224 = vld [vmem:[#allocation2 + $0x28] sm:$0xff]
        %v9225 = vld [vmem:[#allocation2 + $0x30] sm:$0xff]
        %v9226 = vld [vmem:[#allocation2 + $0x38] sm:$0xff]
        %v9227 = vld [vmem:[#allocation2 + $0x40] sm:$0xff]
        %v9228 = vld [vmem:[#allocation2 + $0x48] sm:$0xff]
        %v9229 = vld [vmem:[#allocation2 + $0x50] sm:$0xff]
        %v9230 = vld [vmem:[#allocation2 + $0x58] sm:$0xff]
        %v9231 = vld [vmem:[#allocation2 + $0x60] sm:$0xff]
        %v9232 = vld [vmem:[#allocation2 + $0x68] sm:$0xff]
        %v9233 = vld [vmem:[#allocation2 + $0x70] sm:$0xff]
        %v9234 = vld [vmem:[#allocation2 + $0x78] sm:$0xff]
        %s9235 = scalar_lea.vmem %s1, 768
        %v9236 = vld [vmem:[%s9235] sm:$0xf]
        %v9237 = vld [vmem:[%s9235 + $0x4] sm:$0xf]
        %v9238 = vld [vmem:[%s9235 + $0x8] sm:$0xf]
        %v9239 = vld [vmem:[%s9235 + $0xc] sm:$0xf]
        %v9240 = vld [vmem:[%s9235 + $0x10] sm:$0xf]
        %v9241 = vld [vmem:[%s9235 + $0x14] sm:$0xf]
        %v9242 = vld [vmem:[%s9235 + $0x18] sm:$0xf]
        %v9243 = vld [vmem:[%s9235 + $0x1c] sm:$0xf]
        %v9244 = vunpack.c.l.b16 %v9166
        %v9245 = vunpack.c.l.b16 %v9169
        %v9246 = vunpack.c.l.b16 %v9173
        %v9247 = vunpack.c.l.b16 %v9176
        %v9248 = vunpack.c.l.b16 %v9180
        %v9249 = vunpack.c.l.b16 %v9183
        %v9250 = vunpack.c.l.b16 %v9187
        %v9251 = vunpack.c.l.b16 %v9190
        %v9252 = vunpack.c.l.b16 %v9194
        %v9253 = vunpack.c.l.b16 %v9197
        %v9254 = vunpack.c.l.b16 %v9201
        %v9255 = vunpack.c.l.b16 %v9204
        %v9256 = vunpack.c.l.b16 %v9208
        %v9257 = vunpack.c.l.b16 %v9211
        %v9258 = vunpack.c.l.b16 %v9215
        %v9259 = vunpack.c.l.b16 %v9218
        %v9260 = vpack.c.b16 %v9245, %v9244
        %v9261 = vpack.c.b16 %v9247, %v9246
        %v9262 = vpack.c.b16 %v9249, %v9248
        %v9263 = vpack.c.b16 %v9251, %v9250
        %v9264 = vpack.c.b16 %v9253, %v9252
        %v9265 = vpack.c.b16 %v9255, %v9254
        %v9266 = vpack.c.b16 %v9257, %v9256
        %v9267 = vpack.c.b16 %v9259, %v9258
        %v9276 = vunpack.c.l.b16 %v9236
        %v9277 = vunpack.c.l.b16 %v9237
        %v9278 = vunpack.c.l.b16 %v9238
        %v9279 = vunpack.c.l.b16 %v9239
        %v9280 = vunpack.c.l.b16 %v9240
        %v9281 = vunpack.c.l.b16 %v9241
        %v9282 = vunpack.c.l.b16 %v9242
        %v9283 = vunpack.c.l.b16 %v9243
        %v9284 = vpack.c.b16 %v9277, %v9276
        %v9285 = vpack.c.b16 %v9279, %v9278
        %v9286 = vpack.c.b16 %v9281, %v9280
        %v9287 = vpack.c.b16 %v9283, %v9282
        %v9293 = vsel %vm351, %v9260, 0
        %v9296 = vsel %vm351, %v9261, 0
        %v9299 = vsel %vm351, %v9262, 0
        %v9302 = vsel %vm351, %v9263, 0
        %v9305 = vsel %vm351, %v9264, 0
        %v9308 = vsel %vm351, %v9265, 0
        %v9311 = vsel %vm351, %v9266, 0
        %v9314 = vsel %vm351, %v9267, 0
        %9316 = vmatprep.subr.bf16.mxu0 0
        %9317 = vmatpush1.bf16.msra.mxu0 0
        %9318 = vmatprep.subr.bf16.mxu0 0
        %9319 = vmatpush1.bf16.msra.mxu0 0
        %9320 = vmatprep.subr.bf16.mxu0 0
        %9321 = vmatpush1.bf16.msra.mxu0 0
        %9322 = vmatprep.subr.bf16.mxu0 0
        %9323 = vmatpush1.bf16.msra.mxu0 0
        %9324 = vmatprep.subr.bf16.mxu0 0
        %9325 = vmatpush1.bf16.msra.mxu0 %v9287
        %9326 = vmatprep.subr.bf16.mxu0 0
        %9327 = vmatpush1.bf16.msra.mxu0 %v9286
        %9328 = vmatprep.subr.bf16.mxu0 0
        %9329 = vmatpush1.bf16.msra.mxu0 %v9285
        %9330 = vmatprep.subr.bf16.mxu0 0
        %9331 = vmatpush1.bf16.msra.mxu0 %v9284
        %9332 = vmatprep.subr.bf16.mxu0 0
        %9333 = vmatpush2.bf16.msra.mxu0 0
        %9334 = vmatprep.subr.bf16.mxu0 0
        %9335 = vmatpush2.bf16.msra.mxu0 0
        %9336 = vmatprep.subr.bf16.mxu0 0
        %9337 = vmatpush2.bf16.msra.mxu0 0
        %9338 = vmatprep.subr.bf16.mxu0 0
        %9339 = vmatpush2.bf16.msra.mxu0 0
        %9340 = vmatprep.subr.bf16.mxu0 0
        %9341 = vmatpush2.bf16.msra.mxu0 0
        %9342 = vmatprep.subr.bf16.mxu0 0
        %9343 = vmatpush2.bf16.msra.mxu0 0
        %9344 = vmatprep.subr.bf16.mxu0 0
        %9345 = vmatpush2.bf16.msra.mxu0 0
        %9346 = vmatprep.subr.bf16.mxu0 0
        %9347 = vmatpush2.bf16.msra.mxu0 0
        %9348 = vmatprep.mubr.bf16.mxu0 0
        %9349 = vmatmul.mubr.bf16.gmra.mxu0 %v9293
        %v9350 = vpop.f32.mrf.mxu0
        %v9351 = vadd.f32 0.0, %v9350
        %v9352 = vpop.f32.mrf.mxu0
        %v9353 = vpop.f32.mrf.mxu0
        %v9354 = vadd.f32 0.0, %v9353
        %v9355 = vpop.f32.mrf.mxu0
        %9356 = vmatprep.mubr.bf16.mxu0 0
        %9357 = vmatmul.mubr.bf16.gmra.mxu0 %v9296
        %v9358 = vpop.f32.mrf.mxu0
        %v9359 = vadd.f32 0.0, %v9358
        %v9360 = vpop.f32.mrf.mxu0
        %v9361 = vpop.f32.mrf.mxu0
        %v9362 = vadd.f32 0.0, %v9361
        %v9363 = vpop.f32.mrf.mxu0
        %9364 = vmatprep.mubr.bf16.mxu0 0
        %9365 = vmatmul.mubr.bf16.gmra.mxu0 %v9299
        %v9366 = vpop.f32.mrf.mxu0
        %v9367 = vadd.f32 0.0, %v9366
        %v9368 = vpop.f32.mrf.mxu0
        %v9369 = vpop.f32.mrf.mxu0
        %v9370 = vadd.f32 0.0, %v9369
        %v9371 = vpop.f32.mrf.mxu0
        %9372 = vmatprep.mubr.bf16.mxu0 0
        %9373 = vmatmul.mubr.bf16.gmra.mxu0 %v9302
        %v9374 = vpop.f32.mrf.mxu0
        %v9375 = vadd.f32 0.0, %v9374
        %v9376 = vpop.f32.mrf.mxu0
        %v9377 = vpop.f32.mrf.mxu0
        %v9378 = vadd.f32 0.0, %v9377
        %v9379 = vpop.f32.mrf.mxu0
        %9380 = vmatprep.mubr.bf16.mxu0 0
        %9381 = vmatmul.mubr.bf16.gmra.mxu0 %v9305
        %v9382 = vpop.f32.mrf.mxu0
        %v9383 = vadd.f32 0.0, %v9382
        %v9384 = vpop.f32.mrf.mxu0
        %v9385 = vpop.f32.mrf.mxu0
        %v9386 = vadd.f32 0.0, %v9385
        %v9387 = vpop.f32.mrf.mxu0
        %9388 = vmatprep.mubr.bf16.mxu0 0
        %9389 = vmatmul.mubr.bf16.gmra.mxu0 %v9308
        %v9390 = vpop.f32.mrf.mxu0
        %v9391 = vadd.f32 0.0, %v9390
        %v9392 = vpop.f32.mrf.mxu0
        %v9393 = vpop.f32.mrf.mxu0
        %v9394 = vadd.f32 0.0, %v9393
        %v9395 = vpop.f32.mrf.mxu0
        %9396 = vmatprep.mubr.bf16.mxu0 0
        %9397 = vmatmul.mubr.bf16.gmra.mxu0 %v9311
        %v9398 = vpop.f32.mrf.mxu0
        %v9399 = vadd.f32 0.0, %v9398
        %v9400 = vpop.f32.mrf.mxu0
        %v9401 = vpop.f32.mrf.mxu0
        %v9402 = vadd.f32 0.0, %v9401
        %v9403 = vpop.f32.mrf.mxu0
        %9404 = vmatprep.mubr.bf16.mxu0 0
        %9405 = vmatmul.mubr.bf16.gmra.mxu0 %v9314
        %v9406 = vpop.f32.mrf.mxu0
        %v9407 = vadd.f32 0.0, %v9406
        %v9408 = vpop.f32.mrf.mxu0
        %v9409 = vpop.f32.mrf.mxu0
        %v9410 = vadd.f32 0.0, %v9409
        %v9411 = vpop.f32.mrf.mxu0
        %9412 = vdwg.mxu0
        %v9413 = vadd.f32 %v9219, %v9351
        %v9414 = vadd.f32 %v9220, %v9354
        %v9415 = vadd.f32 %v9221, %v9359
        %v9416 = vadd.f32 %v9222, %v9362
        %v9417 = vadd.f32 %v9223, %v9367
        %v9418 = vadd.f32 %v9224, %v9370
        %v9419 = vadd.f32 %v9225, %v9375
        %v9420 = vadd.f32 %v9226, %v9378
        %v9421 = vadd.f32 %v9227, %v9383
        %v9422 = vadd.f32 %v9228, %v9386
        %v9423 = vadd.f32 %v9229, %v9391
        %v9424 = vadd.f32 %v9230, %v9394
        %v9425 = vadd.f32 %v9231, %v9399
        %v9426 = vadd.f32 %v9232, %v9402
        %v9427 = vadd.f32 %v9233, %v9407
        %v9428 = vadd.f32 %v9234, %v9410
        %9429 = vst [vmem:[#allocation2] sm:$0xff] %v9413
        %9430 = vst [vmem:[#allocation2 + $0x8] sm:$0xff] %v9414
        %9431 = vst [vmem:[#allocation2 + $0x10] sm:$0xff] %v9415
        %9432 = vst [vmem:[#allocation2 + $0x18] sm:$0xff] %v9416
        %9433 = vst [vmem:[#allocation2 + $0x20] sm:$0xff] %v9417
        %9434 = vst [vmem:[#allocation2 + $0x28] sm:$0xff] %v9418
        %9435 = vst [vmem:[#allocation2 + $0x30] sm:$0xff] %v9419
        %9436 = vst [vmem:[#allocation2 + $0x38] sm:$0xff] %v9420
        %9437 = vst [vmem:[#allocation2 + $0x40] sm:$0xff] %v9421
        %9438 = vst [vmem:[#allocation2 + $0x48] sm:$0xff] %v9422
        %9439 = vst [vmem:[#allocation2 + $0x50] sm:$0xff] %v9423
        %9440 = vst [vmem:[#allocation2 + $0x58] sm:$0xff] %v9424
        %9441 = vst [vmem:[#allocation2 + $0x60] sm:$0xff] %v9425
        %9442 = vst [vmem:[#allocation2 + $0x68] sm:$0xff] %v9426
        %9443 = vst [vmem:[#allocation2 + $0x70] sm:$0xff] %v9427
        %9444 = vst [vmem:[#allocation2 + $0x78] sm:$0xff] %v9428
        %v9445 = vld [vmem:[#allocation2] sm:$0xff]
        %v9446 = vld [vmem:[#allocation2 + $0x8] sm:$0xff]
        %v9447 = vld [vmem:[#allocation2 + $0x10] sm:$0xff]
        %v9448 = vld [vmem:[#allocation2 + $0x18] sm:$0xff]
        %v9449 = vld [vmem:[#allocation2 + $0x20] sm:$0xff]
        %v9450 = vld [vmem:[#allocation2 + $0x28] sm:$0xff]
        %v9451 = vld [vmem:[#allocation2 + $0x30] sm:$0xff]
        %v9452 = vld [vmem:[#allocation2 + $0x38] sm:$0xff]
        %v9453 = vld [vmem:[#allocation2 + $0x40] sm:$0xff]
        %v9454 = vld [vmem:[#allocation2 + $0x48] sm:$0xff]
        %v9455 = vld [vmem:[#allocation2 + $0x50] sm:$0xff]
        %v9456 = vld [vmem:[#allocation2 + $0x58] sm:$0xff]
        %v9457 = vld [vmem:[#allocation2 + $0x60] sm:$0xff]
        %v9458 = vld [vmem:[#allocation2 + $0x68] sm:$0xff]
        %v9459 = vld [vmem:[#allocation2 + $0x70] sm:$0xff]
        %v9460 = vld [vmem:[#allocation2 + $0x78] sm:$0xff]
        %v9461 = vld [vmem:[%s2] sm:$0x1]
        %v9463 = vlaneseq
        %v9464 = vshrl.u32 %v9463, 7
        %v9465 = vsub.s32 0, %v9464
        %v9466 = vrot.slane %v9461, %v9465
        %v9468 = vadd.f32 %v9445, %v9466
        %v9469 = vadd.f32 %v9446, %v9466
        %v9470 = vadd.f32 %v9447, %v9466
        %v9471 = vadd.f32 %v9448, %v9466
        %v9472 = vadd.f32 %v9449, %v9466
        %v9473 = vadd.f32 %v9450, %v9466
        %v9474 = vadd.f32 %v9451, %v9466
        %v9475 = vadd.f32 %v9452, %v9466
        %v9476 = vadd.f32 %v9453, %v9466
        %v9477 = vadd.f32 %v9454, %v9466
        %v9478 = vadd.f32 %v9455, %v9466
        %v9479 = vadd.f32 %v9456, %v9466
        %v9480 = vadd.f32 %v9457, %v9466
        %v9481 = vadd.f32 %v9458, %v9466
        %v9482 = vadd.f32 %v9459, %v9466
        %v9483 = vadd.f32 %v9460, %v9466
        %v9484 = vpack.c.bf16 %v9469, %v9468
        %v9485 = vpack.c.bf16 %v9471, %v9470
        %v9486 = vpack.c.bf16 %v9473, %v9472
        %v9487 = vpack.c.bf16 %v9475, %v9474
        %v9488 = vpack.c.bf16 %v9477, %v9476
        %v9489 = vpack.c.bf16 %v9479, %v9478
        %v9490 = vpack.c.bf16 %v9481, %v9480
        %v9491 = vpack.c.bf16 %v9483, %v9482
        %v9500 = vunpack.c.l.b16 %v9484
        %v9501 = vunpack.c.h.b16 %v9484
        %v9502 = vunpack.c.l.b16 %v9485
        %v9503 = vunpack.c.h.b16 %v9485
        %v9504 = vunpack.c.l.b16 %v9486
        %v9505 = vunpack.c.h.b16 %v9486
        %v9506 = vunpack.c.l.b16 %v9487
        %v9507 = vunpack.c.h.b16 %v9487
        %v9508 = vunpack.c.l.b16 %v9488
        %v9509 = vunpack.c.h.b16 %v9488
        %v9510 = vunpack.c.l.b16 %v9489
        %v9511 = vunpack.c.h.b16 %v9489
        %v9512 = vunpack.c.l.b16 %v9490
        %v9513 = vunpack.c.h.b16 %v9490
        %v9514 = vunpack.c.l.b16 %v9491
        %v9515 = vunpack.c.h.b16 %v9491
        %v9516 = vpack.c.b16 %v9500, %v9500
        %v9517 = vpack.c.b16 %v9501, %v9501
        %v9518 = vpack.c.b16 %v9502, %v9502
        %v9519 = vpack.c.b16 %v9503, %v9503
        %v9520 = vpack.c.b16 %v9504, %v9504
        %v9521 = vpack.c.b16 %v9505, %v9505
        %v9522 = vpack.c.b16 %v9506, %v9506
        %v9523 = vpack.c.b16 %v9507, %v9507
        %v9524 = vpack.c.b16 %v9508, %v9508
        %v9525 = vpack.c.b16 %v9509, %v9509
        %v9526 = vpack.c.b16 %v9510, %v9510
        %v9527 = vpack.c.b16 %v9511, %v9511
        %v9528 = vpack.c.b16 %v9512, %v9512
        %v9529 = vpack.c.b16 %v9513, %v9513
        %v9530 = vpack.c.b16 %v9514, %v9514
        %v9531 = vpack.c.b16 %v9515, %v9515
        %9548 = vst [vmem:[%s210] sm:$0xf] %v9516
        %9549 = vst [vmem:[%s210 + $0x4] sm:$0xf] %v9517
        %9550 = vst [vmem:[%s210 + $0x8] sm:$0xf] %v9518
        %9551 = vst [vmem:[%s210 + $0xc] sm:$0xf] %v9519
        %9552 = vst [vmem:[%s210 + $0x10] sm:$0xf] %v9520
        %9553 = vst [vmem:[%s210 + $0x14] sm:$0xf] %v9521
        %9554 = vst [vmem:[%s210 + $0x18] sm:$0xf] %v9522
        %9555 = vst [vmem:[%s210 + $0x1c] sm:$0xf] %v9523
        %9556 = vst [vmem:[%s210 + $0x20] sm:$0xf] %v9524
        %9557 = vst [vmem:[%s210 + $0x24] sm:$0xf] %v9525
        %9558 = vst [vmem:[%s210 + $0x28] sm:$0xf] %v9526
        %9559 = vst [vmem:[%s210 + $0x2c] sm:$0xf] %v9527
        %9560 = vst [vmem:[%s210 + $0x30] sm:$0xf] %v9528
        %9561 = vst [vmem:[%s210 + $0x34] sm:$0xf] %v9529
        %9562 = vst [vmem:[%s210 + $0x38] sm:$0xf] %v9530
        %9563 = vst [vmem:[%s210 + $0x3c] sm:$0xf] %v9531
        %p9564 = scmp.eq.s32.totalorder %s27, 0
        // Predicated region
        $region33: #{tpu_custom_call.1} parent=31 // pred_check
          %p9565 = pneg %p9564
        $region34: #{tpu_custom_call.1} parent=31 // pred_check_branch
          %9567 = sbr.rel (%p9565) target = $region36
        $region35: #{tpu_custom_call.1} parent=31 // pred_region
          %9568 = vst [vmem:[%s217] sm:$0xff] 0.0
        $region36: #{tpu_custom_call.1} parent=31 // pred_fallthru
          _
        %v9569 = vadd.f32 %v9468, %v9469
        %v9570 = vadd.f32 %v9569, %v9470
        %v9571 = vadd.f32 %v9570, %v9471
        %v9572 = vadd.f32 %v9571, %v9472
        %v9573 = vadd.f32 %v9572, %v9473
        %v9574 = vadd.f32 %v9573, %v9474
        %v9575 = vadd.f32 %v9574, %v9475
        %v9576 = vadd.f32 %v9575, %v9476
        %v9577 = vadd.f32 %v9576, %v9477
        %v9578 = vadd.f32 %v9577, %v9478
        %v9579 = vadd.f32 %v9578, %v9479
        %v9580 = vadd.f32 %v9579, %v9480
        %v9581 = vadd.f32 %v9580, %v9481
        %v9582 = vadd.f32 %v9581, %v9482
        %v9583 = vadd.f32 %v9582, %v9483
        %v9584 = vrot.slane %v9583, 4
        %v9585 = vadd.f32 %v9583, %v9584
        %v9586 = vrot.slane %v9585, 2
        %v9587 = vadd.f32 %v9585, %v9586
        %v9588 = vrot.slane %v9587, 1
        %v9589 = vadd.f32 %v9587, %v9588
        %v9590 = vld [vmem:[%s217] sm:$0xff]
        %v9591 = vadd.f32 %v9590, %v9589
        %9592 = vst [vmem:[%s217] sm:$0xff] %v9591
        %s9593 = sand.u32 %s114, 1
        %s9594 = scalar_lea.sflag [#allocation4], %s9593
        %s9595 = sand.u32 %s114, 1
        %s9596 = smul.addr %s9595, 64
        %s9597 = scalar_lea.vmem [#allocation3], %s9596
        %s9598 = sand.u32 %s140, 1
        %s9599 = scalar_lea.sflag [#allocation6], %s9598
        %s9600 = sand.u32 %s140, 1
        %s9601 = smul.addr %s9600, 8
        %s9602 = scalar_lea.vmem [#allocation5], %s9601
        // Predicated region
        $region37: #{tpu_custom_call.1} parent=31 // pred_check
          %p9603 = pneg %p124
        $region38: #{tpu_custom_call.1} parent=31 // pred_check_branch
          %9605 = sbr.rel (%p9603) target = $region40
        $region39: #{tpu_custom_call.1} parent=31 // pred_region
          %s9606 = smul.u32 %s26, 2
          %s9607 = sadd.s32 %s9606, %s27
          %s9608 = smul.u32 16, %s9607
          %s9610 = ssub.s32 1024, 1024
          %9611 = vsyncadd %s9594, %s9610
          %s9612 = smul.addr %s9608, 64
          %s9613 = scalar_lea.hbm %s3, %s9612
          %s9614 = sshll.u32 %s9597, 4
          %s9615 = int_to_ptr.vmem [resolvable:$true] %s9614
          %9620 = dma.vmem_to_hbm [thread:$0]  %s9615, 1024, %s9613, %s9594, 64, 64, 4
        $region40: #{tpu_custom_call.1} parent=31 // pred_fallthru
          _
        // Predicated region
        $region41: #{tpu_custom_call.1} parent=31 // pred_check
          %p9621 = pneg %p150
        $region42: #{tpu_custom_call.1} parent=31 // pred_check_branch
          %9623 = sbr.rel (%p9621) target = $region44
        $region43: #{tpu_custom_call.1} parent=31 // pred_region
          %s9625 = ssub.s32 128, 128
          %9626 = vsyncadd %s9599, %s9625
          %s9627 = smul.addr %s26, 128
          %s9628 = scalar_lea.hbm %s4, %s9627
          %s9630 = sshll.u32 %s9602, 4
          %s9631 = int_to_ptr.vmem [resolvable:$true] %s9630
          %9633 = dma.vmem_to_hbm [thread:$0]  %s9631, 128, %s9628, %s9599
        $region44: #{tpu_custom_call.1} parent=31 // pred_fallthru
          _
      $region32: #{tpu_custom_call.1} parent=5 // pred_fallthru
        _
      %p9634 = scmp.le.s32.totalorder 2, %s17
      // Predicated region
      $region45: #{tpu_custom_call.1} parent=5 // pred_check
        %p9635 = pneg %p9634
      $region46: #{tpu_custom_call.1} parent=5 // pred_check_branch
        %9637 = sbr.rel (%p9635) target = $region48
      $region47: #{tpu_custom_call.1} parent=5 // pred_region
        %s9638 = ssub.s32 %s17, 2
        // Predicated region
        $region49: #{tpu_custom_call.1} parent=47 // pred_check
          %p9639 = pneg %p130
        $region50: #{tpu_custom_call.1} parent=47 // pred_check_branch
          %9641 = sbr.rel (%p9639) target = $region52
        $region51: #{tpu_custom_call.1} parent=47 // pred_region
          %s9642 = sand.u32 %s115, 1
          %s9643 = scalar_lea.sflag [#allocation4], %s9642
          %s9644 = sand.u32 %s115, 1
          %s9645 = smul.addr %s9644, 64
          %s9646 = scalar_lea.vmem [#allocation3], %s9645
          %9647 = dma.done %s9643, 1024
        $region52: #{tpu_custom_call.1} parent=47 // pred_fallthru
          _
        // Predicated region
        $region53: #{tpu_custom_call.1} parent=47 // pred_check
          %p9648 = pneg %p156
        $region54: #{tpu_custom_call.1} parent=47 // pred_check_branch
          %9650 = sbr.rel (%p9648) target = $region56
        $region55: #{tpu_custom_call.1} parent=47 // pred_region
          %s9651 = sand.u32 %s141, 1
          %s9652 = scalar_lea.sflag [#allocation6], %s9651
          %s9653 = sand.u32 %s141, 1
          %s9654 = smul.addr %s9653, 8
          %s9655 = scalar_lea.vmem [#allocation5], %s9654
          %9656 = dma.done %s9652, 128
        $region56: #{tpu_custom_call.1} parent=47 // pred_fallthru
          _
      $region48: #{tpu_custom_call.1} parent=5 // pred_fallthru
        _
    $region6: #{tpu_custom_call.1} parent=1 // loop_footer
      %s21 = sadd.s32 1, %s17
    $region7: #{tpu_custom_call.1} parent=1 // loop_footer_branch
      %16 = sbr.rel target = $region3
    $region8: #{tpu_custom_call.1} parent=1 // loop_exit
      _
    %9657 = vsyncpa [#allocation4], 1
    %s9658 = scalar_lea.sflag [#allocation4], 1
    %9659 = vsyncpa %s9658, 1
    %9660 = vsyncpa [#allocation6], 1
    %s9661 = scalar_lea.sflag [#allocation6], 1
    %9662 = vsyncpa %s9661, 1

</llo_original>
